<compile_context>
chip_gen: v6e
topology: v6e:2x2x1
jax: 0.10.0
libtpu: 0.0.40
codegen_flags: <defaults>
</compile_context>

<pallas_src>
import numpy as np
import jax
import jax.numpy as jnp
from jax.experimental import pallas as pl
from jax.experimental.pallas import tpu as pltpu

EPS = 1e-5      # nn.BatchNorm2d / nn.LayerNorm default eps
KH = 5          # 5x5 convs everywhere
CPAD = 8        # BN channel padding (hc=2 -> 8)
G_OH = 8        # fc1: conv3 output rows handled per grouped dot

_VMEM = pl.BlockSpec(memory_space=pltpu.MemorySpace.VMEM)


# ----------------------------- static prep (once) ----------------------------- #

def _conv_weight_cat(w, stride, in_w, out_w, k_block, n_pad):
    """w: (KH, KW, Cin, Cout) -> (KH*k_block, n_pad) bf16 banded weight with the
    (kw, Cin) -> (Cout, ow) contraction folded in and kh concatenated along K:
        T[kh*k_block + ci*in_w + iw, co*out_w + ow] = w[kh, iw - stride*ow, ci, co]."""
    n_kh, n_kw, cin, cout = w.shape
    iw = jnp.arange(in_w)
    ow = jnp.arange(out_w)
    kk = jnp.arange(n_kw)
    sel = (iw[None, :, None] == stride * ow[None, None, :] + kk[:, None, None])
    sel = sel.astype(w.dtype)                                   # (KW, in_w, out_w)
    t = jnp.einsum('hkco,kiw->hciow', w, sel)                   # (KH,Cin,in_w,Cout,out_w)
    t = t.reshape(n_kh, cin * in_w, cout * out_w)
    t = jnp.pad(t, ((0, 0), (0, k_block - cin * in_w), (0, n_pad - cout * out_w)))
    return t.reshape(n_kh * k_block, n_pad).astype(jnp.bfloat16)


def _pool_expand(n_ch, ow, n_pad):
    """pool: (n_pad, CPAD) column->channel one-hot; expand: its transpose."""
    pool = np.zeros((n_pad, CPAD), np.float32)
    for c in range(n_ch):
        pool[c * ow:(c + 1) * ow, c] = 1.0
    return jnp.asarray(pool), jnp.asarray(pool.T.copy())


def prepare_params(params, input_dims, batch):
    """One-time static prep of every kernel operand (review item #1)."""
    C, H, W = input_dims
    B = batch
    hc = params["conv1_w"].shape[-1]
    C3 = params["conv3_w"].shape[-1]
    HID = params["fc2_w"].shape[0]
    OH1, OW1 = (H - KH) // 2 + 1, (W - KH) // 2 + 1
    OH2, OW2 = (OH1 - KH) // 2 + 1, (OW1 - KH) // 2 + 1
    OH3, OW3 = OH2 - KH + 1, OW2 - KH + 1
    bf16 = jnp.bfloat16

    def rup(n, m):
        return ((n + m - 1) // m) * m

    N1P = rup(hc * OW1, 128)          # 128  (conv1 out columns, lane padded)
    N2P = rup(hc * OW2, 128)          # 128
    N3P = rup(C3 * OW3, 128)          # 640
    K1P = rup(KH * C * W, 128)        # 1536

    # K-folded, lane-padded conv weights (ONE dot per conv inside the kernel).
    w1 = _conv_weight_cat(params["conv1_w"], 2, W, OW1, C * W, N1P)
    w1 = jnp.pad(w1, ((0, K1P - KH * C * W), (0, 0)))                 # (1536, 128)
    w2 = _conv_weight_cat(params["conv2_w"], 2, OW1, OW2, N1P, N2P)   # (640, 128)
    w3 = _conv_weight_cat(params["conv3_w"], 1, OW2, OW3, N2P, N3P)   # (640, 640)

    # conv3 bias expanded to the (channel, ow) column layout, lane-padded.
    b3row = jnp.pad(jnp.repeat(params["conv3_b"], OW3)[None, :],
                    ((0, 0), (0, N3P - C3 * OW3))).astype(jnp.float32)

    # BatchNorm: precomputed pool/expand one-hots + padded gamma/beta.
    pool1, exp1 = _pool_expand(hc, OW1, N1P)
    pool2, exp2 = _pool_expand(hc, OW2, N2P)
    bn1g = jnp.pad(params["bn1_g"][None, :], ((0, 0), (0, CPAD - hc)))
    bn1b = jnp.pad(params["bn1_b"][None, :], ((0, 0), (0, CPAD - hc)))
    bn2g = jnp.pad(params["bn2_g"][None, :], ((0, 0), (0, CPAD - hc)))
    bn2b = jnp.pad(params["bn2_b"][None, :], ((0, 0), (0, CPAD - hc)))

    # fc1: fold the NCHW flatten into per-output-row slabs in (c, ow) order,
    # pad oh and lanes, and stack G_OH slabs per group along N for the grouped
    # diagonal dots.  W1g[g, k, ol*HID + j] = slab(oh = g*G_OH + ol)[k, j].
    NG = -(-OH3 // G_OH)
    OH3P = NG * G_OH
    w1p = (params["fc1_w"].reshape(C3, OH3, OW3, HID)
           .transpose(1, 0, 2, 3).reshape(OH3, C3 * OW3, HID))
    w1p = jnp.pad(w1p, ((0, OH3P - OH3), (0, N3P - C3 * OW3), (0, 0)))
    w1g = (w1p.reshape(NG, G_OH, N3P, HID)
           .transpose(0, 2, 1, 3).reshape(NG, N3P, G_OH * HID).astype(bf16))

    # fc1 diagonal-extraction constants (rows of a tile are (oh_local, b)).
    tr = B * G_OH
    r_idx = np.arange(tr)
    c_idx = np.arange(G_OH * HID)
    mask = (c_idx[None, :] // HID == r_idx[:, None] // B).astype(np.float32)
    fold = np.tile(np.eye(HID, dtype=np.float32), (G_OH, 1))          # (G_OH*HID, HID)
    pbt = (r_idx[None, :] % B == np.arange(B)[:, None]).astype(np.float32)  # (B, tr)

    return {
        "w1": w1, "w2": w2, "w3": w3,
        "bn1_g": bn1g, "bn1_b": bn1b, "bn2_g": bn2g, "bn2_b": bn2b,
        "pool1": pool1, "exp1": exp1, "pool2": pool2, "exp2": exp2,
        "b3row": b3row,
        "w1g": w1g, "mask": jnp.asarray(mask), "fold": jnp.asarray(fold),
        "pbt": jnp.asarray(pbt),
        "fc1_b": params["fc1_b"].reshape(1, -1).astype(jnp.float32),
        "fc2_w": params["fc2_w"].astype(bf16),
        "fc2_b": params["fc2_b"].reshape(1, -1).astype(jnp.float32),
        "ln_g": params["ln_g"].reshape(1, -1).astype(jnp.float32),
        "ln_b": params["ln_b"].reshape(1, -1).astype(jnp.float32),
        "fc3_w": params["fc3_w"].astype(bf16),
        "fc3_b": params["fc3_b"].reshape(1, -1).astype(jnp.float32),
    }


# ------------------------------- fused kernel -------------------------------- #

def _make_kernel(B, OH1, OH2, OW1, OW2, OH3, N1P, N2P, N3P, NG, g_oh, HID):
    f32 = jnp.float32
    bf16 = jnp.bfloat16
    NE = ((OH1 + 1) // 2) * B          # rows in the even-parity block of out1
    R2 = OH2 * B                       # conv2 output rows (= x2 rows)
    R3 = OH3 * B                       # real conv3 output rows
    TR = B * g_oh                      # rows per fc1 group tile (16)
    count1 = float(B * OH1 * OW1)
    count2 = float(B * OH2 * OW2)

    def bn_relu(y, count, gamma, beta, pool, expand):
        # Training-mode BatchNorm2d (batch stats, biased variance) + ReLU on a
        # (rows, channel*width lane-padded) activation; one-pass stats; the
        # pool/expand one-hots are precomputed kernel inputs.
        s1 = jnp.sum(y, axis=0, keepdims=True)
        s2 = jnp.sum(y * y, axis=0, keepdims=True)
        s1c = jnp.dot(s1, pool, preferred_element_type=f32)     # (1, CPAD)
        s2c = jnp.dot(s2, pool, preferred_element_type=f32)
        mu = s1c / count
        var = s2c / count - mu * mu
        scale = gamma * jax.lax.rsqrt(var + EPS)
        shift = beta - mu * scale
        srow = jnp.dot(scale, expand, preferred_element_type=f32)   # (1, NP)
        brow = jnp.dot(shift, expand, preferred_element_type=f32)
        return jnp.maximum(y * srow + brow, 0.0).astype(bf16)

    def kernel(x1_ref, w1_ref, w2_ref, w3_ref,
               bn1g_ref, bn1b_ref, bn2g_ref, bn2b_ref,
               pool1_ref, exp1_ref, pool2_ref, exp2_ref,
               b3_ref, w1g_ref, mask_ref, fold_ref, pbt_ref,
               b1_ref, w2fc_ref, b2_ref, lng_ref, lnb_ref, w3fc_ref, b3fc_ref,
               out_ref, x2_ref, x3_ref):
        # ---- conv1 -> BN1 -> ReLU : ONE dot (kh folded into K by the im2row).
        #      rows = (parity-ordered oh1, b), cols = c1*OW1 + ow (padded).
        y1 = jnp.dot(x1_ref[...], w1_ref[...], preferred_element_type=f32)
        out1 = bn_relu(y1, count1, bn1g_ref[...], bn1b_ref[...],
                       pool1_ref[...], exp1_ref[...])            # (OH1*B, N1P) bf16

        # ---- conv2 -> BN2 -> ReLU : shifted-copy concat into scratch, ONE dot.
        for kh in range(KH):
            off = (kh // 2) * B if kh % 2 == 0 else NE + (kh // 2) * B
            x2_ref[:, kh * N1P:(kh + 1) * N1P] = out1[off:off + R2, :]
        y2 = jnp.dot(x2_ref[...], w2_ref[...], preferred_element_type=f32)
        out2 = bn_relu(y2, count2, bn2g_ref[...], bn2b_ref[...],
                       pool2_ref[...], exp2_ref[...])            # (R2, N2P) bf16

        # ---- conv3 + bias -> ReLU : shifted-copy concat into scratch, ONE dot.
        if NG * TR > R3:
            x3_ref[R3:NG * TR, :] = jnp.zeros((NG * TR - R3, KH * N2P), bf16)
        for kh in range(KH):
            x3_ref[0:R3, kh * N2P:(kh + 1) * N2P] = out2[kh * B:kh * B + R3, :]
        y3 = jnp.dot(x3_ref[...], w3_ref[...], preferred_element_type=f32)
        out3 = jnp.maximum(y3 + b3_ref[...], 0.0).astype(bf16)   # (NG*TR, N3P)
        # Rows >= R3 only ever meet zero fc1 slabs (masked diagonal), harmless.

        # ---- fc1 + ReLU : NG grouped diagonal dots + one fold + one batch pool.
        zsum = None
        for g in range(NG):
            tile = out3[g * TR:(g + 1) * TR, :]                  # aligned 16-row tile
            yg = jnp.dot(tile, w1g_ref[g], preferred_element_type=f32)   # (TR, g_oh*HID)
            zg = yg * mask_ref[...]
            zsum = zg if zsum is None else zsum + zg
        zfold = jnp.dot(zsum, fold_ref[...], preferred_element_type=f32)  # (TR, HID)
        h = jnp.dot(pbt_ref[...], zfold, preferred_element_type=f32)      # (B, HID)
        h = jnp.maximum(h + b1_ref[...], 0.0)

        # ---- fc2 + LayerNorm + ReLU
        z = jnp.dot(h.astype(bf16), w2fc_ref[...], preferred_element_type=f32)
        z = z + b2_ref[...]
        mu = jnp.mean(z, axis=-1, keepdims=True)
        var = jnp.mean((z - mu) * (z - mu), axis=-1, keepdims=True)
        z = (z - mu) * jax.lax.rsqrt(var + EPS) * lng_ref[...] + lnb_ref[...]
        h2 = jnp.maximum(z, 0.0)

        # ---- fc3 + Sigmoid
        logits = jnp.dot(h2.astype(bf16), w3fc_ref[...],
                         preferred_element_type=f32) + b3fc_ref[...]
        out_ref[...] = jax.nn.sigmoid(logits)

    return kernel


# ------------------------------ model wrapper -------------------------------- #

def init_obj_learner(key, embedding_dim, input_dims, hidden_dim, num_objects):
    C, H, W = input_dims
    hc = hidden_dim // 16                       # CNNExtractor hidden channels
    OH3 = ((H - KH) // 2 + 1 - KH) // 2 + 1 - KH + 1
    OW3 = ((W - KH) // 2 + 1 - KH) // 2 + 1 - KH + 1
    mlp_in = 9747                               # hard-coded in EncoderMLP
    assert num_objects * OH3 * OW3 == mlp_in, (num_objects, OH3, OW3)
    ks = jax.random.split(key, 12)

    def u(k, shape, fan_in):
        bound = 1.0 / float(fan_in) ** 0.5
        return jax.random.uniform(k, shape, jnp.float32, -bound, bound)

    return {
        # Conv weights stored as (KH, KW, Cin, Cout).  conv1/conv2 biases are
        # omitted: training-mode BatchNorm mean subtraction cancels them
        # exactly (NOT valid for eval-mode running stats).
        "conv1_w": u(ks[0], (KH, KH, C, hc), KH * KH * C),
        "bn1_g": jnp.ones((hc,), jnp.float32),
        "bn1_b": jnp.zeros((hc,), jnp.float32),
        "conv2_w": u(ks[2], (KH, KH, hc, hc), KH * KH * hc),
        "bn2_g": jnp.ones((hc,), jnp.float32),
        "bn2_b": jnp.zeros((hc,), jnp.float32),
        "conv3_w": u(ks[4], (KH, KH, hc, num_objects), KH * KH * hc),
        "conv3_b": u(ks[5], (num_objects,), KH * KH * hc),
        # EncoderMLP
        "fc1_w": u(ks[6], (mlp_in, hidden_dim), mlp_in),
        "fc1_b": u(ks[7], (hidden_dim,), mlp_in),
        "fc2_w": u(ks[8], (hidden_dim, hidden_dim), hidden_dim),
        "fc2_b": u(ks[9], (hidden_dim,), hidden_dim),
        "ln_g": jnp.ones((hidden_dim,), jnp.float32),
        "ln_b": jnp.zeros((hidden_dim,), jnp.float32),
        "fc3_w": u(ks[10], (hidden_dim, embedding_dim), hidden_dim),
        "fc3_b": u(ks[11], (embedding_dim,), hidden_dim),
    }


def obj_learner_forward(prepped, obs):
    """obs: (B, C, H, W) float32 -> (B, embedding_dim) float32."""
    B, C, H, W = obs.shape
    OH1, OW1 = (H - KH) // 2 + 1, (W - KH) // 2 + 1
    OH2, OW2 = (OH1 - KH) // 2 + 1, (OW1 - KH) // 2 + 1
    OH3 = OH2 - KH + 1
    K1P, N1P = prepped["w1"].shape
    N2P = prepped["w2"].shape[1]
    N3P = prepped["w3"].shape[1]
    HID = prepped["fc2_w"].shape[0]
    EMB = prepped["fc3_w"].shape[1]
    NG = prepped["w1g"].shape[0]
    g_oh = prepped["w1g"].shape[2] // HID

    # Per-call prep (the only non-static XLA work): height-only im2row of the
    # input with kh folded along K, rows ordered (even oh1 block, odd oh1
    # block) x batch so the kernel only needs contiguous slices, K lane-padded.
    x = jnp.transpose(obs, (2, 0, 1, 3)).reshape(H, B, C * W)
    oh_order = np.concatenate([np.arange(0, OH1, 2), np.arange(1, OH1, 2)])
    row_idx = 2 * oh_order[:, None] + np.arange(KH)[None, :]        # (OH1, KH)
    x1 = jnp.transpose(x[row_idx], (0, 2, 1, 3)).reshape(OH1 * B, KH * C * W)
    x1 = jnp.pad(x1, ((0, 0), (0, K1P - KH * C * W))).astype(jnp.bfloat16)

    kernel = _make_kernel(B, OH1, OH2, OW1, OW2, OH3,
                          N1P, N2P, N3P, NG, g_oh, HID)
    return pl.pallas_call(
        kernel,
        out_shape=jax.ShapeDtypeStruct((B, EMB), jnp.float32),
        in_specs=[_VMEM] * 24,
        out_specs=_VMEM,
        scratch_shapes=[
            pltpu.VMEM((OH2 * B, KH * N1P), jnp.bfloat16),          # x2 (46, 640)
            pltpu.VMEM((NG * B * g_oh, KH * N2P), jnp.bfloat16),    # x3 (48, 640)
        ],
    )(x1, prepped["w1"], prepped["w2"], prepped["w3"],
      prepped["bn1_g"], prepped["bn1_b"], prepped["bn2_g"], prepped["bn2_b"],
      prepped["pool1"], prepped["exp1"], prepped["pool2"], prepped["exp2"],
      prepped["b3row"], prepped["w1g"], prepped["mask"], prepped["fold"],
      prepped["pbt"], prepped["fc1_b"], prepped["fc2_w"], prepped["fc2_b"],
      prepped["ln_g"], prepped["ln_b"], prepped["fc3_w"], prepped["fc3_b"])


# ----------------------------------- main ------------------------------------ #

if __name__ == "__main__":
    embedding_dim = 8
    hidden_dim = 32               # hidden_dim // 16 = 2 conv channels
    num_objects = 27
    input_dims = (3, 101, 101)    # -> 27 * 19 * 19 = 9747 flattened features
    batch = 2

    key = jax.random.PRNGKey(0)
    pkey, xkey = jax.random.split(key)
    params = init_obj_learner(pkey, embedding_dim, input_dims, hidden_dim,
                              num_objects)
    prepped = prepare_params(params, input_dims, batch)   # static prep, ONCE
    obs = jax.random.uniform(xkey, (batch,) + input_dims, jnp.float32)

    fwd = jax.jit(obj_learner_forward)
    out = jax.block_until_ready(fwd(prepped, obs))
    assert out.shape == (batch, embedding_dim), out.shape
    assert bool(jnp.all(jnp.isfinite(out)))
    print("KERNEL_OK")
</pallas_src>

<mosaic_0001>
module attributes {stable_mosaic.version = 11 : i64} {
  func.func @kernel(%arg0: memref<98x1536xbf16, #tpu.memory_space<vmem>>, %arg1: memref<1536x128xbf16, #tpu.memory_space<vmem>>, %arg2: memref<640x128xbf16, #tpu.memory_space<vmem>>, %arg3: memref<640x640xbf16, #tpu.memory_space<vmem>>, %arg4: memref<1x8xf32, #tpu.memory_space<vmem>>, %arg5: memref<1x8xf32, #tpu.memory_space<vmem>>, %arg6: memref<1x8xf32, #tpu.memory_space<vmem>>, %arg7: memref<1x8xf32, #tpu.memory_space<vmem>>, %arg8: memref<128x8xf32, #tpu.memory_space<vmem>>, %arg9: memref<8x128xf32, #tpu.memory_space<vmem>>, %arg10: memref<128x8xf32, #tpu.memory_space<vmem>>, %arg11: memref<8x128xf32, #tpu.memory_space<vmem>>, %arg12: memref<1x640xf32, #tpu.memory_space<vmem>>, %arg13: memref<3x640x256xbf16, #tpu.memory_space<vmem>>, %arg14: memref<16x256xf32, #tpu.memory_space<vmem>>, %arg15: memref<256x32xf32, #tpu.memory_space<vmem>>, %arg16: memref<2x16xf32, #tpu.memory_space<vmem>>, %arg17: memref<1x32xf32, #tpu.memory_space<vmem>>, %arg18: memref<32x32xbf16, #tpu.memory_space<vmem>>, %arg19: memref<1x32xf32, #tpu.memory_space<vmem>>, %arg20: memref<1x32xf32, #tpu.memory_space<vmem>>, %arg21: memref<1x32xf32, #tpu.memory_space<vmem>>, %arg22: memref<32x8xbf16, #tpu.memory_space<vmem>>, %arg23: memref<1x8xf32, #tpu.memory_space<vmem>>, %arg24: memref<2x8xf32, #tpu.memory_space<vmem>>, %arg25: memref<46x640xbf16, #tpu.memory_space<vmem>>, %arg26: memref<48x640xbf16, #tpu.memory_space<vmem>>) attributes {dimension_semantics = [], scalar_prefetch = 0 : i64, scratch_operands = 2 : i64, tpu.core_type = #tpu.core_type<tc>} {
    %c0 = arith.constant 0 : index
    %c0_0 = arith.constant 0 : index
    %0 = vector.load %arg0[%c0, %c0_0] : memref<98x1536xbf16, #tpu.memory_space<vmem>>, vector<98x1536xbf16>
    %c0_1 = arith.constant 0 : index
    %c0_2 = arith.constant 0 : index
    %1 = vector.load %arg1[%c0_1, %c0_2] : memref<1536x128xbf16, #tpu.memory_space<vmem>>, vector<1536x128xbf16>
    %cst = arith.constant dense<0.000000e+00> : vector<98x128xf32>
    %2 = tpu.matmul %0, %1, %cst {dimension_numbers = #tpu.dot_dimension_numbers<[1], [0], [0], [1], [0, 0, 1, 1], [], []>} : vector<98x1536xbf16>, vector<1536x128xbf16>, vector<98x128xf32> -> vector<98x128xf32>
    %c0_3 = arith.constant 0 : index
    %c0_4 = arith.constant 0 : index
    %3 = vector.load %arg4[%c0_3, %c0_4] : memref<1x8xf32, #tpu.memory_space<vmem>>, vector<1x8xf32>
    %c0_5 = arith.constant 0 : index
    %c0_6 = arith.constant 0 : index
    %4 = vector.load %arg5[%c0_5, %c0_6] : memref<1x8xf32, #tpu.memory_space<vmem>>, vector<1x8xf32>
    %c0_7 = arith.constant 0 : index
    %c0_8 = arith.constant 0 : index
    %5 = vector.load %arg8[%c0_7, %c0_8] : memref<128x8xf32, #tpu.memory_space<vmem>>, vector<128x8xf32>
    %c0_9 = arith.constant 0 : index
    %c0_10 = arith.constant 0 : index
    %6 = vector.load %arg9[%c0_9, %c0_10] : memref<8x128xf32, #tpu.memory_space<vmem>>, vector<8x128xf32>
    %cst_11 = arith.constant dense<0.000000e+00> : vector<128xf32>
    %7 = vector.multi_reduction <add>, %2, %cst_11 [0] : vector<98x128xf32> to vector<128xf32>
    %8 = vector.shape_cast %7 : vector<128xf32> to vector<1x128xf32>
    %9 = arith.mulf %2, %2 : vector<98x128xf32>
    %cst_12 = arith.constant dense<0.000000e+00> : vector<128xf32>
    %10 = vector.multi_reduction <add>, %9, %cst_12 [0] : vector<98x128xf32> to vector<128xf32>
    %11 = vector.shape_cast %10 : vector<128xf32> to vector<1x128xf32>
    %cst_13 = arith.constant dense<0.000000e+00> : vector<1x8xf32>
    %12 = tpu.matmul %8, %5, %cst_13 {dimension_numbers = #tpu.dot_dimension_numbers<[1], [0], [0], [1], [0, 0, 1, 1], [], []>} : vector<1x128xf32>, vector<128x8xf32>, vector<1x8xf32> -> vector<1x8xf32>
    %cst_14 = arith.constant dense<0.000000e+00> : vector<1x8xf32>
    %13 = tpu.matmul %11, %5, %cst_14 {dimension_numbers = #tpu.dot_dimension_numbers<[1], [0], [0], [1], [0, 0, 1, 1], [], []>} : vector<1x128xf32>, vector<128x8xf32>, vector<1x8xf32> -> vector<1x8xf32>
    %cst_15 = arith.constant 4.802000e+03 : f32
    %14 = vector.broadcast %cst_15 : f32 to vector<1x8xf32>
    %15 = arith.divf %12, %14 : vector<1x8xf32>
    %cst_16 = arith.constant 4.802000e+03 : f32
    %16 = vector.broadcast %cst_16 : f32 to vector<1x8xf32>
    %17 = arith.divf %13, %16 : vector<1x8xf32>
    %18 = arith.mulf %15, %15 : vector<1x8xf32>
    %19 = arith.subf %17, %18 : vector<1x8xf32>
    %cst_17 = arith.constant 9.99999974E-6 : f32
    %20 = vector.broadcast %cst_17 : f32 to vector<1x8xf32>
    %21 = arith.addf %19, %20 : vector<1x8xf32>
    %22 = math.rsqrt %21 : vector<1x8xf32>
    %23 = arith.mulf %3, %22 : vector<1x8xf32>
    %24 = arith.mulf %15, %23 : vector<1x8xf32>
    %25 = arith.subf %4, %24 : vector<1x8xf32>
    %cst_18 = arith.constant dense<0.000000e+00> : vector<1x128xf32>
    %26 = tpu.matmul %23, %6, %cst_18 {dimension_numbers = #tpu.dot_dimension_numbers<[1], [0], [0], [1], [0, 0, 1, 1], [], []>} : vector<1x8xf32>, vector<8x128xf32>, vector<1x128xf32> -> vector<1x128xf32>
    %cst_19 = arith.constant dense<0.000000e+00> : vector<1x128xf32>
    %27 = tpu.matmul %25, %6, %cst_19 {dimension_numbers = #tpu.dot_dimension_numbers<[1], [0], [0], [1], [0, 0, 1, 1], [], []>} : vector<1x8xf32>, vector<8x128xf32>, vector<1x128xf32> -> vector<1x128xf32>
    %28 = vector.broadcast %26 : vector<1x128xf32> to vector<98x128xf32>
    %29 = arith.mulf %2, %28 : vector<98x128xf32>
    %30 = vector.broadcast %27 : vector<1x128xf32> to vector<98x128xf32>
    %31 = arith.addf %29, %30 : vector<98x128xf32>
    %cst_20 = arith.constant 0.000000e+00 : f32
    %32 = vector.broadcast %cst_20 : f32 to vector<98x128xf32>
    %33 = arith.maximumf %31, %32 : vector<98x128xf32>
    %34 = arith.truncf %33 : vector<98x128xf32> to vector<98x128xbf16>
    %35 = vector.extract_strided_slice %34 {offsets = [0, 0], sizes = [46, 128], strides = [1, 1]} : vector<98x128xbf16> to vector<46x128xbf16>
    %c0_21 = arith.constant 0 : index
    %c0_22 = arith.constant 0 : index
    %36 = vector.load %arg25[%c0_21, %c0_22] : memref<46x640xbf16, #tpu.memory_space<vmem>>, vector<46x128xbf16>
    tpu.vector_store %arg25[%c0_21, %c0_22], %35 {strides = array<i32>} : memref<46x640xbf16, #tpu.memory_space<vmem>>, vector<46x128xbf16>,
    %37 = vector.extract_strided_slice %34 {offsets = [50, 0], sizes = [46, 128], strides = [1, 1]} : vector<98x128xbf16> to vector<46x128xbf16>
    %c0_23 = arith.constant 0 : index
    %c128 = arith.constant 128 : index
    %38 = vector.load %arg25[%c0_23, %c128] : memref<46x640xbf16, #tpu.memory_space<vmem>>, vector<46x128xbf16>
    tpu.vector_store %arg25[%c0_23, %c128], %37 {strides = array<i32>} : memref<46x640xbf16, #tpu.memory_space<vmem>>, vector<46x128xbf16>,
    %39 = vector.extract_strided_slice %34 {offsets = [2, 0], sizes = [46, 128], strides = [1, 1]} : vector<98x128xbf16> to vector<46x128xbf16>
    %c0_24 = arith.constant 0 : index
    %c256 = arith.constant 256 : index
    %40 = vector.load %arg25[%c0_24, %c256] : memref<46x640xbf16, #tpu.memory_space<vmem>>, vector<46x128xbf16>
    tpu.vector_store %arg25[%c0_24, %c256], %39 {strides = array<i32>} : memref<46x640xbf16, #tpu.memory_space<vmem>>, vector<46x128xbf16>,
    %41 = vector.extract_strided_slice %34 {offsets = [52, 0], sizes = [46, 128], strides = [1, 1]} : vector<98x128xbf16> to vector<46x128xbf16>
    %c0_25 = arith.constant 0 : index
    %c384 = arith.constant 384 : index
    %42 = vector.load %arg25[%c0_25, %c384] : memref<46x640xbf16, #tpu.memory_space<vmem>>, vector<46x128xbf16>
    tpu.vector_store %arg25[%c0_25, %c384], %41 {strides = array<i32>} : memref<46x640xbf16, #tpu.memory_space<vmem>>, vector<46x128xbf16>,
    %43 = vector.extract_strided_slice %34 {offsets = [4, 0], sizes = [46, 128], strides = [1, 1]} : vector<98x128xbf16> to vector<46x128xbf16>
    %c0_26 = arith.constant 0 : index
    %c512 = arith.constant 512 : index
    %44 = vector.load %arg25[%c0_26, %c512] : memref<46x640xbf16, #tpu.memory_space<vmem>>, vector<46x128xbf16>
    tpu.vector_store %arg25[%c0_26, %c512], %43 {strides = array<i32>} : memref<46x640xbf16, #tpu.memory_space<vmem>>, vector<46x128xbf16>,
    %c0_27 = arith.constant 0 : index
    %c0_28 = arith.constant 0 : index
    %45 = vector.load %arg25[%c0_27, %c0_28] : memref<46x640xbf16, #tpu.memory_space<vmem>>, vector<46x640xbf16>
    %c0_29 = arith.constant 0 : index
    %c0_30 = arith.constant 0 : index
    %46 = vector.load %arg2[%c0_29, %c0_30] : memref<640x128xbf16, #tpu.memory_space<vmem>>, vector<640x128xbf16>
    %cst_31 = arith.constant dense<0.000000e+00> : vector<46x128xf32>
    %47 = tpu.matmul %45, %46, %cst_31 {dimension_numbers = #tpu.dot_dimension_numbers<[1], [0], [0], [1], [0, 0, 1, 1], [], []>} : vector<46x640xbf16>, vector<640x128xbf16>, vector<46x128xf32> -> vector<46x128xf32>
    %c0_32 = arith.constant 0 : index
    %c0_33 = arith.constant 0 : index
    %48 = vector.load %arg6[%c0_32, %c0_33] : memref<1x8xf32, #tpu.memory_space<vmem>>, vector<1x8xf32>
    %c0_34 = arith.constant 0 : index
    %c0_35 = arith.constant 0 : index
    %49 = vector.load %arg7[%c0_34, %c0_35] : memref<1x8xf32, #tpu.memory_space<vmem>>, vector<1x8xf32>
    %c0_36 = arith.constant 0 : index
    %c0_37 = arith.constant 0 : index
    %50 = vector.load %arg10[%c0_36, %c0_37] : memref<128x8xf32, #tpu.memory_space<vmem>>, vector<128x8xf32>
    %c0_38 = arith.constant 0 : index
    %c0_39 = arith.constant 0 : index
    %51 = vector.load %arg11[%c0_38, %c0_39] : memref<8x128xf32, #tpu.memory_space<vmem>>, vector<8x128xf32>
    %cst_40 = arith.constant dense<0.000000e+00> : vector<128xf32>
    %52 = vector.multi_reduction <add>, %47, %cst_40 [0] : vector<46x128xf32> to vector<128xf32>
    %53 = vector.shape_cast %52 : vector<128xf32> to vector<1x128xf32>
    %54 = arith.mulf %47, %47 : vector<46x128xf32>
    %cst_41 = arith.constant dense<0.000000e+00> : vector<128xf32>
    %55 = vector.multi_reduction <add>, %54, %cst_41 [0] : vector<46x128xf32> to vector<128xf32>
    %56 = vector.shape_cast %55 : vector<128xf32> to vector<1x128xf32>
    %cst_42 = arith.constant dense<0.000000e+00> : vector<1x8xf32>
    %57 = tpu.matmul %53, %50, %cst_42 {dimension_numbers = #tpu.dot_dimension_numbers<[1], [0], [0], [1], [0, 0, 1, 1], [], []>} : vector<1x128xf32>, vector<128x8xf32>, vector<1x8xf32> -> vector<1x8xf32>
    %cst_43 = arith.constant dense<0.000000e+00> : vector<1x8xf32>
    %58 = tpu.matmul %56, %50, %cst_43 {dimension_numbers = #tpu.dot_dimension_numbers<[1], [0], [0], [1], [0, 0, 1, 1], [], []>} : vector<1x128xf32>, vector<128x8xf32>, vector<1x8xf32> -> vector<1x8xf32>
    %cst_44 = arith.constant 1.058000e+03 : f32
    %59 = vector.broadcast %cst_44 : f32 to vector<1x8xf32>
    %60 = arith.divf %57, %59 : vector<1x8xf32>
    %cst_45 = arith.constant 1.058000e+03 : f32
    %61 = vector.broadcast %cst_45 : f32 to vector<1x8xf32>
    %62 = arith.divf %58, %61 : vector<1x8xf32>
    %63 = arith.mulf %60, %60 : vector<1x8xf32>
    %64 = arith.subf %62, %63 : vector<1x8xf32>
    %cst_46 = arith.constant 9.99999974E-6 : f32
    %65 = vector.broadcast %cst_46 : f32 to vector<1x8xf32>
    %66 = arith.addf %64, %65 : vector<1x8xf32>
    %67 = math.rsqrt %66 : vector<1x8xf32>
    %68 = arith.mulf %48, %67 : vector<1x8xf32>
    %69 = arith.mulf %60, %68 : vector<1x8xf32>
    %70 = arith.subf %49, %69 : vector<1x8xf32>
    %cst_47 = arith.constant dense<0.000000e+00> : vector<1x128xf32>
    %71 = tpu.matmul %68, %51, %cst_47 {dimension_numbers = #tpu.dot_dimension_numbers<[1], [0], [0], [1], [0, 0, 1, 1], [], []>} : vector<1x8xf32>, vector<8x128xf32>, vector<1x128xf32> -> vector<1x128xf32>
    %cst_48 = arith.constant dense<0.000000e+00> : vector<1x128xf32>
    %72 = tpu.matmul %70, %51, %cst_48 {dimension_numbers = #tpu.dot_dimension_numbers<[1], [0], [0], [1], [0, 0, 1, 1], [], []>} : vector<1x8xf32>, vector<8x128xf32>, vector<1x128xf32> -> vector<1x128xf32>
    %73 = vector.broadcast %71 : vector<1x128xf32> to vector<46x128xf32>
    %74 = arith.mulf %47, %73 : vector<46x128xf32>
    %75 = vector.broadcast %72 : vector<1x128xf32> to vector<46x128xf32>
    %76 = arith.addf %74, %75 : vector<46x128xf32>
    %cst_49 = arith.constant 0.000000e+00 : f32
    %77 = vector.broadcast %cst_49 : f32 to vector<46x128xf32>
    %78 = arith.maximumf %76, %77 : vector<46x128xf32>
    %79 = arith.truncf %78 : vector<46x128xf32> to vector<46x128xbf16>
    %cst_50 = arith.constant 0.000000e+00 : bf16
    %80 = vector.broadcast %cst_50 : bf16 to vector<10x640xbf16>
    %c38 = arith.constant 38 : index
    %c0_51 = arith.constant 0 : index
    %81 = vector.load %arg26[%c38, %c0_51] : memref<48x640xbf16, #tpu.memory_space<vmem>>, vector<10x640xbf16>
    tpu.vector_store %arg26[%c38, %c0_51], %80 {strides = array<i32>} : memref<48x640xbf16, #tpu.memory_space<vmem>>, vector<10x640xbf16>,
    %82 = vector.extract_strided_slice %79 {offsets = [0, 0], sizes = [38, 128], strides = [1, 1]} : vector<46x128xbf16> to vector<38x128xbf16>
    %c0_52 = arith.constant 0 : index
    %c0_53 = arith.constant 0 : index
    %83 = vector.load %arg26[%c0_52, %c0_53] : memref<48x640xbf16, #tpu.memory_space<vmem>>, vector<38x128xbf16>
    tpu.vector_store %arg26[%c0_52, %c0_53], %82 {strides = array<i32>} : memref<48x640xbf16, #tpu.memory_space<vmem>>, vector<38x128xbf16>,
    %84 = vector.extract_strided_slice %79 {offsets = [2, 0], sizes = [38, 128], strides = [1, 1]} : vector<46x128xbf16> to vector<38x128xbf16>
    %c0_54 = arith.constant 0 : index
    %c128_55 = arith.constant 128 : index
    %85 = vector.load %arg26[%c0_54, %c128_55] : memref<48x640xbf16, #tpu.memory_space<vmem>>, vector<38x128xbf16>
    tpu.vector_store %arg26[%c0_54, %c128_55], %84 {strides = array<i32>} : memref<48x640xbf16, #tpu.memory_space<vmem>>, vector<38x128xbf16>,
    %86 = vector.extract_strided_slice %79 {offsets = [4, 0], sizes = [38, 128], strides = [1, 1]} : vector<46x128xbf16> to vector<38x128xbf16>
    %c0_56 = arith.constant 0 : index
    %c256_57 = arith.constant 256 : index
    %87 = vector.load %arg26[%c0_56, %c256_57] : memref<48x640xbf16, #tpu.memory_space<vmem>>, vector<38x128xbf16>
    tpu.vector_store %arg26[%c0_56, %c256_57], %86 {strides = array<i32>} : memref<48x640xbf16, #tpu.memory_space<vmem>>, vector<38x128xbf16>,
    %88 = vector.extract_strided_slice %79 {offsets = [6, 0], sizes = [38, 128], strides = [1, 1]} : vector<46x128xbf16> to vector<38x128xbf16>
    %c0_58 = arith.constant 0 : index
    %c384_59 = arith.constant 384 : index
    %89 = vector.load %arg26[%c0_58, %c384_59] : memref<48x640xbf16, #tpu.memory_space<vmem>>, vector<38x128xbf16>
    tpu.vector_store %arg26[%c0_58, %c384_59], %88 {strides = array<i32>} : memref<48x640xbf16, #tpu.memory_space<vmem>>, vector<38x128xbf16>,
    %90 = vector.extract_strided_slice %79 {offsets = [8, 0], sizes = [38, 128], strides = [1, 1]} : vector<46x128xbf16> to vector<38x128xbf16>
    %c0_60 = arith.constant 0 : index
    %c512_61 = arith.constant 512 : index
    %91 = vector.load %arg26[%c0_60, %c512_61] : memref<48x640xbf16, #tpu.memory_space<vmem>>, vector<38x128xbf16>
    tpu.vector_store %arg26[%c0_60, %c512_61], %90 {strides = array<i32>} : memref<48x640xbf16, #tpu.memory_space<vmem>>, vector<38x128xbf16>,
    %c0_62 = arith.constant 0 : index
    %c0_63 = arith.constant 0 : index
    %92 = vector.load %arg26[%c0_62, %c0_63] : memref<48x640xbf16, #tpu.memory_space<vmem>>, vector<48x640xbf16>
    %c0_64 = arith.constant 0 : index
    %c0_65 = arith.constant 0 : index
    %93 = vector.load %arg3[%c0_64, %c0_65] : memref<640x640xbf16, #tpu.memory_space<vmem>>, vector<640x640xbf16>
    %cst_66 = arith.constant dense<0.000000e+00> : vector<48x640xf32>
    %94 = tpu.matmul %92, %93, %cst_66 {dimension_numbers = #tpu.dot_dimension_numbers<[1], [0], [0], [1], [0, 0, 1, 1], [], []>} : vector<48x640xbf16>, vector<640x640xbf16>, vector<48x640xf32> -> vector<48x640xf32>
    %c0_67 = arith.constant 0 : index
    %c0_68 = arith.constant 0 : index
    %95 = vector.load %arg12[%c0_67, %c0_68] : memref<1x640xf32, #tpu.memory_space<vmem>>, vector<1x640xf32>
    %96 = vector.broadcast %95 : vector<1x640xf32> to vector<48x640xf32>
    %97 = arith.addf %94, %96 : vector<48x640xf32>
    %cst_69 = arith.constant 0.000000e+00 : f32
    %98 = vector.broadcast %cst_69 : f32 to vector<48x640xf32>
    %99 = arith.maximumf %97, %98 : vector<48x640xf32>
    %100 = arith.truncf %99 : vector<48x640xf32> to vector<48x640xbf16>
    %101 = vector.extract_strided_slice %100 {offsets = [0, 0], sizes = [16, 640], strides = [1, 1]} : vector<48x640xbf16> to vector<16x640xbf16>
    %c0_70 = arith.constant 0 : index
    %c0_71 = arith.constant 0 : index
    %c0_72 = arith.constant 0 : index
    %102 = vector.load %arg13[%c0_70, %c0_71, %c0_72] : memref<3x640x256xbf16, #tpu.memory_space<vmem>>, vector<1x640x256xbf16>
    %103 = vector.shape_cast %102 : vector<1x640x256xbf16> to vector<640x256xbf16>
    %cst_73 = arith.constant dense<0.000000e+00> : vector<16x256xf32>
    %104 = tpu.matmul %101, %103, %cst_73 {dimension_numbers = #tpu.dot_dimension_numbers<[1], [0], [0], [1], [0, 0, 1, 1], [], []>} : vector<16x640xbf16>, vector<640x256xbf16>, vector<16x256xf32> -> vector<16x256xf32>
    %c0_74 = arith.constant 0 : index
    %c0_75 = arith.constant 0 : index
    %105 = vector.load %arg14[%c0_74, %c0_75] : memref<16x256xf32, #tpu.memory_space<vmem>>, vector<16x256xf32>
    %106 = arith.mulf %104, %105 : vector<16x256xf32>
    %107 = vector.extract_strided_slice %100 {offsets = [16, 0], sizes = [16, 640], strides = [1, 1]} : vector<48x640xbf16> to vector<16x640xbf16>
    %c1 = arith.constant 1 : index
    %c0_76 = arith.constant 0 : index
    %c0_77 = arith.constant 0 : index
    %108 = vector.load %arg13[%c1, %c0_76, %c0_77] : memref<3x640x256xbf16, #tpu.memory_space<vmem>>, vector<1x640x256xbf16>
    %109 = vector.shape_cast %108 : vector<1x640x256xbf16> to vector<640x256xbf16>
    %cst_78 = arith.constant dense<0.000000e+00> : vector<16x256xf32>
    %110 = tpu.matmul %107, %109, %cst_78 {dimension_numbers = #tpu.dot_dimension_numbers<[1], [0], [0], [1], [0, 0, 1, 1], [], []>} : vector<16x640xbf16>, vector<640x256xbf16>, vector<16x256xf32> -> vector<16x256xf32>
    %c0_79 = arith.constant 0 : index
    %c0_80 = arith.constant 0 : index
    %111 = vector.load %arg14[%c0_79, %c0_80] : memref<16x256xf32, #tpu.memory_space<vmem>>, vector<16x256xf32>
    %112 = arith.mulf %110, %111 : vector<16x256xf32>
    %113 = arith.addf %106, %112 : vector<16x256xf32>
    %114 = vector.extract_strided_slice %100 {offsets = [32, 0], sizes = [16, 640], strides = [1, 1]} : vector<48x640xbf16> to vector<16x640xbf16>
    %c2 = arith.constant 2 : index
    %c0_81 = arith.constant 0 : index
    %c0_82 = arith.constant 0 : index
    %115 = vector.load %arg13[%c2, %c0_81, %c0_82] : memref<3x640x256xbf16, #tpu.memory_space<vmem>>, vector<1x640x256xbf16>
    %116 = vector.shape_cast %115 : vector<1x640x256xbf16> to vector<640x256xbf16>
    %cst_83 = arith.constant dense<0.000000e+00> : vector<16x256xf32>
    %117 = tpu.matmul %114, %116, %cst_83 {dimension_numbers = #tpu.dot_dimension_numbers<[1], [0], [0], [1], [0, 0, 1, 1], [], []>} : vector<16x640xbf16>, vector<640x256xbf16>, vector<16x256xf32> -> vector<16x256xf32>
    %c0_84 = arith.constant 0 : index
    %c0_85 = arith.constant 0 : index
    %118 = vector.load %arg14[%c0_84, %c0_85] : memref<16x256xf32, #tpu.memory_space<vmem>>, vector<16x256xf32>
    %119 = arith.mulf %117, %118 : vector<16x256xf32>
    %120 = arith.addf %113, %119 : vector<16x256xf32>
    %c0_86 = arith.constant 0 : index
    %c0_87 = arith.constant 0 : index
    %121 = vector.load %arg15[%c0_86, %c0_87] : memref<256x32xf32, #tpu.memory_space<vmem>>, vector<256x32xf32>
    %cst_88 = arith.constant dense<0.000000e+00> : vector<16x32xf32>
    %122 = tpu.matmul %120, %121, %cst_88 {dimension_numbers = #tpu.dot_dimension_numbers<[1], [0], [0], [1], [0, 0, 1, 1], [], []>} : vector<16x256xf32>, vector<256x32xf32>, vector<16x32xf32> -> vector<16x32xf32>
    %c0_89 = arith.constant 0 : index
    %c0_90 = arith.constant 0 : index
    %123 = vector.load %arg16[%c0_89, %c0_90] : memref<2x16xf32, #tpu.memory_space<vmem>>, vector<2x16xf32>
    %cst_91 = arith.constant dense<0.000000e+00> : vector<2x32xf32>
    %124 = tpu.matmul %123, %122, %cst_91 {dimension_numbers = #tpu.dot_dimension_numbers<[1], [0], [0], [1], [0, 0, 1, 1], [], []>} : vector<2x16xf32>, vector<16x32xf32>, vector<2x32xf32> -> vector<2x32xf32>
    %c0_92 = arith.constant 0 : index
    %c0_93 = arith.constant 0 : index
    %125 = vector.load %arg17[%c0_92, %c0_93] : memref<1x32xf32, #tpu.memory_space<vmem>>, vector<1x32xf32>
    %126 = vector.broadcast %125 : vector<1x32xf32> to vector<2x32xf32>
    %127 = arith.addf %124, %126 : vector<2x32xf32>
    %cst_94 = arith.constant 0.000000e+00 : f32
    %128 = vector.broadcast %cst_94 : f32 to vector<2x32xf32>
    %129 = arith.maximumf %127, %128 : vector<2x32xf32>
    %130 = arith.truncf %129 : vector<2x32xf32> to vector<2x32xbf16>
    %c0_95 = arith.constant 0 : index
    %c0_96 = arith.constant 0 : index
    %131 = vector.load %arg18[%c0_95, %c0_96] : memref<32x32xbf16, #tpu.memory_space<vmem>>, vector<32x32xbf16>
    %cst_97 = arith.constant dense<0.000000e+00> : vector<2x32xf32>
    %132 = tpu.matmul %130, %131, %cst_97 {dimension_numbers = #tpu.dot_dimension_numbers<[1], [0], [0], [1], [0, 0, 1, 1], [], []>} : vector<2x32xbf16>, vector<32x32xbf16>, vector<2x32xf32> -> vector<2x32xf32>
    %c0_98 = arith.constant 0 : index
    %c0_99 = arith.constant 0 : index
    %133 = vector.load %arg19[%c0_98, %c0_99] : memref<1x32xf32, #tpu.memory_space<vmem>>, vector<1x32xf32>
    %134 = vector.broadcast %133 : vector<1x32xf32> to vector<2x32xf32>
    %135 = arith.addf %132, %134 : vector<2x32xf32>
    %cst_100 = arith.constant dense<0.000000e+00> : vector<2xf32>
    %136 = vector.multi_reduction <add>, %135, %cst_100 [1] : vector<2x32xf32> to vector<2xf32>
    %137 = vector.shape_cast %136 : vector<2xf32> to vector<2x1xf32>
    %cst_101 = arith.constant 3.200000e+01 : f32
    %138 = vector.broadcast %cst_101 : f32 to vector<2x1xf32>
    %139 = arith.divf %137, %138 : vector<2x1xf32>
    %140 = vector.broadcast %139 : vector<2x1xf32> to vector<2x32xf32>
    %141 = arith.subf %135, %140 : vector<2x32xf32>
    %142 = vector.broadcast %139 : vector<2x1xf32> to vector<2x32xf32>
    %143 = arith.subf %135, %142 : vector<2x32xf32>
    %144 = arith.mulf %141, %143 : vector<2x32xf32>
    %cst_102 = arith.constant dense<0.000000e+00> : vector<2xf32>
    %145 = vector.multi_reduction <add>, %144, %cst_102 [1] : vector<2x32xf32> to vector<2xf32>
    %146 = vector.shape_cast %145 : vector<2xf32> to vector<2x1xf32>
    %cst_103 = arith.constant 3.200000e+01 : f32
    %147 = vector.broadcast %cst_103 : f32 to vector<2x1xf32>
    %148 = arith.divf %146, %147 : vector<2x1xf32>
    %149 = vector.broadcast %139 : vector<2x1xf32> to vector<2x32xf32>
    %150 = arith.subf %135, %149 : vector<2x32xf32>
    %cst_104 = arith.constant 9.99999974E-6 : f32
    %151 = vector.broadcast %cst_104 : f32 to vector<2x1xf32>
    %152 = arith.addf %148, %151 : vector<2x1xf32>
    %153 = math.rsqrt %152 : vector<2x1xf32>
    %154 = vector.broadcast %153 : vector<2x1xf32> to vector<2x32xf32>
    %155 = arith.mulf %150, %154 : vector<2x32xf32>
    %c0_105 = arith.constant 0 : index
    %c0_106 = arith.constant 0 : index
    %156 = vector.load %arg20[%c0_105, %c0_106] : memref<1x32xf32, #tpu.memory_space<vmem>>, vector<1x32xf32>
    %157 = vector.broadcast %156 : vector<1x32xf32> to vector<2x32xf32>
    %158 = arith.mulf %155, %157 : vector<2x32xf32>
    %c0_107 = arith.constant 0 : index
    %c0_108 = arith.constant 0 : index
    %159 = vector.load %arg21[%c0_107, %c0_108] : memref<1x32xf32, #tpu.memory_space<vmem>>, vector<1x32xf32>
    %160 = vector.broadcast %159 : vector<1x32xf32> to vector<2x32xf32>
    %161 = arith.addf %158, %160 : vector<2x32xf32>
    %cst_109 = arith.constant 0.000000e+00 : f32
    %162 = vector.broadcast %cst_109 : f32 to vector<2x32xf32>
    %163 = arith.maximumf %161, %162 : vector<2x32xf32>
    %164 = arith.truncf %163 : vector<2x32xf32> to vector<2x32xbf16>
    %c0_110 = arith.constant 0 : index
    %c0_111 = arith.constant 0 : index
    %165 = vector.load %arg22[%c0_110, %c0_111] : memref<32x8xbf16, #tpu.memory_space<vmem>>, vector<32x8xbf16>
    %cst_112 = arith.constant dense<0.000000e+00> : vector<2x8xf32>
    %166 = tpu.matmul %164, %165, %cst_112 {dimension_numbers = #tpu.dot_dimension_numbers<[1], [0], [0], [1], [0, 0, 1, 1], [], []>} : vector<2x32xbf16>, vector<32x8xbf16>, vector<2x8xf32> -> vector<2x8xf32>
    %c0_113 = arith.constant 0 : index
    %c0_114 = arith.constant 0 : index
    %167 = vector.load %arg23[%c0_113, %c0_114] : memref<1x8xf32, #tpu.memory_space<vmem>>, vector<1x8xf32>
    %168 = vector.broadcast %167 : vector<1x8xf32> to vector<2x8xf32>
    %169 = arith.addf %166, %168 : vector<2x8xf32>
    %170 = arith.negf %169 : vector<2x8xf32>
    %171 = math.exp %170 : vector<2x8xf32>
    %cst_115 = arith.constant 1.000000e+00 : f32
    %172 = vector.broadcast %cst_115 : f32 to vector<2x8xf32>
    %173 = arith.addf %172, %171 : vector<2x8xf32>
    %174 = arith.divf %172, %173 : vector<2x8xf32>
    %c0_116 = arith.constant 0 : index
    %c0_117 = arith.constant 0 : index
    %175 = vector.load %arg24[%c0_116, %c0_117] : memref<2x8xf32, #tpu.memory_space<vmem>>, vector<2x8xf32>
    tpu.vector_store %arg24[%c0_116, %c0_117], %174 {strides = array<i32>} : memref<2x8xf32, #tpu.memory_space<vmem>>, vector<2x8xf32>,
    return
  }
}

</mosaic_0001>

<llo_original>
// kernel: obj_learner_forward.1
$region0: #{obj_learner_forward.1}
  #allocation0 [shape = 'u32[]', space=smem, size = 0x4, offset = 0x4, fixed_abs, tag = 'smem constant byte address 0x4 - core index']
  #allocation1 [shape = 'u32[144,128]{1,0:T(1,128)}', space=vmem, size = 0x12000, scoped, tag = 'internal scratch']
  #allocation2 [shape = 'bf16[46,640]{1,0:T(8,128)(2,1)}', space=vmem, size = 0xf000, scoped, tag = 'scratch operand']
  #allocation3 [shape = 'bf16[48,640]{1,0:T(8,128)(2,1)}', space=vmem, size = 0xf000, scoped, tag = 'scratch operand']
  %s0 = inlined_call_operand.vmem [shape: bf16[98,1536], index: 0, kind: input, shape index: {}]
  %s1 = inlined_call_operand.vmem [shape: bf16[1536,128], index: 1, kind: input, shape index: {}]
  %s2 = inlined_call_operand.vmem [shape: bf16[640,128], index: 2, kind: input, shape index: {}]
  %s3 = inlined_call_operand.vmem [shape: bf16[640,640], index: 3, kind: input, shape index: {}]
  %s4 = inlined_call_operand.vmem [shape: f32[1,8], index: 4, kind: input, shape index: {}]
  %s5 = inlined_call_operand.vmem [shape: f32[1,8], index: 5, kind: input, shape index: {}]
  %s6 = inlined_call_operand.vmem [shape: f32[1,8], index: 6, kind: input, shape index: {}]
  %s7 = inlined_call_operand.vmem [shape: f32[1,8], index: 7, kind: input, shape index: {}]
  %s8 = inlined_call_operand.vmem [shape: f32[128,8], index: 8, kind: input, shape index: {}]
  %s9 = inlined_call_operand.vmem [shape: f32[8,128], index: 9, kind: input, shape index: {}]
  %s10 = inlined_call_operand.vmem [shape: f32[128,8], index: 10, kind: input, shape index: {}]
  %s11 = inlined_call_operand.vmem [shape: f32[8,128], index: 11, kind: input, shape index: {}]
  %s12 = inlined_call_operand.vmem [shape: f32[1,640], index: 12, kind: input, shape index: {}]
  %s13 = inlined_call_operand.vmem [shape: bf16[3,640,256], index: 13, kind: input, shape index: {}]
  %s14 = inlined_call_operand.vmem [shape: f32[16,256], index: 14, kind: input, shape index: {}]
  %s15 = inlined_call_operand.vmem [shape: f32[256,32], index: 15, kind: input, shape index: {}]
  %s16 = inlined_call_operand.vmem [shape: f32[2,16], index: 16, kind: input, shape index: {}]
  %s17 = inlined_call_operand.vmem [shape: f32[1,32], index: 17, kind: input, shape index: {}]
  %s18 = inlined_call_operand.vmem [shape: bf16[32,32], index: 18, kind: input, shape index: {}]
  %s19 = inlined_call_operand.vmem [shape: f32[1,32], index: 19, kind: input, shape index: {}]
  %s20 = inlined_call_operand.vmem [shape: f32[1,32], index: 20, kind: input, shape index: {}]
  %s21 = inlined_call_operand.vmem [shape: f32[1,32], index: 21, kind: input, shape index: {}]
  %s22 = inlined_call_operand.vmem [shape: bf16[32,8], index: 22, kind: input, shape index: {}]
  %s23 = inlined_call_operand.vmem [shape: f32[1,8], index: 23, kind: input, shape index: {}]
  %s24 = inlined_call_operand.hbm [shape: f32[2,8], index: 24, kind: output, shape index: {}]
  %s25 = sld [smem:[#allocation0]]
  $region106: #{obj_learner_forward.1} parent=0
    _
  %s27 = ssub.s32 1, %s25
  %s28 = scalar_select 0, %s27, %s25
  $region1: #{obj_learner_forward.1} parent=0
    #allocation4 [shape = 'u8[1024]{0}', space=vmem, size = 0x400, scoped, tag = 'output window, operand 0, single buffered']
    #allocation5 [shape = 's32[1]{0}', space=sflag, size = 0x4, scoped, tag = 'scoped memory for obj_learner_forward.1']
    %29 = vsyncpa [#allocation5], 0
    // Predicated region
    $region2: #{obj_learner_forward.1} parent=1 // pred_check
      _
    $region3: #{obj_learner_forward.1} parent=1 // pred_check_branch
      %31 = sbr.rel (0) target = $region5
    $region4: #{obj_learner_forward.1} parent=1 // pred_region
      _
    $region5: #{obj_learner_forward.1} parent=1 // pred_fallthru
      _
    // Predicated region
    $region6: #{obj_learner_forward.1} parent=1 // pred_check
      _
    $region7: #{obj_learner_forward.1} parent=1 // pred_check_branch
      %33 = sbr.rel (0) target = $region9
    $region8: #{obj_learner_forward.1} parent=1 // pred_region
      _
    $region9: #{obj_learner_forward.1} parent=1 // pred_fallthru
      _
    // Predicated region
    $region10: #{obj_learner_forward.1} parent=1 // pred_check
      _
    $region11: #{obj_learner_forward.1} parent=1 // pred_check_branch
      %35 = sbr.rel (0) target = $region13
    $region12: #{obj_learner_forward.1} parent=1 // pred_region
      _
    $region13: #{obj_learner_forward.1} parent=1 // pred_fallthru
      _
    // Predicated region
    $region14: #{obj_learner_forward.1} parent=1 // pred_check
      _
    $region15: #{obj_learner_forward.1} parent=1 // pred_check_branch
      %37 = sbr.rel (0) target = $region17
    $region16: #{obj_learner_forward.1} parent=1 // pred_region
      _
    $region17: #{obj_learner_forward.1} parent=1 // pred_fallthru
      _
    // Predicated region
    $region18: #{obj_learner_forward.1} parent=1 // pred_check
      _
    $region19: #{obj_learner_forward.1} parent=1 // pred_check_branch
      %39 = sbr.rel (0) target = $region21
    $region20: #{obj_learner_forward.1} parent=1 // pred_region
      _
    $region21: #{obj_learner_forward.1} parent=1 // pred_fallthru
      _
    // Predicated region
    $region22: #{obj_learner_forward.1} parent=1 // pred_check
      _
    $region23: #{obj_learner_forward.1} parent=1 // pred_check_branch
      %41 = sbr.rel (0) target = $region25
    $region24: #{obj_learner_forward.1} parent=1 // pred_region
      _
    $region25: #{obj_learner_forward.1} parent=1 // pred_fallthru
      _
    // Predicated region
    $region26: #{obj_learner_forward.1} parent=1 // pred_check
      _
    $region27: #{obj_learner_forward.1} parent=1 // pred_check_branch
      %43 = sbr.rel (0) target = $region29
    $region28: #{obj_learner_forward.1} parent=1 // pred_region
      _
    $region29: #{obj_learner_forward.1} parent=1 // pred_fallthru
      _
    // Predicated region
    $region30: #{obj_learner_forward.1} parent=1 // pred_check
      _
    $region31: #{obj_learner_forward.1} parent=1 // pred_check_branch
      %45 = sbr.rel (0) target = $region33
    $region32: #{obj_learner_forward.1} parent=1 // pred_region
      _
    $region33: #{obj_learner_forward.1} parent=1 // pred_fallthru
      _
    // Predicated region
    $region34: #{obj_learner_forward.1} parent=1 // pred_check
      _
    $region35: #{obj_learner_forward.1} parent=1 // pred_check_branch
      %47 = sbr.rel (0) target = $region37
    $region36: #{obj_learner_forward.1} parent=1 // pred_region
      _
    $region37: #{obj_learner_forward.1} parent=1 // pred_fallthru
      _
    // Predicated region
    $region38: #{obj_learner_forward.1} parent=1 // pred_check
      _
    $region39: #{obj_learner_forward.1} parent=1 // pred_check_branch
      %49 = sbr.rel (0) target = $region41
    $region40: #{obj_learner_forward.1} parent=1 // pred_region
      _
    $region41: #{obj_learner_forward.1} parent=1 // pred_fallthru
      _
    // Predicated region
    $region42: #{obj_learner_forward.1} parent=1 // pred_check
      _
    $region43: #{obj_learner_forward.1} parent=1 // pred_check_branch
      %51 = sbr.rel (0) target = $region45
    $region44: #{obj_learner_forward.1} parent=1 // pred_region
      _
    $region45: #{obj_learner_forward.1} parent=1 // pred_fallthru
      _
    // Predicated region
    $region46: #{obj_learner_forward.1} parent=1 // pred_check
      _
    $region47: #{obj_learner_forward.1} parent=1 // pred_check_branch
      %53 = sbr.rel (0) target = $region49
    $region48: #{obj_learner_forward.1} parent=1 // pred_region
      _
    $region49: #{obj_learner_forward.1} parent=1 // pred_fallthru
      _
    // Predicated region
    $region50: #{obj_learner_forward.1} parent=1 // pred_check
      _
    $region51: #{obj_learner_forward.1} parent=1 // pred_check_branch
      %55 = sbr.rel (0) target = $region53
    $region52: #{obj_learner_forward.1} parent=1 // pred_region
      _
    $region53: #{obj_learner_forward.1} parent=1 // pred_fallthru
      _
    // Predicated region
    $region54: #{obj_learner_forward.1} parent=1 // pred_check
      _
    $region55: #{obj_learner_forward.1} parent=1 // pred_check_branch
      %57 = sbr.rel (0) target = $region57
    $region56: #{obj_learner_forward.1} parent=1 // pred_region
      _
    $region57: #{obj_learner_forward.1} parent=1 // pred_fallthru
      _
    // Predicated region
    $region58: #{obj_learner_forward.1} parent=1 // pred_check
      _
    $region59: #{obj_learner_forward.1} parent=1 // pred_check_branch
      %59 = sbr.rel (0) target = $region61
    $region60: #{obj_learner_forward.1} parent=1 // pred_region
      _
    $region61: #{obj_learner_forward.1} parent=1 // pred_fallthru
      _
    // Predicated region
    $region62: #{obj_learner_forward.1} parent=1 // pred_check
      _
    $region63: #{obj_learner_forward.1} parent=1 // pred_check_branch
      %61 = sbr.rel (0) target = $region65
    $region64: #{obj_learner_forward.1} parent=1 // pred_region
      _
    $region65: #{obj_learner_forward.1} parent=1 // pred_fallthru
      _
    // Predicated region
    $region66: #{obj_learner_forward.1} parent=1 // pred_check
      _
    $region67: #{obj_learner_forward.1} parent=1 // pred_check_branch
      %63 = sbr.rel (0) target = $region69
    $region68: #{obj_learner_forward.1} parent=1 // pred_region
      _
    $region69: #{obj_learner_forward.1} parent=1 // pred_fallthru
      _
    // Predicated region
    $region70: #{obj_learner_forward.1} parent=1 // pred_check
      _
    $region71: #{obj_learner_forward.1} parent=1 // pred_check_branch
      %65 = sbr.rel (0) target = $region73
    $region72: #{obj_learner_forward.1} parent=1 // pred_region
      _
    $region73: #{obj_learner_forward.1} parent=1 // pred_fallthru
      _
    // Predicated region
    $region74: #{obj_learner_forward.1} parent=1 // pred_check
      _
    $region75: #{obj_learner_forward.1} parent=1 // pred_check_branch
      %67 = sbr.rel (0) target = $region77
    $region76: #{obj_learner_forward.1} parent=1 // pred_region
      _
    $region77: #{obj_learner_forward.1} parent=1 // pred_fallthru
      _
    // Predicated region
    $region78: #{obj_learner_forward.1} parent=1 // pred_check
      _
    $region79: #{obj_learner_forward.1} parent=1 // pred_check_branch
      %69 = sbr.rel (0) target = $region81
    $region80: #{obj_learner_forward.1} parent=1 // pred_region
      _
    $region81: #{obj_learner_forward.1} parent=1 // pred_fallthru
      _
    // Predicated region
    $region82: #{obj_learner_forward.1} parent=1 // pred_check
      _
    $region83: #{obj_learner_forward.1} parent=1 // pred_check_branch
      %71 = sbr.rel (0) target = $region85
    $region84: #{obj_learner_forward.1} parent=1 // pred_region
      _
    $region85: #{obj_learner_forward.1} parent=1 // pred_fallthru
      _
    // Predicated region
    $region86: #{obj_learner_forward.1} parent=1 // pred_check
      _
    $region87: #{obj_learner_forward.1} parent=1 // pred_check_branch
      %73 = sbr.rel (0) target = $region89
    $region88: #{obj_learner_forward.1} parent=1 // pred_region
      _
    $region89: #{obj_learner_forward.1} parent=1 // pred_fallthru
      _
    // Predicated region
    $region90: #{obj_learner_forward.1} parent=1 // pred_check
      _
    $region91: #{obj_learner_forward.1} parent=1 // pred_check_branch
      %75 = sbr.rel (0) target = $region93
    $region92: #{obj_learner_forward.1} parent=1 // pred_region
      _
    $region93: #{obj_learner_forward.1} parent=1 // pred_fallthru
      _
    // Predicated region
    $region94: #{obj_learner_forward.1} parent=1 // pred_check
      _
    $region95: #{obj_learner_forward.1} parent=1 // pred_check_branch
      %77 = sbr.rel (0) target = $region97
    $region96: #{obj_learner_forward.1} parent=1 // pred_region
      _
    $region97: #{obj_learner_forward.1} parent=1 // pred_fallthru
      _
    %v79 = vld [vmem:[%s0] sm:$0xff]
    %v80 = vld [vmem:[%s0 + $0x8] sm:$0xff]
    %v81 = vld [vmem:[%s0 + $0x10] sm:$0xff]
    %v82 = vld [vmem:[%s0 + $0x18] sm:$0xff]
    %v83 = vld [vmem:[%s0 + $0x20] sm:$0xff]
    %v84 = vld [vmem:[%s0 + $0x28] sm:$0xff]
    %v85 = vld [vmem:[%s0 + $0x30] sm:$0xff]
    %v86 = vld [vmem:[%s0 + $0x38] sm:$0xff]
    %v87 = vld [vmem:[%s0 + $0x40] sm:$0xff]
    %v88 = vld [vmem:[%s0 + $0x48] sm:$0xff]
    %v89 = vld [vmem:[%s0 + $0x50] sm:$0xff]
    %v90 = vld [vmem:[%s0 + $0x58] sm:$0xff]
    %v91 = vld [vmem:[%s0 + $0x60] sm:$0xff]
    %v92 = vld [vmem:[%s0 + $0x68] sm:$0xff]
    %v93 = vld [vmem:[%s0 + $0x70] sm:$0xff]
    %v94 = vld [vmem:[%s0 + $0x78] sm:$0xff]
    %v95 = vld [vmem:[%s0 + $0x80] sm:$0xff]
    %v96 = vld [vmem:[%s0 + $0x88] sm:$0xff]
    %v97 = vld [vmem:[%s0 + $0x90] sm:$0xff]
    %v98 = vld [vmem:[%s0 + $0x98] sm:$0xff]
    %v99 = vld [vmem:[%s0 + $0xa0] sm:$0xff]
    %v100 = vld [vmem:[%s0 + $0xa8] sm:$0xff]
    %v101 = vld [vmem:[%s0 + $0xb0] sm:$0xff]
    %v102 = vld [vmem:[%s0 + $0xb8] sm:$0xff]
    %v103 = vld [vmem:[%s0 + $0xc0] sm:$0xff]
    %v104 = vld [vmem:[%s0 + $0xc8] sm:$0xff]
    %v105 = vld [vmem:[%s0 + $0xd0] sm:$0xff]
    %v106 = vld [vmem:[%s0 + $0xd8] sm:$0xff]
    %v107 = vld [vmem:[%s0 + $0xe0] sm:$0xff]
    %v108 = vld [vmem:[%s0 + $0xe8] sm:$0xff]
    %v109 = vld [vmem:[%s0 + $0xf0] sm:$0xff]
    %v110 = vld [vmem:[%s0 + $0xf8] sm:$0xff]
    %v111 = vld [vmem:[%s0 + $0x100] sm:$0xff]
    %v112 = vld [vmem:[%s0 + $0x108] sm:$0xff]
    %v113 = vld [vmem:[%s0 + $0x110] sm:$0xff]
    %v114 = vld [vmem:[%s0 + $0x118] sm:$0xff]
    %v115 = vld [vmem:[%s0 + $0x120] sm:$0xff]
    %v116 = vld [vmem:[%s0 + $0x128] sm:$0xff]
    %v117 = vld [vmem:[%s0 + $0x130] sm:$0xff]
    %v118 = vld [vmem:[%s0 + $0x138] sm:$0xff]
    %v119 = vld [vmem:[%s0 + $0x140] sm:$0xff]
    %v120 = vld [vmem:[%s0 + $0x148] sm:$0xff]
    %v121 = vld [vmem:[%s0 + $0x150] sm:$0xff]
    %v122 = vld [vmem:[%s0 + $0x158] sm:$0xff]
    %v123 = vld [vmem:[%s0 + $0x160] sm:$0xff]
    %v124 = vld [vmem:[%s0 + $0x168] sm:$0xff]
    %v125 = vld [vmem:[%s0 + $0x170] sm:$0xff]
    %v126 = vld [vmem:[%s0 + $0x178] sm:$0xff]
    %v127 = vld [vmem:[%s0 + $0x180] sm:$0xff]
    %v128 = vld [vmem:[%s0 + $0x188] sm:$0xff]
    %v129 = vld [vmem:[%s0 + $0x190] sm:$0xff]
    %v130 = vld [vmem:[%s0 + $0x198] sm:$0xff]
    %v131 = vld [vmem:[%s0 + $0x1a0] sm:$0xff]
    %v132 = vld [vmem:[%s0 + $0x1a8] sm:$0xff]
    %v133 = vld [vmem:[%s0 + $0x1b0] sm:$0xff]
    %v134 = vld [vmem:[%s0 + $0x1b8] sm:$0xff]
    %v135 = vld [vmem:[%s0 + $0x1c0] sm:$0xff]
    %v136 = vld [vmem:[%s0 + $0x1c8] sm:$0xff]
    %v137 = vld [vmem:[%s0 + $0x1d0] sm:$0xff]
    %v138 = vld [vmem:[%s0 + $0x1d8] sm:$0xff]
    %v139 = vld [vmem:[%s0 + $0x1e0] sm:$0xff]
    %v140 = vld [vmem:[%s0 + $0x1e8] sm:$0xff]
    %v141 = vld [vmem:[%s0 + $0x1f0] sm:$0xff]
    %v142 = vld [vmem:[%s0 + $0x1f8] sm:$0xff]
    %v143 = vld [vmem:[%s0 + $0x200] sm:$0xff]
    %v144 = vld [vmem:[%s0 + $0x208] sm:$0xff]
    %v145 = vld [vmem:[%s0 + $0x210] sm:$0xff]
    %v146 = vld [vmem:[%s0 + $0x218] sm:$0xff]
    %v147 = vld [vmem:[%s0 + $0x220] sm:$0xff]
    %v148 = vld [vmem:[%s0 + $0x228] sm:$0xff]
    %v149 = vld [vmem:[%s0 + $0x230] sm:$0xff]
    %v150 = vld [vmem:[%s0 + $0x238] sm:$0xff]
    %v151 = vld [vmem:[%s0 + $0x240] sm:$0x11]
    %v152 = vld [vmem:[%s0 + $0x248] sm:$0x11]
    %v153 = vld [vmem:[%s0 + $0x250] sm:$0x11]
    %v154 = vld [vmem:[%s0 + $0x258] sm:$0x11]
    %v155 = vld [vmem:[%s0 + $0x260] sm:$0x11]
    %v156 = vld [vmem:[%s0 + $0x268] sm:$0x11]
    %v157 = vld [vmem:[%s1] sm:$0xf]
    %v158 = vld [vmem:[%s1 + $0x4] sm:$0xf]
    %v159 = vld [vmem:[%s1 + $0x8] sm:$0xf]
    %v160 = vld [vmem:[%s1 + $0xc] sm:$0xf]
    %v161 = vld [vmem:[%s1 + $0x10] sm:$0xf]
    %v162 = vld [vmem:[%s1 + $0x14] sm:$0xf]
    %v163 = vld [vmem:[%s1 + $0x18] sm:$0xf]
    %v164 = vld [vmem:[%s1 + $0x1c] sm:$0xf]
    %v165 = vld [vmem:[%s1 + $0x20] sm:$0xf]
    %v166 = vld [vmem:[%s1 + $0x24] sm:$0xf]
    %v167 = vld [vmem:[%s1 + $0x28] sm:$0xf]
    %v168 = vld [vmem:[%s1 + $0x2c] sm:$0xf]
    %v169 = vld [vmem:[%s1 + $0x30] sm:$0xf]
    %v170 = vld [vmem:[%s1 + $0x34] sm:$0xf]
    %v171 = vld [vmem:[%s1 + $0x38] sm:$0xf]
    %v172 = vld [vmem:[%s1 + $0x3c] sm:$0xf]
    %v173 = vld [vmem:[%s1 + $0x40] sm:$0xf]
    %v174 = vld [vmem:[%s1 + $0x44] sm:$0xf]
    %v175 = vld [vmem:[%s1 + $0x48] sm:$0xf]
    %v176 = vld [vmem:[%s1 + $0x4c] sm:$0xf]
    %v177 = vld [vmem:[%s1 + $0x50] sm:$0xf]
    %v178 = vld [vmem:[%s1 + $0x54] sm:$0xf]
    %v179 = vld [vmem:[%s1 + $0x58] sm:$0xf]
    %v180 = vld [vmem:[%s1 + $0x5c] sm:$0xf]
    %v181 = vld [vmem:[%s1 + $0x60] sm:$0xf]
    %v182 = vld [vmem:[%s1 + $0x64] sm:$0xf]
    %v183 = vld [vmem:[%s1 + $0x68] sm:$0xf]
    %v184 = vld [vmem:[%s1 + $0x6c] sm:$0xf]
    %v185 = vld [vmem:[%s1 + $0x70] sm:$0xf]
    %v186 = vld [vmem:[%s1 + $0x74] sm:$0xf]
    %v187 = vld [vmem:[%s1 + $0x78] sm:$0xf]
    %v188 = vld [vmem:[%s1 + $0x7c] sm:$0xf]
    %v189 = vld [vmem:[%s1 + $0x80] sm:$0xf]
    %v190 = vld [vmem:[%s1 + $0x84] sm:$0xf]
    %v191 = vld [vmem:[%s1 + $0x88] sm:$0xf]
    %v192 = vld [vmem:[%s1 + $0x8c] sm:$0xf]
    %v193 = vld [vmem:[%s1 + $0x90] sm:$0xf]
    %v194 = vld [vmem:[%s1 + $0x94] sm:$0xf]
    %v195 = vld [vmem:[%s1 + $0x98] sm:$0xf]
    %v196 = vld [vmem:[%s1 + $0x9c] sm:$0xf]
    %v197 = vld [vmem:[%s1 + $0xa0] sm:$0xf]
    %v198 = vld [vmem:[%s1 + $0xa4] sm:$0xf]
    %v199 = vld [vmem:[%s1 + $0xa8] sm:$0xf]
    %v200 = vld [vmem:[%s1 + $0xac] sm:$0xf]
    %v201 = vld [vmem:[%s1 + $0xb0] sm:$0xf]
    %v202 = vld [vmem:[%s1 + $0xb4] sm:$0xf]
    %v203 = vld [vmem:[%s1 + $0xb8] sm:$0xf]
    %v204 = vld [vmem:[%s1 + $0xbc] sm:$0xf]
    %v205 = vld [vmem:[%s1 + $0xc0] sm:$0xf]
    %v206 = vld [vmem:[%s1 + $0xc4] sm:$0xf]
    %v207 = vld [vmem:[%s1 + $0xc8] sm:$0xf]
    %v208 = vld [vmem:[%s1 + $0xcc] sm:$0xf]
    %v209 = vld [vmem:[%s1 + $0xd0] sm:$0xf]
    %v210 = vld [vmem:[%s1 + $0xd4] sm:$0xf]
    %v211 = vld [vmem:[%s1 + $0xd8] sm:$0xf]
    %v212 = vld [vmem:[%s1 + $0xdc] sm:$0xf]
    %v213 = vld [vmem:[%s1 + $0xe0] sm:$0xf]
    %v214 = vld [vmem:[%s1 + $0xe4] sm:$0xf]
    %v215 = vld [vmem:[%s1 + $0xe8] sm:$0xf]
    %v216 = vld [vmem:[%s1 + $0xec] sm:$0xf]
    %v217 = vld [vmem:[%s1 + $0xf0] sm:$0xf]
    %v218 = vld [vmem:[%s1 + $0xf4] sm:$0xf]
    %v219 = vld [vmem:[%s1 + $0xf8] sm:$0xf]
    %v220 = vld [vmem:[%s1 + $0xfc] sm:$0xf]
    %v221 = vld [vmem:[%s1 + $0x100] sm:$0xf]
    %v222 = vld [vmem:[%s1 + $0x104] sm:$0xf]
    %v223 = vld [vmem:[%s1 + $0x108] sm:$0xf]
    %v224 = vld [vmem:[%s1 + $0x10c] sm:$0xf]
    %v225 = vld [vmem:[%s1 + $0x110] sm:$0xf]
    %v226 = vld [vmem:[%s1 + $0x114] sm:$0xf]
    %v227 = vld [vmem:[%s1 + $0x118] sm:$0xf]
    %v228 = vld [vmem:[%s1 + $0x11c] sm:$0xf]
    %v229 = vld [vmem:[%s1 + $0x120] sm:$0xf]
    %v230 = vld [vmem:[%s1 + $0x124] sm:$0xf]
    %v231 = vld [vmem:[%s1 + $0x128] sm:$0xf]
    %v232 = vld [vmem:[%s1 + $0x12c] sm:$0xf]
    %v233 = vld [vmem:[%s1 + $0x130] sm:$0xf]
    %v234 = vld [vmem:[%s1 + $0x134] sm:$0xf]
    %v235 = vld [vmem:[%s1 + $0x138] sm:$0xf]
    %v236 = vld [vmem:[%s1 + $0x13c] sm:$0xf]
    %v237 = vld [vmem:[%s1 + $0x140] sm:$0xf]
    %v238 = vld [vmem:[%s1 + $0x144] sm:$0xf]
    %v239 = vld [vmem:[%s1 + $0x148] sm:$0xf]
    %v240 = vld [vmem:[%s1 + $0x14c] sm:$0xf]
    %v241 = vld [vmem:[%s1 + $0x150] sm:$0xf]
    %v242 = vld [vmem:[%s1 + $0x154] sm:$0xf]
    %v243 = vld [vmem:[%s1 + $0x158] sm:$0xf]
    %v244 = vld [vmem:[%s1 + $0x15c] sm:$0xf]
    %v245 = vld [vmem:[%s1 + $0x160] sm:$0xf]
    %v246 = vld [vmem:[%s1 + $0x164] sm:$0xf]
    %v247 = vld [vmem:[%s1 + $0x168] sm:$0xf]
    %v248 = vld [vmem:[%s1 + $0x16c] sm:$0xf]
    %v249 = vld [vmem:[%s1 + $0x170] sm:$0xf]
    %v250 = vld [vmem:[%s1 + $0x174] sm:$0xf]
    %v251 = vld [vmem:[%s1 + $0x178] sm:$0xf]
    %v252 = vld [vmem:[%s1 + $0x17c] sm:$0xf]
    %v253 = vld [vmem:[%s1 + $0x180] sm:$0xf]
    %v254 = vld [vmem:[%s1 + $0x184] sm:$0xf]
    %v255 = vld [vmem:[%s1 + $0x188] sm:$0xf]
    %v256 = vld [vmem:[%s1 + $0x18c] sm:$0xf]
    %v257 = vld [vmem:[%s1 + $0x190] sm:$0xf]
    %v258 = vld [vmem:[%s1 + $0x194] sm:$0xf]
    %v259 = vld [vmem:[%s1 + $0x198] sm:$0xf]
    %v260 = vld [vmem:[%s1 + $0x19c] sm:$0xf]
    %v261 = vld [vmem:[%s1 + $0x1a0] sm:$0xf]
    %v262 = vld [vmem:[%s1 + $0x1a4] sm:$0xf]
    %v263 = vld [vmem:[%s1 + $0x1a8] sm:$0xf]
    %v264 = vld [vmem:[%s1 + $0x1ac] sm:$0xf]
    %v265 = vld [vmem:[%s1 + $0x1b0] sm:$0xf]
    %v266 = vld [vmem:[%s1 + $0x1b4] sm:$0xf]
    %v267 = vld [vmem:[%s1 + $0x1b8] sm:$0xf]
    %v268 = vld [vmem:[%s1 + $0x1bc] sm:$0xf]
    %v269 = vld [vmem:[%s1 + $0x1c0] sm:$0xf]
    %v270 = vld [vmem:[%s1 + $0x1c4] sm:$0xf]
    %v271 = vld [vmem:[%s1 + $0x1c8] sm:$0xf]
    %v272 = vld [vmem:[%s1 + $0x1cc] sm:$0xf]
    %v273 = vld [vmem:[%s1 + $0x1d0] sm:$0xf]
    %v274 = vld [vmem:[%s1 + $0x1d4] sm:$0xf]
    %v275 = vld [vmem:[%s1 + $0x1d8] sm:$0xf]
    %v276 = vld [vmem:[%s1 + $0x1dc] sm:$0xf]
    %v277 = vld [vmem:[%s1 + $0x1e0] sm:$0xf]
    %v278 = vld [vmem:[%s1 + $0x1e4] sm:$0xf]
    %v279 = vld [vmem:[%s1 + $0x1e8] sm:$0xf]
    %v280 = vld [vmem:[%s1 + $0x1ec] sm:$0xf]
    %v281 = vld [vmem:[%s1 + $0x1f0] sm:$0xf]
    %v282 = vld [vmem:[%s1 + $0x1f4] sm:$0xf]
    %v283 = vld [vmem:[%s1 + $0x1f8] sm:$0xf]
    %v284 = vld [vmem:[%s1 + $0x1fc] sm:$0xf]
    %v285 = vld [vmem:[%s1 + $0x200] sm:$0xf]
    %v286 = vld [vmem:[%s1 + $0x204] sm:$0xf]
    %v287 = vld [vmem:[%s1 + $0x208] sm:$0xf]
    %v288 = vld [vmem:[%s1 + $0x20c] sm:$0xf]
    %v289 = vld [vmem:[%s1 + $0x210] sm:$0xf]
    %v290 = vld [vmem:[%s1 + $0x214] sm:$0xf]
    %v291 = vld [vmem:[%s1 + $0x218] sm:$0xf]
    %v292 = vld [vmem:[%s1 + $0x21c] sm:$0xf]
    %v293 = vld [vmem:[%s1 + $0x220] sm:$0xf]
    %v294 = vld [vmem:[%s1 + $0x224] sm:$0xf]
    %v295 = vld [vmem:[%s1 + $0x228] sm:$0xf]
    %v296 = vld [vmem:[%s1 + $0x22c] sm:$0xf]
    %v297 = vld [vmem:[%s1 + $0x230] sm:$0xf]
    %v298 = vld [vmem:[%s1 + $0x234] sm:$0xf]
    %v299 = vld [vmem:[%s1 + $0x238] sm:$0xf]
    %v300 = vld [vmem:[%s1 + $0x23c] sm:$0xf]
    %v301 = vld [vmem:[%s1 + $0x240] sm:$0xf]
    %v302 = vld [vmem:[%s1 + $0x244] sm:$0xf]
    %v303 = vld [vmem:[%s1 + $0x248] sm:$0xf]
    %v304 = vld [vmem:[%s1 + $0x24c] sm:$0xf]
    %v305 = vld [vmem:[%s1 + $0x250] sm:$0xf]
    %v306 = vld [vmem:[%s1 + $0x254] sm:$0xf]
    %v307 = vld [vmem:[%s1 + $0x258] sm:$0xf]
    %v308 = vld [vmem:[%s1 + $0x25c] sm:$0xf]
    %v309 = vld [vmem:[%s1 + $0x260] sm:$0xf]
    %v310 = vld [vmem:[%s1 + $0x264] sm:$0xf]
    %v311 = vld [vmem:[%s1 + $0x268] sm:$0xf]
    %v312 = vld [vmem:[%s1 + $0x26c] sm:$0xf]
    %v313 = vld [vmem:[%s1 + $0x270] sm:$0xf]
    %v314 = vld [vmem:[%s1 + $0x274] sm:$0xf]
    %v315 = vld [vmem:[%s1 + $0x278] sm:$0xf]
    %v316 = vld [vmem:[%s1 + $0x27c] sm:$0xf]
    %v317 = vld [vmem:[%s1 + $0x280] sm:$0xf]
    %v318 = vld [vmem:[%s1 + $0x284] sm:$0xf]
    %v319 = vld [vmem:[%s1 + $0x288] sm:$0xf]
    %v320 = vld [vmem:[%s1 + $0x28c] sm:$0xf]
    %v321 = vld [vmem:[%s1 + $0x290] sm:$0xf]
    %v322 = vld [vmem:[%s1 + $0x294] sm:$0xf]
    %v323 = vld [vmem:[%s1 + $0x298] sm:$0xf]
    %v324 = vld [vmem:[%s1 + $0x29c] sm:$0xf]
    %v325 = vld [vmem:[%s1 + $0x2a0] sm:$0xf]
    %v326 = vld [vmem:[%s1 + $0x2a4] sm:$0xf]
    %v327 = vld [vmem:[%s1 + $0x2a8] sm:$0xf]
    %v328 = vld [vmem:[%s1 + $0x2ac] sm:$0xf]
    %v329 = vld [vmem:[%s1 + $0x2b0] sm:$0xf]
    %v330 = vld [vmem:[%s1 + $0x2b4] sm:$0xf]
    %v331 = vld [vmem:[%s1 + $0x2b8] sm:$0xf]
    %v332 = vld [vmem:[%s1 + $0x2bc] sm:$0xf]
    %v333 = vld [vmem:[%s1 + $0x2c0] sm:$0xf]
    %v334 = vld [vmem:[%s1 + $0x2c4] sm:$0xf]
    %v335 = vld [vmem:[%s1 + $0x2c8] sm:$0xf]
    %v336 = vld [vmem:[%s1 + $0x2cc] sm:$0xf]
    %v337 = vld [vmem:[%s1 + $0x2d0] sm:$0xf]
    %v338 = vld [vmem:[%s1 + $0x2d4] sm:$0xf]
    %v339 = vld [vmem:[%s1 + $0x2d8] sm:$0xf]
    %v340 = vld [vmem:[%s1 + $0x2dc] sm:$0xf]
    %v341 = vld [vmem:[%s1 + $0x2e0] sm:$0xf]
    %v342 = vld [vmem:[%s1 + $0x2e4] sm:$0xf]
    %v343 = vld [vmem:[%s1 + $0x2e8] sm:$0xf]
    %v344 = vld [vmem:[%s1 + $0x2ec] sm:$0xf]
    %v345 = vld [vmem:[%s1 + $0x2f0] sm:$0xf]
    %v346 = vld [vmem:[%s1 + $0x2f4] sm:$0xf]
    %v347 = vld [vmem:[%s1 + $0x2f8] sm:$0xf]
    %v348 = vld [vmem:[%s1 + $0x2fc] sm:$0xf]
    %v427 = vunpack.c.l.b16 %v79
    %v428 = vunpack.c.h.b16 %v79
    %v429 = vunpack.c.l.b16 %v80
    %v430 = vunpack.c.h.b16 %v80
    %v431 = vunpack.c.l.b16 %v81
    %v432 = vunpack.c.h.b16 %v81
    %v433 = vunpack.c.l.b16 %v82
    %v434 = vunpack.c.h.b16 %v82
    %v435 = vunpack.c.l.b16 %v83
    %v436 = vunpack.c.h.b16 %v83
    %v437 = vunpack.c.l.b16 %v84
    %v438 = vunpack.c.h.b16 %v84
    %v439 = vunpack.c.l.b16 %v85
    %v440 = vunpack.c.h.b16 %v85
    %v441 = vunpack.c.l.b16 %v86
    %v442 = vunpack.c.h.b16 %v86
    %v443 = vunpack.c.l.b16 %v87
    %v444 = vunpack.c.h.b16 %v87
    %v445 = vunpack.c.l.b16 %v88
    %v446 = vunpack.c.h.b16 %v88
    %v447 = vunpack.c.l.b16 %v89
    %v448 = vunpack.c.h.b16 %v89
    %v449 = vunpack.c.l.b16 %v90
    %v450 = vunpack.c.h.b16 %v90
    %v451 = vunpack.c.l.b16 %v91
    %v452 = vunpack.c.h.b16 %v91
    %v453 = vunpack.c.l.b16 %v92
    %v454 = vunpack.c.h.b16 %v92
    %v455 = vunpack.c.l.b16 %v93
    %v456 = vunpack.c.h.b16 %v93
    %v457 = vunpack.c.l.b16 %v94
    %v458 = vunpack.c.h.b16 %v94
    %v459 = vunpack.c.l.b16 %v95
    %v460 = vunpack.c.h.b16 %v95
    %v461 = vunpack.c.l.b16 %v96
    %v462 = vunpack.c.h.b16 %v96
    %v463 = vunpack.c.l.b16 %v97
    %v464 = vunpack.c.h.b16 %v97
    %v465 = vunpack.c.l.b16 %v98
    %v466 = vunpack.c.h.b16 %v98
    %v467 = vunpack.c.l.b16 %v99
    %v468 = vunpack.c.h.b16 %v99
    %v469 = vunpack.c.l.b16 %v100
    %v470 = vunpack.c.h.b16 %v100
    %v471 = vunpack.c.l.b16 %v101
    %v472 = vunpack.c.h.b16 %v101
    %v473 = vunpack.c.l.b16 %v102
    %v474 = vunpack.c.h.b16 %v102
    %v475 = vunpack.c.l.b16 %v103
    %v476 = vunpack.c.h.b16 %v103
    %v477 = vunpack.c.l.b16 %v104
    %v478 = vunpack.c.h.b16 %v104
    %v479 = vunpack.c.l.b16 %v105
    %v480 = vunpack.c.h.b16 %v105
    %v481 = vunpack.c.l.b16 %v106
    %v482 = vunpack.c.h.b16 %v106
    %v483 = vunpack.c.l.b16 %v107
    %v484 = vunpack.c.h.b16 %v107
    %v485 = vunpack.c.l.b16 %v108
    %v486 = vunpack.c.h.b16 %v108
    %v487 = vunpack.c.l.b16 %v109
    %v488 = vunpack.c.h.b16 %v109
    %v489 = vunpack.c.l.b16 %v110
    %v490 = vunpack.c.h.b16 %v110
    %v491 = vunpack.c.l.b16 %v111
    %v492 = vunpack.c.h.b16 %v111
    %v493 = vunpack.c.l.b16 %v112
    %v494 = vunpack.c.h.b16 %v112
    %v495 = vunpack.c.l.b16 %v113
    %v496 = vunpack.c.h.b16 %v113
    %v497 = vunpack.c.l.b16 %v114
    %v498 = vunpack.c.h.b16 %v114
    %v499 = vunpack.c.l.b16 %v115
    %v500 = vunpack.c.h.b16 %v115
    %v501 = vunpack.c.l.b16 %v116
    %v502 = vunpack.c.h.b16 %v116
    %v503 = vunpack.c.l.b16 %v117
    %v504 = vunpack.c.h.b16 %v117
    %v505 = vunpack.c.l.b16 %v118
    %v506 = vunpack.c.h.b16 %v118
    %v507 = vunpack.c.l.b16 %v119
    %v508 = vunpack.c.h.b16 %v119
    %v509 = vunpack.c.l.b16 %v120
    %v510 = vunpack.c.h.b16 %v120
    %v511 = vunpack.c.l.b16 %v121
    %v512 = vunpack.c.h.b16 %v121
    %v513 = vunpack.c.l.b16 %v122
    %v514 = vunpack.c.h.b16 %v122
    %v515 = vunpack.c.l.b16 %v123
    %v516 = vunpack.c.h.b16 %v123
    %v517 = vunpack.c.l.b16 %v124
    %v518 = vunpack.c.h.b16 %v124
    %v519 = vunpack.c.l.b16 %v125
    %v520 = vunpack.c.h.b16 %v125
    %v521 = vunpack.c.l.b16 %v126
    %v522 = vunpack.c.h.b16 %v126
    %v523 = vunpack.c.l.b16 %v127
    %v524 = vunpack.c.h.b16 %v127
    %v525 = vunpack.c.l.b16 %v128
    %v526 = vunpack.c.h.b16 %v128
    %v527 = vunpack.c.l.b16 %v129
    %v528 = vunpack.c.h.b16 %v129
    %v529 = vunpack.c.l.b16 %v130
    %v530 = vunpack.c.h.b16 %v130
    %v531 = vunpack.c.l.b16 %v131
    %v532 = vunpack.c.h.b16 %v131
    %v533 = vunpack.c.l.b16 %v132
    %v534 = vunpack.c.h.b16 %v132
    %v535 = vunpack.c.l.b16 %v133
    %v536 = vunpack.c.h.b16 %v133
    %v537 = vunpack.c.l.b16 %v134
    %v538 = vunpack.c.h.b16 %v134
    %v539 = vunpack.c.l.b16 %v135
    %v540 = vunpack.c.h.b16 %v135
    %v541 = vunpack.c.l.b16 %v136
    %v542 = vunpack.c.h.b16 %v136
    %v543 = vunpack.c.l.b16 %v137
    %v544 = vunpack.c.h.b16 %v137
    %v545 = vunpack.c.l.b16 %v138
    %v546 = vunpack.c.h.b16 %v138
    %v547 = vunpack.c.l.b16 %v139
    %v548 = vunpack.c.h.b16 %v139
    %v549 = vunpack.c.l.b16 %v140
    %v550 = vunpack.c.h.b16 %v140
    %v551 = vunpack.c.l.b16 %v141
    %v552 = vunpack.c.h.b16 %v141
    %v553 = vunpack.c.l.b16 %v142
    %v554 = vunpack.c.h.b16 %v142
    %v555 = vunpack.c.l.b16 %v143
    %v556 = vunpack.c.h.b16 %v143
    %v557 = vunpack.c.l.b16 %v144
    %v558 = vunpack.c.h.b16 %v144
    %v559 = vunpack.c.l.b16 %v145
    %v560 = vunpack.c.h.b16 %v145
    %v561 = vunpack.c.l.b16 %v146
    %v562 = vunpack.c.h.b16 %v146
    %v563 = vunpack.c.l.b16 %v147
    %v564 = vunpack.c.h.b16 %v147
    %v565 = vunpack.c.l.b16 %v148
    %v566 = vunpack.c.h.b16 %v148
    %v567 = vunpack.c.l.b16 %v149
    %v568 = vunpack.c.h.b16 %v149
    %v569 = vunpack.c.l.b16 %v150
    %v570 = vunpack.c.h.b16 %v150
    %v571 = vunpack.c.l.b16 %v151
    %v572 = vunpack.c.h.b16 %v151
    %v573 = vunpack.c.l.b16 %v152
    %v574 = vunpack.c.h.b16 %v152
    %v575 = vunpack.c.l.b16 %v153
    %v576 = vunpack.c.h.b16 %v153
    %v577 = vunpack.c.l.b16 %v154
    %v578 = vunpack.c.h.b16 %v154
    %v579 = vunpack.c.l.b16 %v155
    %v580 = vunpack.c.h.b16 %v155
    %v581 = vunpack.c.l.b16 %v156
    %v582 = vunpack.c.h.b16 %v156
    %v583 = vpack.c.b16 %v439, %v427
    %v584 = vpack.c.b16 %v440, %v428
    %v585 = vpack.c.b16 %v441, %v429
    %v586 = vpack.c.b16 %v442, %v430
    %v587 = vpack.c.b16 %v443, %v431
    %v588 = vpack.c.b16 %v444, %v432
    %v589 = vpack.c.b16 %v445, %v433
    %v590 = vpack.c.b16 %v446, %v434
    %v591 = vpack.c.b16 %v447, %v435
    %v592 = vpack.c.b16 %v448, %v436
    %v593 = vpack.c.b16 %v449, %v437
    %v594 = vpack.c.b16 %v450, %v438
    %v595 = vpack.c.b16 %v463, %v451
    %v596 = vpack.c.b16 %v464, %v452
    %v597 = vpack.c.b16 %v465, %v453
    %v598 = vpack.c.b16 %v466, %v454
    %v599 = vpack.c.b16 %v467, %v455
    %v600 = vpack.c.b16 %v468, %v456
    %v601 = vpack.c.b16 %v469, %v457
    %v602 = vpack.c.b16 %v470, %v458
    %v603 = vpack.c.b16 %v471, %v459
    %v604 = vpack.c.b16 %v472, %v460
    %v605 = vpack.c.b16 %v473, %v461
    %v606 = vpack.c.b16 %v474, %v462
    %v607 = vpack.c.b16 %v487, %v475
    %v608 = vpack.c.b16 %v488, %v476
    %v609 = vpack.c.b16 %v489, %v477
    %v610 = vpack.c.b16 %v490, %v478
    %v611 = vpack.c.b16 %v491, %v479
    %v612 = vpack.c.b16 %v492, %v480
    %v613 = vpack.c.b16 %v493, %v481
    %v614 = vpack.c.b16 %v494, %v482
    %v615 = vpack.c.b16 %v495, %v483
    %v616 = vpack.c.b16 %v496, %v484
    %v617 = vpack.c.b16 %v497, %v485
    %v618 = vpack.c.b16 %v498, %v486
    %v619 = vpack.c.b16 %v511, %v499
    %v620 = vpack.c.b16 %v512, %v500
    %v621 = vpack.c.b16 %v513, %v501
    %v622 = vpack.c.b16 %v514, %v502
    %v623 = vpack.c.b16 %v515, %v503
    %v624 = vpack.c.b16 %v516, %v504
    %v625 = vpack.c.b16 %v517, %v505
    %v626 = vpack.c.b16 %v518, %v506
    %v627 = vpack.c.b16 %v519, %v507
    %v628 = vpack.c.b16 %v520, %v508
    %v629 = vpack.c.b16 %v521, %v509
    %v630 = vpack.c.b16 %v522, %v510
    %v631 = vpack.c.b16 %v535, %v523
    %v632 = vpack.c.b16 %v536, %v524
    %v633 = vpack.c.b16 %v537, %v525
    %v634 = vpack.c.b16 %v538, %v526
    %v635 = vpack.c.b16 %v539, %v527
    %v636 = vpack.c.b16 %v540, %v528
    %v637 = vpack.c.b16 %v541, %v529
    %v638 = vpack.c.b16 %v542, %v530
    %v639 = vpack.c.b16 %v543, %v531
    %v640 = vpack.c.b16 %v544, %v532
    %v641 = vpack.c.b16 %v545, %v533
    %v642 = vpack.c.b16 %v546, %v534
    %v643 = vpack.c.b16 %v559, %v547
    %v644 = vpack.c.b16 %v560, %v548
    %v645 = vpack.c.b16 %v561, %v549
    %v646 = vpack.c.b16 %v562, %v550
    %v647 = vpack.c.b16 %v563, %v551
    %v648 = vpack.c.b16 %v564, %v552
    %v649 = vpack.c.b16 %v565, %v553
    %v650 = vpack.c.b16 %v566, %v554
    %v651 = vpack.c.b16 %v567, %v555
    %v652 = vpack.c.b16 %v568, %v556
    %v653 = vpack.c.b16 %v569, %v557
    %v654 = vpack.c.b16 %v570, %v558
    %v655 = vpack.c.b16 %v571, %v571
    %v656 = vpack.c.b16 %v572, %v572
    %v657 = vpack.c.b16 %v573, %v573
    %v658 = vpack.c.b16 %v574, %v574
    %v659 = vpack.c.b16 %v575, %v575
    %v660 = vpack.c.b16 %v576, %v576
    %v661 = vpack.c.b16 %v577, %v577
    %v662 = vpack.c.b16 %v578, %v578
    %v663 = vpack.c.b16 %v579, %v579
    %v664 = vpack.c.b16 %v580, %v580
    %v665 = vpack.c.b16 %v581, %v581
    %v666 = vpack.c.b16 %v582, %v582
    %v943 = vunpack.c.l.b16 %v157
    %v944 = vunpack.c.l.b16 %v158
    %v945 = vunpack.c.l.b16 %v159
    %v946 = vunpack.c.l.b16 %v160
    %v947 = vunpack.c.l.b16 %v161
    %v948 = vunpack.c.l.b16 %v162
    %v949 = vunpack.c.l.b16 %v163
    %v950 = vunpack.c.l.b16 %v164
    %v951 = vunpack.c.l.b16 %v165
    %v952 = vunpack.c.l.b16 %v166
    %v953 = vunpack.c.l.b16 %v167
    %v954 = vunpack.c.l.b16 %v168
    %v955 = vunpack.c.l.b16 %v169
    %v956 = vunpack.c.l.b16 %v170
    %v957 = vunpack.c.l.b16 %v171
    %v958 = vunpack.c.l.b16 %v172
    %v959 = vunpack.c.l.b16 %v173
    %v960 = vunpack.c.l.b16 %v174
    %v961 = vunpack.c.l.b16 %v175
    %v962 = vunpack.c.l.b16 %v176
    %v963 = vunpack.c.l.b16 %v177
    %v964 = vunpack.c.l.b16 %v178
    %v965 = vunpack.c.l.b16 %v179
    %v966 = vunpack.c.l.b16 %v180
    %v967 = vunpack.c.l.b16 %v181
    %v968 = vunpack.c.l.b16 %v182
    %v969 = vunpack.c.l.b16 %v183
    %v970 = vunpack.c.l.b16 %v184
    %v971 = vunpack.c.l.b16 %v185
    %v972 = vunpack.c.l.b16 %v186
    %v973 = vunpack.c.l.b16 %v187
    %v974 = vunpack.c.l.b16 %v188
    %v975 = vunpack.c.l.b16 %v189
    %v976 = vunpack.c.l.b16 %v190
    %v977 = vunpack.c.l.b16 %v191
    %v978 = vunpack.c.l.b16 %v192
    %v979 = vunpack.c.l.b16 %v193
    %v980 = vunpack.c.l.b16 %v194
    %v981 = vunpack.c.l.b16 %v195
    %v982 = vunpack.c.l.b16 %v196
    %v983 = vunpack.c.l.b16 %v197
    %v984 = vunpack.c.l.b16 %v198
    %v985 = vunpack.c.l.b16 %v199
    %v986 = vunpack.c.l.b16 %v200
    %v987 = vunpack.c.l.b16 %v201
    %v988 = vunpack.c.l.b16 %v202
    %v989 = vunpack.c.l.b16 %v203
    %v990 = vunpack.c.l.b16 %v204
    %v991 = vunpack.c.l.b16 %v205
    %v992 = vunpack.c.l.b16 %v206
    %v993 = vunpack.c.l.b16 %v207
    %v994 = vunpack.c.l.b16 %v208
    %v995 = vunpack.c.l.b16 %v209
    %v996 = vunpack.c.l.b16 %v210
    %v997 = vunpack.c.l.b16 %v211
    %v998 = vunpack.c.l.b16 %v212
    %v999 = vunpack.c.l.b16 %v213
    %v1000 = vunpack.c.l.b16 %v214
    %v1001 = vunpack.c.l.b16 %v215
    %v1002 = vunpack.c.l.b16 %v216
    %v1003 = vunpack.c.l.b16 %v217
    %v1004 = vunpack.c.l.b16 %v218
    %v1005 = vunpack.c.l.b16 %v219
    %v1006 = vunpack.c.l.b16 %v220
    %v1007 = vunpack.c.l.b16 %v221
    %v1008 = vunpack.c.l.b16 %v222
    %v1009 = vunpack.c.l.b16 %v223
    %v1010 = vunpack.c.l.b16 %v224
    %v1011 = vunpack.c.l.b16 %v225
    %v1012 = vunpack.c.l.b16 %v226
    %v1013 = vunpack.c.l.b16 %v227
    %v1014 = vunpack.c.l.b16 %v228
    %v1015 = vunpack.c.l.b16 %v229
    %v1016 = vunpack.c.l.b16 %v230
    %v1017 = vunpack.c.l.b16 %v231
    %v1018 = vunpack.c.l.b16 %v232
    %v1019 = vunpack.c.l.b16 %v233
    %v1020 = vunpack.c.l.b16 %v234
    %v1021 = vunpack.c.l.b16 %v235
    %v1022 = vunpack.c.l.b16 %v236
    %v1023 = vunpack.c.l.b16 %v237
    %v1024 = vunpack.c.l.b16 %v238
    %v1025 = vunpack.c.l.b16 %v239
    %v1026 = vunpack.c.l.b16 %v240
    %v1027 = vunpack.c.l.b16 %v241
    %v1028 = vunpack.c.l.b16 %v242
    %v1029 = vunpack.c.l.b16 %v243
    %v1030 = vunpack.c.l.b16 %v244
    %v1031 = vunpack.c.l.b16 %v245
    %v1032 = vunpack.c.l.b16 %v246
    %v1033 = vunpack.c.l.b16 %v247
    %v1034 = vunpack.c.l.b16 %v248
    %v1035 = vunpack.c.l.b16 %v249
    %v1036 = vunpack.c.l.b16 %v250
    %v1037 = vunpack.c.l.b16 %v251
    %v1038 = vunpack.c.l.b16 %v252
    %v1039 = vunpack.c.l.b16 %v253
    %v1040 = vunpack.c.l.b16 %v254
    %v1041 = vunpack.c.l.b16 %v255
    %v1042 = vunpack.c.l.b16 %v256
    %v1043 = vunpack.c.l.b16 %v257
    %v1044 = vunpack.c.l.b16 %v258
    %v1045 = vunpack.c.l.b16 %v259
    %v1046 = vunpack.c.l.b16 %v260
    %v1047 = vunpack.c.l.b16 %v261
    %v1048 = vunpack.c.l.b16 %v262
    %v1049 = vunpack.c.l.b16 %v263
    %v1050 = vunpack.c.l.b16 %v264
    %v1051 = vunpack.c.l.b16 %v265
    %v1052 = vunpack.c.l.b16 %v266
    %v1053 = vunpack.c.l.b16 %v267
    %v1054 = vunpack.c.l.b16 %v268
    %v1055 = vunpack.c.l.b16 %v269
    %v1056 = vunpack.c.l.b16 %v270
    %v1057 = vunpack.c.l.b16 %v271
    %v1058 = vunpack.c.l.b16 %v272
    %v1059 = vunpack.c.l.b16 %v273
    %v1060 = vunpack.c.l.b16 %v274
    %v1061 = vunpack.c.l.b16 %v275
    %v1062 = vunpack.c.l.b16 %v276
    %v1063 = vunpack.c.l.b16 %v277
    %v1064 = vunpack.c.l.b16 %v278
    %v1065 = vunpack.c.l.b16 %v279
    %v1066 = vunpack.c.l.b16 %v280
    %v1067 = vunpack.c.l.b16 %v281
    %v1068 = vunpack.c.l.b16 %v282
    %v1069 = vunpack.c.l.b16 %v283
    %v1070 = vunpack.c.l.b16 %v284
    %v1071 = vunpack.c.l.b16 %v285
    %v1072 = vunpack.c.l.b16 %v286
    %v1073 = vunpack.c.l.b16 %v287
    %v1074 = vunpack.c.l.b16 %v288
    %v1075 = vunpack.c.l.b16 %v289
    %v1076 = vunpack.c.l.b16 %v290
    %v1077 = vunpack.c.l.b16 %v291
    %v1078 = vunpack.c.l.b16 %v292
    %v1079 = vunpack.c.l.b16 %v293
    %v1080 = vunpack.c.l.b16 %v294
    %v1081 = vunpack.c.l.b16 %v295
    %v1082 = vunpack.c.l.b16 %v296
    %v1083 = vunpack.c.l.b16 %v297
    %v1084 = vunpack.c.l.b16 %v298
    %v1085 = vunpack.c.l.b16 %v299
    %v1086 = vunpack.c.l.b16 %v300
    %v1087 = vunpack.c.l.b16 %v301
    %v1088 = vunpack.c.l.b16 %v302
    %v1089 = vunpack.c.l.b16 %v303
    %v1090 = vunpack.c.l.b16 %v304
    %v1091 = vunpack.c.l.b16 %v305
    %v1092 = vunpack.c.l.b16 %v306
    %v1093 = vunpack.c.l.b16 %v307
    %v1094 = vunpack.c.l.b16 %v308
    %v1095 = vunpack.c.l.b16 %v309
    %v1096 = vunpack.c.l.b16 %v310
    %v1097 = vunpack.c.l.b16 %v311
    %v1098 = vunpack.c.l.b16 %v312
    %v1099 = vunpack.c.l.b16 %v313
    %v1100 = vunpack.c.l.b16 %v314
    %v1101 = vunpack.c.l.b16 %v315
    %v1102 = vunpack.c.l.b16 %v316
    %v1103 = vunpack.c.l.b16 %v317
    %v1104 = vunpack.c.l.b16 %v318
    %v1105 = vunpack.c.l.b16 %v319
    %v1106 = vunpack.c.l.b16 %v320
    %v1107 = vunpack.c.l.b16 %v321
    %v1108 = vunpack.c.l.b16 %v322
    %v1109 = vunpack.c.l.b16 %v323
    %v1110 = vunpack.c.l.b16 %v324
    %v1111 = vunpack.c.l.b16 %v325
    %v1112 = vunpack.c.l.b16 %v326
    %v1113 = vunpack.c.l.b16 %v327
    %v1114 = vunpack.c.l.b16 %v328
    %v1115 = vunpack.c.l.b16 %v329
    %v1116 = vunpack.c.l.b16 %v330
    %v1117 = vunpack.c.l.b16 %v331
    %v1118 = vunpack.c.l.b16 %v332
    %v1119 = vunpack.c.l.b16 %v333
    %v1120 = vunpack.c.l.b16 %v334
    %v1121 = vunpack.c.l.b16 %v335
    %v1122 = vunpack.c.l.b16 %v336
    %v1123 = vunpack.c.l.b16 %v337
    %v1124 = vunpack.c.l.b16 %v338
    %v1125 = vunpack.c.l.b16 %v339
    %v1126 = vunpack.c.l.b16 %v340
    %v1127 = vunpack.c.l.b16 %v341
    %v1128 = vunpack.c.l.b16 %v342
    %v1129 = vunpack.c.l.b16 %v343
    %v1130 = vunpack.c.l.b16 %v344
    %v1131 = vunpack.c.l.b16 %v345
    %v1132 = vunpack.c.l.b16 %v346
    %v1133 = vunpack.c.l.b16 %v347
    %v1134 = vunpack.c.l.b16 %v348
    %v1135 = vpack.c.b16 %v944, %v943
    %v1136 = vpack.c.b16 %v946, %v945
    %v1137 = vpack.c.b16 %v948, %v947
    %v1138 = vpack.c.b16 %v950, %v949
    %v1139 = vpack.c.b16 %v952, %v951
    %v1140 = vpack.c.b16 %v954, %v953
    %v1141 = vpack.c.b16 %v956, %v955
    %v1142 = vpack.c.b16 %v958, %v957
    %v1143 = vpack.c.b16 %v960, %v959
    %v1144 = vpack.c.b16 %v962, %v961
    %v1145 = vpack.c.b16 %v964, %v963
    %v1146 = vpack.c.b16 %v966, %v965
    %v1147 = vpack.c.b16 %v968, %v967
    %v1148 = vpack.c.b16 %v970, %v969
    %v1149 = vpack.c.b16 %v972, %v971
    %v1150 = vpack.c.b16 %v974, %v973
    %v1151 = vpack.c.b16 %v976, %v975
    %v1152 = vpack.c.b16 %v978, %v977
    %v1153 = vpack.c.b16 %v980, %v979
    %v1154 = vpack.c.b16 %v982, %v981
    %v1155 = vpack.c.b16 %v984, %v983
    %v1156 = vpack.c.b16 %v986, %v985
    %v1157 = vpack.c.b16 %v988, %v987
    %v1158 = vpack.c.b16 %v990, %v989
    %v1159 = vpack.c.b16 %v992, %v991
    %v1160 = vpack.c.b16 %v994, %v993
    %v1161 = vpack.c.b16 %v996, %v995
    %v1162 = vpack.c.b16 %v998, %v997
    %v1163 = vpack.c.b16 %v1000, %v999
    %v1164 = vpack.c.b16 %v1002, %v1001
    %v1165 = vpack.c.b16 %v1004, %v1003
    %v1166 = vpack.c.b16 %v1006, %v1005
    %v1167 = vpack.c.b16 %v1008, %v1007
    %v1168 = vpack.c.b16 %v1010, %v1009
    %v1169 = vpack.c.b16 %v1012, %v1011
    %v1170 = vpack.c.b16 %v1014, %v1013
    %v1171 = vpack.c.b16 %v1016, %v1015
    %v1172 = vpack.c.b16 %v1018, %v1017
    %v1173 = vpack.c.b16 %v1020, %v1019
    %v1174 = vpack.c.b16 %v1022, %v1021
    %v1175 = vpack.c.b16 %v1024, %v1023
    %v1176 = vpack.c.b16 %v1026, %v1025
    %v1177 = vpack.c.b16 %v1028, %v1027
    %v1178 = vpack.c.b16 %v1030, %v1029
    %v1179 = vpack.c.b16 %v1032, %v1031
    %v1180 = vpack.c.b16 %v1034, %v1033
    %v1181 = vpack.c.b16 %v1036, %v1035
    %v1182 = vpack.c.b16 %v1038, %v1037
    %v1183 = vpack.c.b16 %v1040, %v1039
    %v1184 = vpack.c.b16 %v1042, %v1041
    %v1185 = vpack.c.b16 %v1044, %v1043
    %v1186 = vpack.c.b16 %v1046, %v1045
    %v1187 = vpack.c.b16 %v1048, %v1047
    %v1188 = vpack.c.b16 %v1050, %v1049
    %v1189 = vpack.c.b16 %v1052, %v1051
    %v1190 = vpack.c.b16 %v1054, %v1053
    %v1191 = vpack.c.b16 %v1056, %v1055
    %v1192 = vpack.c.b16 %v1058, %v1057
    %v1193 = vpack.c.b16 %v1060, %v1059
    %v1194 = vpack.c.b16 %v1062, %v1061
    %v1195 = vpack.c.b16 %v1064, %v1063
    %v1196 = vpack.c.b16 %v1066, %v1065
    %v1197 = vpack.c.b16 %v1068, %v1067
    %v1198 = vpack.c.b16 %v1070, %v1069
    %v1199 = vpack.c.b16 %v1072, %v1071
    %v1200 = vpack.c.b16 %v1074, %v1073
    %v1201 = vpack.c.b16 %v1076, %v1075
    %v1202 = vpack.c.b16 %v1078, %v1077
    %v1203 = vpack.c.b16 %v1080, %v1079
    %v1204 = vpack.c.b16 %v1082, %v1081
    %v1205 = vpack.c.b16 %v1084, %v1083
    %v1206 = vpack.c.b16 %v1086, %v1085
    %v1207 = vpack.c.b16 %v1088, %v1087
    %v1208 = vpack.c.b16 %v1090, %v1089
    %v1209 = vpack.c.b16 %v1092, %v1091
    %v1210 = vpack.c.b16 %v1094, %v1093
    %v1211 = vpack.c.b16 %v1096, %v1095
    %v1212 = vpack.c.b16 %v1098, %v1097
    %v1213 = vpack.c.b16 %v1100, %v1099
    %v1214 = vpack.c.b16 %v1102, %v1101
    %v1215 = vpack.c.b16 %v1104, %v1103
    %v1216 = vpack.c.b16 %v1106, %v1105
    %v1217 = vpack.c.b16 %v1108, %v1107
    %v1218 = vpack.c.b16 %v1110, %v1109
    %v1219 = vpack.c.b16 %v1112, %v1111
    %v1220 = vpack.c.b16 %v1114, %v1113
    %v1221 = vpack.c.b16 %v1116, %v1115
    %v1222 = vpack.c.b16 %v1118, %v1117
    %v1223 = vpack.c.b16 %v1120, %v1119
    %v1224 = vpack.c.b16 %v1122, %v1121
    %v1225 = vpack.c.b16 %v1124, %v1123
    %v1226 = vpack.c.b16 %v1126, %v1125
    %v1227 = vpack.c.b16 %v1128, %v1127
    %v1228 = vpack.c.b16 %v1130, %v1129
    %v1229 = vpack.c.b16 %v1132, %v1131
    %v1230 = vpack.c.b16 %v1134, %v1133
    %1327 = vmatprep.subr.bf16.mxu0 0
    %1328 = vmatpush1.bf16.msra.mxu0 %v1142
    %1329 = vmatprep.subr.bf16.mxu0 0
    %1330 = vmatpush1.bf16.msra.mxu0 %v1141
    %1331 = vmatprep.subr.bf16.mxu0 0
    %1332 = vmatpush1.bf16.msra.mxu0 %v1140
    %1333 = vmatprep.subr.bf16.mxu0 0
    %1334 = vmatpush1.bf16.msra.mxu0 %v1139
    %1335 = vmatprep.subr.bf16.mxu0 0
    %1336 = vmatpush1.bf16.msra.mxu0 %v1138
    %1337 = vmatprep.subr.bf16.mxu0 0
    %1338 = vmatpush1.bf16.msra.mxu0 %v1137
    %1339 = vmatprep.subr.bf16.mxu0 0
    %1340 = vmatpush1.bf16.msra.mxu0 %v1136
    %1341 = vmatprep.subr.bf16.mxu0 0
    %1342 = vmatpush1.bf16.msra.mxu0 %v1135
    %1343 = vmatprep.subr.bf16.mxu0 0
    %1344 = vmatpush2.bf16.msra.mxu0 %v1150
    %1345 = vmatprep.subr.bf16.mxu0 0
    %1346 = vmatpush2.bf16.msra.mxu0 %v1149
    %1347 = vmatprep.subr.bf16.mxu0 0
    %1348 = vmatpush2.bf16.msra.mxu0 %v1148
    %1349 = vmatprep.subr.bf16.mxu0 0
    %1350 = vmatpush2.bf16.msra.mxu0 %v1147
    %1351 = vmatprep.subr.bf16.mxu0 0
    %1352 = vmatpush2.bf16.msra.mxu0 %v1146
    %1353 = vmatprep.subr.bf16.mxu0 0
    %1354 = vmatpush2.bf16.msra.mxu0 %v1145
    %1355 = vmatprep.subr.bf16.mxu0 0
    %1356 = vmatpush2.bf16.msra.mxu0 %v1144
    %1357 = vmatprep.subr.bf16.mxu0 0
    %1358 = vmatpush2.bf16.msra.mxu0 %v1143
    %1359 = vmatprep.mubr.bf16.mxu0 %v584
    %1360 = vmatmul.mubr.bf16.gmra.mxu0 %v583
    %v1361 = vpop.f32.mrf.mxu0
    %v1362 = vadd.f32 0.0, %v1361
    %v1363 = vpop.f32.mrf.mxu0
    %v1364 = vpop.f32.mrf.mxu0
    %v1365 = vadd.f32 0.0, %v1364
    %v1366 = vpop.f32.mrf.mxu0
    %1367 = vmatprep.mubr.bf16.mxu0 %v596
    %1368 = vmatmul.mubr.bf16.gmra.mxu0 %v595
    %v1369 = vpop.f32.mrf.mxu0
    %v1370 = vadd.f32 0.0, %v1369
    %v1371 = vpop.f32.mrf.mxu0
    %v1372 = vpop.f32.mrf.mxu0
    %v1373 = vadd.f32 0.0, %v1372
    %v1374 = vpop.f32.mrf.mxu0
    %1375 = vmatprep.mubr.bf16.mxu0 %v608
    %1376 = vmatmul.mubr.bf16.gmra.mxu0 %v607
    %v1377 = vpop.f32.mrf.mxu0
    %v1378 = vadd.f32 0.0, %v1377
    %v1379 = vpop.f32.mrf.mxu0
    %v1380 = vpop.f32.mrf.mxu0
    %v1381 = vadd.f32 0.0, %v1380
    %v1382 = vpop.f32.mrf.mxu0
    %1383 = vmatprep.mubr.bf16.mxu0 %v620
    %1384 = vmatmul.mubr.bf16.gmra.mxu0 %v619
    %v1385 = vpop.f32.mrf.mxu0
    %v1386 = vadd.f32 0.0, %v1385
    %v1387 = vpop.f32.mrf.mxu0
    %v1388 = vpop.f32.mrf.mxu0
    %v1389 = vadd.f32 0.0, %v1388
    %v1390 = vpop.f32.mrf.mxu0
    %1391 = vmatprep.mubr.bf16.mxu0 %v632
    %1392 = vmatmul.mubr.bf16.gmra.mxu0 %v631
    %v1393 = vpop.f32.mrf.mxu0
    %v1394 = vadd.f32 0.0, %v1393
    %v1395 = vpop.f32.mrf.mxu0
    %v1396 = vpop.f32.mrf.mxu0
    %v1397 = vadd.f32 0.0, %v1396
    %v1398 = vpop.f32.mrf.mxu0
    %1399 = vmatprep.mubr.bf16.mxu0 %v644
    %1400 = vmatmul.mubr.bf16.gmra.mxu0 %v643
    %v1401 = vpop.f32.mrf.mxu0
    %v1402 = vadd.f32 0.0, %v1401
    %v1403 = vpop.f32.mrf.mxu0
    %v1404 = vpop.f32.mrf.mxu0
    %v1405 = vadd.f32 0.0, %v1404
    %v1406 = vpop.f32.mrf.mxu0
    %1407 = vmatprep.mubr.bf16.mxu0 %v656
    %1408 = vmatmul.mubr.bf16.gmra.mxu0 %v655
    %v1409 = vpop.f32.mrf.mxu0
    %v1410 = vadd.f32 0.0, %v1409
    %v1411 = vpop.f32.mrf.mxu0
    %v1412 = vpop.f32.mrf.mxu0
    %v1413 = vpop.f32.mrf.mxu0
    %1414 = vdwg.mxu0
    %1415 = vmatprep.subr.bf16.mxu0 0
    %1416 = vmatpush1.bf16.msra.mxu0 %v1158
    %1417 = vmatprep.subr.bf16.mxu0 0
    %1418 = vmatpush1.bf16.msra.mxu0 %v1157
    %1419 = vmatprep.subr.bf16.mxu0 0
    %1420 = vmatpush1.bf16.msra.mxu0 %v1156
    %1421 = vmatprep.subr.bf16.mxu0 0
    %1422 = vmatpush1.bf16.msra.mxu0 %v1155
    %1423 = vmatprep.subr.bf16.mxu0 0
    %1424 = vmatpush1.bf16.msra.mxu0 %v1154
    %1425 = vmatprep.subr.bf16.mxu0 0
    %1426 = vmatpush1.bf16.msra.mxu0 %v1153
    %1427 = vmatprep.subr.bf16.mxu0 0
    %1428 = vmatpush1.bf16.msra.mxu0 %v1152
    %1429 = vmatprep.subr.bf16.mxu0 0
    %1430 = vmatpush1.bf16.msra.mxu0 %v1151
    %1431 = vmatprep.subr.bf16.mxu0 0
    %1432 = vmatpush2.bf16.msra.mxu0 %v1166
    %1433 = vmatprep.subr.bf16.mxu0 0
    %1434 = vmatpush2.bf16.msra.mxu0 %v1165
    %1435 = vmatprep.subr.bf16.mxu0 0
    %1436 = vmatpush2.bf16.msra.mxu0 %v1164
    %1437 = vmatprep.subr.bf16.mxu0 0
    %1438 = vmatpush2.bf16.msra.mxu0 %v1163
    %1439 = vmatprep.subr.bf16.mxu0 0
    %1440 = vmatpush2.bf16.msra.mxu0 %v1162
    %1441 = vmatprep.subr.bf16.mxu0 0
    %1442 = vmatpush2.bf16.msra.mxu0 %v1161
    %1443 = vmatprep.subr.bf16.mxu0 0
    %1444 = vmatpush2.bf16.msra.mxu0 %v1160
    %1445 = vmatprep.subr.bf16.mxu0 0
    %1446 = vmatpush2.bf16.msra.mxu0 %v1159
    %1447 = vmatprep.mubr.bf16.mxu0 %v586
    %1448 = vmatmul.mubr.bf16.gmra.mxu0 %v585
    %v1449 = vpop.f32.mrf.mxu0
    %v1450 = vadd.f32 %v1362, %v1449
    %v1451 = vpop.f32.mrf.mxu0
    %v1452 = vpop.f32.mrf.mxu0
    %v1453 = vadd.f32 %v1365, %v1452
    %v1454 = vpop.f32.mrf.mxu0
    %1455 = vmatprep.mubr.bf16.mxu0 %v598
    %1456 = vmatmul.mubr.bf16.gmra.mxu0 %v597
    %v1457 = vpop.f32.mrf.mxu0
    %v1458 = vadd.f32 %v1370, %v1457
    %v1459 = vpop.f32.mrf.mxu0
    %v1460 = vpop.f32.mrf.mxu0
    %v1461 = vadd.f32 %v1373, %v1460
    %v1462 = vpop.f32.mrf.mxu0
    %1463 = vmatprep.mubr.bf16.mxu0 %v610
    %1464 = vmatmul.mubr.bf16.gmra.mxu0 %v609
    %v1465 = vpop.f32.mrf.mxu0
    %v1466 = vadd.f32 %v1378, %v1465
    %v1467 = vpop.f32.mrf.mxu0
    %v1468 = vpop.f32.mrf.mxu0
    %v1469 = vadd.f32 %v1381, %v1468
    %v1470 = vpop.f32.mrf.mxu0
    %1471 = vmatprep.mubr.bf16.mxu0 %v622
    %1472 = vmatmul.mubr.bf16.gmra.mxu0 %v621
    %v1473 = vpop.f32.mrf.mxu0
    %v1474 = vadd.f32 %v1386, %v1473
    %v1475 = vpop.f32.mrf.mxu0
    %v1476 = vpop.f32.mrf.mxu0
    %v1477 = vadd.f32 %v1389, %v1476
    %v1478 = vpop.f32.mrf.mxu0
    %1479 = vmatprep.mubr.bf16.mxu0 %v634
    %1480 = vmatmul.mubr.bf16.gmra.mxu0 %v633
    %v1481 = vpop.f32.mrf.mxu0
    %v1482 = vadd.f32 %v1394, %v1481
    %v1483 = vpop.f32.mrf.mxu0
    %v1484 = vpop.f32.mrf.mxu0
    %v1485 = vadd.f32 %v1397, %v1484
    %v1486 = vpop.f32.mrf.mxu0
    %1487 = vmatprep.mubr.bf16.mxu0 %v646
    %1488 = vmatmul.mubr.bf16.gmra.mxu0 %v645
    %v1489 = vpop.f32.mrf.mxu0
    %v1490 = vadd.f32 %v1402, %v1489
    %v1491 = vpop.f32.mrf.mxu0
    %v1492 = vpop.f32.mrf.mxu0
    %v1493 = vadd.f32 %v1405, %v1492
    %v1494 = vpop.f32.mrf.mxu0
    %1495 = vmatprep.mubr.bf16.mxu0 %v658
    %1496 = vmatmul.mubr.bf16.gmra.mxu0 %v657
    %v1497 = vpop.f32.mrf.mxu0
    %v1498 = vadd.f32 %v1410, %v1497
    %v1499 = vpop.f32.mrf.mxu0
    %v1500 = vpop.f32.mrf.mxu0
    %v1501 = vpop.f32.mrf.mxu0
    %1502 = vdwg.mxu0
    %1503 = vmatprep.subr.bf16.mxu0 0
    %1504 = vmatpush1.bf16.msra.mxu0 %v1174
    %1505 = vmatprep.subr.bf16.mxu0 0
    %1506 = vmatpush1.bf16.msra.mxu0 %v1173
    %1507 = vmatprep.subr.bf16.mxu0 0
    %1508 = vmatpush1.bf16.msra.mxu0 %v1172
    %1509 = vmatprep.subr.bf16.mxu0 0
    %1510 = vmatpush1.bf16.msra.mxu0 %v1171
    %1511 = vmatprep.subr.bf16.mxu0 0
    %1512 = vmatpush1.bf16.msra.mxu0 %v1170
    %1513 = vmatprep.subr.bf16.mxu0 0
    %1514 = vmatpush1.bf16.msra.mxu0 %v1169
    %1515 = vmatprep.subr.bf16.mxu0 0
    %1516 = vmatpush1.bf16.msra.mxu0 %v1168
    %1517 = vmatprep.subr.bf16.mxu0 0
    %1518 = vmatpush1.bf16.msra.mxu0 %v1167
    %1519 = vmatprep.subr.bf16.mxu0 0
    %1520 = vmatpush2.bf16.msra.mxu0 %v1182
    %1521 = vmatprep.subr.bf16.mxu0 0
    %1522 = vmatpush2.bf16.msra.mxu0 %v1181
    %1523 = vmatprep.subr.bf16.mxu0 0
    %1524 = vmatpush2.bf16.msra.mxu0 %v1180
    %1525 = vmatprep.subr.bf16.mxu0 0
    %1526 = vmatpush2.bf16.msra.mxu0 %v1179
    %1527 = vmatprep.subr.bf16.mxu0 0
    %1528 = vmatpush2.bf16.msra.mxu0 %v1178
    %1529 = vmatprep.subr.bf16.mxu0 0
    %1530 = vmatpush2.bf16.msra.mxu0 %v1177
    %1531 = vmatprep.subr.bf16.mxu0 0
    %1532 = vmatpush2.bf16.msra.mxu0 %v1176
    %1533 = vmatprep.subr.bf16.mxu0 0
    %1534 = vmatpush2.bf16.msra.mxu0 %v1175
    %1535 = vmatprep.mubr.bf16.mxu0 %v588
    %1536 = vmatmul.mubr.bf16.gmra.mxu0 %v587
    %v1537 = vpop.f32.mrf.mxu0
    %v1538 = vadd.f32 %v1450, %v1537
    %v1539 = vpop.f32.mrf.mxu0
    %v1540 = vpop.f32.mrf.mxu0
    %v1541 = vadd.f32 %v1453, %v1540
    %v1542 = vpop.f32.mrf.mxu0
    %1543 = vmatprep.mubr.bf16.mxu0 %v600
    %1544 = vmatmul.mubr.bf16.gmra.mxu0 %v599
    %v1545 = vpop.f32.mrf.mxu0
    %v1546 = vadd.f32 %v1458, %v1545
    %v1547 = vpop.f32.mrf.mxu0
    %v1548 = vpop.f32.mrf.mxu0
    %v1549 = vadd.f32 %v1461, %v1548
    %v1550 = vpop.f32.mrf.mxu0
    %1551 = vmatprep.mubr.bf16.mxu0 %v612
    %1552 = vmatmul.mubr.bf16.gmra.mxu0 %v611
    %v1553 = vpop.f32.mrf.mxu0
    %v1554 = vadd.f32 %v1466, %v1553
    %v1555 = vpop.f32.mrf.mxu0
    %v1556 = vpop.f32.mrf.mxu0
    %v1557 = vadd.f32 %v1469, %v1556
    %v1558 = vpop.f32.mrf.mxu0
    %1559 = vmatprep.mubr.bf16.mxu0 %v624
    %1560 = vmatmul.mubr.bf16.gmra.mxu0 %v623
    %v1561 = vpop.f32.mrf.mxu0
    %v1562 = vadd.f32 %v1474, %v1561
    %v1563 = vpop.f32.mrf.mxu0
    %v1564 = vpop.f32.mrf.mxu0
    %v1565 = vadd.f32 %v1477, %v1564
    %v1566 = vpop.f32.mrf.mxu0
    %1567 = vmatprep.mubr.bf16.mxu0 %v636
    %1568 = vmatmul.mubr.bf16.gmra.mxu0 %v635
    %v1569 = vpop.f32.mrf.mxu0
    %v1570 = vadd.f32 %v1482, %v1569
    %v1571 = vpop.f32.mrf.mxu0
    %v1572 = vpop.f32.mrf.mxu0
    %v1573 = vadd.f32 %v1485, %v1572
    %v1574 = vpop.f32.mrf.mxu0
    %1575 = vmatprep.mubr.bf16.mxu0 %v648
    %1576 = vmatmul.mubr.bf16.gmra.mxu0 %v647
    %v1577 = vpop.f32.mrf.mxu0
    %v1578 = vadd.f32 %v1490, %v1577
    %v1579 = vpop.f32.mrf.mxu0
    %v1580 = vpop.f32.mrf.mxu0
    %v1581 = vadd.f32 %v1493, %v1580
    %v1582 = vpop.f32.mrf.mxu0
    %1583 = vmatprep.mubr.bf16.mxu0 %v660
    %1584 = vmatmul.mubr.bf16.gmra.mxu0 %v659
    %v1585 = vpop.f32.mrf.mxu0
    %v1586 = vadd.f32 %v1498, %v1585
    %v1587 = vpop.f32.mrf.mxu0
    %v1588 = vpop.f32.mrf.mxu0
    %v1589 = vpop.f32.mrf.mxu0
    %1590 = vdwg.mxu0
    %1591 = vmatprep.subr.bf16.mxu0 0
    %1592 = vmatpush1.bf16.msra.mxu0 %v1190
    %1593 = vmatprep.subr.bf16.mxu0 0
    %1594 = vmatpush1.bf16.msra.mxu0 %v1189
    %1595 = vmatprep.subr.bf16.mxu0 0
    %1596 = vmatpush1.bf16.msra.mxu0 %v1188
    %1597 = vmatprep.subr.bf16.mxu0 0
    %1598 = vmatpush1.bf16.msra.mxu0 %v1187
    %1599 = vmatprep.subr.bf16.mxu0 0
    %1600 = vmatpush1.bf16.msra.mxu0 %v1186
    %1601 = vmatprep.subr.bf16.mxu0 0
    %1602 = vmatpush1.bf16.msra.mxu0 %v1185
    %1603 = vmatprep.subr.bf16.mxu0 0
    %1604 = vmatpush1.bf16.msra.mxu0 %v1184
    %1605 = vmatprep.subr.bf16.mxu0 0
    %1606 = vmatpush1.bf16.msra.mxu0 %v1183
    %1607 = vmatprep.subr.bf16.mxu0 0
    %1608 = vmatpush2.bf16.msra.mxu0 %v1198
    %1609 = vmatprep.subr.bf16.mxu0 0
    %1610 = vmatpush2.bf16.msra.mxu0 %v1197
    %1611 = vmatprep.subr.bf16.mxu0 0
    %1612 = vmatpush2.bf16.msra.mxu0 %v1196
    %1613 = vmatprep.subr.bf16.mxu0 0
    %1614 = vmatpush2.bf16.msra.mxu0 %v1195
    %1615 = vmatprep.subr.bf16.mxu0 0
    %1616 = vmatpush2.bf16.msra.mxu0 %v1194
    %1617 = vmatprep.subr.bf16.mxu0 0
    %1618 = vmatpush2.bf16.msra.mxu0 %v1193
    %1619 = vmatprep.subr.bf16.mxu0 0
    %1620 = vmatpush2.bf16.msra.mxu0 %v1192
    %1621 = vmatprep.subr.bf16.mxu0 0
    %1622 = vmatpush2.bf16.msra.mxu0 %v1191
    %1623 = vmatprep.mubr.bf16.mxu0 %v590
    %1624 = vmatmul.mubr.bf16.gmra.mxu0 %v589
    %v1625 = vpop.f32.mrf.mxu0
    %v1626 = vadd.f32 %v1538, %v1625
    %v1627 = vpop.f32.mrf.mxu0
    %v1628 = vpop.f32.mrf.mxu0
    %v1629 = vadd.f32 %v1541, %v1628
    %v1630 = vpop.f32.mrf.mxu0
    %1631 = vmatprep.mubr.bf16.mxu0 %v602
    %1632 = vmatmul.mubr.bf16.gmra.mxu0 %v601
    %v1633 = vpop.f32.mrf.mxu0
    %v1634 = vadd.f32 %v1546, %v1633
    %v1635 = vpop.f32.mrf.mxu0
    %v1636 = vpop.f32.mrf.mxu0
    %v1637 = vadd.f32 %v1549, %v1636
    %v1638 = vpop.f32.mrf.mxu0
    %1639 = vmatprep.mubr.bf16.mxu0 %v614
    %1640 = vmatmul.mubr.bf16.gmra.mxu0 %v613
    %v1641 = vpop.f32.mrf.mxu0
    %v1642 = vadd.f32 %v1554, %v1641
    %v1643 = vpop.f32.mrf.mxu0
    %v1644 = vpop.f32.mrf.mxu0
    %v1645 = vadd.f32 %v1557, %v1644
    %v1646 = vpop.f32.mrf.mxu0
    %1647 = vmatprep.mubr.bf16.mxu0 %v626
    %1648 = vmatmul.mubr.bf16.gmra.mxu0 %v625
    %v1649 = vpop.f32.mrf.mxu0
    %v1650 = vadd.f32 %v1562, %v1649
    %v1651 = vpop.f32.mrf.mxu0
    %v1652 = vpop.f32.mrf.mxu0
    %v1653 = vadd.f32 %v1565, %v1652
    %v1654 = vpop.f32.mrf.mxu0
    %1655 = vmatprep.mubr.bf16.mxu0 %v638
    %1656 = vmatmul.mubr.bf16.gmra.mxu0 %v637
    %v1657 = vpop.f32.mrf.mxu0
    %v1658 = vadd.f32 %v1570, %v1657
    %v1659 = vpop.f32.mrf.mxu0
    %v1660 = vpop.f32.mrf.mxu0
    %v1661 = vadd.f32 %v1573, %v1660
    %v1662 = vpop.f32.mrf.mxu0
    %1663 = vmatprep.mubr.bf16.mxu0 %v650
    %1664 = vmatmul.mubr.bf16.gmra.mxu0 %v649
    %v1665 = vpop.f32.mrf.mxu0
    %v1666 = vadd.f32 %v1578, %v1665
    %v1667 = vpop.f32.mrf.mxu0
    %v1668 = vpop.f32.mrf.mxu0
    %v1669 = vadd.f32 %v1581, %v1668
    %v1670 = vpop.f32.mrf.mxu0
    %1671 = vmatprep.mubr.bf16.mxu0 %v662
    %1672 = vmatmul.mubr.bf16.gmra.mxu0 %v661
    %v1673 = vpop.f32.mrf.mxu0
    %v1674 = vadd.f32 %v1586, %v1673
    %v1675 = vpop.f32.mrf.mxu0
    %v1676 = vpop.f32.mrf.mxu0
    %v1677 = vpop.f32.mrf.mxu0
    %1678 = vdwg.mxu0
    %1679 = vmatprep.subr.bf16.mxu0 0
    %1680 = vmatpush1.bf16.msra.mxu0 %v1206
    %1681 = vmatprep.subr.bf16.mxu0 0
    %1682 = vmatpush1.bf16.msra.mxu0 %v1205
    %1683 = vmatprep.subr.bf16.mxu0 0
    %1684 = vmatpush1.bf16.msra.mxu0 %v1204
    %1685 = vmatprep.subr.bf16.mxu0 0
    %1686 = vmatpush1.bf16.msra.mxu0 %v1203
    %1687 = vmatprep.subr.bf16.mxu0 0
    %1688 = vmatpush1.bf16.msra.mxu0 %v1202
    %1689 = vmatprep.subr.bf16.mxu0 0
    %1690 = vmatpush1.bf16.msra.mxu0 %v1201
    %1691 = vmatprep.subr.bf16.mxu0 0
    %1692 = vmatpush1.bf16.msra.mxu0 %v1200
    %1693 = vmatprep.subr.bf16.mxu0 0
    %1694 = vmatpush1.bf16.msra.mxu0 %v1199
    %1695 = vmatprep.subr.bf16.mxu0 0
    %1696 = vmatpush2.bf16.msra.mxu0 %v1214
    %1697 = vmatprep.subr.bf16.mxu0 0
    %1698 = vmatpush2.bf16.msra.mxu0 %v1213
    %1699 = vmatprep.subr.bf16.mxu0 0
    %1700 = vmatpush2.bf16.msra.mxu0 %v1212
    %1701 = vmatprep.subr.bf16.mxu0 0
    %1702 = vmatpush2.bf16.msra.mxu0 %v1211
    %1703 = vmatprep.subr.bf16.mxu0 0
    %1704 = vmatpush2.bf16.msra.mxu0 %v1210
    %1705 = vmatprep.subr.bf16.mxu0 0
    %1706 = vmatpush2.bf16.msra.mxu0 %v1209
    %1707 = vmatprep.subr.bf16.mxu0 0
    %1708 = vmatpush2.bf16.msra.mxu0 %v1208
    %1709 = vmatprep.subr.bf16.mxu0 0
    %1710 = vmatpush2.bf16.msra.mxu0 %v1207
    %1711 = vmatprep.mubr.bf16.mxu0 %v592
    %1712 = vmatmul.mubr.bf16.gmra.mxu0 %v591
    %v1713 = vpop.f32.mrf.mxu0
    %v1714 = vadd.f32 %v1626, %v1713
    %v1715 = vpop.f32.mrf.mxu0
    %v1716 = vpop.f32.mrf.mxu0
    %v1717 = vadd.f32 %v1629, %v1716
    %v1718 = vpop.f32.mrf.mxu0
    %1719 = vmatprep.mubr.bf16.mxu0 %v604
    %1720 = vmatmul.mubr.bf16.gmra.mxu0 %v603
    %v1721 = vpop.f32.mrf.mxu0
    %v1722 = vadd.f32 %v1634, %v1721
    %v1723 = vpop.f32.mrf.mxu0
    %v1724 = vpop.f32.mrf.mxu0
    %v1725 = vadd.f32 %v1637, %v1724
    %v1726 = vpop.f32.mrf.mxu0
    %1727 = vmatprep.mubr.bf16.mxu0 %v616
    %1728 = vmatmul.mubr.bf16.gmra.mxu0 %v615
    %v1729 = vpop.f32.mrf.mxu0
    %v1730 = vadd.f32 %v1642, %v1729
    %v1731 = vpop.f32.mrf.mxu0
    %v1732 = vpop.f32.mrf.mxu0
    %v1733 = vadd.f32 %v1645, %v1732
    %v1734 = vpop.f32.mrf.mxu0
    %1735 = vmatprep.mubr.bf16.mxu0 %v628
    %1736 = vmatmul.mubr.bf16.gmra.mxu0 %v627
    %v1737 = vpop.f32.mrf.mxu0
    %v1738 = vadd.f32 %v1650, %v1737
    %v1739 = vpop.f32.mrf.mxu0
    %v1740 = vpop.f32.mrf.mxu0
    %v1741 = vadd.f32 %v1653, %v1740
    %v1742 = vpop.f32.mrf.mxu0
    %1743 = vmatprep.mubr.bf16.mxu0 %v640
    %1744 = vmatmul.mubr.bf16.gmra.mxu0 %v639
    %v1745 = vpop.f32.mrf.mxu0
    %v1746 = vadd.f32 %v1658, %v1745
    %v1747 = vpop.f32.mrf.mxu0
    %v1748 = vpop.f32.mrf.mxu0
    %v1749 = vadd.f32 %v1661, %v1748
    %v1750 = vpop.f32.mrf.mxu0
    %1751 = vmatprep.mubr.bf16.mxu0 %v652
    %1752 = vmatmul.mubr.bf16.gmra.mxu0 %v651
    %v1753 = vpop.f32.mrf.mxu0
    %v1754 = vadd.f32 %v1666, %v1753
    %v1755 = vpop.f32.mrf.mxu0
    %v1756 = vpop.f32.mrf.mxu0
    %v1757 = vadd.f32 %v1669, %v1756
    %v1758 = vpop.f32.mrf.mxu0
    %1759 = vmatprep.mubr.bf16.mxu0 %v664
    %1760 = vmatmul.mubr.bf16.gmra.mxu0 %v663
    %v1761 = vpop.f32.mrf.mxu0
    %v1762 = vadd.f32 %v1674, %v1761
    %v1763 = vpop.f32.mrf.mxu0
    %v1764 = vpop.f32.mrf.mxu0
    %v1765 = vpop.f32.mrf.mxu0
    %1766 = vdwg.mxu0
    %1767 = vmatprep.subr.bf16.mxu0 0
    %1768 = vmatpush1.bf16.msra.mxu0 %v1222
    %1769 = vmatprep.subr.bf16.mxu0 0
    %1770 = vmatpush1.bf16.msra.mxu0 %v1221
    %1771 = vmatprep.subr.bf16.mxu0 0
    %1772 = vmatpush1.bf16.msra.mxu0 %v1220
    %1773 = vmatprep.subr.bf16.mxu0 0
    %1774 = vmatpush1.bf16.msra.mxu0 %v1219
    %1775 = vmatprep.subr.bf16.mxu0 0
    %1776 = vmatpush1.bf16.msra.mxu0 %v1218
    %1777 = vmatprep.subr.bf16.mxu0 0
    %1778 = vmatpush1.bf16.msra.mxu0 %v1217
    %1779 = vmatprep.subr.bf16.mxu0 0
    %1780 = vmatpush1.bf16.msra.mxu0 %v1216
    %1781 = vmatprep.subr.bf16.mxu0 0
    %1782 = vmatpush1.bf16.msra.mxu0 %v1215
    %1783 = vmatprep.subr.bf16.mxu0 0
    %1784 = vmatpush2.bf16.msra.mxu0 %v1230
    %1785 = vmatprep.subr.bf16.mxu0 0
    %1786 = vmatpush2.bf16.msra.mxu0 %v1229
    %1787 = vmatprep.subr.bf16.mxu0 0
    %1788 = vmatpush2.bf16.msra.mxu0 %v1228
    %1789 = vmatprep.subr.bf16.mxu0 0
    %1790 = vmatpush2.bf16.msra.mxu0 %v1227
    %1791 = vmatprep.subr.bf16.mxu0 0
    %1792 = vmatpush2.bf16.msra.mxu0 %v1226
    %1793 = vmatprep.subr.bf16.mxu0 0
    %1794 = vmatpush2.bf16.msra.mxu0 %v1225
    %1795 = vmatprep.subr.bf16.mxu0 0
    %1796 = vmatpush2.bf16.msra.mxu0 %v1224
    %1797 = vmatprep.subr.bf16.mxu0 0
    %1798 = vmatpush2.bf16.msra.mxu0 %v1223
    %1799 = vmatprep.mubr.bf16.mxu0 %v594
    %1800 = vmatmul.mubr.bf16.gmra.mxu0 %v593
    %v1801 = vpop.f32.mrf.mxu0
    %v1802 = vadd.f32 %v1714, %v1801
    %v1803 = vpop.f32.mrf.mxu0
    %v1804 = vpop.f32.mrf.mxu0
    %v1805 = vadd.f32 %v1717, %v1804
    %v1806 = vpop.f32.mrf.mxu0
    %1807 = vmatprep.mubr.bf16.mxu0 %v606
    %1808 = vmatmul.mubr.bf16.gmra.mxu0 %v605
    %v1809 = vpop.f32.mrf.mxu0
    %v1810 = vadd.f32 %v1722, %v1809
    %v1811 = vpop.f32.mrf.mxu0
    %v1812 = vpop.f32.mrf.mxu0
    %v1813 = vadd.f32 %v1725, %v1812
    %v1814 = vpop.f32.mrf.mxu0
    %1815 = vmatprep.mubr.bf16.mxu0 %v618
    %1816 = vmatmul.mubr.bf16.gmra.mxu0 %v617
    %v1817 = vpop.f32.mrf.mxu0
    %v1818 = vadd.f32 %v1730, %v1817
    %v1819 = vpop.f32.mrf.mxu0
    %v1820 = vpop.f32.mrf.mxu0
    %v1821 = vadd.f32 %v1733, %v1820
    %v1822 = vpop.f32.mrf.mxu0
    %1823 = vmatprep.mubr.bf16.mxu0 %v630
    %1824 = vmatmul.mubr.bf16.gmra.mxu0 %v629
    %v1825 = vpop.f32.mrf.mxu0
    %v1826 = vadd.f32 %v1738, %v1825
    %v1827 = vpop.f32.mrf.mxu0
    %v1828 = vpop.f32.mrf.mxu0
    %v1829 = vadd.f32 %v1741, %v1828
    %v1830 = vpop.f32.mrf.mxu0
    %1831 = vmatprep.mubr.bf16.mxu0 %v642
    %1832 = vmatmul.mubr.bf16.gmra.mxu0 %v641
    %v1833 = vpop.f32.mrf.mxu0
    %v1834 = vadd.f32 %v1746, %v1833
    %v1835 = vpop.f32.mrf.mxu0
    %v1836 = vpop.f32.mrf.mxu0
    %v1837 = vadd.f32 %v1749, %v1836
    %v1838 = vpop.f32.mrf.mxu0
    %1839 = vmatprep.mubr.bf16.mxu0 %v654
    %1840 = vmatmul.mubr.bf16.gmra.mxu0 %v653
    %v1841 = vpop.f32.mrf.mxu0
    %v1842 = vadd.f32 %v1754, %v1841
    %v1843 = vpop.f32.mrf.mxu0
    %v1844 = vpop.f32.mrf.mxu0
    %v1845 = vadd.f32 %v1757, %v1844
    %v1846 = vpop.f32.mrf.mxu0
    %1847 = vmatprep.mubr.bf16.mxu0 %v666
    %1848 = vmatmul.mubr.bf16.gmra.mxu0 %v665
    %v1849 = vpop.f32.mrf.mxu0
    %v1850 = vadd.f32 %v1762, %v1849
    %v1851 = vpop.f32.mrf.mxu0
    %v1852 = vpop.f32.mrf.mxu0
    %v1853 = vpop.f32.mrf.mxu0
    %1854 = vdwg.mxu0
    %v1855 = vld [vmem:[%s4] sm:$0x1]
    %v1856 = vld [vmem:[%s5] sm:$0x1]
    %v1857 = vld [vmem:[%s8] sm:$0xff]
    %v1858 = vld [vmem:[%s8 + $0x8] sm:$0xff]
    %v1859 = vld [vmem:[%s8 + $0x10] sm:$0xff]
    %v1860 = vld [vmem:[%s8 + $0x18] sm:$0xff]
    %v1861 = vld [vmem:[%s8 + $0x20] sm:$0xff]
    %v1862 = vld [vmem:[%s8 + $0x28] sm:$0xff]
    %v1863 = vld [vmem:[%s8 + $0x30] sm:$0xff]
    %v1864 = vld [vmem:[%s8 + $0x38] sm:$0xff]
    %v1865 = vld [vmem:[%s8 + $0x40] sm:$0xff]
    %v1866 = vld [vmem:[%s8 + $0x48] sm:$0xff]
    %v1867 = vld [vmem:[%s8 + $0x50] sm:$0xff]
    %v1868 = vld [vmem:[%s8 + $0x58] sm:$0xff]
    %v1869 = vld [vmem:[%s8 + $0x60] sm:$0xff]
    %v1870 = vld [vmem:[%s8 + $0x68] sm:$0xff]
    %v1871 = vld [vmem:[%s8 + $0x70] sm:$0xff]
    %v1872 = vld [vmem:[%s8 + $0x78] sm:$0xff]
    %v1873 = vld [vmem:[%s9] sm:$0xff]
    %v1874 = vadd.f32 %v1802, %v1805
    %v1875 = vadd.f32 %v1874, %v1810
    %v1876 = vadd.f32 %v1875, %v1813
    %v1877 = vadd.f32 %v1876, %v1818
    %v1878 = vadd.f32 %v1877, %v1821
    %v1879 = vadd.f32 %v1878, %v1826
    %v1880 = vadd.f32 %v1879, %v1829
    %v1881 = vadd.f32 %v1880, %v1834
    %v1882 = vadd.f32 %v1881, %v1837
    %v1883 = vadd.f32 %v1882, %v1842
    %v1884 = vadd.f32 %v1883, %v1845
    %vm1885 = vcmask 1041408
    %v1886 = vsel %vm1885, %v1850, 0.0
    %v1887 = vadd.f32 %v1884, %v1886
    %v1888 = vrot.slane %v1887, 4
    %v1889 = vadd.f32 %v1887, %v1888
    %v1890 = vrot.slane %v1889, 2
    %v1891 = vadd.f32 %v1889, %v1890
    %v1892 = vrot.slane %v1891, 1
    %v1893 = vadd.f32 %v1891, %v1892
    %v1894 = vmul.f32 %v1802, %v1802
    %v1895 = vmul.f32 %v1805, %v1805
    %v1896 = vmul.f32 %v1810, %v1810
    %v1897 = vmul.f32 %v1813, %v1813
    %v1898 = vmul.f32 %v1818, %v1818
    %v1899 = vmul.f32 %v1821, %v1821
    %v1900 = vmul.f32 %v1826, %v1826
    %v1901 = vmul.f32 %v1829, %v1829
    %v1902 = vmul.f32 %v1834, %v1834
    %v1903 = vmul.f32 %v1837, %v1837
    %v1904 = vmul.f32 %v1842, %v1842
    %v1905 = vmul.f32 %v1845, %v1845
    %v1906 = vmul.f32 %v1850, %v1850
    %v1907 = vadd.f32 %v1894, %v1895
    %v1908 = vadd.f32 %v1907, %v1896
    %v1909 = vadd.f32 %v1908, %v1897
    %v1910 = vadd.f32 %v1909, %v1898
    %v1911 = vadd.f32 %v1910, %v1899
    %v1912 = vadd.f32 %v1911, %v1900
    %v1913 = vadd.f32 %v1912, %v1901
    %v1914 = vadd.f32 %v1913, %v1902
    %v1915 = vadd.f32 %v1914, %v1903
    %v1916 = vadd.f32 %v1915, %v1904
    %v1917 = vadd.f32 %v1916, %v1905
    %v1918 = vsel %vm1885, %v1906, 0.0
    %v1919 = vadd.f32 %v1917, %v1918
    %v1920 = vrot.slane %v1919, 4
    %v1921 = vadd.f32 %v1919, %v1920
    %v1922 = vrot.slane %v1921, 2
    %v1923 = vadd.f32 %v1921, %v1922
    %v1924 = vrot.slane %v1923, 1
    %v1925 = vadd.f32 %v1923, %v1924
    %1926 = vmatprep.subr.mxu0 0.0
    %1927 = vmatpush1.msra.mxu0 %v1872
    %1928 = vmatprep.subr.mxu0 0.0
    %1929 = vmatpush1.msra.mxu0 %v1871
    %1930 = vmatprep.subr.mxu0 0.0
    %1931 = vmatpush1.msra.mxu0 %v1870
    %1932 = vmatprep.subr.mxu0 0.0
    %1933 = vmatpush1.msra.mxu0 %v1869
    %1934 = vmatprep.subr.mxu0 0.0
    %1935 = vmatpush1.msra.mxu0 %v1868
    %1936 = vmatprep.subr.mxu0 0.0
    %1937 = vmatpush1.msra.mxu0 %v1867
    %1938 = vmatprep.subr.mxu0 0.0
    %1939 = vmatpush1.msra.mxu0 %v1866
    %1940 = vmatprep.subr.mxu0 0.0
    %1941 = vmatpush1.msra.mxu0 %v1865
    %1942 = vmatprep.subr.mxu0 0.0
    %1943 = vmatpush1.msra.mxu0 %v1864
    %1944 = vmatprep.subr.mxu0 0.0
    %1945 = vmatpush1.msra.mxu0 %v1863
    %1946 = vmatprep.subr.mxu0 0.0
    %1947 = vmatpush1.msra.mxu0 %v1862
    %1948 = vmatprep.subr.mxu0 0.0
    %1949 = vmatpush1.msra.mxu0 %v1861
    %1950 = vmatprep.subr.mxu0 0.0
    %1951 = vmatpush1.msra.mxu0 %v1860
    %1952 = vmatprep.subr.mxu0 0.0
    %1953 = vmatpush1.msra.mxu0 %v1859
    %1954 = vmatprep.subr.mxu0 0.0
    %1955 = vmatpush1.msra.mxu0 %v1858
    %1956 = vmatprep.subr.mxu0 0.0
    %1957 = vmatpush1.msra.mxu0 %v1857
    %1958 = vmatprep.subr.mxu0 0.0
    %1959 = vmatpush2.msra.mxu0 0.0
    %1960 = vmatprep.subr.mxu0 0.0
    %1961 = vmatpush2.msra.mxu0 0.0
    %1962 = vmatprep.subr.mxu0 0.0
    %1963 = vmatpush2.msra.mxu0 0.0
    %1964 = vmatprep.subr.mxu0 0.0
    %1965 = vmatpush2.msra.mxu0 0.0
    %1966 = vmatprep.subr.mxu0 0.0
    %1967 = vmatpush2.msra.mxu0 0.0
    %1968 = vmatprep.subr.mxu0 0.0
    %1969 = vmatpush2.msra.mxu0 0.0
    %1970 = vmatprep.subr.mxu0 0.0
    %1971 = vmatpush2.msra.mxu0 0.0
    %1972 = vmatprep.subr.mxu0 0.0
    %1973 = vmatpush2.msra.mxu0 0.0
    %1974 = vmatprep.subr.mxu0 0.0
    %1975 = vmatpush2.msra.mxu0 0.0
    %1976 = vmatprep.subr.mxu0 0.0
    %1977 = vmatpush2.msra.mxu0 0.0
    %1978 = vmatprep.subr.mxu0 0.0
    %1979 = vmatpush2.msra.mxu0 0.0
    %1980 = vmatprep.subr.mxu0 0.0
    %1981 = vmatpush2.msra.mxu0 0.0
    %1982 = vmatprep.subr.mxu0 0.0
    %1983 = vmatpush2.msra.mxu0 0.0
    %1984 = vmatprep.subr.mxu0 0.0
    %1985 = vmatpush2.msra.mxu0 0.0
    %1986 = vmatprep.subr.mxu0 0.0
    %1987 = vmatpush2.msra.mxu0 0.0
    %1988 = vmatprep.subr.mxu0 0.0
    %1989 = vmatpush2.msra.mxu0 0.0
    %1990 = vmatprep.mubr.f32.mxu0 0.0
    %1991 = vmatmul.mubr.f32.gmra.mxu0 %v1893
    %v1992 = vpop.f32.mrf.mxu0
    %v1993 = vadd.f32 0.0, %v1992
    %v1994 = vpop.f32.mrf.mxu0
    %1995 = vdwg.mxu0
    %1996 = vmatprep.subr.mxu0 0.0
    %1997 = vmatpush1.msra.mxu0 %v1872
    %1998 = vmatprep.subr.mxu0 0.0
    %1999 = vmatpush1.msra.mxu0 %v1871
    %2000 = vmatprep.subr.mxu0 0.0
    %2001 = vmatpush1.msra.mxu0 %v1870
    %2002 = vmatprep.subr.mxu0 0.0
    %2003 = vmatpush1.msra.mxu0 %v1869
    %2004 = vmatprep.subr.mxu0 0.0
    %2005 = vmatpush1.msra.mxu0 %v1868
    %2006 = vmatprep.subr.mxu0 0.0
    %2007 = vmatpush1.msra.mxu0 %v1867
    %2008 = vmatprep.subr.mxu0 0.0
    %2009 = vmatpush1.msra.mxu0 %v1866
    %2010 = vmatprep.subr.mxu0 0.0
    %2011 = vmatpush1.msra.mxu0 %v1865
    %2012 = vmatprep.subr.mxu0 0.0
    %2013 = vmatpush1.msra.mxu0 %v1864
    %2014 = vmatprep.subr.mxu0 0.0
    %2015 = vmatpush1.msra.mxu0 %v1863
    %2016 = vmatprep.subr.mxu0 0.0
    %2017 = vmatpush1.msra.mxu0 %v1862
    %2018 = vmatprep.subr.mxu0 0.0
    %2019 = vmatpush1.msra.mxu0 %v1861
    %2020 = vmatprep.subr.mxu0 0.0
    %2021 = vmatpush1.msra.mxu0 %v1860
    %2022 = vmatprep.subr.mxu0 0.0
    %2023 = vmatpush1.msra.mxu0 %v1859
    %2024 = vmatprep.subr.mxu0 0.0
    %2025 = vmatpush1.msra.mxu0 %v1858
    %2026 = vmatprep.subr.mxu0 0.0
    %2027 = vmatpush1.msra.mxu0 %v1857
    %2028 = vmatprep.subr.mxu0 0.0
    %2029 = vmatpush2.msra.mxu0 0.0
    %2030 = vmatprep.subr.mxu0 0.0
    %2031 = vmatpush2.msra.mxu0 0.0
    %2032 = vmatprep.subr.mxu0 0.0
    %2033 = vmatpush2.msra.mxu0 0.0
    %2034 = vmatprep.subr.mxu0 0.0
    %2035 = vmatpush2.msra.mxu0 0.0
    %2036 = vmatprep.subr.mxu0 0.0
    %2037 = vmatpush2.msra.mxu0 0.0
    %2038 = vmatprep.subr.mxu0 0.0
    %2039 = vmatpush2.msra.mxu0 0.0
    %2040 = vmatprep.subr.mxu0 0.0
    %2041 = vmatpush2.msra.mxu0 0.0
    %2042 = vmatprep.subr.mxu0 0.0
    %2043 = vmatpush2.msra.mxu0 0.0
    %2044 = vmatprep.subr.mxu0 0.0
    %2045 = vmatpush2.msra.mxu0 0.0
    %2046 = vmatprep.subr.mxu0 0.0
    %2047 = vmatpush2.msra.mxu0 0.0
    %2048 = vmatprep.subr.mxu0 0.0
    %2049 = vmatpush2.msra.mxu0 0.0
    %2050 = vmatprep.subr.mxu0 0.0
    %2051 = vmatpush2.msra.mxu0 0.0
    %2052 = vmatprep.subr.mxu0 0.0
    %2053 = vmatpush2.msra.mxu0 0.0
    %2054 = vmatprep.subr.mxu0 0.0
    %2055 = vmatpush2.msra.mxu0 0.0
    %2056 = vmatprep.subr.mxu0 0.0
    %2057 = vmatpush2.msra.mxu0 0.0
    %2058 = vmatprep.subr.mxu0 0.0
    %2059 = vmatpush2.msra.mxu0 0.0
    %2060 = vmatprep.mubr.f32.mxu0 0.0
    %2061 = vmatmul.mubr.f32.gmra.mxu0 %v1925
    %v2062 = vpop.f32.mrf.mxu0
    %v2063 = vadd.f32 0.0, %v2062
    %v2064 = vpop.f32.mrf.mxu0
    %2065 = vdwg.mxu0
    %v2066 = vrcp.pop 4802.0
    %v2067 = vmul.f32 %v1993, %v2066
    %v2068 = vmul.f32 %v2063, %v2066
    %v2069 = vmul.f32 %v2067, %v2067
    %v2070 = vsub.f32 %v2068, %v2069
    %v2071 = vadd.f32 %v2070, 1e-05
    %v2072 = vrsqrt.pop %v2071
    %v2073 = vmul.f32 %v1855, %v2072
    %v2074 = vmul.f32 %v2067, %v2073
    %v2075 = vsub.f32 %v1856, %v2074
    %vm2076 = vcmask 64512
    %v2078 = vsel %vm2076, %v2073, 0
    %2080 = vmatprep.subr.mxu0 0.0
    %2081 = vmatpush1.msra.mxu0 0.0
    %2082 = vmatprep.subr.mxu0 0.0
    %2083 = vmatpush1.msra.mxu0 0.0
    %2084 = vmatprep.subr.mxu0 0.0
    %2085 = vmatpush1.msra.mxu0 0.0
    %2086 = vmatprep.subr.mxu0 0.0
    %2087 = vmatpush1.msra.mxu0 0.0
    %2088 = vmatprep.subr.mxu0 0.0
    %2089 = vmatpush1.msra.mxu0 0.0
    %2090 = vmatprep.subr.mxu0 0.0
    %2091 = vmatpush1.msra.mxu0 0.0
    %2092 = vmatprep.subr.mxu0 0.0
    %2093 = vmatpush1.msra.mxu0 0.0
    %2094 = vmatprep.subr.mxu0 0.0
    %2095 = vmatpush1.msra.mxu0 0.0
    %2096 = vmatprep.subr.mxu0 0.0
    %2097 = vmatpush1.msra.mxu0 0.0
    %2098 = vmatprep.subr.mxu0 0.0
    %2099 = vmatpush1.msra.mxu0 0.0
    %2100 = vmatprep.subr.mxu0 0.0
    %2101 = vmatpush1.msra.mxu0 0.0
    %2102 = vmatprep.subr.mxu0 0.0
    %2103 = vmatpush1.msra.mxu0 0.0
    %2104 = vmatprep.subr.mxu0 0.0
    %2105 = vmatpush1.msra.mxu0 0.0
    %2106 = vmatprep.subr.mxu0 0.0
    %2107 = vmatpush1.msra.mxu0 0.0
    %2108 = vmatprep.subr.mxu0 0.0
    %2109 = vmatpush1.msra.mxu0 0.0
    %2110 = vmatprep.subr.mxu0 0.0
    %2111 = vmatpush1.msra.mxu0 %v1873
    %2112 = vmatprep.subr.mxu0 0.0
    %2113 = vmatpush2.msra.mxu0 0.0
    %2114 = vmatprep.subr.mxu0 0.0
    %2115 = vmatpush2.msra.mxu0 0.0
    %2116 = vmatprep.subr.mxu0 0.0
    %2117 = vmatpush2.msra.mxu0 0.0
    %2118 = vmatprep.subr.mxu0 0.0
    %2119 = vmatpush2.msra.mxu0 0.0
    %2120 = vmatprep.subr.mxu0 0.0
    %2121 = vmatpush2.msra.mxu0 0.0
    %2122 = vmatprep.subr.mxu0 0.0
    %2123 = vmatpush2.msra.mxu0 0.0
    %2124 = vmatprep.subr.mxu0 0.0
    %2125 = vmatpush2.msra.mxu0 0.0
    %2126 = vmatprep.subr.mxu0 0.0
    %2127 = vmatpush2.msra.mxu0 0.0
    %2128 = vmatprep.subr.mxu0 0.0
    %2129 = vmatpush2.msra.mxu0 0.0
    %2130 = vmatprep.subr.mxu0 0.0
    %2131 = vmatpush2.msra.mxu0 0.0
    %2132 = vmatprep.subr.mxu0 0.0
    %2133 = vmatpush2.msra.mxu0 0.0
    %2134 = vmatprep.subr.mxu0 0.0
    %2135 = vmatpush2.msra.mxu0 0.0
    %2136 = vmatprep.subr.mxu0 0.0
    %2137 = vmatpush2.msra.mxu0 0.0
    %2138 = vmatprep.subr.mxu0 0.0
    %2139 = vmatpush2.msra.mxu0 0.0
    %2140 = vmatprep.subr.mxu0 0.0
    %2141 = vmatpush2.msra.mxu0 0.0
    %2142 = vmatprep.subr.mxu0 0.0
    %2143 = vmatpush2.msra.mxu0 0.0
    %2144 = vmatprep.mubr.f32.mxu0 0.0
    %2145 = vmatmul.mubr.f32.gmra.mxu0 %v2078
    %v2146 = vpop.f32.mrf.mxu0
    %v2147 = vadd.f32 0.0, %v2146
    %v2148 = vpop.f32.mrf.mxu0
    %2149 = vdwg.mxu0
    %v2151 = vsel %vm2076, %v2075, 0
    %2153 = vmatprep.subr.mxu0 0.0
    %2154 = vmatpush1.msra.mxu0 0.0
    %2155 = vmatprep.subr.mxu0 0.0
    %2156 = vmatpush1.msra.mxu0 0.0
    %2157 = vmatprep.subr.mxu0 0.0
    %2158 = vmatpush1.msra.mxu0 0.0
    %2159 = vmatprep.subr.mxu0 0.0
    %2160 = vmatpush1.msra.mxu0 0.0
    %2161 = vmatprep.subr.mxu0 0.0
    %2162 = vmatpush1.msra.mxu0 0.0
    %2163 = vmatprep.subr.mxu0 0.0
    %2164 = vmatpush1.msra.mxu0 0.0
    %2165 = vmatprep.subr.mxu0 0.0
    %2166 = vmatpush1.msra.mxu0 0.0
    %2167 = vmatprep.subr.mxu0 0.0
    %2168 = vmatpush1.msra.mxu0 0.0
    %2169 = vmatprep.subr.mxu0 0.0
    %2170 = vmatpush1.msra.mxu0 0.0
    %2171 = vmatprep.subr.mxu0 0.0
    %2172 = vmatpush1.msra.mxu0 0.0
    %2173 = vmatprep.subr.mxu0 0.0
    %2174 = vmatpush1.msra.mxu0 0.0
    %2175 = vmatprep.subr.mxu0 0.0
    %2176 = vmatpush1.msra.mxu0 0.0
    %2177 = vmatprep.subr.mxu0 0.0
    %2178 = vmatpush1.msra.mxu0 0.0
    %2179 = vmatprep.subr.mxu0 0.0
    %2180 = vmatpush1.msra.mxu0 0.0
    %2181 = vmatprep.subr.mxu0 0.0
    %2182 = vmatpush1.msra.mxu0 0.0
    %2183 = vmatprep.subr.mxu0 0.0
    %2184 = vmatpush1.msra.mxu0 %v1873
    %2185 = vmatprep.subr.mxu0 0.0
    %2186 = vmatpush2.msra.mxu0 0.0
    %2187 = vmatprep.subr.mxu0 0.0
    %2188 = vmatpush2.msra.mxu0 0.0
    %2189 = vmatprep.subr.mxu0 0.0
    %2190 = vmatpush2.msra.mxu0 0.0
    %2191 = vmatprep.subr.mxu0 0.0
    %2192 = vmatpush2.msra.mxu0 0.0
    %2193 = vmatprep.subr.mxu0 0.0
    %2194 = vmatpush2.msra.mxu0 0.0
    %2195 = vmatprep.subr.mxu0 0.0
    %2196 = vmatpush2.msra.mxu0 0.0
    %2197 = vmatprep.subr.mxu0 0.0
    %2198 = vmatpush2.msra.mxu0 0.0
    %2199 = vmatprep.subr.mxu0 0.0
    %2200 = vmatpush2.msra.mxu0 0.0
    %2201 = vmatprep.subr.mxu0 0.0
    %2202 = vmatpush2.msra.mxu0 0.0
    %2203 = vmatprep.subr.mxu0 0.0
    %2204 = vmatpush2.msra.mxu0 0.0
    %2205 = vmatprep.subr.mxu0 0.0
    %2206 = vmatpush2.msra.mxu0 0.0
    %2207 = vmatprep.subr.mxu0 0.0
    %2208 = vmatpush2.msra.mxu0 0.0
    %2209 = vmatprep.subr.mxu0 0.0
    %2210 = vmatpush2.msra.mxu0 0.0
    %2211 = vmatprep.subr.mxu0 0.0
    %2212 = vmatpush2.msra.mxu0 0.0
    %2213 = vmatprep.subr.mxu0 0.0
    %2214 = vmatpush2.msra.mxu0 0.0
    %2215 = vmatprep.subr.mxu0 0.0
    %2216 = vmatpush2.msra.mxu0 0.0
    %2217 = vmatprep.mubr.f32.mxu0 0.0
    %2218 = vmatmul.mubr.f32.gmra.mxu0 %v2151
    %v2219 = vpop.f32.mrf.mxu0
    %v2220 = vadd.f32 0.0, %v2219
    %v2221 = vpop.f32.mrf.mxu0
    %2222 = vdwg.mxu0
    %v2223 = vlaneseq
    %v2224 = vshrl.u32 %v2223, 7
    %v2225 = vsub.s32 0, %v2224
    %v2226 = vrot.slane %v2147, %v2225
    %v2227 = vmul.f32 %v1802, %v2226
    %v2228 = vmul.f32 %v1805, %v2226
    %v2229 = vmul.f32 %v1810, %v2226
    %v2230 = vmul.f32 %v1813, %v2226
    %v2231 = vmul.f32 %v1818, %v2226
    %v2232 = vmul.f32 %v1821, %v2226
    %v2233 = vmul.f32 %v1826, %v2226
    %v2234 = vmul.f32 %v1829, %v2226
    %v2235 = vmul.f32 %v1834, %v2226
    %v2236 = vmul.f32 %v1837, %v2226
    %v2237 = vmul.f32 %v1842, %v2226
    %v2238 = vmul.f32 %v1845, %v2226
    %v2239 = vmul.f32 %v1850, %v2226
    %v2240 = vlaneseq
    %v2241 = vshrl.u32 %v2240, 7
    %v2242 = vsub.s32 0, %v2241
    %v2243 = vrot.slane %v2220, %v2242
    %v2244 = vadd.f32 %v2227, %v2243
    %v2245 = vadd.f32 %v2228, %v2243
    %v2246 = vadd.f32 %v2229, %v2243
    %v2247 = vadd.f32 %v2230, %v2243
    %v2248 = vadd.f32 %v2231, %v2243
    %v2249 = vadd.f32 %v2232, %v2243
    %v2250 = vadd.f32 %v2233, %v2243
    %v2251 = vadd.f32 %v2234, %v2243
    %v2252 = vadd.f32 %v2235, %v2243
    %v2253 = vadd.f32 %v2236, %v2243
    %v2254 = vadd.f32 %v2237, %v2243
    %v2255 = vadd.f32 %v2238, %v2243
    %v2256 = vadd.f32 %v2239, %v2243
    %v2257 = vmax.f32 %v2244, 0.0
    %v2258 = vmax.f32 %v2245, 0.0
    %v2259 = vmax.f32 %v2246, 0.0
    %v2260 = vmax.f32 %v2247, 0.0
    %v2261 = vmax.f32 %v2248, 0.0
    %v2262 = vmax.f32 %v2249, 0.0
    %v2263 = vmax.f32 %v2250, 0.0
    %v2264 = vmax.f32 %v2251, 0.0
    %v2265 = vmax.f32 %v2252, 0.0
    %v2266 = vmax.f32 %v2253, 0.0
    %v2267 = vmax.f32 %v2254, 0.0
    %v2268 = vmax.f32 %v2255, 0.0
    %v2269 = vmax.f32 %v2256, 0.0
    %v2270 = vpack.c.bf16 %v2258, %v2257
    %v2271 = vpack.c.bf16 %v2260, %v2259
    %v2272 = vpack.c.bf16 %v2262, %v2261
    %v2273 = vpack.c.bf16 %v2264, %v2263
    %v2274 = vpack.c.bf16 %v2266, %v2265
    %v2275 = vpack.c.bf16 %v2268, %v2267
    %v2276 = vpack.c.bf16 %v2269, %v2269
    %v2280 = vunpack.c.l.b16 %v2270
    %v2281 = vunpack.c.h.b16 %v2270
    %v2282 = vunpack.c.l.b16 %v2271
    %v2283 = vunpack.c.h.b16 %v2271
    %v2284 = vunpack.c.l.b16 %v2272
    %v2285 = vunpack.c.h.b16 %v2272
    %v2286 = vpack.c.b16 %v2280, %v2280
    %v2287 = vpack.c.b16 %v2281, %v2281
    %v2288 = vpack.c.b16 %v2282, %v2282
    %v2289 = vpack.c.b16 %v2283, %v2283
    %v2290 = vpack.c.b16 %v2284, %v2284
    %v2291 = vpack.c.b16 %v2285, %v2285
    %2298 = vst [vmem:[#allocation2] sm:$0xf] %v2286
    %2299 = vst [vmem:[#allocation2 + $0x14] sm:$0xf] %v2287
    %2300 = vst [vmem:[#allocation2 + $0x28] sm:$0xf] %v2288
    %2301 = vst [vmem:[#allocation2 + $0x3c] sm:$0xf] %v2289
    %2302 = vst [vmem:[#allocation2 + $0x50] sm:$0xf] %v2290
    %2303 = vst [vmem:[#allocation2 + $0x64] sm:$0x7] %v2291
    %v2307 = vunpack.c.l.b16 %v2273
    %v2308 = vunpack.c.h.b16 %v2273
    %v2309 = vunpack.c.l.b16 %v2274
    %v2310 = vunpack.c.h.b16 %v2274
    %v2311 = vunpack.c.l.b16 %v2275
    %v2312 = vunpack.c.h.b16 %v2275
    %v2313 = vpack.c.b16 %v2307, %v2307
    %v2314 = vpack.c.b16 %v2308, %v2308
    %v2315 = vpack.c.b16 %v2309, %v2309
    %v2316 = vpack.c.b16 %v2310, %v2310
    %v2317 = vpack.c.b16 %v2311, %v2311
    %v2318 = vpack.c.b16 %v2312, %v2312
    %vm2319 = vcmask 1042432
    %vm2320 = vcmask 1046532
    %vm2321 = vmor %vm2319, %vm2320
    %v2322 = vrot.slane %v2313, 5
    %v2323 = vrot.slane %v2322, 4
    %v2324 = vrot.slane %v2314, 5
    %v2325 = vsel %vm2321, %v2323, %v2324
    %v2326 = vrot.slane %v2324, 4
    %v2327 = vrot.slane %v2315, 5
    %v2328 = vsel %vm2321, %v2326, %v2327
    %v2329 = vrot.slane %v2327, 4
    %v2330 = vrot.slane %v2316, 5
    %v2331 = vsel %vm2321, %v2329, %v2330
    %v2332 = vrot.slane %v2330, 4
    %v2333 = vrot.slane %v2317, 5
    %v2334 = vsel %vm2321, %v2332, %v2333
    %v2335 = vrot.slane %v2333, 4
    %v2336 = vrot.slane %v2318, 5
    %v2337 = vsel %vm2321, %v2335, %v2336
    %v2338 = vrot.slane %v2336, 4
    %2345 = vst [vmem:[#allocation2 + $0x4] sm:$0xf] %v2325
    %2346 = vst [vmem:[#allocation2 + $0x18] sm:$0xf] %v2328
    %2347 = vst [vmem:[#allocation2 + $0x2c] sm:$0xf] %v2331
    %2348 = vst [vmem:[#allocation2 + $0x40] sm:$0xf] %v2334
    %2349 = vst [vmem:[#allocation2 + $0x54] sm:$0xf] %v2337
    %2350 = vst [vmem:[#allocation2 + $0x68] sm:$0x7] %v2338
    %v2351 = vrot.slane %v2286, 5
    %v2352 = vrot.slane %v2351, 4
    %v2353 = vrot.slane %v2287, 5
    %v2354 = vsel %vm2321, %v2352, %v2353
    %v2355 = vrot.slane %v2353, 4
    %v2356 = vrot.slane %v2288, 5
    %v2357 = vsel %vm2321, %v2355, %v2356
    %v2358 = vrot.slane %v2356, 4
    %v2359 = vrot.slane %v2289, 5
    %v2360 = vsel %vm2321, %v2358, %v2359
    %v2361 = vrot.slane %v2359, 4
    %v2362 = vrot.slane %v2290, 5
    %v2363 = vsel %vm2321, %v2361, %v2362
    %v2364 = vrot.slane %v2362, 4
    %v2365 = vrot.slane %v2291, 5
    %v2366 = vsel %vm2321, %v2364, %v2365
    %v2367 = vrot.slane %v2365, 4
    %2374 = vst [vmem:[#allocation2 + $0x8] sm:$0xf] %v2354
    %2375 = vst [vmem:[#allocation2 + $0x1c] sm:$0xf] %v2357
    %2376 = vst [vmem:[#allocation2 + $0x30] sm:$0xf] %v2360
    %2377 = vst [vmem:[#allocation2 + $0x44] sm:$0xf] %v2363
    %2378 = vst [vmem:[#allocation2 + $0x58] sm:$0xf] %v2366
    %2379 = vst [vmem:[#allocation2 + $0x6c] sm:$0x7] %v2367
    %v2381 = vunpack.c.l.b16 %v2276
    %v2382 = vpack.c.b16 %v2381, %v2381
    %vm2383 = vcmask 1041408
    %vm2384 = vcmask 1045508
    %vm2385 = vmor %vm2383, %vm2384
    %v2386 = vrot.slane %v2313, 6
    %v2387 = vrot.slane %v2386, 4
    %v2388 = vrot.slane %v2314, 6
    %v2389 = vsel %vm2385, %v2387, %v2388
    %v2390 = vrot.slane %v2388, 4
    %v2391 = vrot.slane %v2315, 6
    %v2392 = vsel %vm2385, %v2390, %v2391
    %v2393 = vrot.slane %v2391, 4
    %v2394 = vrot.slane %v2316, 6
    %v2395 = vsel %vm2385, %v2393, %v2394
    %v2396 = vrot.slane %v2394, 4
    %v2397 = vrot.slane %v2317, 6
    %v2398 = vsel %vm2385, %v2396, %v2397
    %v2399 = vrot.slane %v2397, 4
    %v2400 = vrot.slane %v2318, 6
    %v2401 = vsel %vm2385, %v2399, %v2400
    %v2402 = vrot.slane %v2400, 4
    %v2403 = vrot.slane %v2382, 6
    %v2404 = vsel %vm2385, %v2402, %v2403
    %2411 = vst [vmem:[#allocation2 + $0xc] sm:$0xf] %v2389
    %2412 = vst [vmem:[#allocation2 + $0x20] sm:$0xf] %v2392
    %2413 = vst [vmem:[#allocation2 + $0x34] sm:$0xf] %v2395
    %2414 = vst [vmem:[#allocation2 + $0x48] sm:$0xf] %v2398
    %2415 = vst [vmem:[#allocation2 + $0x5c] sm:$0xf] %v2401
    %2416 = vst [vmem:[#allocation2 + $0x70] sm:$0x7] %v2404
    %v2417 = vrot.slane %v2286, 6
    %v2418 = vrot.slane %v2417, 4
    %v2419 = vrot.slane %v2287, 6
    %v2420 = vsel %vm2385, %v2418, %v2419
    %v2421 = vrot.slane %v2419, 4
    %v2422 = vrot.slane %v2288, 6
    %v2423 = vsel %vm2385, %v2421, %v2422
    %v2424 = vrot.slane %v2422, 4
    %v2425 = vrot.slane %v2289, 6
    %v2426 = vsel %vm2385, %v2424, %v2425
    %v2427 = vrot.slane %v2425, 4
    %v2428 = vrot.slane %v2290, 6
    %v2429 = vsel %vm2385, %v2427, %v2428
    %v2430 = vrot.slane %v2428, 4
    %v2431 = vrot.slane %v2291, 6
    %v2432 = vsel %vm2385, %v2430, %v2431
    %v2433 = vrot.slane %v2431, 4
    %v2434 = vsel %vm2385, %v2433, %v2386
    %2441 = vst [vmem:[#allocation2 + $0x10] sm:$0xf] %v2420
    %2442 = vst [vmem:[#allocation2 + $0x24] sm:$0xf] %v2423
    %2443 = vst [vmem:[#allocation2 + $0x38] sm:$0xf] %v2426
    %2444 = vst [vmem:[#allocation2 + $0x4c] sm:$0xf] %v2429
    %2445 = vst [vmem:[#allocation2 + $0x60] sm:$0xf] %v2432
    %2446 = vst [vmem:[#allocation2 + $0x74] sm:$0x7] %v2434
    %v2447 = vld [vmem:[#allocation2] sm:$0xff]
    %v2448 = vld [vmem:[#allocation2 + $0x8] sm:$0xff]
    %v2449 = vld [vmem:[#allocation2 + $0x10] sm:$0xf]
    %v2450 = vld [vmem:[#allocation2 + $0x14] sm:$0xff]
    %v2451 = vld [vmem:[#allocation2 + $0x1c] sm:$0xff]
    %v2452 = vld [vmem:[#allocation2 + $0x24] sm:$0xf]
    %v2453 = vld [vmem:[#allocation2 + $0x28] sm:$0xff]
    %v2454 = vld [vmem:[#allocation2 + $0x30] sm:$0xff]
    %v2455 = vld [vmem:[#allocation2 + $0x38] sm:$0xf]
    %v2456 = vld [vmem:[#allocation2 + $0x3c] sm:$0xff]
    %v2457 = vld [vmem:[#allocation2 + $0x44] sm:$0xff]
    %v2458 = vld [vmem:[#allocation2 + $0x4c] sm:$0xf]
    %v2459 = vld [vmem:[#allocation2 + $0x50] sm:$0xff]
    %v2460 = vld [vmem:[#allocation2 + $0x58] sm:$0xff]
    %v2461 = vld [vmem:[#allocation2 + $0x60] sm:$0xf]
    %v2462 = vld [vmem:[#allocation2 + $0x64] sm:$0x77]
    %v2463 = vld [vmem:[#allocation2 + $0x6c] sm:$0x77]
    %v2464 = vld [vmem:[#allocation2 + $0x74] sm:$0x7]
    %v2465 = vld [vmem:[%s2] sm:$0xf]
    %v2466 = vld [vmem:[%s2 + $0x4] sm:$0xf]
    %v2467 = vld [vmem:[%s2 + $0x8] sm:$0xf]
    %v2468 = vld [vmem:[%s2 + $0xc] sm:$0xf]
    %v2469 = vld [vmem:[%s2 + $0x10] sm:$0xf]
    %v2470 = vld [vmem:[%s2 + $0x14] sm:$0xf]
    %v2471 = vld [vmem:[%s2 + $0x18] sm:$0xf]
    %v2472 = vld [vmem:[%s2 + $0x1c] sm:$0xf]
    %v2473 = vld [vmem:[%s2 + $0x20] sm:$0xf]
    %v2474 = vld [vmem:[%s2 + $0x24] sm:$0xf]
    %v2475 = vld [vmem:[%s2 + $0x28] sm:$0xf]
    %v2476 = vld [vmem:[%s2 + $0x2c] sm:$0xf]
    %v2477 = vld [vmem:[%s2 + $0x30] sm:$0xf]
    %v2478 = vld [vmem:[%s2 + $0x34] sm:$0xf]
    %v2479 = vld [vmem:[%s2 + $0x38] sm:$0xf]
    %v2480 = vld [vmem:[%s2 + $0x3c] sm:$0xf]
    %v2481 = vld [vmem:[%s2 + $0x40] sm:$0xf]
    %v2482 = vld [vmem:[%s2 + $0x44] sm:$0xf]
    %v2483 = vld [vmem:[%s2 + $0x48] sm:$0xf]
    %v2484 = vld [vmem:[%s2 + $0x4c] sm:$0xf]
    %v2485 = vld [vmem:[%s2 + $0x50] sm:$0xf]
    %v2486 = vld [vmem:[%s2 + $0x54] sm:$0xf]
    %v2487 = vld [vmem:[%s2 + $0x58] sm:$0xf]
    %v2488 = vld [vmem:[%s2 + $0x5c] sm:$0xf]
    %v2489 = vld [vmem:[%s2 + $0x60] sm:$0xf]
    %v2490 = vld [vmem:[%s2 + $0x64] sm:$0xf]
    %v2491 = vld [vmem:[%s2 + $0x68] sm:$0xf]
    %v2492 = vld [vmem:[%s2 + $0x6c] sm:$0xf]
    %v2493 = vld [vmem:[%s2 + $0x70] sm:$0xf]
    %v2494 = vld [vmem:[%s2 + $0x74] sm:$0xf]
    %v2495 = vld [vmem:[%s2 + $0x78] sm:$0xf]
    %v2496 = vld [vmem:[%s2 + $0x7c] sm:$0xf]
    %v2497 = vld [vmem:[%s2 + $0x80] sm:$0xf]
    %v2498 = vld [vmem:[%s2 + $0x84] sm:$0xf]
    %v2499 = vld [vmem:[%s2 + $0x88] sm:$0xf]
    %v2500 = vld [vmem:[%s2 + $0x8c] sm:$0xf]
    %v2501 = vld [vmem:[%s2 + $0x90] sm:$0xf]
    %v2502 = vld [vmem:[%s2 + $0x94] sm:$0xf]
    %v2503 = vld [vmem:[%s2 + $0x98] sm:$0xf]
    %v2504 = vld [vmem:[%s2 + $0x9c] sm:$0xf]
    %v2505 = vld [vmem:[%s2 + $0xa0] sm:$0xf]
    %v2506 = vld [vmem:[%s2 + $0xa4] sm:$0xf]
    %v2507 = vld [vmem:[%s2 + $0xa8] sm:$0xf]
    %v2508 = vld [vmem:[%s2 + $0xac] sm:$0xf]
    %v2509 = vld [vmem:[%s2 + $0xb0] sm:$0xf]
    %v2510 = vld [vmem:[%s2 + $0xb4] sm:$0xf]
    %v2511 = vld [vmem:[%s2 + $0xb8] sm:$0xf]
    %v2512 = vld [vmem:[%s2 + $0xbc] sm:$0xf]
    %v2513 = vld [vmem:[%s2 + $0xc0] sm:$0xf]
    %v2514 = vld [vmem:[%s2 + $0xc4] sm:$0xf]
    %v2515 = vld [vmem:[%s2 + $0xc8] sm:$0xf]
    %v2516 = vld [vmem:[%s2 + $0xcc] sm:$0xf]
    %v2517 = vld [vmem:[%s2 + $0xd0] sm:$0xf]
    %v2518 = vld [vmem:[%s2 + $0xd4] sm:$0xf]
    %v2519 = vld [vmem:[%s2 + $0xd8] sm:$0xf]
    %v2520 = vld [vmem:[%s2 + $0xdc] sm:$0xf]
    %v2521 = vld [vmem:[%s2 + $0xe0] sm:$0xf]
    %v2522 = vld [vmem:[%s2 + $0xe4] sm:$0xf]
    %v2523 = vld [vmem:[%s2 + $0xe8] sm:$0xf]
    %v2524 = vld [vmem:[%s2 + $0xec] sm:$0xf]
    %v2525 = vld [vmem:[%s2 + $0xf0] sm:$0xf]
    %v2526 = vld [vmem:[%s2 + $0xf4] sm:$0xf]
    %v2527 = vld [vmem:[%s2 + $0xf8] sm:$0xf]
    %v2528 = vld [vmem:[%s2 + $0xfc] sm:$0xf]
    %v2529 = vld [vmem:[%s2 + $0x100] sm:$0xf]
    %v2530 = vld [vmem:[%s2 + $0x104] sm:$0xf]
    %v2531 = vld [vmem:[%s2 + $0x108] sm:$0xf]
    %v2532 = vld [vmem:[%s2 + $0x10c] sm:$0xf]
    %v2533 = vld [vmem:[%s2 + $0x110] sm:$0xf]
    %v2534 = vld [vmem:[%s2 + $0x114] sm:$0xf]
    %v2535 = vld [vmem:[%s2 + $0x118] sm:$0xf]
    %v2536 = vld [vmem:[%s2 + $0x11c] sm:$0xf]
    %v2537 = vld [vmem:[%s2 + $0x120] sm:$0xf]
    %v2538 = vld [vmem:[%s2 + $0x124] sm:$0xf]
    %v2539 = vld [vmem:[%s2 + $0x128] sm:$0xf]
    %v2540 = vld [vmem:[%s2 + $0x12c] sm:$0xf]
    %v2541 = vld [vmem:[%s2 + $0x130] sm:$0xf]
    %v2542 = vld [vmem:[%s2 + $0x134] sm:$0xf]
    %v2543 = vld [vmem:[%s2 + $0x138] sm:$0xf]
    %v2544 = vld [vmem:[%s2 + $0x13c] sm:$0xf]
    %v2563 = vunpack.c.l.b16 %v2447
    %v2564 = vunpack.c.h.b16 %v2447
    %v2565 = vunpack.c.l.b16 %v2448
    %v2566 = vunpack.c.h.b16 %v2448
    %v2567 = vunpack.c.l.b16 %v2449
    %v2568 = vunpack.c.l.b16 %v2450
    %v2569 = vunpack.c.h.b16 %v2450
    %v2570 = vunpack.c.l.b16 %v2451
    %v2571 = vunpack.c.h.b16 %v2451
    %v2572 = vunpack.c.l.b16 %v2452
    %v2573 = vunpack.c.l.b16 %v2453
    %v2574 = vunpack.c.h.b16 %v2453
    %v2575 = vunpack.c.l.b16 %v2454
    %v2576 = vunpack.c.h.b16 %v2454
    %v2577 = vunpack.c.l.b16 %v2455
    %v2578 = vunpack.c.l.b16 %v2456
    %v2579 = vunpack.c.h.b16 %v2456
    %v2580 = vunpack.c.l.b16 %v2457
    %v2581 = vunpack.c.h.b16 %v2457
    %v2582 = vunpack.c.l.b16 %v2458
    %v2583 = vunpack.c.l.b16 %v2459
    %v2584 = vunpack.c.h.b16 %v2459
    %v2585 = vunpack.c.l.b16 %v2460
    %v2586 = vunpack.c.h.b16 %v2460
    %v2587 = vunpack.c.l.b16 %v2461
    %v2588 = vunpack.c.l.b16 %v2462
    %v2589 = vunpack.c.h.b16 %v2462
    %v2590 = vunpack.c.l.b16 %v2463
    %v2591 = vunpack.c.h.b16 %v2463
    %v2592 = vunpack.c.l.b16 %v2464
    %v2593 = vpack.c.b16 %v2568, %v2563
    %v2594 = vpack.c.b16 %v2569, %v2564
    %v2595 = vpack.c.b16 %v2570, %v2565
    %v2596 = vpack.c.b16 %v2571, %v2566
    %v2597 = vpack.c.b16 %v2572, %v2567
    %v2598 = vpack.c.b16 %v2578, %v2573
    %v2599 = vpack.c.b16 %v2579, %v2574
    %v2600 = vpack.c.b16 %v2580, %v2575
    %v2601 = vpack.c.b16 %v2581, %v2576
    %v2602 = vpack.c.b16 %v2582, %v2577
    %v2603 = vpack.c.b16 %v2588, %v2583
    %v2604 = vpack.c.b16 %v2589, %v2584
    %v2605 = vpack.c.b16 %v2590, %v2585
    %v2606 = vpack.c.b16 %v2591, %v2586
    %v2607 = vpack.c.b16 %v2592, %v2587
    %v2703 = vunpack.c.l.b16 %v2465
    %v2704 = vunpack.c.l.b16 %v2466
    %v2705 = vunpack.c.l.b16 %v2467
    %v2706 = vunpack.c.l.b16 %v2468
    %v2707 = vunpack.c.l.b16 %v2469
    %v2708 = vunpack.c.l.b16 %v2470
    %v2709 = vunpack.c.l.b16 %v2471
    %v2710 = vunpack.c.l.b16 %v2472
    %v2711 = vunpack.c.l.b16 %v2473
    %v2712 = vunpack.c.l.b16 %v2474
    %v2713 = vunpack.c.l.b16 %v2475
    %v2714 = vunpack.c.l.b16 %v2476
    %v2715 = vunpack.c.l.b16 %v2477
    %v2716 = vunpack.c.l.b16 %v2478
    %v2717 = vunpack.c.l.b16 %v2479
    %v2718 = vunpack.c.l.b16 %v2480
    %v2719 = vunpack.c.l.b16 %v2481
    %v2720 = vunpack.c.l.b16 %v2482
    %v2721 = vunpack.c.l.b16 %v2483
    %v2722 = vunpack.c.l.b16 %v2484
    %v2723 = vunpack.c.l.b16 %v2485
    %v2724 = vunpack.c.l.b16 %v2486
    %v2725 = vunpack.c.l.b16 %v2487
    %v2726 = vunpack.c.l.b16 %v2488
    %v2727 = vunpack.c.l.b16 %v2489
    %v2728 = vunpack.c.l.b16 %v2490
    %v2729 = vunpack.c.l.b16 %v2491
    %v2730 = vunpack.c.l.b16 %v2492
    %v2731 = vunpack.c.l.b16 %v2493
    %v2732 = vunpack.c.l.b16 %v2494
    %v2733 = vunpack.c.l.b16 %v2495
    %v2734 = vunpack.c.l.b16 %v2496
    %v2735 = vunpack.c.l.b16 %v2497
    %v2736 = vunpack.c.l.b16 %v2498
    %v2737 = vunpack.c.l.b16 %v2499
    %v2738 = vunpack.c.l.b16 %v2500
    %v2739 = vunpack.c.l.b16 %v2501
    %v2740 = vunpack.c.l.b16 %v2502
    %v2741 = vunpack.c.l.b16 %v2503
    %v2742 = vunpack.c.l.b16 %v2504
    %v2743 = vunpack.c.l.b16 %v2505
    %v2744 = vunpack.c.l.b16 %v2506
    %v2745 = vunpack.c.l.b16 %v2507
    %v2746 = vunpack.c.l.b16 %v2508
    %v2747 = vunpack.c.l.b16 %v2509
    %v2748 = vunpack.c.l.b16 %v2510
    %v2749 = vunpack.c.l.b16 %v2511
    %v2750 = vunpack.c.l.b16 %v2512
    %v2751 = vunpack.c.l.b16 %v2513
    %v2752 = vunpack.c.l.b16 %v2514
    %v2753 = vunpack.c.l.b16 %v2515
    %v2754 = vunpack.c.l.b16 %v2516
    %v2755 = vunpack.c.l.b16 %v2517
    %v2756 = vunpack.c.l.b16 %v2518
    %v2757 = vunpack.c.l.b16 %v2519
    %v2758 = vunpack.c.l.b16 %v2520
    %v2759 = vunpack.c.l.b16 %v2521
    %v2760 = vunpack.c.l.b16 %v2522
    %v2761 = vunpack.c.l.b16 %v2523
    %v2762 = vunpack.c.l.b16 %v2524
    %v2763 = vunpack.c.l.b16 %v2525
    %v2764 = vunpack.c.l.b16 %v2526
    %v2765 = vunpack.c.l.b16 %v2527
    %v2766 = vunpack.c.l.b16 %v2528
    %v2767 = vunpack.c.l.b16 %v2529
    %v2768 = vunpack.c.l.b16 %v2530
    %v2769 = vunpack.c.l.b16 %v2531
    %v2770 = vunpack.c.l.b16 %v2532
    %v2771 = vunpack.c.l.b16 %v2533
    %v2772 = vunpack.c.l.b16 %v2534
    %v2773 = vunpack.c.l.b16 %v2535
    %v2774 = vunpack.c.l.b16 %v2536
    %v2775 = vunpack.c.l.b16 %v2537
    %v2776 = vunpack.c.l.b16 %v2538
    %v2777 = vunpack.c.l.b16 %v2539
    %v2778 = vunpack.c.l.b16 %v2540
    %v2779 = vunpack.c.l.b16 %v2541
    %v2780 = vunpack.c.l.b16 %v2542
    %v2781 = vunpack.c.l.b16 %v2543
    %v2782 = vunpack.c.l.b16 %v2544
    %v2783 = vpack.c.b16 %v2704, %v2703
    %v2784 = vpack.c.b16 %v2706, %v2705
    %v2785 = vpack.c.b16 %v2708, %v2707
    %v2786 = vpack.c.b16 %v2710, %v2709
    %v2787 = vpack.c.b16 %v2712, %v2711
    %v2788 = vpack.c.b16 %v2714, %v2713
    %v2789 = vpack.c.b16 %v2716, %v2715
    %v2790 = vpack.c.b16 %v2718, %v2717
    %v2791 = vpack.c.b16 %v2720, %v2719
    %v2792 = vpack.c.b16 %v2722, %v2721
    %v2793 = vpack.c.b16 %v2724, %v2723
    %v2794 = vpack.c.b16 %v2726, %v2725
    %v2795 = vpack.c.b16 %v2728, %v2727
    %v2796 = vpack.c.b16 %v2730, %v2729
    %v2797 = vpack.c.b16 %v2732, %v2731
    %v2798 = vpack.c.b16 %v2734, %v2733
    %v2799 = vpack.c.b16 %v2736, %v2735
    %v2800 = vpack.c.b16 %v2738, %v2737
    %v2801 = vpack.c.b16 %v2740, %v2739
    %v2802 = vpack.c.b16 %v2742, %v2741
    %v2803 = vpack.c.b16 %v2744, %v2743
    %v2804 = vpack.c.b16 %v2746, %v2745
    %v2805 = vpack.c.b16 %v2748, %v2747
    %v2806 = vpack.c.b16 %v2750, %v2749
    %v2807 = vpack.c.b16 %v2752, %v2751
    %v2808 = vpack.c.b16 %v2754, %v2753
    %v2809 = vpack.c.b16 %v2756, %v2755
    %v2810 = vpack.c.b16 %v2758, %v2757
    %v2811 = vpack.c.b16 %v2760, %v2759
    %v2812 = vpack.c.b16 %v2762, %v2761
    %v2813 = vpack.c.b16 %v2764, %v2763
    %v2814 = vpack.c.b16 %v2766, %v2765
    %v2815 = vpack.c.b16 %v2768, %v2767
    %v2816 = vpack.c.b16 %v2770, %v2769
    %v2817 = vpack.c.b16 %v2772, %v2771
    %v2818 = vpack.c.b16 %v2774, %v2773
    %v2819 = vpack.c.b16 %v2776, %v2775
    %v2820 = vpack.c.b16 %v2778, %v2777
    %v2821 = vpack.c.b16 %v2780, %v2779
    %v2822 = vpack.c.b16 %v2782, %v2781
    %2863 = vmatprep.subr.bf16.mxu0 0
    %2864 = vmatpush1.bf16.msra.mxu0 %v2790
    %2865 = vmatprep.subr.bf16.mxu0 0
    %2866 = vmatpush1.bf16.msra.mxu0 %v2789
    %2867 = vmatprep.subr.bf16.mxu0 0
    %2868 = vmatpush1.bf16.msra.mxu0 %v2788
    %2869 = vmatprep.subr.bf16.mxu0 0
    %2870 = vmatpush1.bf16.msra.mxu0 %v2787
    %2871 = vmatprep.subr.bf16.mxu0 0
    %2872 = vmatpush1.bf16.msra.mxu0 %v2786
    %2873 = vmatprep.subr.bf16.mxu0 0
    %2874 = vmatpush1.bf16.msra.mxu0 %v2785
    %2875 = vmatprep.subr.bf16.mxu0 0
    %2876 = vmatpush1.bf16.msra.mxu0 %v2784
    %2877 = vmatprep.subr.bf16.mxu0 0
    %2878 = vmatpush1.bf16.msra.mxu0 %v2783
    %2879 = vmatprep.subr.bf16.mxu0 0
    %2880 = vmatpush2.bf16.msra.mxu0 %v2798
    %2881 = vmatprep.subr.bf16.mxu0 0
    %2882 = vmatpush2.bf16.msra.mxu0 %v2797
    %2883 = vmatprep.subr.bf16.mxu0 0
    %2884 = vmatpush2.bf16.msra.mxu0 %v2796
    %2885 = vmatprep.subr.bf16.mxu0 0
    %2886 = vmatpush2.bf16.msra.mxu0 %v2795
    %2887 = vmatprep.subr.bf16.mxu0 0
    %2888 = vmatpush2.bf16.msra.mxu0 %v2794
    %2889 = vmatprep.subr.bf16.mxu0 0
    %2890 = vmatpush2.bf16.msra.mxu0 %v2793
    %2891 = vmatprep.subr.bf16.mxu0 0
    %2892 = vmatpush2.bf16.msra.mxu0 %v2792
    %2893 = vmatprep.subr.bf16.mxu0 0
    %2894 = vmatpush2.bf16.msra.mxu0 %v2791
    %2895 = vmatprep.mubr.bf16.mxu0 %v2594
    %2896 = vmatmul.mubr.bf16.gmra.mxu0 %v2593
    %v2897 = vpop.f32.mrf.mxu0
    %v2898 = vadd.f32 0.0, %v2897
    %v2899 = vpop.f32.mrf.mxu0
    %v2900 = vpop.f32.mrf.mxu0
    %v2901 = vadd.f32 0.0, %v2900
    %v2902 = vpop.f32.mrf.mxu0
    %2903 = vmatprep.mubr.bf16.mxu0 %v2599
    %2904 = vmatmul.mubr.bf16.gmra.mxu0 %v2598
    %v2905 = vpop.f32.mrf.mxu0
    %v2906 = vadd.f32 0.0, %v2905
    %v2907 = vpop.f32.mrf.mxu0
    %v2908 = vpop.f32.mrf.mxu0
    %v2909 = vadd.f32 0.0, %v2908
    %v2910 = vpop.f32.mrf.mxu0
    %2911 = vmatprep.mubr.bf16.mxu0 %v2604
    %2912 = vmatmul.mubr.bf16.gmra.mxu0 %v2603
    %v2913 = vpop.f32.mrf.mxu0
    %v2914 = vadd.f32 0.0, %v2913
    %v2915 = vpop.f32.mrf.mxu0
    %v2916 = vpop.f32.mrf.mxu0
    %v2917 = vadd.f32 0.0, %v2916
    %v2918 = vpop.f32.mrf.mxu0
    %2919 = vdwg.mxu0
    %2920 = vmatprep.subr.bf16.mxu0 0
    %2921 = vmatpush1.bf16.msra.mxu0 %v2806
    %2922 = vmatprep.subr.bf16.mxu0 0
    %2923 = vmatpush1.bf16.msra.mxu0 %v2805
    %2924 = vmatprep.subr.bf16.mxu0 0
    %2925 = vmatpush1.bf16.msra.mxu0 %v2804
    %2926 = vmatprep.subr.bf16.mxu0 0
    %2927 = vmatpush1.bf16.msra.mxu0 %v2803
    %2928 = vmatprep.subr.bf16.mxu0 0
    %2929 = vmatpush1.bf16.msra.mxu0 %v2802
    %2930 = vmatprep.subr.bf16.mxu0 0
    %2931 = vmatpush1.bf16.msra.mxu0 %v2801
    %2932 = vmatprep.subr.bf16.mxu0 0
    %2933 = vmatpush1.bf16.msra.mxu0 %v2800
    %2934 = vmatprep.subr.bf16.mxu0 0
    %2935 = vmatpush1.bf16.msra.mxu0 %v2799
    %2936 = vmatprep.subr.bf16.mxu0 0
    %2937 = vmatpush2.bf16.msra.mxu0 %v2814
    %2938 = vmatprep.subr.bf16.mxu0 0
    %2939 = vmatpush2.bf16.msra.mxu0 %v2813
    %2940 = vmatprep.subr.bf16.mxu0 0
    %2941 = vmatpush2.bf16.msra.mxu0 %v2812
    %2942 = vmatprep.subr.bf16.mxu0 0
    %2943 = vmatpush2.bf16.msra.mxu0 %v2811
    %2944 = vmatprep.subr.bf16.mxu0 0
    %2945 = vmatpush2.bf16.msra.mxu0 %v2810
    %2946 = vmatprep.subr.bf16.mxu0 0
    %2947 = vmatpush2.bf16.msra.mxu0 %v2809
    %2948 = vmatprep.subr.bf16.mxu0 0
    %2949 = vmatpush2.bf16.msra.mxu0 %v2808
    %2950 = vmatprep.subr.bf16.mxu0 0
    %2951 = vmatpush2.bf16.msra.mxu0 %v2807
    %2952 = vmatprep.mubr.bf16.mxu0 %v2596
    %2953 = vmatmul.mubr.bf16.gmra.mxu0 %v2595
    %v2954 = vpop.f32.mrf.mxu0
    %v2955 = vadd.f32 %v2898, %v2954
    %v2956 = vpop.f32.mrf.mxu0
    %v2957 = vpop.f32.mrf.mxu0
    %v2958 = vadd.f32 %v2901, %v2957
    %v2959 = vpop.f32.mrf.mxu0
    %2960 = vmatprep.mubr.bf16.mxu0 %v2601
    %2961 = vmatmul.mubr.bf16.gmra.mxu0 %v2600
    %v2962 = vpop.f32.mrf.mxu0
    %v2963 = vadd.f32 %v2906, %v2962
    %v2964 = vpop.f32.mrf.mxu0
    %v2965 = vpop.f32.mrf.mxu0
    %v2966 = vadd.f32 %v2909, %v2965
    %v2967 = vpop.f32.mrf.mxu0
    %2968 = vmatprep.mubr.bf16.mxu0 %v2606
    %2969 = vmatmul.mubr.bf16.gmra.mxu0 %v2605
    %v2970 = vpop.f32.mrf.mxu0
    %v2971 = vadd.f32 %v2914, %v2970
    %v2972 = vpop.f32.mrf.mxu0
    %v2973 = vpop.f32.mrf.mxu0
    %v2974 = vadd.f32 %v2917, %v2973
    %v2975 = vpop.f32.mrf.mxu0
    %2976 = vdwg.mxu0
    %2977 = vmatprep.subr.bf16.mxu0 0
    %2978 = vmatpush1.bf16.msra.mxu0 %v2822
    %2979 = vmatprep.subr.bf16.mxu0 0
    %2980 = vmatpush1.bf16.msra.mxu0 %v2821
    %2981 = vmatprep.subr.bf16.mxu0 0
    %2982 = vmatpush1.bf16.msra.mxu0 %v2820
    %2983 = vmatprep.subr.bf16.mxu0 0
    %2984 = vmatpush1.bf16.msra.mxu0 %v2819
    %2985 = vmatprep.subr.bf16.mxu0 0
    %2986 = vmatpush1.bf16.msra.mxu0 %v2818
    %2987 = vmatprep.subr.bf16.mxu0 0
    %2988 = vmatpush1.bf16.msra.mxu0 %v2817
    %2989 = vmatprep.subr.bf16.mxu0 0
    %2990 = vmatpush1.bf16.msra.mxu0 %v2816
    %2991 = vmatprep.subr.bf16.mxu0 0
    %2992 = vmatpush1.bf16.msra.mxu0 %v2815
    %2993 = vmatprep.subr.bf16.mxu0 0
    %2994 = vmatpush2.bf16.msra.mxu0 0
    %2995 = vmatprep.subr.bf16.mxu0 0
    %2996 = vmatpush2.bf16.msra.mxu0 0
    %2997 = vmatprep.subr.bf16.mxu0 0
    %2998 = vmatpush2.bf16.msra.mxu0 0
    %2999 = vmatprep.subr.bf16.mxu0 0
    %3000 = vmatpush2.bf16.msra.mxu0 0
    %3001 = vmatprep.subr.bf16.mxu0 0
    %3002 = vmatpush2.bf16.msra.mxu0 0
    %3003 = vmatprep.subr.bf16.mxu0 0
    %3004 = vmatpush2.bf16.msra.mxu0 0
    %3005 = vmatprep.subr.bf16.mxu0 0
    %3006 = vmatpush2.bf16.msra.mxu0 0
    %3007 = vmatprep.subr.bf16.mxu0 0
    %3008 = vmatpush2.bf16.msra.mxu0 0
    %3009 = vmatprep.mubr.bf16.mxu0 0
    %3010 = vmatmul.mubr.bf16.gmra.mxu0 %v2597
    %v3011 = vpop.f32.mrf.mxu0
    %v3012 = vadd.f32 %v2955, %v3011
    %v3013 = vpop.f32.mrf.mxu0
    %v3014 = vpop.f32.mrf.mxu0
    %v3015 = vadd.f32 %v2958, %v3014
    %v3016 = vpop.f32.mrf.mxu0
    %3017 = vmatprep.mubr.bf16.mxu0 0
    %3018 = vmatmul.mubr.bf16.gmra.mxu0 %v2602
    %v3019 = vpop.f32.mrf.mxu0
    %v3020 = vadd.f32 %v2963, %v3019
    %v3021 = vpop.f32.mrf.mxu0
    %v3022 = vpop.f32.mrf.mxu0
    %v3023 = vadd.f32 %v2966, %v3022
    %v3024 = vpop.f32.mrf.mxu0
    %3025 = vmatprep.mubr.bf16.mxu0 0
    %3026 = vmatmul.mubr.bf16.gmra.mxu0 %v2607
    %v3027 = vpop.f32.mrf.mxu0
    %v3028 = vadd.f32 %v2971, %v3027
    %v3029 = vpop.f32.mrf.mxu0
    %v3030 = vpop.f32.mrf.mxu0
    %v3031 = vadd.f32 %v2974, %v3030
    %v3032 = vpop.f32.mrf.mxu0
    %3033 = vdwg.mxu0
    %v3034 = vld [vmem:[%s6] sm:$0x1]
    %v3035 = vld [vmem:[%s7] sm:$0x1]
    %v3036 = vld [vmem:[%s10] sm:$0xff]
    %v3037 = vld [vmem:[%s10 + $0x8] sm:$0xff]
    %v3038 = vld [vmem:[%s10 + $0x10] sm:$0xff]
    %v3039 = vld [vmem:[%s10 + $0x18] sm:$0xff]
    %v3040 = vld [vmem:[%s10 + $0x20] sm:$0xff]
    %v3041 = vld [vmem:[%s10 + $0x28] sm:$0xff]
    %v3042 = vld [vmem:[%s10 + $0x30] sm:$0xff]
    %v3043 = vld [vmem:[%s10 + $0x38] sm:$0xff]
    %v3044 = vld [vmem:[%s10 + $0x40] sm:$0xff]
    %v3045 = vld [vmem:[%s10 + $0x48] sm:$0xff]
    %v3046 = vld [vmem:[%s10 + $0x50] sm:$0xff]
    %v3047 = vld [vmem:[%s10 + $0x58] sm:$0xff]
    %v3048 = vld [vmem:[%s10 + $0x60] sm:$0xff]
    %v3049 = vld [vmem:[%s10 + $0x68] sm:$0xff]
    %v3050 = vld [vmem:[%s10 + $0x70] sm:$0xff]
    %v3051 = vld [vmem:[%s10 + $0x78] sm:$0xff]
    %v3052 = vld [vmem:[%s11] sm:$0xff]
    %v3053 = vadd.f32 %v3012, %v3015
    %v3054 = vadd.f32 %v3053, %v3020
    %v3055 = vadd.f32 %v3054, %v3023
    %v3056 = vadd.f32 %v3055, %v3028
    %vm3057 = vcmask 1045504
    %v3058 = vsel %vm3057, %v3031, 0.0
    %v3059 = vadd.f32 %v3056, %v3058
    %v3060 = vrot.slane %v3059, 4
    %v3061 = vadd.f32 %v3059, %v3060
    %v3062 = vrot.slane %v3061, 2
    %v3063 = vadd.f32 %v3061, %v3062
    %v3064 = vrot.slane %v3063, 1
    %v3065 = vadd.f32 %v3063, %v3064
    %v3066 = vmul.f32 %v3012, %v3012
    %v3067 = vmul.f32 %v3015, %v3015
    %v3068 = vmul.f32 %v3020, %v3020
    %v3069 = vmul.f32 %v3023, %v3023
    %v3070 = vmul.f32 %v3028, %v3028
    %v3071 = vmul.f32 %v3031, %v3031
    %v3072 = vadd.f32 %v3066, %v3067
    %v3073 = vadd.f32 %v3072, %v3068
    %v3074 = vadd.f32 %v3073, %v3069
    %v3075 = vadd.f32 %v3074, %v3070
    %v3076 = vsel %vm3057, %v3071, 0.0
    %v3077 = vadd.f32 %v3075, %v3076
    %v3078 = vrot.slane %v3077, 4
    %v3079 = vadd.f32 %v3077, %v3078
    %v3080 = vrot.slane %v3079, 2
    %v3081 = vadd.f32 %v3079, %v3080
    %v3082 = vrot.slane %v3081, 1
    %v3083 = vadd.f32 %v3081, %v3082
    %3084 = vmatprep.subr.mxu0 0.0
    %3085 = vmatpush1.msra.mxu0 %v3051
    %3086 = vmatprep.subr.mxu0 0.0
    %3087 = vmatpush1.msra.mxu0 %v3050
    %3088 = vmatprep.subr.mxu0 0.0
    %3089 = vmatpush1.msra.mxu0 %v3049
    %3090 = vmatprep.subr.mxu0 0.0
    %3091 = vmatpush1.msra.mxu0 %v3048
    %3092 = vmatprep.subr.mxu0 0.0
    %3093 = vmatpush1.msra.mxu0 %v3047
    %3094 = vmatprep.subr.mxu0 0.0
    %3095 = vmatpush1.msra.mxu0 %v3046
    %3096 = vmatprep.subr.mxu0 0.0
    %3097 = vmatpush1.msra.mxu0 %v3045
    %3098 = vmatprep.subr.mxu0 0.0
    %3099 = vmatpush1.msra.mxu0 %v3044
    %3100 = vmatprep.subr.mxu0 0.0
    %3101 = vmatpush1.msra.mxu0 %v3043
    %3102 = vmatprep.subr.mxu0 0.0
    %3103 = vmatpush1.msra.mxu0 %v3042
    %3104 = vmatprep.subr.mxu0 0.0
    %3105 = vmatpush1.msra.mxu0 %v3041
    %3106 = vmatprep.subr.mxu0 0.0
    %3107 = vmatpush1.msra.mxu0 %v3040
    %3108 = vmatprep.subr.mxu0 0.0
    %3109 = vmatpush1.msra.mxu0 %v3039
    %3110 = vmatprep.subr.mxu0 0.0
    %3111 = vmatpush1.msra.mxu0 %v3038
    %3112 = vmatprep.subr.mxu0 0.0
    %3113 = vmatpush1.msra.mxu0 %v3037
    %3114 = vmatprep.subr.mxu0 0.0
    %3115 = vmatpush1.msra.mxu0 %v3036
    %3116 = vmatprep.subr.mxu0 0.0
    %3117 = vmatpush2.msra.mxu0 0.0
    %3118 = vmatprep.subr.mxu0 0.0
    %3119 = vmatpush2.msra.mxu0 0.0
    %3120 = vmatprep.subr.mxu0 0.0
    %3121 = vmatpush2.msra.mxu0 0.0
    %3122 = vmatprep.subr.mxu0 0.0
    %3123 = vmatpush2.msra.mxu0 0.0
    %3124 = vmatprep.subr.mxu0 0.0
    %3125 = vmatpush2.msra.mxu0 0.0
    %3126 = vmatprep.subr.mxu0 0.0
    %3127 = vmatpush2.msra.mxu0 0.0
    %3128 = vmatprep.subr.mxu0 0.0
    %3129 = vmatpush2.msra.mxu0 0.0
    %3130 = vmatprep.subr.mxu0 0.0
    %3131 = vmatpush2.msra.mxu0 0.0
    %3132 = vmatprep.subr.mxu0 0.0
    %3133 = vmatpush2.msra.mxu0 0.0
    %3134 = vmatprep.subr.mxu0 0.0
    %3135 = vmatpush2.msra.mxu0 0.0
    %3136 = vmatprep.subr.mxu0 0.0
    %3137 = vmatpush2.msra.mxu0 0.0
    %3138 = vmatprep.subr.mxu0 0.0
    %3139 = vmatpush2.msra.mxu0 0.0
    %3140 = vmatprep.subr.mxu0 0.0
    %3141 = vmatpush2.msra.mxu0 0.0
    %3142 = vmatprep.subr.mxu0 0.0
    %3143 = vmatpush2.msra.mxu0 0.0
    %3144 = vmatprep.subr.mxu0 0.0
    %3145 = vmatpush2.msra.mxu0 0.0
    %3146 = vmatprep.subr.mxu0 0.0
    %3147 = vmatpush2.msra.mxu0 0.0
    %3148 = vmatprep.mubr.f32.mxu0 0.0
    %3149 = vmatmul.mubr.f32.gmra.mxu0 %v3065
    %v3150 = vpop.f32.mrf.mxu0
    %v3151 = vadd.f32 0.0, %v3150
    %v3152 = vpop.f32.mrf.mxu0
    %3153 = vdwg.mxu0
    %3154 = vmatprep.subr.mxu0 0.0
    %3155 = vmatpush1.msra.mxu0 %v3051
    %3156 = vmatprep.subr.mxu0 0.0
    %3157 = vmatpush1.msra.mxu0 %v3050
    %3158 = vmatprep.subr.mxu0 0.0
    %3159 = vmatpush1.msra.mxu0 %v3049
    %3160 = vmatprep.subr.mxu0 0.0
    %3161 = vmatpush1.msra.mxu0 %v3048
    %3162 = vmatprep.subr.mxu0 0.0
    %3163 = vmatpush1.msra.mxu0 %v3047
    %3164 = vmatprep.subr.mxu0 0.0
    %3165 = vmatpush1.msra.mxu0 %v3046
    %3166 = vmatprep.subr.mxu0 0.0
    %3167 = vmatpush1.msra.mxu0 %v3045
    %3168 = vmatprep.subr.mxu0 0.0
    %3169 = vmatpush1.msra.mxu0 %v3044
    %3170 = vmatprep.subr.mxu0 0.0
    %3171 = vmatpush1.msra.mxu0 %v3043
    %3172 = vmatprep.subr.mxu0 0.0
    %3173 = vmatpush1.msra.mxu0 %v3042
    %3174 = vmatprep.subr.mxu0 0.0
    %3175 = vmatpush1.msra.mxu0 %v3041
    %3176 = vmatprep.subr.mxu0 0.0
    %3177 = vmatpush1.msra.mxu0 %v3040
    %3178 = vmatprep.subr.mxu0 0.0
    %3179 = vmatpush1.msra.mxu0 %v3039
    %3180 = vmatprep.subr.mxu0 0.0
    %3181 = vmatpush1.msra.mxu0 %v3038
    %3182 = vmatprep.subr.mxu0 0.0
    %3183 = vmatpush1.msra.mxu0 %v3037
    %3184 = vmatprep.subr.mxu0 0.0
    %3185 = vmatpush1.msra.mxu0 %v3036
    %3186 = vmatprep.subr.mxu0 0.0
    %3187 = vmatpush2.msra.mxu0 0.0
    %3188 = vmatprep.subr.mxu0 0.0
    %3189 = vmatpush2.msra.mxu0 0.0
    %3190 = vmatprep.subr.mxu0 0.0
    %3191 = vmatpush2.msra.mxu0 0.0
    %3192 = vmatprep.subr.mxu0 0.0
    %3193 = vmatpush2.msra.mxu0 0.0
    %3194 = vmatprep.subr.mxu0 0.0
    %3195 = vmatpush2.msra.mxu0 0.0
    %3196 = vmatprep.subr.mxu0 0.0
    %3197 = vmatpush2.msra.mxu0 0.0
    %3198 = vmatprep.subr.mxu0 0.0
    %3199 = vmatpush2.msra.mxu0 0.0
    %3200 = vmatprep.subr.mxu0 0.0
    %3201 = vmatpush2.msra.mxu0 0.0
    %3202 = vmatprep.subr.mxu0 0.0
    %3203 = vmatpush2.msra.mxu0 0.0
    %3204 = vmatprep.subr.mxu0 0.0
    %3205 = vmatpush2.msra.mxu0 0.0
    %3206 = vmatprep.subr.mxu0 0.0
    %3207 = vmatpush2.msra.mxu0 0.0
    %3208 = vmatprep.subr.mxu0 0.0
    %3209 = vmatpush2.msra.mxu0 0.0
    %3210 = vmatprep.subr.mxu0 0.0
    %3211 = vmatpush2.msra.mxu0 0.0
    %3212 = vmatprep.subr.mxu0 0.0
    %3213 = vmatpush2.msra.mxu0 0.0
    %3214 = vmatprep.subr.mxu0 0.0
    %3215 = vmatpush2.msra.mxu0 0.0
    %3216 = vmatprep.subr.mxu0 0.0
    %3217 = vmatpush2.msra.mxu0 0.0
    %3218 = vmatprep.mubr.f32.mxu0 0.0
    %3219 = vmatmul.mubr.f32.gmra.mxu0 %v3083
    %v3220 = vpop.f32.mrf.mxu0
    %v3221 = vadd.f32 0.0, %v3220
    %v3222 = vpop.f32.mrf.mxu0
    %3223 = vdwg.mxu0
    %v3224 = vrcp.pop 1058.0
    %v3225 = vmul.f32 %v3151, %v3224
    %v3226 = vmul.f32 %v3221, %v3224
    %v3227 = vmul.f32 %v3225, %v3225
    %v3228 = vsub.f32 %v3226, %v3227
    %v3229 = vadd.f32 %v3228, 1e-05
    %v3230 = vrsqrt.pop %v3229
    %v3231 = vmul.f32 %v3034, %v3230
    %v3232 = vmul.f32 %v3225, %v3231
    %v3233 = vsub.f32 %v3035, %v3232
    %v3235 = vsel %vm2076, %v3231, 0
    %3237 = vmatprep.subr.mxu0 0.0
    %3238 = vmatpush1.msra.mxu0 0.0
    %3239 = vmatprep.subr.mxu0 0.0
    %3240 = vmatpush1.msra.mxu0 0.0
    %3241 = vmatprep.subr.mxu0 0.0
    %3242 = vmatpush1.msra.mxu0 0.0
    %3243 = vmatprep.subr.mxu0 0.0
    %3244 = vmatpush1.msra.mxu0 0.0
    %3245 = vmatprep.subr.mxu0 0.0
    %3246 = vmatpush1.msra.mxu0 0.0
    %3247 = vmatprep.subr.mxu0 0.0
    %3248 = vmatpush1.msra.mxu0 0.0
    %3249 = vmatprep.subr.mxu0 0.0
    %3250 = vmatpush1.msra.mxu0 0.0
    %3251 = vmatprep.subr.mxu0 0.0
    %3252 = vmatpush1.msra.mxu0 0.0
    %3253 = vmatprep.subr.mxu0 0.0
    %3254 = vmatpush1.msra.mxu0 0.0
    %3255 = vmatprep.subr.mxu0 0.0
    %3256 = vmatpush1.msra.mxu0 0.0
    %3257 = vmatprep.subr.mxu0 0.0
    %3258 = vmatpush1.msra.mxu0 0.0
    %3259 = vmatprep.subr.mxu0 0.0
    %3260 = vmatpush1.msra.mxu0 0.0
    %3261 = vmatprep.subr.mxu0 0.0
    %3262 = vmatpush1.msra.mxu0 0.0
    %3263 = vmatprep.subr.mxu0 0.0
    %3264 = vmatpush1.msra.mxu0 0.0
    %3265 = vmatprep.subr.mxu0 0.0
    %3266 = vmatpush1.msra.mxu0 0.0
    %3267 = vmatprep.subr.mxu0 0.0
    %3268 = vmatpush1.msra.mxu0 %v3052
    %3269 = vmatprep.subr.mxu0 0.0
    %3270 = vmatpush2.msra.mxu0 0.0
    %3271 = vmatprep.subr.mxu0 0.0
    %3272 = vmatpush2.msra.mxu0 0.0
    %3273 = vmatprep.subr.mxu0 0.0
    %3274 = vmatpush2.msra.mxu0 0.0
    %3275 = vmatprep.subr.mxu0 0.0
    %3276 = vmatpush2.msra.mxu0 0.0
    %3277 = vmatprep.subr.mxu0 0.0
    %3278 = vmatpush2.msra.mxu0 0.0
    %3279 = vmatprep.subr.mxu0 0.0
    %3280 = vmatpush2.msra.mxu0 0.0
    %3281 = vmatprep.subr.mxu0 0.0
    %3282 = vmatpush2.msra.mxu0 0.0
    %3283 = vmatprep.subr.mxu0 0.0
    %3284 = vmatpush2.msra.mxu0 0.0
    %3285 = vmatprep.subr.mxu0 0.0
    %3286 = vmatpush2.msra.mxu0 0.0
    %3287 = vmatprep.subr.mxu0 0.0
    %3288 = vmatpush2.msra.mxu0 0.0
    %3289 = vmatprep.subr.mxu0 0.0
    %3290 = vmatpush2.msra.mxu0 0.0
    %3291 = vmatprep.subr.mxu0 0.0
    %3292 = vmatpush2.msra.mxu0 0.0
    %3293 = vmatprep.subr.mxu0 0.0
    %3294 = vmatpush2.msra.mxu0 0.0
    %3295 = vmatprep.subr.mxu0 0.0
    %3296 = vmatpush2.msra.mxu0 0.0
    %3297 = vmatprep.subr.mxu0 0.0
    %3298 = vmatpush2.msra.mxu0 0.0
    %3299 = vmatprep.subr.mxu0 0.0
    %3300 = vmatpush2.msra.mxu0 0.0
    %3301 = vmatprep.mubr.f32.mxu0 0.0
    %3302 = vmatmul.mubr.f32.gmra.mxu0 %v3235
    %v3303 = vpop.f32.mrf.mxu0
    %v3304 = vadd.f32 0.0, %v3303
    %v3305 = vpop.f32.mrf.mxu0
    %3306 = vdwg.mxu0
    %v3308 = vsel %vm2076, %v3233, 0
    %3310 = vmatprep.subr.mxu0 0.0
    %3311 = vmatpush1.msra.mxu0 0.0
    %3312 = vmatprep.subr.mxu0 0.0
    %3313 = vmatpush1.msra.mxu0 0.0
    %3314 = vmatprep.subr.mxu0 0.0
    %3315 = vmatpush1.msra.mxu0 0.0
    %3316 = vmatprep.subr.mxu0 0.0
    %3317 = vmatpush1.msra.mxu0 0.0
    %3318 = vmatprep.subr.mxu0 0.0
    %3319 = vmatpush1.msra.mxu0 0.0
    %3320 = vmatprep.subr.mxu0 0.0
    %3321 = vmatpush1.msra.mxu0 0.0
    %3322 = vmatprep.subr.mxu0 0.0
    %3323 = vmatpush1.msra.mxu0 0.0
    %3324 = vmatprep.subr.mxu0 0.0
    %3325 = vmatpush1.msra.mxu0 0.0
    %3326 = vmatprep.subr.mxu0 0.0
    %3327 = vmatpush1.msra.mxu0 0.0
    %3328 = vmatprep.subr.mxu0 0.0
    %3329 = vmatpush1.msra.mxu0 0.0
    %3330 = vmatprep.subr.mxu0 0.0
    %3331 = vmatpush1.msra.mxu0 0.0
    %3332 = vmatprep.subr.mxu0 0.0
    %3333 = vmatpush1.msra.mxu0 0.0
    %3334 = vmatprep.subr.mxu0 0.0
    %3335 = vmatpush1.msra.mxu0 0.0
    %3336 = vmatprep.subr.mxu0 0.0
    %3337 = vmatpush1.msra.mxu0 0.0
    %3338 = vmatprep.subr.mxu0 0.0
    %3339 = vmatpush1.msra.mxu0 0.0
    %3340 = vmatprep.subr.mxu0 0.0
    %3341 = vmatpush1.msra.mxu0 %v3052
    %3342 = vmatprep.subr.mxu0 0.0
    %3343 = vmatpush2.msra.mxu0 0.0
    %3344 = vmatprep.subr.mxu0 0.0
    %3345 = vmatpush2.msra.mxu0 0.0
    %3346 = vmatprep.subr.mxu0 0.0
    %3347 = vmatpush2.msra.mxu0 0.0
    %3348 = vmatprep.subr.mxu0 0.0
    %3349 = vmatpush2.msra.mxu0 0.0
    %3350 = vmatprep.subr.mxu0 0.0
    %3351 = vmatpush2.msra.mxu0 0.0
    %3352 = vmatprep.subr.mxu0 0.0
    %3353 = vmatpush2.msra.mxu0 0.0
    %3354 = vmatprep.subr.mxu0 0.0
    %3355 = vmatpush2.msra.mxu0 0.0
    %3356 = vmatprep.subr.mxu0 0.0
    %3357 = vmatpush2.msra.mxu0 0.0
    %3358 = vmatprep.subr.mxu0 0.0
    %3359 = vmatpush2.msra.mxu0 0.0
    %3360 = vmatprep.subr.mxu0 0.0
    %3361 = vmatpush2.msra.mxu0 0.0
    %3362 = vmatprep.subr.mxu0 0.0
    %3363 = vmatpush2.msra.mxu0 0.0
    %3364 = vmatprep.subr.mxu0 0.0
    %3365 = vmatpush2.msra.mxu0 0.0
    %3366 = vmatprep.subr.mxu0 0.0
    %3367 = vmatpush2.msra.mxu0 0.0
    %3368 = vmatprep.subr.mxu0 0.0
    %3369 = vmatpush2.msra.mxu0 0.0
    %3370 = vmatprep.subr.mxu0 0.0
    %3371 = vmatpush2.msra.mxu0 0.0
    %3372 = vmatprep.subr.mxu0 0.0
    %3373 = vmatpush2.msra.mxu0 0.0
    %3374 = vmatprep.mubr.f32.mxu0 0.0
    %3375 = vmatmul.mubr.f32.gmra.mxu0 %v3308
    %v3376 = vpop.f32.mrf.mxu0
    %v3377 = vadd.f32 0.0, %v3376
    %v3378 = vpop.f32.mrf.mxu0
    %3379 = vdwg.mxu0
    %v3380 = vlaneseq
    %v3381 = vshrl.u32 %v3380, 7
    %v3382 = vsub.s32 0, %v3381
    %v3383 = vrot.slane %v3304, %v3382
    %v3384 = vmul.f32 %v3012, %v3383
    %v3385 = vmul.f32 %v3015, %v3383
    %v3386 = vmul.f32 %v3020, %v3383
    %v3387 = vmul.f32 %v3023, %v3383
    %v3388 = vmul.f32 %v3028, %v3383
    %v3389 = vmul.f32 %v3031, %v3383
    %v3390 = vlaneseq
    %v3391 = vshrl.u32 %v3390, 7
    %v3392 = vsub.s32 0, %v3391
    %v3393 = vrot.slane %v3377, %v3392
    %v3394 = vadd.f32 %v3384, %v3393
    %v3395 = vadd.f32 %v3385, %v3393
    %v3396 = vadd.f32 %v3386, %v3393
    %v3397 = vadd.f32 %v3387, %v3393
    %v3398 = vadd.f32 %v3388, %v3393
    %v3399 = vadd.f32 %v3389, %v3393
    %v3400 = vmax.f32 %v3394, 0.0
    %v3401 = vmax.f32 %v3395, 0.0
    %v3402 = vmax.f32 %v3396, 0.0
    %v3403 = vmax.f32 %v3397, 0.0
    %v3404 = vmax.f32 %v3398, 0.0
    %v3405 = vmax.f32 %v3399, 0.0
    %v3406 = vpack.c.bf16 %v3401, %v3400
    %v3407 = vpack.c.bf16 %v3403, %v3402
    %v3408 = vpack.c.bf16 %v3405, %v3404
    %3409 = vst [vmem:[#allocation3 + $0x50] sm:$0x88] 0
    %3410 = vst [vmem:[#allocation3 + $0x58] sm:$0x88] 0
    %3411 = vst [vmem:[#allocation3 + $0x60] sm:$0x8] 0
    %3412 = vst [vmem:[#allocation3 + $0x64] sm:$0xff] 0
    %3413 = vst [vmem:[#allocation3 + $0x6c] sm:$0xff] 0
    %3414 = vst [vmem:[#allocation3 + $0x74] sm:$0xf] 0
    %v3418 = vunpack.c.l.b16 %v3406
    %v3419 = vunpack.c.h.b16 %v3406
    %v3420 = vunpack.c.l.b16 %v3407
    %v3421 = vunpack.c.h.b16 %v3407
    %v3422 = vunpack.c.l.b16 %v3408
    %v3423 = vpack.c.b16 %v3418, %v3418
    %v3424 = vpack.c.b16 %v3419, %v3419
    %v3425 = vpack.c.b16 %v3420, %v3420
    %v3426 = vpack.c.b16 %v3421, %v3421
    %v3427 = vpack.c.b16 %v3422, %v3422
    %3433 = vst [vmem:[#allocation3] sm:$0xf] %v3423
    %3434 = vst [vmem:[#allocation3 + $0x14] sm:$0xf] %v3424
    %3435 = vst [vmem:[#allocation3 + $0x28] sm:$0xf] %v3425
    %3436 = vst [vmem:[#allocation3 + $0x3c] sm:$0xf] %v3426
    %3437 = vst [vmem:[#allocation3 + $0x50] sm:$0x7] %v3427
    %v3438 = vrot.slane %v3423, 5
    %v3439 = vrot.slane %v3438, 4
    %v3440 = vrot.slane %v3424, 5
    %v3441 = vsel %vm2321, %v3439, %v3440
    %v3442 = vrot.slane %v3440, 4
    %v3443 = vrot.slane %v3425, 5
    %v3444 = vsel %vm2321, %v3442, %v3443
    %v3445 = vrot.slane %v3443, 4
    %v3446 = vrot.slane %v3426, 5
    %v3447 = vsel %vm2321, %v3445, %v3446
    %v3448 = vrot.slane %v3446, 4
    %v3449 = vrot.slane %v3427, 5
    %v3450 = vsel %vm2321, %v3448, %v3449
    %v3451 = vrot.slane %v3449, 4
    %3457 = vst [vmem:[#allocation3 + $0x4] sm:$0xf] %v3441
    %3458 = vst [vmem:[#allocation3 + $0x18] sm:$0xf] %v3444
    %3459 = vst [vmem:[#allocation3 + $0x2c] sm:$0xf] %v3447
    %3460 = vst [vmem:[#allocation3 + $0x40] sm:$0xf] %v3450
    %3461 = vst [vmem:[#allocation3 + $0x54] sm:$0x7] %v3451
    %v3462 = vunpack.c.h.b16 %v3408
    %v3463 = vpack.c.b16 %v3462, %v3462
    %v3464 = vrot.slane %v3423, 6
    %v3465 = vrot.slane %v3464, 4
    %v3466 = vrot.slane %v3424, 6
    %v3467 = vsel %vm2385, %v3465, %v3466
    %v3468 = vrot.slane %v3466, 4
    %v3469 = vrot.slane %v3425, 6
    %v3470 = vsel %vm2385, %v3468, %v3469
    %v3471 = vrot.slane %v3469, 4
    %v3472 = vrot.slane %v3426, 6
    %v3473 = vsel %vm2385, %v3471, %v3472
    %v3474 = vrot.slane %v3472, 4
    %v3475 = vrot.slane %v3427, 6
    %v3476 = vsel %vm2385, %v3474, %v3475
    %v3477 = vrot.slane %v3475, 4
    %v3478 = vrot.slane %v3463, 6
    %v3479 = vsel %vm2385, %v3477, %v3478
    %3485 = vst [vmem:[#allocation3 + $0x8] sm:$0xf] %v3467
    %3486 = vst [vmem:[#allocation3 + $0x1c] sm:$0xf] %v3470
    %3487 = vst [vmem:[#allocation3 + $0x30] sm:$0xf] %v3473
    %3488 = vst [vmem:[#allocation3 + $0x44] sm:$0xf] %v3476
    %3489 = vst [vmem:[#allocation3 + $0x58] sm:$0x7] %v3479
    %vm3490 = vcmask 1040384
    %vm3491 = vcmask 1044484
    %vm3492 = vmor %vm3490, %vm3491
    %v3493 = vrot.slane %v3423, 7
    %v3494 = vrot.slane %v3493, 4
    %v3495 = vrot.slane %v3424, 7
    %v3496 = vsel %vm3492, %v3494, %v3495
    %v3497 = vrot.slane %v3495, 4
    %v3498 = vrot.slane %v3425, 7
    %v3499 = vsel %vm3492, %v3497, %v3498
    %v3500 = vrot.slane %v3498, 4
    %v3501 = vrot.slane %v3426, 7
    %v3502 = vsel %vm3492, %v3500, %v3501
    %v3503 = vrot.slane %v3501, 4
    %v3504 = vrot.slane %v3427, 7
    %v3505 = vsel %vm3492, %v3503, %v3504
    %v3506 = vrot.slane %v3504, 4
    %v3507 = vrot.slane %v3463, 7
    %v3508 = vsel %vm3492, %v3506, %v3507
    %3514 = vst [vmem:[#allocation3 + $0xc] sm:$0xf] %v3496
    %3515 = vst [vmem:[#allocation3 + $0x20] sm:$0xf] %v3499
    %3516 = vst [vmem:[#allocation3 + $0x34] sm:$0xf] %v3502
    %3517 = vst [vmem:[#allocation3 + $0x48] sm:$0xf] %v3505
    %3518 = vst [vmem:[#allocation3 + $0x5c] sm:$0x7] %v3508
    %3520 = vst [vmem:[#allocation3 + $0x10] sm:$0xf] %v3424
    %3521 = vst [vmem:[#allocation3 + $0x24] sm:$0xf] %v3425
    %3522 = vst [vmem:[#allocation3 + $0x38] sm:$0xf] %v3426
    %3523 = vst [vmem:[#allocation3 + $0x4c] sm:$0xf] %v3427
    %3524 = vst [vmem:[#allocation3 + $0x60] sm:$0x7] %v3463
    %v3525 = vld [vmem:[#allocation3] sm:$0xff]
    %v3526 = vld [vmem:[#allocation3 + $0x8] sm:$0xff]
    %v3527 = vld [vmem:[#allocation3 + $0x10] sm:$0xf]
    %v3528 = vld [vmem:[#allocation3 + $0x14] sm:$0xff]
    %v3529 = vld [vmem:[#allocation3 + $0x1c] sm:$0xff]
    %v3530 = vld [vmem:[#allocation3 + $0x24] sm:$0xf]
    %v3531 = vld [vmem:[#allocation3 + $0x28] sm:$0xff]
    %v3532 = vld [vmem:[#allocation3 + $0x30] sm:$0xff]
    %v3533 = vld [vmem:[#allocation3 + $0x38] sm:$0xf]
    %v3534 = vld [vmem:[#allocation3 + $0x3c] sm:$0xff]
    %v3535 = vld [vmem:[#allocation3 + $0x44] sm:$0xff]
    %v3536 = vld [vmem:[#allocation3 + $0x4c] sm:$0xf]
    %v3537 = vld [vmem:[#allocation3 + $0x50] sm:$0xff]
    %v3538 = vld [vmem:[#allocation3 + $0x58] sm:$0xff]
    %v3539 = vld [vmem:[#allocation3 + $0x60] sm:$0xf]
    %v3540 = vld [vmem:[#allocation3 + $0x64] sm:$0xff]
    %v3541 = vld [vmem:[#allocation3 + $0x6c] sm:$0xff]
    %v3542 = vld [vmem:[#allocation3 + $0x74] sm:$0xf]
    %v3543 = vld [vmem:[%s3] sm:$0xff]
    %v3544 = vld [vmem:[%s3 + $0x8] sm:$0xff]
    %v3545 = vld [vmem:[%s3 + $0x10] sm:$0xf]
    %v3546 = vld [vmem:[%s3 + $0x14] sm:$0xff]
    %v3547 = vld [vmem:[%s3 + $0x1c] sm:$0xff]
    %v3548 = vld [vmem:[%s3 + $0x24] sm:$0xf]
    %v3549 = vld [vmem:[%s3 + $0x28] sm:$0xff]
    %v3550 = vld [vmem:[%s3 + $0x30] sm:$0xff]
    %v3551 = vld [vmem:[%s3 + $0x38] sm:$0xf]
    %v3552 = vld [vmem:[%s3 + $0x3c] sm:$0xff]
    %v3553 = vld [vmem:[%s3 + $0x44] sm:$0xff]
    %v3554 = vld [vmem:[%s3 + $0x4c] sm:$0xf]
    %v3555 = vld [vmem:[%s3 + $0x50] sm:$0xff]
    %v3556 = vld [vmem:[%s3 + $0x58] sm:$0xff]
    %v3557 = vld [vmem:[%s3 + $0x60] sm:$0xf]
    %v3558 = vld [vmem:[%s3 + $0x64] sm:$0xff]
    %v3559 = vld [vmem:[%s3 + $0x6c] sm:$0xff]
    %v3560 = vld [vmem:[%s3 + $0x74] sm:$0xf]
    %v3561 = vld [vmem:[%s3 + $0x78] sm:$0xff]
    %v3562 = vld [vmem:[%s3 + $0x80] sm:$0xff]
    %v3563 = vld [vmem:[%s3 + $0x88] sm:$0xf]
    %v3564 = vld [vmem:[%s3 + $0x8c] sm:$0xff]
    %v3565 = vld [vmem:[%s3 + $0x94] sm:$0xff]
    %v3566 = vld [vmem:[%s3 + $0x9c] sm:$0xf]
    %v3567 = vld [vmem:[%s3 + $0xa0] sm:$0xff]
    %v3568 = vld [vmem:[%s3 + $0xa8] sm:$0xff]
    %v3569 = vld [vmem:[%s3 + $0xb0] sm:$0xf]
    %v3570 = vld [vmem:[%s3 + $0xb4] sm:$0xff]
    %v3571 = vld [vmem:[%s3 + $0xbc] sm:$0xff]
    %v3572 = vld [vmem:[%s3 + $0xc4] sm:$0xf]
    %v3573 = vld [vmem:[%s3 + $0xc8] sm:$0xff]
    %v3574 = vld [vmem:[%s3 + $0xd0] sm:$0xff]
    %v3575 = vld [vmem:[%s3 + $0xd8] sm:$0xf]
    %v3576 = vld [vmem:[%s3 + $0xdc] sm:$0xff]
    %v3577 = vld [vmem:[%s3 + $0xe4] sm:$0xff]
    %v3578 = vld [vmem:[%s3 + $0xec] sm:$0xf]
    %v3579 = vld [vmem:[%s3 + $0xf0] sm:$0xff]
    %v3580 = vld [vmem:[%s3 + $0xf8] sm:$0xff]
    %v3581 = vld [vmem:[%s3 + $0x100] sm:$0xf]
    %v3582 = vld [vmem:[%s3 + $0x104] sm:$0xff]
    %v3583 = vld [vmem:[%s3 + $0x10c] sm:$0xff]
    %v3584 = vld [vmem:[%s3 + $0x114] sm:$0xf]
    %v3585 = vld [vmem:[%s3 + $0x118] sm:$0xff]
    %v3586 = vld [vmem:[%s3 + $0x120] sm:$0xff]
    %v3587 = vld [vmem:[%s3 + $0x128] sm:$0xf]
    %v3588 = vld [vmem:[%s3 + $0x12c] sm:$0xff]
    %v3589 = vld [vmem:[%s3 + $0x134] sm:$0xff]
    %v3590 = vld [vmem:[%s3 + $0x13c] sm:$0xf]
    %v3591 = vld [vmem:[%s3 + $0x140] sm:$0xff]
    %v3592 = vld [vmem:[%s3 + $0x148] sm:$0xff]
    %v3593 = vld [vmem:[%s3 + $0x150] sm:$0xf]
    %v3594 = vld [vmem:[%s3 + $0x154] sm:$0xff]
    %v3595 = vld [vmem:[%s3 + $0x15c] sm:$0xff]
    %v3596 = vld [vmem:[%s3 + $0x164] sm:$0xf]
    %v3597 = vld [vmem:[%s3 + $0x168] sm:$0xff]
    %v3598 = vld [vmem:[%s3 + $0x170] sm:$0xff]
    %v3599 = vld [vmem:[%s3 + $0x178] sm:$0xf]
    %v3600 = vld [vmem:[%s3 + $0x17c] sm:$0xff]
    %v3601 = vld [vmem:[%s3 + $0x184] sm:$0xff]
    %v3602 = vld [vmem:[%s3 + $0x18c] sm:$0xf]
    %v3603 = vld [vmem:[%s3 + $0x190] sm:$0xff]
    %v3604 = vld [vmem:[%s3 + $0x198] sm:$0xff]
    %v3605 = vld [vmem:[%s3 + $0x1a0] sm:$0xf]
    %v3606 = vld [vmem:[%s3 + $0x1a4] sm:$0xff]
    %v3607 = vld [vmem:[%s3 + $0x1ac] sm:$0xff]
    %v3608 = vld [vmem:[%s3 + $0x1b4] sm:$0xf]
    %v3609 = vld [vmem:[%s3 + $0x1b8] sm:$0xff]
    %v3610 = vld [vmem:[%s3 + $0x1c0] sm:$0xff]
    %v3611 = vld [vmem:[%s3 + $0x1c8] sm:$0xf]
    %v3612 = vld [vmem:[%s3 + $0x1cc] sm:$0xff]
    %v3613 = vld [vmem:[%s3 + $0x1d4] sm:$0xff]
    %v3614 = vld [vmem:[%s3 + $0x1dc] sm:$0xf]
    %v3615 = vld [vmem:[%s3 + $0x1e0] sm:$0xff]
    %v3616 = vld [vmem:[%s3 + $0x1e8] sm:$0xff]
    %v3617 = vld [vmem:[%s3 + $0x1f0] sm:$0xf]
    %v3618 = vld [vmem:[%s3 + $0x1f4] sm:$0xff]
    %v3619 = vld [vmem:[%s3 + $0x1fc] sm:$0xff]
    %v3620 = vld [vmem:[%s3 + $0x204] sm:$0xf]
    %v3621 = vld [vmem:[%s3 + $0x208] sm:$0xff]
    %v3622 = vld [vmem:[%s3 + $0x210] sm:$0xff]
    %v3623 = vld [vmem:[%s3 + $0x218] sm:$0xf]
    %v3624 = vld [vmem:[%s3 + $0x21c] sm:$0xff]
    %v3625 = vld [vmem:[%s3 + $0x224] sm:$0xff]
    %v3626 = vld [vmem:[%s3 + $0x22c] sm:$0xf]
    %v3627 = vld [vmem:[%s3 + $0x230] sm:$0xff]
    %v3628 = vld [vmem:[%s3 + $0x238] sm:$0xff]
    %v3629 = vld [vmem:[%s3 + $0x240] sm:$0xf]
    %v3630 = vld [vmem:[%s3 + $0x244] sm:$0xff]
    %v3631 = vld [vmem:[%s3 + $0x24c] sm:$0xff]
    %v3632 = vld [vmem:[%s3 + $0x254] sm:$0xf]
    %v3633 = vld [vmem:[%s3 + $0x258] sm:$0xff]
    %v3634 = vld [vmem:[%s3 + $0x260] sm:$0xff]
    %v3635 = vld [vmem:[%s3 + $0x268] sm:$0xf]
    %v3636 = vld [vmem:[%s3 + $0x26c] sm:$0xff]
    %v3637 = vld [vmem:[%s3 + $0x274] sm:$0xff]
    %v3638 = vld [vmem:[%s3 + $0x27c] sm:$0xf]
    %v3639 = vld [vmem:[%s3 + $0x280] sm:$0xff]
    %v3640 = vld [vmem:[%s3 + $0x288] sm:$0xff]
    %v3641 = vld [vmem:[%s3 + $0x290] sm:$0xf]
    %v3642 = vld [vmem:[%s3 + $0x294] sm:$0xff]
    %v3643 = vld [vmem:[%s3 + $0x29c] sm:$0xff]
    %v3644 = vld [vmem:[%s3 + $0x2a4] sm:$0xf]
    %v3645 = vld [vmem:[%s3 + $0x2a8] sm:$0xff]
    %v3646 = vld [vmem:[%s3 + $0x2b0] sm:$0xff]
    %v3647 = vld [vmem:[%s3 + $0x2b8] sm:$0xf]
    %v3648 = vld [vmem:[%s3 + $0x2bc] sm:$0xff]
    %v3649 = vld [vmem:[%s3 + $0x2c4] sm:$0xff]
    %v3650 = vld [vmem:[%s3 + $0x2cc] sm:$0xf]
    %v3651 = vld [vmem:[%s3 + $0x2d0] sm:$0xff]
    %v3652 = vld [vmem:[%s3 + $0x2d8] sm:$0xff]
    %v3653 = vld [vmem:[%s3 + $0x2e0] sm:$0xf]
    %v3654 = vld [vmem:[%s3 + $0x2e4] sm:$0xff]
    %v3655 = vld [vmem:[%s3 + $0x2ec] sm:$0xff]
    %v3656 = vld [vmem:[%s3 + $0x2f4] sm:$0xf]
    %v3657 = vld [vmem:[%s3 + $0x2f8] sm:$0xff]
    %v3658 = vld [vmem:[%s3 + $0x300] sm:$0xff]
    %v3659 = vld [vmem:[%s3 + $0x308] sm:$0xf]
    %v3660 = vld [vmem:[%s3 + $0x30c] sm:$0xff]
    %v3661 = vld [vmem:[%s3 + $0x314] sm:$0xff]
    %v3662 = vld [vmem:[%s3 + $0x31c] sm:$0xf]
    %v3663 = vld [vmem:[%s3 + $0x320] sm:$0xff]
    %v3664 = vld [vmem:[%s3 + $0x328] sm:$0xff]
    %v3665 = vld [vmem:[%s3 + $0x330] sm:$0xf]
    %v3666 = vld [vmem:[%s3 + $0x334] sm:$0xff]
    %v3667 = vld [vmem:[%s3 + $0x33c] sm:$0xff]
    %v3668 = vld [vmem:[%s3 + $0x344] sm:$0xf]
    %v3669 = vld [vmem:[%s3 + $0x348] sm:$0xff]
    %v3670 = vld [vmem:[%s3 + $0x350] sm:$0xff]
    %v3671 = vld [vmem:[%s3 + $0x358] sm:$0xf]
    %v3672 = vld [vmem:[%s3 + $0x35c] sm:$0xff]
    %v3673 = vld [vmem:[%s3 + $0x364] sm:$0xff]
    %v3674 = vld [vmem:[%s3 + $0x36c] sm:$0xf]
    %v3675 = vld [vmem:[%s3 + $0x370] sm:$0xff]
    %v3676 = vld [vmem:[%s3 + $0x378] sm:$0xff]
    %v3677 = vld [vmem:[%s3 + $0x380] sm:$0xf]
    %v3678 = vld [vmem:[%s3 + $0x384] sm:$0xff]
    %v3679 = vld [vmem:[%s3 + $0x38c] sm:$0xff]
    %v3680 = vld [vmem:[%s3 + $0x394] sm:$0xf]
    %v3681 = vld [vmem:[%s3 + $0x398] sm:$0xff]
    %v3682 = vld [vmem:[%s3 + $0x3a0] sm:$0xff]
    %v3683 = vld [vmem:[%s3 + $0x3a8] sm:$0xf]
    %v3684 = vld [vmem:[%s3 + $0x3ac] sm:$0xff]
    %v3685 = vld [vmem:[%s3 + $0x3b4] sm:$0xff]
    %v3686 = vld [vmem:[%s3 + $0x3bc] sm:$0xf]
    %v3687 = vld [vmem:[%s3 + $0x3c0] sm:$0xff]
    %v3688 = vld [vmem:[%s3 + $0x3c8] sm:$0xff]
    %v3689 = vld [vmem:[%s3 + $0x3d0] sm:$0xf]
    %v3690 = vld [vmem:[%s3 + $0x3d4] sm:$0xff]
    %v3691 = vld [vmem:[%s3 + $0x3dc] sm:$0xff]
    %v3692 = vld [vmem:[%s3 + $0x3e4] sm:$0xf]
    %v3693 = vld [vmem:[%s3 + $0x3e8] sm:$0xff]
    %v3694 = vld [vmem:[%s3 + $0x3f0] sm:$0xff]
    %v3695 = vld [vmem:[%s3 + $0x3f8] sm:$0xf]
    %v3696 = vld [vmem:[%s3 + $0x3fc] sm:$0xff]
    %v3697 = vld [vmem:[%s3 + $0x404] sm:$0xff]
    %v3698 = vld [vmem:[%s3 + $0x40c] sm:$0xf]
    %v3699 = vld [vmem:[%s3 + $0x410] sm:$0xff]
    %v3700 = vld [vmem:[%s3 + $0x418] sm:$0xff]
    %v3701 = vld [vmem:[%s3 + $0x420] sm:$0xf]
    %v3702 = vld [vmem:[%s3 + $0x424] sm:$0xff]
    %v3703 = vld [vmem:[%s3 + $0x42c] sm:$0xff]
    %v3704 = vld [vmem:[%s3 + $0x434] sm:$0xf]
    %v3705 = vld [vmem:[%s3 + $0x438] sm:$0xff]
    %v3706 = vld [vmem:[%s3 + $0x440] sm:$0xff]
    %v3707 = vld [vmem:[%s3 + $0x448] sm:$0xf]
    %v3708 = vld [vmem:[%s3 + $0x44c] sm:$0xff]
    %v3709 = vld [vmem:[%s3 + $0x454] sm:$0xff]
    %v3710 = vld [vmem:[%s3 + $0x45c] sm:$0xf]
    %v3711 = vld [vmem:[%s3 + $0x460] sm:$0xff]
    %v3712 = vld [vmem:[%s3 + $0x468] sm:$0xff]
    %v3713 = vld [vmem:[%s3 + $0x470] sm:$0xf]
    %v3714 = vld [vmem:[%s3 + $0x474] sm:$0xff]
    %v3715 = vld [vmem:[%s3 + $0x47c] sm:$0xff]
    %v3716 = vld [vmem:[%s3 + $0x484] sm:$0xf]
    %v3717 = vld [vmem:[%s3 + $0x488] sm:$0xff]
    %v3718 = vld [vmem:[%s3 + $0x490] sm:$0xff]
    %v3719 = vld [vmem:[%s3 + $0x498] sm:$0xf]
    %v3720 = vld [vmem:[%s3 + $0x49c] sm:$0xff]
    %v3721 = vld [vmem:[%s3 + $0x4a4] sm:$0xff]
    %v3722 = vld [vmem:[%s3 + $0x4ac] sm:$0xf]
    %v3723 = vld [vmem:[%s3 + $0x4b0] sm:$0xff]
    %v3724 = vld [vmem:[%s3 + $0x4b8] sm:$0xff]
    %v3725 = vld [vmem:[%s3 + $0x4c0] sm:$0xf]
    %v3726 = vld [vmem:[%s3 + $0x4c4] sm:$0xff]
    %v3727 = vld [vmem:[%s3 + $0x4cc] sm:$0xff]
    %v3728 = vld [vmem:[%s3 + $0x4d4] sm:$0xf]
    %v3729 = vld [vmem:[%s3 + $0x4d8] sm:$0xff]
    %v3730 = vld [vmem:[%s3 + $0x4e0] sm:$0xff]
    %v3731 = vld [vmem:[%s3 + $0x4e8] sm:$0xf]
    %v3732 = vld [vmem:[%s3 + $0x4ec] sm:$0xff]
    %v3733 = vld [vmem:[%s3 + $0x4f4] sm:$0xff]
    %v3734 = vld [vmem:[%s3 + $0x4fc] sm:$0xf]
    %v3735 = vld [vmem:[%s3 + $0x500] sm:$0xff]
    %v3736 = vld [vmem:[%s3 + $0x508] sm:$0xff]
    %v3737 = vld [vmem:[%s3 + $0x510] sm:$0xf]
    %v3738 = vld [vmem:[%s3 + $0x514] sm:$0xff]
    %v3739 = vld [vmem:[%s3 + $0x51c] sm:$0xff]
    %v3740 = vld [vmem:[%s3 + $0x524] sm:$0xf]
    %v3741 = vld [vmem:[%s3 + $0x528] sm:$0xff]
    %v3742 = vld [vmem:[%s3 + $0x530] sm:$0xff]
    %v3743 = vld [vmem:[%s3 + $0x538] sm:$0xf]
    %v3744 = vld [vmem:[%s3 + $0x53c] sm:$0xff]
    %v3745 = vld [vmem:[%s3 + $0x544] sm:$0xff]
    %v3746 = vld [vmem:[%s3 + $0x54c] sm:$0xf]
    %v3747 = vld [vmem:[%s3 + $0x550] sm:$0xff]
    %v3748 = vld [vmem:[%s3 + $0x558] sm:$0xff]
    %v3749 = vld [vmem:[%s3 + $0x560] sm:$0xf]
    %v3750 = vld [vmem:[%s3 + $0x564] sm:$0xff]
    %v3751 = vld [vmem:[%s3 + $0x56c] sm:$0xff]
    %v3752 = vld [vmem:[%s3 + $0x574] sm:$0xf]
    %v3753 = vld [vmem:[%s3 + $0x578] sm:$0xff]
    %v3754 = vld [vmem:[%s3 + $0x580] sm:$0xff]
    %v3755 = vld [vmem:[%s3 + $0x588] sm:$0xf]
    %v3756 = vld [vmem:[%s3 + $0x58c] sm:$0xff]
    %v3757 = vld [vmem:[%s3 + $0x594] sm:$0xff]
    %v3758 = vld [vmem:[%s3 + $0x59c] sm:$0xf]
    %v3759 = vld [vmem:[%s3 + $0x5a0] sm:$0xff]
    %v3760 = vld [vmem:[%s3 + $0x5a8] sm:$0xff]
    %v3761 = vld [vmem:[%s3 + $0x5b0] sm:$0xf]
    %v3762 = vld [vmem:[%s3 + $0x5b4] sm:$0xff]
    %v3763 = vld [vmem:[%s3 + $0x5bc] sm:$0xff]
    %v3764 = vld [vmem:[%s3 + $0x5c4] sm:$0xf]
    %v3765 = vld [vmem:[%s3 + $0x5c8] sm:$0xff]
    %v3766 = vld [vmem:[%s3 + $0x5d0] sm:$0xff]
    %v3767 = vld [vmem:[%s3 + $0x5d8] sm:$0xf]
    %v3768 = vld [vmem:[%s3 + $0x5dc] sm:$0xff]
    %v3769 = vld [vmem:[%s3 + $0x5e4] sm:$0xff]
    %v3770 = vld [vmem:[%s3 + $0x5ec] sm:$0xf]
    %v3771 = vld [vmem:[%s3 + $0x5f0] sm:$0xff]
    %v3772 = vld [vmem:[%s3 + $0x5f8] sm:$0xff]
    %v3773 = vld [vmem:[%s3 + $0x600] sm:$0xf]
    %v3774 = vld [vmem:[%s3 + $0x604] sm:$0xff]
    %v3775 = vld [vmem:[%s3 + $0x60c] sm:$0xff]
    %v3776 = vld [vmem:[%s3 + $0x614] sm:$0xf]
    %v3777 = vld [vmem:[%s3 + $0x618] sm:$0xff]
    %v3778 = vld [vmem:[%s3 + $0x620] sm:$0xff]
    %v3779 = vld [vmem:[%s3 + $0x628] sm:$0xf]
    %v3780 = vld [vmem:[%s3 + $0x62c] sm:$0xff]
    %v3781 = vld [vmem:[%s3 + $0x634] sm:$0xff]
    %v3782 = vld [vmem:[%s3 + $0x63c] sm:$0xf]
    %v3783 = vld [vmem:[%s12] sm:$0x1f]
    %v3785 = vlaneseq
    %v3786 = vshrl.u32 %v3785, 7
    %v3787 = vsub.s32 0, %v3786
    %v3788 = vrot.slane %v3783, %v3787
    %v3789 = vlaneseq
    %v3790 = vshrl.u32 %v3789, 7
    %v3791 = vsub.s32 1, %v3790
    %v3792 = vrot.slane %v3783, %v3791
    %v3793 = vlaneseq
    %v3794 = vshrl.u32 %v3793, 7
    %v3795 = vsub.s32 2, %v3794
    %v3796 = vrot.slane %v3783, %v3795
    %v3797 = vlaneseq
    %v3798 = vshrl.u32 %v3797, 7
    %v3799 = vsub.s32 3, %v3798
    %v3800 = vrot.slane %v3783, %v3799
    %v3801 = vlaneseq
    %v3802 = vshrl.u32 %v3801, 7
    %v3803 = vsub.s32 4, %v3802
    %v3804 = vrot.slane %v3783, %v3803
    %v3828 = vunpack.c.l.b16 %v3525
    %v3829 = vunpack.c.h.b16 %v3525
    %v3830 = vunpack.c.l.b16 %v3526
    %v3831 = vunpack.c.h.b16 %v3526
    %v3832 = vunpack.c.l.b16 %v3527
    %v3833 = vunpack.c.l.b16 %v3528
    %v3834 = vunpack.c.h.b16 %v3528
    %v3835 = vunpack.c.l.b16 %v3529
    %v3836 = vunpack.c.h.b16 %v3529
    %v3837 = vunpack.c.l.b16 %v3530
    %v3838 = vunpack.c.l.b16 %v3531
    %v3839 = vunpack.c.h.b16 %v3531
    %v3840 = vunpack.c.l.b16 %v3532
    %v3841 = vunpack.c.h.b16 %v3532
    %v3842 = vunpack.c.l.b16 %v3533
    %v3843 = vunpack.c.l.b16 %v3534
    %v3844 = vunpack.c.h.b16 %v3534
    %v3845 = vunpack.c.l.b16 %v3535
    %v3846 = vunpack.c.h.b16 %v3535
    %v3847 = vunpack.c.l.b16 %v3536
    %v3848 = vunpack.c.l.b16 %v3537
    %v3849 = vunpack.c.h.b16 %v3537
    %v3850 = vunpack.c.l.b16 %v3538
    %v3851 = vunpack.c.h.b16 %v3538
    %v3852 = vunpack.c.l.b16 %v3539
    %v3853 = vunpack.c.l.b16 %v3540
    %v3854 = vunpack.c.h.b16 %v3540
    %v3855 = vunpack.c.l.b16 %v3541
    %v3856 = vunpack.c.h.b16 %v3541
    %v3857 = vunpack.c.l.b16 %v3542
    %v3858 = vpack.c.b16 %v3833, %v3828
    %v3859 = vpack.c.b16 %v3834, %v3829
    %v3860 = vpack.c.b16 %v3835, %v3830
    %v3861 = vpack.c.b16 %v3836, %v3831
    %v3862 = vpack.c.b16 %v3837, %v3832
    %v3863 = vpack.c.b16 %v3843, %v3838
    %v3864 = vpack.c.b16 %v3844, %v3839
    %v3865 = vpack.c.b16 %v3845, %v3840
    %v3866 = vpack.c.b16 %v3846, %v3841
    %v3867 = vpack.c.b16 %v3847, %v3842
    %v3868 = vpack.c.b16 %v3853, %v3848
    %v3869 = vpack.c.b16 %v3854, %v3849
    %v3870 = vpack.c.b16 %v3855, %v3850
    %v3871 = vpack.c.b16 %v3856, %v3851
    %v3872 = vpack.c.b16 %v3857, %v3852
    %v4128 = vunpack.c.l.b16 %v3543
    %v4129 = vunpack.c.h.b16 %v3543
    %v4130 = vunpack.c.l.b16 %v3544
    %v4131 = vunpack.c.h.b16 %v3544
    %v4132 = vunpack.c.l.b16 %v3545
    %v4133 = vunpack.c.l.b16 %v3546
    %v4134 = vunpack.c.h.b16 %v3546
    %v4135 = vunpack.c.l.b16 %v3547
    %v4136 = vunpack.c.h.b16 %v3547
    %v4137 = vunpack.c.l.b16 %v3548
    %v4138 = vunpack.c.l.b16 %v3549
    %v4139 = vunpack.c.h.b16 %v3549
    %v4140 = vunpack.c.l.b16 %v3550
    %v4141 = vunpack.c.h.b16 %v3550
    %v4142 = vunpack.c.l.b16 %v3551
    %v4143 = vunpack.c.l.b16 %v3552
    %v4144 = vunpack.c.h.b16 %v3552
    %v4145 = vunpack.c.l.b16 %v3553
    %v4146 = vunpack.c.h.b16 %v3553
    %v4147 = vunpack.c.l.b16 %v3554
    %v4148 = vunpack.c.l.b16 %v3555
    %v4149 = vunpack.c.h.b16 %v3555
    %v4150 = vunpack.c.l.b16 %v3556
    %v4151 = vunpack.c.h.b16 %v3556
    %v4152 = vunpack.c.l.b16 %v3557
    %v4153 = vunpack.c.l.b16 %v3558
    %v4154 = vunpack.c.h.b16 %v3558
    %v4155 = vunpack.c.l.b16 %v3559
    %v4156 = vunpack.c.h.b16 %v3559
    %v4157 = vunpack.c.l.b16 %v3560
    %v4158 = vunpack.c.l.b16 %v3561
    %v4159 = vunpack.c.h.b16 %v3561
    %v4160 = vunpack.c.l.b16 %v3562
    %v4161 = vunpack.c.h.b16 %v3562
    %v4162 = vunpack.c.l.b16 %v3563
    %v4163 = vunpack.c.l.b16 %v3564
    %v4164 = vunpack.c.h.b16 %v3564
    %v4165 = vunpack.c.l.b16 %v3565
    %v4166 = vunpack.c.h.b16 %v3565
    %v4167 = vunpack.c.l.b16 %v3566
    %v4168 = vunpack.c.l.b16 %v3567
    %v4169 = vunpack.c.h.b16 %v3567
    %v4170 = vunpack.c.l.b16 %v3568
    %v4171 = vunpack.c.h.b16 %v3568
    %v4172 = vunpack.c.l.b16 %v3569
    %v4173 = vunpack.c.l.b16 %v3570
    %v4174 = vunpack.c.h.b16 %v3570
    %v4175 = vunpack.c.l.b16 %v3571
    %v4176 = vunpack.c.h.b16 %v3571
    %v4177 = vunpack.c.l.b16 %v3572
    %v4178 = vunpack.c.l.b16 %v3573
    %v4179 = vunpack.c.h.b16 %v3573
    %v4180 = vunpack.c.l.b16 %v3574
    %v4181 = vunpack.c.h.b16 %v3574
    %v4182 = vunpack.c.l.b16 %v3575
    %v4183 = vunpack.c.l.b16 %v3576
    %v4184 = vunpack.c.h.b16 %v3576
    %v4185 = vunpack.c.l.b16 %v3577
    %v4186 = vunpack.c.h.b16 %v3577
    %v4187 = vunpack.c.l.b16 %v3578
    %v4188 = vunpack.c.l.b16 %v3579
    %v4189 = vunpack.c.h.b16 %v3579
    %v4190 = vunpack.c.l.b16 %v3580
    %v4191 = vunpack.c.h.b16 %v3580
    %v4192 = vunpack.c.l.b16 %v3581
    %v4193 = vunpack.c.l.b16 %v3582
    %v4194 = vunpack.c.h.b16 %v3582
    %v4195 = vunpack.c.l.b16 %v3583
    %v4196 = vunpack.c.h.b16 %v3583
    %v4197 = vunpack.c.l.b16 %v3584
    %v4198 = vunpack.c.l.b16 %v3585
    %v4199 = vunpack.c.h.b16 %v3585
    %v4200 = vunpack.c.l.b16 %v3586
    %v4201 = vunpack.c.h.b16 %v3586
    %v4202 = vunpack.c.l.b16 %v3587
    %v4203 = vunpack.c.l.b16 %v3588
    %v4204 = vunpack.c.h.b16 %v3588
    %v4205 = vunpack.c.l.b16 %v3589
    %v4206 = vunpack.c.h.b16 %v3589
    %v4207 = vunpack.c.l.b16 %v3590
    %v4208 = vunpack.c.l.b16 %v3591
    %v4209 = vunpack.c.h.b16 %v3591
    %v4210 = vunpack.c.l.b16 %v3592
    %v4211 = vunpack.c.h.b16 %v3592
    %v4212 = vunpack.c.l.b16 %v3593
    %v4213 = vunpack.c.l.b16 %v3594
    %v4214 = vunpack.c.h.b16 %v3594
    %v4215 = vunpack.c.l.b16 %v3595
    %v4216 = vunpack.c.h.b16 %v3595
    %v4217 = vunpack.c.l.b16 %v3596
    %v4218 = vunpack.c.l.b16 %v3597
    %v4219 = vunpack.c.h.b16 %v3597
    %v4220 = vunpack.c.l.b16 %v3598
    %v4221 = vunpack.c.h.b16 %v3598
    %v4222 = vunpack.c.l.b16 %v3599
    %v4223 = vunpack.c.l.b16 %v3600
    %v4224 = vunpack.c.h.b16 %v3600
    %v4225 = vunpack.c.l.b16 %v3601
    %v4226 = vunpack.c.h.b16 %v3601
    %v4227 = vunpack.c.l.b16 %v3602
    %v4228 = vunpack.c.l.b16 %v3603
    %v4229 = vunpack.c.h.b16 %v3603
    %v4230 = vunpack.c.l.b16 %v3604
    %v4231 = vunpack.c.h.b16 %v3604
    %v4232 = vunpack.c.l.b16 %v3605
    %v4233 = vunpack.c.l.b16 %v3606
    %v4234 = vunpack.c.h.b16 %v3606
    %v4235 = vunpack.c.l.b16 %v3607
    %v4236 = vunpack.c.h.b16 %v3607
    %v4237 = vunpack.c.l.b16 %v3608
    %v4238 = vunpack.c.l.b16 %v3609
    %v4239 = vunpack.c.h.b16 %v3609
    %v4240 = vunpack.c.l.b16 %v3610
    %v4241 = vunpack.c.h.b16 %v3610
    %v4242 = vunpack.c.l.b16 %v3611
    %v4243 = vunpack.c.l.b16 %v3612
    %v4244 = vunpack.c.h.b16 %v3612
    %v4245 = vunpack.c.l.b16 %v3613
    %v4246 = vunpack.c.h.b16 %v3613
    %v4247 = vunpack.c.l.b16 %v3614
    %v4248 = vunpack.c.l.b16 %v3615
    %v4249 = vunpack.c.h.b16 %v3615
    %v4250 = vunpack.c.l.b16 %v3616
    %v4251 = vunpack.c.h.b16 %v3616
    %v4252 = vunpack.c.l.b16 %v3617
    %v4253 = vunpack.c.l.b16 %v3618
    %v4254 = vunpack.c.h.b16 %v3618
    %v4255 = vunpack.c.l.b16 %v3619
    %v4256 = vunpack.c.h.b16 %v3619
    %v4257 = vunpack.c.l.b16 %v3620
    %v4258 = vunpack.c.l.b16 %v3621
    %v4259 = vunpack.c.h.b16 %v3621
    %v4260 = vunpack.c.l.b16 %v3622
    %v4261 = vunpack.c.h.b16 %v3622
    %v4262 = vunpack.c.l.b16 %v3623
    %v4263 = vunpack.c.l.b16 %v3624
    %v4264 = vunpack.c.h.b16 %v3624
    %v4265 = vunpack.c.l.b16 %v3625
    %v4266 = vunpack.c.h.b16 %v3625
    %v4267 = vunpack.c.l.b16 %v3626
    %v4268 = vunpack.c.l.b16 %v3627
    %v4269 = vunpack.c.h.b16 %v3627
    %v4270 = vunpack.c.l.b16 %v3628
    %v4271 = vunpack.c.h.b16 %v3628
    %v4272 = vunpack.c.l.b16 %v3629
    %v4273 = vunpack.c.l.b16 %v3630
    %v4274 = vunpack.c.h.b16 %v3630
    %v4275 = vunpack.c.l.b16 %v3631
    %v4276 = vunpack.c.h.b16 %v3631
    %v4277 = vunpack.c.l.b16 %v3632
    %v4278 = vunpack.c.l.b16 %v3633
    %v4279 = vunpack.c.h.b16 %v3633
    %v4280 = vunpack.c.l.b16 %v3634
    %v4281 = vunpack.c.h.b16 %v3634
    %v4282 = vunpack.c.l.b16 %v3635
    %v4283 = vunpack.c.l.b16 %v3636
    %v4284 = vunpack.c.h.b16 %v3636
    %v4285 = vunpack.c.l.b16 %v3637
    %v4286 = vunpack.c.h.b16 %v3637
    %v4287 = vunpack.c.l.b16 %v3638
    %v4288 = vunpack.c.l.b16 %v3639
    %v4289 = vunpack.c.h.b16 %v3639
    %v4290 = vunpack.c.l.b16 %v3640
    %v4291 = vunpack.c.h.b16 %v3640
    %v4292 = vunpack.c.l.b16 %v3641
    %v4293 = vunpack.c.l.b16 %v3642
    %v4294 = vunpack.c.h.b16 %v3642
    %v4295 = vunpack.c.l.b16 %v3643
    %v4296 = vunpack.c.h.b16 %v3643
    %v4297 = vunpack.c.l.b16 %v3644
    %v4298 = vunpack.c.l.b16 %v3645
    %v4299 = vunpack.c.h.b16 %v3645
    %v4300 = vunpack.c.l.b16 %v3646
    %v4301 = vunpack.c.h.b16 %v3646
    %v4302 = vunpack.c.l.b16 %v3647
    %v4303 = vunpack.c.l.b16 %v3648
    %v4304 = vunpack.c.h.b16 %v3648
    %v4305 = vunpack.c.l.b16 %v3649
    %v4306 = vunpack.c.h.b16 %v3649
    %v4307 = vunpack.c.l.b16 %v3650
    %v4308 = vunpack.c.l.b16 %v3651
    %v4309 = vunpack.c.h.b16 %v3651
    %v4310 = vunpack.c.l.b16 %v3652
    %v4311 = vunpack.c.h.b16 %v3652
    %v4312 = vunpack.c.l.b16 %v3653
    %v4313 = vunpack.c.l.b16 %v3654
    %v4314 = vunpack.c.h.b16 %v3654
    %v4315 = vunpack.c.l.b16 %v3655
    %v4316 = vunpack.c.h.b16 %v3655
    %v4317 = vunpack.c.l.b16 %v3656
    %v4318 = vunpack.c.l.b16 %v3657
    %v4319 = vunpack.c.h.b16 %v3657
    %v4320 = vunpack.c.l.b16 %v3658
    %v4321 = vunpack.c.h.b16 %v3658
    %v4322 = vunpack.c.l.b16 %v3659
    %v4323 = vunpack.c.l.b16 %v3660
    %v4324 = vunpack.c.h.b16 %v3660
    %v4325 = vunpack.c.l.b16 %v3661
    %v4326 = vunpack.c.h.b16 %v3661
    %v4327 = vunpack.c.l.b16 %v3662
    %v4328 = vunpack.c.l.b16 %v3663
    %v4329 = vunpack.c.h.b16 %v3663
    %v4330 = vunpack.c.l.b16 %v3664
    %v4331 = vunpack.c.h.b16 %v3664
    %v4332 = vunpack.c.l.b16 %v3665
    %v4333 = vunpack.c.l.b16 %v3666
    %v4334 = vunpack.c.h.b16 %v3666
    %v4335 = vunpack.c.l.b16 %v3667
    %v4336 = vunpack.c.h.b16 %v3667
    %v4337 = vunpack.c.l.b16 %v3668
    %v4338 = vunpack.c.l.b16 %v3669
    %v4339 = vunpack.c.h.b16 %v3669
    %v4340 = vunpack.c.l.b16 %v3670
    %v4341 = vunpack.c.h.b16 %v3670
    %v4342 = vunpack.c.l.b16 %v3671
    %v4343 = vunpack.c.l.b16 %v3672
    %v4344 = vunpack.c.h.b16 %v3672
    %v4345 = vunpack.c.l.b16 %v3673
    %v4346 = vunpack.c.h.b16 %v3673
    %v4347 = vunpack.c.l.b16 %v3674
    %v4348 = vunpack.c.l.b16 %v3675
    %v4349 = vunpack.c.h.b16 %v3675
    %v4350 = vunpack.c.l.b16 %v3676
    %v4351 = vunpack.c.h.b16 %v3676
    %v4352 = vunpack.c.l.b16 %v3677
    %v4353 = vunpack.c.l.b16 %v3678
    %v4354 = vunpack.c.h.b16 %v3678
    %v4355 = vunpack.c.l.b16 %v3679
    %v4356 = vunpack.c.h.b16 %v3679
    %v4357 = vunpack.c.l.b16 %v3680
    %v4358 = vunpack.c.l.b16 %v3681
    %v4359 = vunpack.c.h.b16 %v3681
    %v4360 = vunpack.c.l.b16 %v3682
    %v4361 = vunpack.c.h.b16 %v3682
    %v4362 = vunpack.c.l.b16 %v3683
    %v4363 = vunpack.c.l.b16 %v3684
    %v4364 = vunpack.c.h.b16 %v3684
    %v4365 = vunpack.c.l.b16 %v3685
    %v4366 = vunpack.c.h.b16 %v3685
    %v4367 = vunpack.c.l.b16 %v3686
    %v4368 = vunpack.c.l.b16 %v3687
    %v4369 = vunpack.c.h.b16 %v3687
    %v4370 = vunpack.c.l.b16 %v3688
    %v4371 = vunpack.c.h.b16 %v3688
    %v4372 = vunpack.c.l.b16 %v3689
    %v4373 = vunpack.c.l.b16 %v3690
    %v4374 = vunpack.c.h.b16 %v3690
    %v4375 = vunpack.c.l.b16 %v3691
    %v4376 = vunpack.c.h.b16 %v3691
    %v4377 = vunpack.c.l.b16 %v3692
    %v4378 = vunpack.c.l.b16 %v3693
    %v4379 = vunpack.c.h.b16 %v3693
    %v4380 = vunpack.c.l.b16 %v3694
    %v4381 = vunpack.c.h.b16 %v3694
    %v4382 = vunpack.c.l.b16 %v3695
    %v4383 = vunpack.c.l.b16 %v3696
    %v4384 = vunpack.c.h.b16 %v3696
    %v4385 = vunpack.c.l.b16 %v3697
    %v4386 = vunpack.c.h.b16 %v3697
    %v4387 = vunpack.c.l.b16 %v3698
    %v4388 = vunpack.c.l.b16 %v3699
    %v4389 = vunpack.c.h.b16 %v3699
    %v4390 = vunpack.c.l.b16 %v3700
    %v4391 = vunpack.c.h.b16 %v3700
    %v4392 = vunpack.c.l.b16 %v3701
    %v4393 = vunpack.c.l.b16 %v3702
    %v4394 = vunpack.c.h.b16 %v3702
    %v4395 = vunpack.c.l.b16 %v3703
    %v4396 = vunpack.c.h.b16 %v3703
    %v4397 = vunpack.c.l.b16 %v3704
    %v4398 = vunpack.c.l.b16 %v3705
    %v4399 = vunpack.c.h.b16 %v3705
    %v4400 = vunpack.c.l.b16 %v3706
    %v4401 = vunpack.c.h.b16 %v3706
    %v4402 = vunpack.c.l.b16 %v3707
    %v4403 = vunpack.c.l.b16 %v3708
    %v4404 = vunpack.c.h.b16 %v3708
    %v4405 = vunpack.c.l.b16 %v3709
    %v4406 = vunpack.c.h.b16 %v3709
    %v4407 = vunpack.c.l.b16 %v3710
    %v4408 = vunpack.c.l.b16 %v3711
    %v4409 = vunpack.c.h.b16 %v3711
    %v4410 = vunpack.c.l.b16 %v3712
    %v4411 = vunpack.c.h.b16 %v3712
    %v4412 = vunpack.c.l.b16 %v3713
    %v4413 = vunpack.c.l.b16 %v3714
    %v4414 = vunpack.c.h.b16 %v3714
    %v4415 = vunpack.c.l.b16 %v3715
    %v4416 = vunpack.c.h.b16 %v3715
    %v4417 = vunpack.c.l.b16 %v3716
    %v4418 = vunpack.c.l.b16 %v3717
    %v4419 = vunpack.c.h.b16 %v3717
    %v4420 = vunpack.c.l.b16 %v3718
    %v4421 = vunpack.c.h.b16 %v3718
    %v4422 = vunpack.c.l.b16 %v3719
    %v4423 = vunpack.c.l.b16 %v3720
    %v4424 = vunpack.c.h.b16 %v3720
    %v4425 = vunpack.c.l.b16 %v3721
    %v4426 = vunpack.c.h.b16 %v3721
    %v4427 = vunpack.c.l.b16 %v3722
    %v4428 = vunpack.c.l.b16 %v3723
    %v4429 = vunpack.c.h.b16 %v3723
    %v4430 = vunpack.c.l.b16 %v3724
    %v4431 = vunpack.c.h.b16 %v3724
    %v4432 = vunpack.c.l.b16 %v3725
    %v4433 = vunpack.c.l.b16 %v3726
    %v4434 = vunpack.c.h.b16 %v3726
    %v4435 = vunpack.c.l.b16 %v3727
    %v4436 = vunpack.c.h.b16 %v3727
    %v4437 = vunpack.c.l.b16 %v3728
    %v4438 = vunpack.c.l.b16 %v3729
    %v4439 = vunpack.c.h.b16 %v3729
    %v4440 = vunpack.c.l.b16 %v3730
    %v4441 = vunpack.c.h.b16 %v3730
    %v4442 = vunpack.c.l.b16 %v3731
    %v4443 = vunpack.c.l.b16 %v3732
    %v4444 = vunpack.c.h.b16 %v3732
    %v4445 = vunpack.c.l.b16 %v3733
    %v4446 = vunpack.c.h.b16 %v3733
    %v4447 = vunpack.c.l.b16 %v3734
    %v4448 = vunpack.c.l.b16 %v3735
    %v4449 = vunpack.c.h.b16 %v3735
    %v4450 = vunpack.c.l.b16 %v3736
    %v4451 = vunpack.c.h.b16 %v3736
    %v4452 = vunpack.c.l.b16 %v3737
    %v4453 = vunpack.c.l.b16 %v3738
    %v4454 = vunpack.c.h.b16 %v3738
    %v4455 = vunpack.c.l.b16 %v3739
    %v4456 = vunpack.c.h.b16 %v3739
    %v4457 = vunpack.c.l.b16 %v3740
    %v4458 = vunpack.c.l.b16 %v3741
    %v4459 = vunpack.c.h.b16 %v3741
    %v4460 = vunpack.c.l.b16 %v3742
    %v4461 = vunpack.c.h.b16 %v3742
    %v4462 = vunpack.c.l.b16 %v3743
    %v4463 = vunpack.c.l.b16 %v3744
    %v4464 = vunpack.c.h.b16 %v3744
    %v4465 = vunpack.c.l.b16 %v3745
    %v4466 = vunpack.c.h.b16 %v3745
    %v4467 = vunpack.c.l.b16 %v3746
    %v4468 = vunpack.c.l.b16 %v3747
    %v4469 = vunpack.c.h.b16 %v3747
    %v4470 = vunpack.c.l.b16 %v3748
    %v4471 = vunpack.c.h.b16 %v3748
    %v4472 = vunpack.c.l.b16 %v3749
    %v4473 = vunpack.c.l.b16 %v3750
    %v4474 = vunpack.c.h.b16 %v3750
    %v4475 = vunpack.c.l.b16 %v3751
    %v4476 = vunpack.c.h.b16 %v3751
    %v4477 = vunpack.c.l.b16 %v3752
    %v4478 = vunpack.c.l.b16 %v3753
    %v4479 = vunpack.c.h.b16 %v3753
    %v4480 = vunpack.c.l.b16 %v3754
    %v4481 = vunpack.c.h.b16 %v3754
    %v4482 = vunpack.c.l.b16 %v3755
    %v4483 = vunpack.c.l.b16 %v3756
    %v4484 = vunpack.c.h.b16 %v3756
    %v4485 = vunpack.c.l.b16 %v3757
    %v4486 = vunpack.c.h.b16 %v3757
    %v4487 = vunpack.c.l.b16 %v3758
    %v4488 = vunpack.c.l.b16 %v3759
    %v4489 = vunpack.c.h.b16 %v3759
    %v4490 = vunpack.c.l.b16 %v3760
    %v4491 = vunpack.c.h.b16 %v3760
    %v4492 = vunpack.c.l.b16 %v3761
    %v4493 = vunpack.c.l.b16 %v3762
    %v4494 = vunpack.c.h.b16 %v3762
    %v4495 = vunpack.c.l.b16 %v3763
    %v4496 = vunpack.c.h.b16 %v3763
    %v4497 = vunpack.c.l.b16 %v3764
    %v4498 = vunpack.c.l.b16 %v3765
    %v4499 = vunpack.c.h.b16 %v3765
    %v4500 = vunpack.c.l.b16 %v3766
    %v4501 = vunpack.c.h.b16 %v3766
    %v4502 = vunpack.c.l.b16 %v3767
    %v4503 = vunpack.c.l.b16 %v3768
    %v4504 = vunpack.c.h.b16 %v3768
    %v4505 = vunpack.c.l.b16 %v3769
    %v4506 = vunpack.c.h.b16 %v3769
    %v4507 = vunpack.c.l.b16 %v3770
    %v4508 = vunpack.c.l.b16 %v3771
    %v4509 = vunpack.c.h.b16 %v3771
    %v4510 = vunpack.c.l.b16 %v3772
    %v4511 = vunpack.c.h.b16 %v3772
    %v4512 = vunpack.c.l.b16 %v3773
    %v4513 = vunpack.c.l.b16 %v3774
    %v4514 = vunpack.c.h.b16 %v3774
    %v4515 = vunpack.c.l.b16 %v3775
    %v4516 = vunpack.c.h.b16 %v3775
    %v4517 = vunpack.c.l.b16 %v3776
    %v4518 = vunpack.c.l.b16 %v3777
    %v4519 = vunpack.c.h.b16 %v3777
    %v4520 = vunpack.c.l.b16 %v3778
    %v4521 = vunpack.c.h.b16 %v3778
    %v4522 = vunpack.c.l.b16 %v3779
    %v4523 = vunpack.c.l.b16 %v3780
    %v4524 = vunpack.c.h.b16 %v3780
    %v4525 = vunpack.c.l.b16 %v3781
    %v4526 = vunpack.c.h.b16 %v3781
    %v4527 = vunpack.c.l.b16 %v3782
    %v4528 = vpack.c.b16 %v4133, %v4128
    %v4529 = vpack.c.b16 %v4134, %v4129
    %v4530 = vpack.c.b16 %v4135, %v4130
    %v4531 = vpack.c.b16 %v4136, %v4131
    %v4532 = vpack.c.b16 %v4137, %v4132
    %v4533 = vpack.c.b16 %v4143, %v4138
    %v4534 = vpack.c.b16 %v4144, %v4139
    %v4535 = vpack.c.b16 %v4145, %v4140
    %v4536 = vpack.c.b16 %v4146, %v4141
    %v4537 = vpack.c.b16 %v4147, %v4142
    %v4538 = vpack.c.b16 %v4153, %v4148
    %v4539 = vpack.c.b16 %v4154, %v4149
    %v4540 = vpack.c.b16 %v4155, %v4150
    %v4541 = vpack.c.b16 %v4156, %v4151
    %v4542 = vpack.c.b16 %v4157, %v4152
    %v4543 = vpack.c.b16 %v4163, %v4158
    %v4544 = vpack.c.b16 %v4164, %v4159
    %v4545 = vpack.c.b16 %v4165, %v4160
    %v4546 = vpack.c.b16 %v4166, %v4161
    %v4547 = vpack.c.b16 %v4167, %v4162
    %v4548 = vpack.c.b16 %v4173, %v4168
    %v4549 = vpack.c.b16 %v4174, %v4169
    %v4550 = vpack.c.b16 %v4175, %v4170
    %v4551 = vpack.c.b16 %v4176, %v4171
    %v4552 = vpack.c.b16 %v4177, %v4172
    %v4553 = vpack.c.b16 %v4183, %v4178
    %v4554 = vpack.c.b16 %v4184, %v4179
    %v4555 = vpack.c.b16 %v4185, %v4180
    %v4556 = vpack.c.b16 %v4186, %v4181
    %v4557 = vpack.c.b16 %v4187, %v4182
    %v4558 = vpack.c.b16 %v4193, %v4188
    %v4559 = vpack.c.b16 %v4194, %v4189
    %v4560 = vpack.c.b16 %v4195, %v4190
    %v4561 = vpack.c.b16 %v4196, %v4191
    %v4562 = vpack.c.b16 %v4197, %v4192
    %v4563 = vpack.c.b16 %v4203, %v4198
    %v4564 = vpack.c.b16 %v4204, %v4199
    %v4565 = vpack.c.b16 %v4205, %v4200
    %v4566 = vpack.c.b16 %v4206, %v4201
    %v4567 = vpack.c.b16 %v4207, %v4202
    %v4568 = vpack.c.b16 %v4213, %v4208
    %v4569 = vpack.c.b16 %v4214, %v4209
    %v4570 = vpack.c.b16 %v4215, %v4210
    %v4571 = vpack.c.b16 %v4216, %v4211
    %v4572 = vpack.c.b16 %v4217, %v4212
    %v4573 = vpack.c.b16 %v4223, %v4218
    %v4574 = vpack.c.b16 %v4224, %v4219
    %v4575 = vpack.c.b16 %v4225, %v4220
    %v4576 = vpack.c.b16 %v4226, %v4221
    %v4577 = vpack.c.b16 %v4227, %v4222
    %v4578 = vpack.c.b16 %v4233, %v4228
    %v4579 = vpack.c.b16 %v4234, %v4229
    %v4580 = vpack.c.b16 %v4235, %v4230
    %v4581 = vpack.c.b16 %v4236, %v4231
    %v4582 = vpack.c.b16 %v4237, %v4232
    %v4583 = vpack.c.b16 %v4243, %v4238
    %v4584 = vpack.c.b16 %v4244, %v4239
    %v4585 = vpack.c.b16 %v4245, %v4240
    %v4586 = vpack.c.b16 %v4246, %v4241
    %v4587 = vpack.c.b16 %v4247, %v4242
    %v4588 = vpack.c.b16 %v4253, %v4248
    %v4589 = vpack.c.b16 %v4254, %v4249
    %v4590 = vpack.c.b16 %v4255, %v4250
    %v4591 = vpack.c.b16 %v4256, %v4251
    %v4592 = vpack.c.b16 %v4257, %v4252
    %v4593 = vpack.c.b16 %v4263, %v4258
    %v4594 = vpack.c.b16 %v4264, %v4259
    %v4595 = vpack.c.b16 %v4265, %v4260
    %v4596 = vpack.c.b16 %v4266, %v4261
    %v4597 = vpack.c.b16 %v4267, %v4262
    %v4598 = vpack.c.b16 %v4273, %v4268
    %v4599 = vpack.c.b16 %v4274, %v4269
    %v4600 = vpack.c.b16 %v4275, %v4270
    %v4601 = vpack.c.b16 %v4276, %v4271
    %v4602 = vpack.c.b16 %v4277, %v4272
    %v4603 = vpack.c.b16 %v4283, %v4278
    %v4604 = vpack.c.b16 %v4284, %v4279
    %v4605 = vpack.c.b16 %v4285, %v4280
    %v4606 = vpack.c.b16 %v4286, %v4281
    %v4607 = vpack.c.b16 %v4287, %v4282
    %v4608 = vpack.c.b16 %v4293, %v4288
    %v4609 = vpack.c.b16 %v4294, %v4289
    %v4610 = vpack.c.b16 %v4295, %v4290
    %v4611 = vpack.c.b16 %v4296, %v4291
    %v4612 = vpack.c.b16 %v4297, %v4292
    %v4613 = vpack.c.b16 %v4303, %v4298
    %v4614 = vpack.c.b16 %v4304, %v4299
    %v4615 = vpack.c.b16 %v4305, %v4300
    %v4616 = vpack.c.b16 %v4306, %v4301
    %v4617 = vpack.c.b16 %v4307, %v4302
    %v4618 = vpack.c.b16 %v4313, %v4308
    %v4619 = vpack.c.b16 %v4314, %v4309
    %v4620 = vpack.c.b16 %v4315, %v4310
    %v4621 = vpack.c.b16 %v4316, %v4311
    %v4622 = vpack.c.b16 %v4317, %v4312
    %v4623 = vpack.c.b16 %v4323, %v4318
    %v4624 = vpack.c.b16 %v4324, %v4319
    %v4625 = vpack.c.b16 %v4325, %v4320
    %v4626 = vpack.c.b16 %v4326, %v4321
    %v4627 = vpack.c.b16 %v4327, %v4322
    %v4628 = vpack.c.b16 %v4333, %v4328
    %v4629 = vpack.c.b16 %v4334, %v4329
    %v4630 = vpack.c.b16 %v4335, %v4330
    %v4631 = vpack.c.b16 %v4336, %v4331
    %v4632 = vpack.c.b16 %v4337, %v4332
    %v4633 = vpack.c.b16 %v4343, %v4338
    %v4634 = vpack.c.b16 %v4344, %v4339
    %v4635 = vpack.c.b16 %v4345, %v4340
    %v4636 = vpack.c.b16 %v4346, %v4341
    %v4637 = vpack.c.b16 %v4347, %v4342
    %v4638 = vpack.c.b16 %v4353, %v4348
    %v4639 = vpack.c.b16 %v4354, %v4349
    %v4640 = vpack.c.b16 %v4355, %v4350
    %v4641 = vpack.c.b16 %v4356, %v4351
    %v4642 = vpack.c.b16 %v4357, %v4352
    %v4643 = vpack.c.b16 %v4363, %v4358
    %v4644 = vpack.c.b16 %v4364, %v4359
    %v4645 = vpack.c.b16 %v4365, %v4360
    %v4646 = vpack.c.b16 %v4366, %v4361
    %v4647 = vpack.c.b16 %v4367, %v4362
    %v4648 = vpack.c.b16 %v4373, %v4368
    %v4649 = vpack.c.b16 %v4374, %v4369
    %v4650 = vpack.c.b16 %v4375, %v4370
    %v4651 = vpack.c.b16 %v4376, %v4371
    %v4652 = vpack.c.b16 %v4377, %v4372
    %v4653 = vpack.c.b16 %v4383, %v4378
    %v4654 = vpack.c.b16 %v4384, %v4379
    %v4655 = vpack.c.b16 %v4385, %v4380
    %v4656 = vpack.c.b16 %v4386, %v4381
    %v4657 = vpack.c.b16 %v4387, %v4382
    %v4658 = vpack.c.b16 %v4393, %v4388
    %v4659 = vpack.c.b16 %v4394, %v4389
    %v4660 = vpack.c.b16 %v4395, %v4390
    %v4661 = vpack.c.b16 %v4396, %v4391
    %v4662 = vpack.c.b16 %v4397, %v4392
    %v4663 = vpack.c.b16 %v4403, %v4398
    %v4664 = vpack.c.b16 %v4404, %v4399
    %v4665 = vpack.c.b16 %v4405, %v4400
    %v4666 = vpack.c.b16 %v4406, %v4401
    %v4667 = vpack.c.b16 %v4407, %v4402
    %v4668 = vpack.c.b16 %v4413, %v4408
    %v4669 = vpack.c.b16 %v4414, %v4409
    %v4670 = vpack.c.b16 %v4415, %v4410
    %v4671 = vpack.c.b16 %v4416, %v4411
    %v4672 = vpack.c.b16 %v4417, %v4412
    %v4673 = vpack.c.b16 %v4423, %v4418
    %v4674 = vpack.c.b16 %v4424, %v4419
    %v4675 = vpack.c.b16 %v4425, %v4420
    %v4676 = vpack.c.b16 %v4426, %v4421
    %v4677 = vpack.c.b16 %v4427, %v4422
    %v4678 = vpack.c.b16 %v4433, %v4428
    %v4679 = vpack.c.b16 %v4434, %v4429
    %v4680 = vpack.c.b16 %v4435, %v4430
    %v4681 = vpack.c.b16 %v4436, %v4431
    %v4682 = vpack.c.b16 %v4437, %v4432
    %v4683 = vpack.c.b16 %v4443, %v4438
    %v4684 = vpack.c.b16 %v4444, %v4439
    %v4685 = vpack.c.b16 %v4445, %v4440
    %v4686 = vpack.c.b16 %v4446, %v4441
    %v4687 = vpack.c.b16 %v4447, %v4442
    %v4688 = vpack.c.b16 %v4453, %v4448
    %v4689 = vpack.c.b16 %v4454, %v4449
    %v4690 = vpack.c.b16 %v4455, %v4450
    %v4691 = vpack.c.b16 %v4456, %v4451
    %v4692 = vpack.c.b16 %v4457, %v4452
    %v4693 = vpack.c.b16 %v4463, %v4458
    %v4694 = vpack.c.b16 %v4464, %v4459
    %v4695 = vpack.c.b16 %v4465, %v4460
    %v4696 = vpack.c.b16 %v4466, %v4461
    %v4697 = vpack.c.b16 %v4467, %v4462
    %v4698 = vpack.c.b16 %v4473, %v4468
    %v4699 = vpack.c.b16 %v4474, %v4469
    %v4700 = vpack.c.b16 %v4475, %v4470
    %v4701 = vpack.c.b16 %v4476, %v4471
    %v4702 = vpack.c.b16 %v4477, %v4472
    %v4703 = vpack.c.b16 %v4483, %v4478
    %v4704 = vpack.c.b16 %v4484, %v4479
    %v4705 = vpack.c.b16 %v4485, %v4480
    %v4706 = vpack.c.b16 %v4486, %v4481
    %v4707 = vpack.c.b16 %v4487, %v4482
    %v4708 = vpack.c.b16 %v4493, %v4488
    %v4709 = vpack.c.b16 %v4494, %v4489
    %v4710 = vpack.c.b16 %v4495, %v4490
    %v4711 = vpack.c.b16 %v4496, %v4491
    %v4712 = vpack.c.b16 %v4497, %v4492
    %v4713 = vpack.c.b16 %v4503, %v4498
    %v4714 = vpack.c.b16 %v4504, %v4499
    %v4715 = vpack.c.b16 %v4505, %v4500
    %v4716 = vpack.c.b16 %v4506, %v4501
    %v4717 = vpack.c.b16 %v4507, %v4502
    %v4718 = vpack.c.b16 %v4513, %v4508
    %v4719 = vpack.c.b16 %v4514, %v4509
    %v4720 = vpack.c.b16 %v4515, %v4510
    %v4721 = vpack.c.b16 %v4516, %v4511
    %v4722 = vpack.c.b16 %v4517, %v4512
    %v4723 = vpack.c.b16 %v4523, %v4518
    %v4724 = vpack.c.b16 %v4524, %v4519
    %v4725 = vpack.c.b16 %v4525, %v4520
    %v4726 = vpack.c.b16 %v4526, %v4521
    %v4727 = vpack.c.b16 %v4527, %v4522
    %4928 = vmatprep.subr.bf16.mxu0 %v4564
    %4929 = vmatpush1.bf16.msra.mxu0 %v4563
    %4930 = vmatprep.subr.bf16.mxu0 %v4559
    %4931 = vmatpush1.bf16.msra.mxu0 %v4558
    %4932 = vmatprep.subr.bf16.mxu0 %v4554
    %4933 = vmatpush1.bf16.msra.mxu0 %v4553
    %4934 = vmatprep.subr.bf16.mxu0 %v4549
    %4935 = vmatpush1.bf16.msra.mxu0 %v4548
    %4936 = vmatprep.subr.bf16.mxu0 %v4544
    %4937 = vmatpush1.bf16.msra.mxu0 %v4543
    %4938 = vmatprep.subr.bf16.mxu0 %v4539
    %4939 = vmatpush1.bf16.msra.mxu0 %v4538
    %4940 = vmatprep.subr.bf16.mxu0 %v4534
    %4941 = vmatpush1.bf16.msra.mxu0 %v4533
    %4942 = vmatprep.subr.bf16.mxu0 %v4529
    %4943 = vmatpush1.bf16.msra.mxu0 %v4528
    %4944 = vmatprep.subr.bf16.mxu0 %v4604
    %4945 = vmatpush2.bf16.msra.mxu0 %v4603
    %4946 = vmatprep.subr.bf16.mxu0 %v4599
    %4947 = vmatpush2.bf16.msra.mxu0 %v4598
    %4948 = vmatprep.subr.bf16.mxu0 %v4594
    %4949 = vmatpush2.bf16.msra.mxu0 %v4593
    %4950 = vmatprep.subr.bf16.mxu0 %v4589
    %4951 = vmatpush2.bf16.msra.mxu0 %v4588
    %4952 = vmatprep.subr.bf16.mxu0 %v4584
    %4953 = vmatpush2.bf16.msra.mxu0 %v4583
    %4954 = vmatprep.subr.bf16.mxu0 %v4579
    %4955 = vmatpush2.bf16.msra.mxu0 %v4578
    %4956 = vmatprep.subr.bf16.mxu0 %v4574
    %4957 = vmatpush2.bf16.msra.mxu0 %v4573
    %4958 = vmatprep.subr.bf16.mxu0 %v4569
    %4959 = vmatpush2.bf16.msra.mxu0 %v4568
    %4960 = vmatprep.mubr.bf16.mxu0 %v3859
    %4961 = vmatmul.mubr.bf16.gmra.mxu0 %v3858
    %v4962 = vpop.f32.mrf.mxu0
    %v4963 = vadd.f32 %v3788, %v4962
    %v4964 = vpop.f32.mrf.mxu0
    %v4965 = vadd.f32 %v3792, %v4964
    %v4966 = vpop.f32.mrf.mxu0
    %v4967 = vadd.f32 %v3788, %v4966
    %v4968 = vpop.f32.mrf.mxu0
    %v4969 = vadd.f32 %v3792, %v4968
    %4970 = vmatprep.mubr.bf16.mxu0 %v3864
    %4971 = vmatmul.mubr.bf16.gmra.mxu0 %v3863
    %v4972 = vpop.f32.mrf.mxu0
    %v4973 = vadd.f32 %v3788, %v4972
    %v4974 = vpop.f32.mrf.mxu0
    %v4975 = vadd.f32 %v3792, %v4974
    %v4976 = vpop.f32.mrf.mxu0
    %v4977 = vadd.f32 %v3788, %v4976
    %v4978 = vpop.f32.mrf.mxu0
    %v4979 = vadd.f32 %v3792, %v4978
    %4980 = vmatprep.mubr.bf16.mxu0 %v3869
    %4981 = vmatmul.mubr.bf16.gmra.mxu0 %v3868
    %v4982 = vpop.f32.mrf.mxu0
    %v4983 = vadd.f32 %v3788, %v4982
    %v4984 = vpop.f32.mrf.mxu0
    %v4985 = vadd.f32 %v3792, %v4984
    %v4986 = vpop.f32.mrf.mxu0
    %v4987 = vadd.f32 %v3788, %v4986
    %v4988 = vpop.f32.mrf.mxu0
    %v4989 = vadd.f32 %v3792, %v4988
    %4990 = vdwg.mxu0
    %4991 = vmatprep.subr.bf16.mxu0 %v4644
    %4992 = vmatpush1.bf16.msra.mxu0 %v4643
    %4993 = vmatprep.subr.bf16.mxu0 %v4639
    %4994 = vmatpush1.bf16.msra.mxu0 %v4638
    %4995 = vmatprep.subr.bf16.mxu0 %v4634
    %4996 = vmatpush1.bf16.msra.mxu0 %v4633
    %4997 = vmatprep.subr.bf16.mxu0 %v4629
    %4998 = vmatpush1.bf16.msra.mxu0 %v4628
    %4999 = vmatprep.subr.bf16.mxu0 %v4624
    %5000 = vmatpush1.bf16.msra.mxu0 %v4623
    %5001 = vmatprep.subr.bf16.mxu0 %v4619
    %5002 = vmatpush1.bf16.msra.mxu0 %v4618
    %5003 = vmatprep.subr.bf16.mxu0 %v4614
    %5004 = vmatpush1.bf16.msra.mxu0 %v4613
    %5005 = vmatprep.subr.bf16.mxu0 %v4609
    %5006 = vmatpush1.bf16.msra.mxu0 %v4608
    %5007 = vmatprep.subr.bf16.mxu0 %v4684
    %5008 = vmatpush2.bf16.msra.mxu0 %v4683
    %5009 = vmatprep.subr.bf16.mxu0 %v4679
    %5010 = vmatpush2.bf16.msra.mxu0 %v4678
    %5011 = vmatprep.subr.bf16.mxu0 %v4674
    %5012 = vmatpush2.bf16.msra.mxu0 %v4673
    %5013 = vmatprep.subr.bf16.mxu0 %v4669
    %5014 = vmatpush2.bf16.msra.mxu0 %v4668
    %5015 = vmatprep.subr.bf16.mxu0 %v4664
    %5016 = vmatpush2.bf16.msra.mxu0 %v4663
    %5017 = vmatprep.subr.bf16.mxu0 %v4659
    %5018 = vmatpush2.bf16.msra.mxu0 %v4658
    %5019 = vmatprep.subr.bf16.mxu0 %v4654
    %5020 = vmatpush2.bf16.msra.mxu0 %v4653
    %5021 = vmatprep.subr.bf16.mxu0 %v4649
    %5022 = vmatpush2.bf16.msra.mxu0 %v4648
    %5023 = vmatprep.mubr.bf16.mxu0 %v3861
    %5024 = vmatmul.mubr.bf16.gmra.mxu0 %v3860
    %v5025 = vpop.f32.mrf.mxu0
    %v5026 = vadd.f32 %v4963, %v5025
    %v5027 = vpop.f32.mrf.mxu0
    %v5028 = vadd.f32 %v4965, %v5027
    %v5029 = vpop.f32.mrf.mxu0
    %v5030 = vadd.f32 %v4967, %v5029
    %v5031 = vpop.f32.mrf.mxu0
    %v5032 = vadd.f32 %v4969, %v5031
    %5033 = vmatprep.mubr.bf16.mxu0 %v3866
    %5034 = vmatmul.mubr.bf16.gmra.mxu0 %v3865
    %v5035 = vpop.f32.mrf.mxu0
    %v5036 = vadd.f32 %v4973, %v5035
    %v5037 = vpop.f32.mrf.mxu0
    %v5038 = vadd.f32 %v4975, %v5037
    %v5039 = vpop.f32.mrf.mxu0
    %v5040 = vadd.f32 %v4977, %v5039
    %v5041 = vpop.f32.mrf.mxu0
    %v5042 = vadd.f32 %v4979, %v5041
    %5043 = vmatprep.mubr.bf16.mxu0 %v3871
    %5044 = vmatmul.mubr.bf16.gmra.mxu0 %v3870
    %v5045 = vpop.f32.mrf.mxu0
    %v5046 = vadd.f32 %v4983, %v5045
    %v5047 = vpop.f32.mrf.mxu0
    %v5048 = vadd.f32 %v4985, %v5047
    %v5049 = vpop.f32.mrf.mxu0
    %v5050 = vadd.f32 %v4987, %v5049
    %v5051 = vpop.f32.mrf.mxu0
    %v5052 = vadd.f32 %v4989, %v5051
    %5053 = vdwg.mxu0
    %5054 = vmatprep.subr.bf16.mxu0 %v4724
    %5055 = vmatpush1.bf16.msra.mxu0 %v4723
    %5056 = vmatprep.subr.bf16.mxu0 %v4719
    %5057 = vmatpush1.bf16.msra.mxu0 %v4718
    %5058 = vmatprep.subr.bf16.mxu0 %v4714
    %5059 = vmatpush1.bf16.msra.mxu0 %v4713
    %5060 = vmatprep.subr.bf16.mxu0 %v4709
    %5061 = vmatpush1.bf16.msra.mxu0 %v4708
    %5062 = vmatprep.subr.bf16.mxu0 %v4704
    %5063 = vmatpush1.bf16.msra.mxu0 %v4703
    %5064 = vmatprep.subr.bf16.mxu0 %v4699
    %5065 = vmatpush1.bf16.msra.mxu0 %v4698
    %5066 = vmatprep.subr.bf16.mxu0 %v4694
    %5067 = vmatpush1.bf16.msra.mxu0 %v4693
    %5068 = vmatprep.subr.bf16.mxu0 %v4689
    %5069 = vmatpush1.bf16.msra.mxu0 %v4688
    %5070 = vmatprep.subr.bf16.mxu0 0
    %5071 = vmatpush2.bf16.msra.mxu0 0
    %5072 = vmatprep.subr.bf16.mxu0 0
    %5073 = vmatpush2.bf16.msra.mxu0 0
    %5074 = vmatprep.subr.bf16.mxu0 0
    %5075 = vmatpush2.bf16.msra.mxu0 0
    %5076 = vmatprep.subr.bf16.mxu0 0
    %5077 = vmatpush2.bf16.msra.mxu0 0
    %5078 = vmatprep.subr.bf16.mxu0 0
    %5079 = vmatpush2.bf16.msra.mxu0 0
    %5080 = vmatprep.subr.bf16.mxu0 0
    %5081 = vmatpush2.bf16.msra.mxu0 0
    %5082 = vmatprep.subr.bf16.mxu0 0
    %5083 = vmatpush2.bf16.msra.mxu0 0
    %5084 = vmatprep.subr.bf16.mxu0 0
    %5085 = vmatpush2.bf16.msra.mxu0 0
    %5086 = vmatprep.mubr.bf16.mxu0 0
    %5087 = vmatmul.mubr.bf16.gmra.mxu0 %v3862
    %v5088 = vpop.f32.mrf.mxu0
    %v5089 = vadd.f32 %v5026, %v5088
    %v5090 = vpop.f32.mrf.mxu0
    %v5091 = vadd.f32 %v5028, %v5090
    %v5092 = vpop.f32.mrf.mxu0
    %v5093 = vadd.f32 %v5030, %v5092
    %v5094 = vpop.f32.mrf.mxu0
    %v5095 = vadd.f32 %v5032, %v5094
    %5096 = vmatprep.mubr.bf16.mxu0 0
    %5097 = vmatmul.mubr.bf16.gmra.mxu0 %v3867
    %v5098 = vpop.f32.mrf.mxu0
    %v5099 = vadd.f32 %v5036, %v5098
    %v5100 = vpop.f32.mrf.mxu0
    %v5101 = vadd.f32 %v5038, %v5100
    %v5102 = vpop.f32.mrf.mxu0
    %v5103 = vadd.f32 %v5040, %v5102
    %v5104 = vpop.f32.mrf.mxu0
    %v5105 = vadd.f32 %v5042, %v5104
    %5106 = vmatprep.mubr.bf16.mxu0 0
    %5107 = vmatmul.mubr.bf16.gmra.mxu0 %v3872
    %v5108 = vpop.f32.mrf.mxu0
    %v5109 = vadd.f32 %v5046, %v5108
    %v5110 = vpop.f32.mrf.mxu0
    %v5111 = vadd.f32 %v5048, %v5110
    %v5112 = vpop.f32.mrf.mxu0
    %v5113 = vadd.f32 %v5050, %v5112
    %v5114 = vpop.f32.mrf.mxu0
    %v5115 = vadd.f32 %v5052, %v5114
    %5116 = vdwg.mxu0
    %5117 = vmatprep.subr.bf16.mxu0 %v4566
    %5118 = vmatpush1.bf16.msra.mxu0 %v4565
    %5119 = vmatprep.subr.bf16.mxu0 %v4561
    %5120 = vmatpush1.bf16.msra.mxu0 %v4560
    %5121 = vmatprep.subr.bf16.mxu0 %v4556
    %5122 = vmatpush1.bf16.msra.mxu0 %v4555
    %5123 = vmatprep.subr.bf16.mxu0 %v4551
    %5124 = vmatpush1.bf16.msra.mxu0 %v4550
    %5125 = vmatprep.subr.bf16.mxu0 %v4546
    %5126 = vmatpush1.bf16.msra.mxu0 %v4545
    %5127 = vmatprep.subr.bf16.mxu0 %v4541
    %5128 = vmatpush1.bf16.msra.mxu0 %v4540
    %5129 = vmatprep.subr.bf16.mxu0 %v4536
    %5130 = vmatpush1.bf16.msra.mxu0 %v4535
    %5131 = vmatprep.subr.bf16.mxu0 %v4531
    %5132 = vmatpush1.bf16.msra.mxu0 %v4530
    %5133 = vmatprep.subr.bf16.mxu0 %v4606
    %5134 = vmatpush2.bf16.msra.mxu0 %v4605
    %5135 = vmatprep.subr.bf16.mxu0 %v4601
    %5136 = vmatpush2.bf16.msra.mxu0 %v4600
    %5137 = vmatprep.subr.bf16.mxu0 %v4596
    %5138 = vmatpush2.bf16.msra.mxu0 %v4595
    %5139 = vmatprep.subr.bf16.mxu0 %v4591
    %5140 = vmatpush2.bf16.msra.mxu0 %v4590
    %5141 = vmatprep.subr.bf16.mxu0 %v4586
    %5142 = vmatpush2.bf16.msra.mxu0 %v4585
    %5143 = vmatprep.subr.bf16.mxu0 %v4581
    %5144 = vmatpush2.bf16.msra.mxu0 %v4580
    %5145 = vmatprep.subr.bf16.mxu0 %v4576
    %5146 = vmatpush2.bf16.msra.mxu0 %v4575
    %5147 = vmatprep.subr.bf16.mxu0 %v4571
    %5148 = vmatpush2.bf16.msra.mxu0 %v4570
    %5149 = vmatprep.mubr.bf16.mxu0 %v3859
    %5150 = vmatmul.mubr.bf16.gmra.mxu0 %v3858
    %v5151 = vpop.f32.mrf.mxu0
    %v5152 = vadd.f32 %v3796, %v5151
    %v5153 = vpop.f32.mrf.mxu0
    %v5154 = vadd.f32 %v3800, %v5153
    %v5155 = vpop.f32.mrf.mxu0
    %v5156 = vadd.f32 %v3796, %v5155
    %v5157 = vpop.f32.mrf.mxu0
    %v5158 = vadd.f32 %v3800, %v5157
    %5159 = vmatprep.mubr.bf16.mxu0 %v3864
    %5160 = vmatmul.mubr.bf16.gmra.mxu0 %v3863
    %v5161 = vpop.f32.mrf.mxu0
    %v5162 = vadd.f32 %v3796, %v5161
    %v5163 = vpop.f32.mrf.mxu0
    %v5164 = vadd.f32 %v3800, %v5163
    %v5165 = vpop.f32.mrf.mxu0
    %v5166 = vadd.f32 %v3796, %v5165
    %v5167 = vpop.f32.mrf.mxu0
    %v5168 = vadd.f32 %v3800, %v5167
    %5169 = vmatprep.mubr.bf16.mxu0 %v3869
    %5170 = vmatmul.mubr.bf16.gmra.mxu0 %v3868
    %v5171 = vpop.f32.mrf.mxu0
    %v5172 = vadd.f32 %v3796, %v5171
    %v5173 = vpop.f32.mrf.mxu0
    %v5174 = vadd.f32 %v3800, %v5173
    %v5175 = vpop.f32.mrf.mxu0
    %v5176 = vadd.f32 %v3796, %v5175
    %v5177 = vpop.f32.mrf.mxu0
    %v5178 = vadd.f32 %v3800, %v5177
    %5179 = vdwg.mxu0
    %5180 = vmatprep.subr.bf16.mxu0 %v4646
    %5181 = vmatpush1.bf16.msra.mxu0 %v4645
    %5182 = vmatprep.subr.bf16.mxu0 %v4641
    %5183 = vmatpush1.bf16.msra.mxu0 %v4640
    %5184 = vmatprep.subr.bf16.mxu0 %v4636
    %5185 = vmatpush1.bf16.msra.mxu0 %v4635
    %5186 = vmatprep.subr.bf16.mxu0 %v4631
    %5187 = vmatpush1.bf16.msra.mxu0 %v4630
    %5188 = vmatprep.subr.bf16.mxu0 %v4626
    %5189 = vmatpush1.bf16.msra.mxu0 %v4625
    %5190 = vmatprep.subr.bf16.mxu0 %v4621
    %5191 = vmatpush1.bf16.msra.mxu0 %v4620
    %5192 = vmatprep.subr.bf16.mxu0 %v4616
    %5193 = vmatpush1.bf16.msra.mxu0 %v4615
    %5194 = vmatprep.subr.bf16.mxu0 %v4611
    %5195 = vmatpush1.bf16.msra.mxu0 %v4610
    %5196 = vmatprep.subr.bf16.mxu0 %v4686
    %5197 = vmatpush2.bf16.msra.mxu0 %v4685
    %5198 = vmatprep.subr.bf16.mxu0 %v4681
    %5199 = vmatpush2.bf16.msra.mxu0 %v4680
    %5200 = vmatprep.subr.bf16.mxu0 %v4676
    %5201 = vmatpush2.bf16.msra.mxu0 %v4675
    %5202 = vmatprep.subr.bf16.mxu0 %v4671
    %5203 = vmatpush2.bf16.msra.mxu0 %v4670
    %5204 = vmatprep.subr.bf16.mxu0 %v4666
    %5205 = vmatpush2.bf16.msra.mxu0 %v4665
    %5206 = vmatprep.subr.bf16.mxu0 %v4661
    %5207 = vmatpush2.bf16.msra.mxu0 %v4660
    %5208 = vmatprep.subr.bf16.mxu0 %v4656
    %5209 = vmatpush2.bf16.msra.mxu0 %v4655
    %5210 = vmatprep.subr.bf16.mxu0 %v4651
    %5211 = vmatpush2.bf16.msra.mxu0 %v4650
    %5212 = vmatprep.mubr.bf16.mxu0 %v3861
    %5213 = vmatmul.mubr.bf16.gmra.mxu0 %v3860
    %v5214 = vpop.f32.mrf.mxu0
    %v5215 = vadd.f32 %v5152, %v5214
    %v5216 = vpop.f32.mrf.mxu0
    %v5217 = vadd.f32 %v5154, %v5216
    %v5218 = vpop.f32.mrf.mxu0
    %v5219 = vadd.f32 %v5156, %v5218
    %v5220 = vpop.f32.mrf.mxu0
    %v5221 = vadd.f32 %v5158, %v5220
    %5222 = vmatprep.mubr.bf16.mxu0 %v3866
    %5223 = vmatmul.mubr.bf16.gmra.mxu0 %v3865
    %v5224 = vpop.f32.mrf.mxu0
    %v5225 = vadd.f32 %v5162, %v5224
    %v5226 = vpop.f32.mrf.mxu0
    %v5227 = vadd.f32 %v5164, %v5226
    %v5228 = vpop.f32.mrf.mxu0
    %v5229 = vadd.f32 %v5166, %v5228
    %v5230 = vpop.f32.mrf.mxu0
    %v5231 = vadd.f32 %v5168, %v5230
    %5232 = vmatprep.mubr.bf16.mxu0 %v3871
    %5233 = vmatmul.mubr.bf16.gmra.mxu0 %v3870
    %v5234 = vpop.f32.mrf.mxu0
    %v5235 = vadd.f32 %v5172, %v5234
    %v5236 = vpop.f32.mrf.mxu0
    %v5237 = vadd.f32 %v5174, %v5236
    %v5238 = vpop.f32.mrf.mxu0
    %v5239 = vadd.f32 %v5176, %v5238
    %v5240 = vpop.f32.mrf.mxu0
    %v5241 = vadd.f32 %v5178, %v5240
    %5242 = vdwg.mxu0
    %5243 = vmatprep.subr.bf16.mxu0 %v4726
    %5244 = vmatpush1.bf16.msra.mxu0 %v4725
    %5245 = vmatprep.subr.bf16.mxu0 %v4721
    %5246 = vmatpush1.bf16.msra.mxu0 %v4720
    %5247 = vmatprep.subr.bf16.mxu0 %v4716
    %5248 = vmatpush1.bf16.msra.mxu0 %v4715
    %5249 = vmatprep.subr.bf16.mxu0 %v4711
    %5250 = vmatpush1.bf16.msra.mxu0 %v4710
    %5251 = vmatprep.subr.bf16.mxu0 %v4706
    %5252 = vmatpush1.bf16.msra.mxu0 %v4705
    %5253 = vmatprep.subr.bf16.mxu0 %v4701
    %5254 = vmatpush1.bf16.msra.mxu0 %v4700
    %5255 = vmatprep.subr.bf16.mxu0 %v4696
    %5256 = vmatpush1.bf16.msra.mxu0 %v4695
    %5257 = vmatprep.subr.bf16.mxu0 %v4691
    %5258 = vmatpush1.bf16.msra.mxu0 %v4690
    %5259 = vmatprep.subr.bf16.mxu0 0
    %5260 = vmatpush2.bf16.msra.mxu0 0
    %5261 = vmatprep.subr.bf16.mxu0 0
    %5262 = vmatpush2.bf16.msra.mxu0 0
    %5263 = vmatprep.subr.bf16.mxu0 0
    %5264 = vmatpush2.bf16.msra.mxu0 0
    %5265 = vmatprep.subr.bf16.mxu0 0
    %5266 = vmatpush2.bf16.msra.mxu0 0
    %5267 = vmatprep.subr.bf16.mxu0 0
    %5268 = vmatpush2.bf16.msra.mxu0 0
    %5269 = vmatprep.subr.bf16.mxu0 0
    %5270 = vmatpush2.bf16.msra.mxu0 0
    %5271 = vmatprep.subr.bf16.mxu0 0
    %5272 = vmatpush2.bf16.msra.mxu0 0
    %5273 = vmatprep.subr.bf16.mxu0 0
    %5274 = vmatpush2.bf16.msra.mxu0 0
    %5275 = vmatprep.mubr.bf16.mxu0 0
    %5276 = vmatmul.mubr.bf16.gmra.mxu0 %v3862
    %v5277 = vpop.f32.mrf.mxu0
    %v5278 = vadd.f32 %v5215, %v5277
    %v5279 = vpop.f32.mrf.mxu0
    %v5280 = vadd.f32 %v5217, %v5279
    %v5281 = vpop.f32.mrf.mxu0
    %v5282 = vadd.f32 %v5219, %v5281
    %v5283 = vpop.f32.mrf.mxu0
    %v5284 = vadd.f32 %v5221, %v5283
    %5285 = vmatprep.mubr.bf16.mxu0 0
    %5286 = vmatmul.mubr.bf16.gmra.mxu0 %v3867
    %v5287 = vpop.f32.mrf.mxu0
    %v5288 = vadd.f32 %v5225, %v5287
    %v5289 = vpop.f32.mrf.mxu0
    %v5290 = vadd.f32 %v5227, %v5289
    %v5291 = vpop.f32.mrf.mxu0
    %v5292 = vadd.f32 %v5229, %v5291
    %v5293 = vpop.f32.mrf.mxu0
    %v5294 = vadd.f32 %v5231, %v5293
    %5295 = vmatprep.mubr.bf16.mxu0 0
    %5296 = vmatmul.mubr.bf16.gmra.mxu0 %v3872
    %v5297 = vpop.f32.mrf.mxu0
    %v5298 = vadd.f32 %v5235, %v5297
    %v5299 = vpop.f32.mrf.mxu0
    %v5300 = vadd.f32 %v5237, %v5299
    %v5301 = vpop.f32.mrf.mxu0
    %v5302 = vadd.f32 %v5239, %v5301
    %v5303 = vpop.f32.mrf.mxu0
    %v5304 = vadd.f32 %v5241, %v5303
    %5305 = vdwg.mxu0
    %5306 = vmatprep.subr.bf16.mxu0 0
    %5307 = vmatpush1.bf16.msra.mxu0 %v4567
    %5308 = vmatprep.subr.bf16.mxu0 0
    %5309 = vmatpush1.bf16.msra.mxu0 %v4562
    %5310 = vmatprep.subr.bf16.mxu0 0
    %5311 = vmatpush1.bf16.msra.mxu0 %v4557
    %5312 = vmatprep.subr.bf16.mxu0 0
    %5313 = vmatpush1.bf16.msra.mxu0 %v4552
    %5314 = vmatprep.subr.bf16.mxu0 0
    %5315 = vmatpush1.bf16.msra.mxu0 %v4547
    %5316 = vmatprep.subr.bf16.mxu0 0
    %5317 = vmatpush1.bf16.msra.mxu0 %v4542
    %5318 = vmatprep.subr.bf16.mxu0 0
    %5319 = vmatpush1.bf16.msra.mxu0 %v4537
    %5320 = vmatprep.subr.bf16.mxu0 0
    %5321 = vmatpush1.bf16.msra.mxu0 %v4532
    %5322 = vmatprep.subr.bf16.mxu0 0
    %5323 = vmatpush2.bf16.msra.mxu0 %v4607
    %5324 = vmatprep.subr.bf16.mxu0 0
    %5325 = vmatpush2.bf16.msra.mxu0 %v4602
    %5326 = vmatprep.subr.bf16.mxu0 0
    %5327 = vmatpush2.bf16.msra.mxu0 %v4597
    %5328 = vmatprep.subr.bf16.mxu0 0
    %5329 = vmatpush2.bf16.msra.mxu0 %v4592
    %5330 = vmatprep.subr.bf16.mxu0 0
    %5331 = vmatpush2.bf16.msra.mxu0 %v4587
    %5332 = vmatprep.subr.bf16.mxu0 0
    %5333 = vmatpush2.bf16.msra.mxu0 %v4582
    %5334 = vmatprep.subr.bf16.mxu0 0
    %5335 = vmatpush2.bf16.msra.mxu0 %v4577
    %5336 = vmatprep.subr.bf16.mxu0 0
    %5337 = vmatpush2.bf16.msra.mxu0 %v4572
    %5338 = vmatprep.mubr.bf16.mxu0 %v3859
    %5339 = vmatmul.mubr.bf16.gmra.mxu0 %v3858
    %v5340 = vpop.f32.mrf.mxu0
    %v5341 = vadd.f32 %v3804, %v5340
    %v5342 = vpop.f32.mrf.mxu0
    %v5343 = vpop.f32.mrf.mxu0
    %v5344 = vadd.f32 %v3804, %v5343
    %v5345 = vpop.f32.mrf.mxu0
    %5346 = vmatprep.mubr.bf16.mxu0 %v3864
    %5347 = vmatmul.mubr.bf16.gmra.mxu0 %v3863
    %v5348 = vpop.f32.mrf.mxu0
    %v5349 = vadd.f32 %v3804, %v5348
    %v5350 = vpop.f32.mrf.mxu0
    %v5351 = vpop.f32.mrf.mxu0
    %v5352 = vadd.f32 %v3804, %v5351
    %v5353 = vpop.f32.mrf.mxu0
    %5354 = vmatprep.mubr.bf16.mxu0 %v3869
    %5355 = vmatmul.mubr.bf16.gmra.mxu0 %v3868
    %v5356 = vpop.f32.mrf.mxu0
    %v5357 = vadd.f32 %v3804, %v5356
    %v5358 = vpop.f32.mrf.mxu0
    %v5359 = vpop.f32.mrf.mxu0
    %v5360 = vadd.f32 %v3804, %v5359
    %v5361 = vpop.f32.mrf.mxu0
    %5362 = vdwg.mxu0
    %5363 = vmatprep.subr.bf16.mxu0 0
    %5364 = vmatpush1.bf16.msra.mxu0 %v4647
    %5365 = vmatprep.subr.bf16.mxu0 0
    %5366 = vmatpush1.bf16.msra.mxu0 %v4642
    %5367 = vmatprep.subr.bf16.mxu0 0
    %5368 = vmatpush1.bf16.msra.mxu0 %v4637
    %5369 = vmatprep.subr.bf16.mxu0 0
    %5370 = vmatpush1.bf16.msra.mxu0 %v4632
    %5371 = vmatprep.subr.bf16.mxu0 0
    %5372 = vmatpush1.bf16.msra.mxu0 %v4627
    %5373 = vmatprep.subr.bf16.mxu0 0
    %5374 = vmatpush1.bf16.msra.mxu0 %v4622
    %5375 = vmatprep.subr.bf16.mxu0 0
    %5376 = vmatpush1.bf16.msra.mxu0 %v4617
    %5377 = vmatprep.subr.bf16.mxu0 0
    %5378 = vmatpush1.bf16.msra.mxu0 %v4612
    %5379 = vmatprep.subr.bf16.mxu0 0
    %5380 = vmatpush2.bf16.msra.mxu0 %v4687
    %5381 = vmatprep.subr.bf16.mxu0 0
    %5382 = vmatpush2.bf16.msra.mxu0 %v4682
    %5383 = vmatprep.subr.bf16.mxu0 0
    %5384 = vmatpush2.bf16.msra.mxu0 %v4677
    %5385 = vmatprep.subr.bf16.mxu0 0
    %5386 = vmatpush2.bf16.msra.mxu0 %v4672
    %5387 = vmatprep.subr.bf16.mxu0 0
    %5388 = vmatpush2.bf16.msra.mxu0 %v4667
    %5389 = vmatprep.subr.bf16.mxu0 0
    %5390 = vmatpush2.bf16.msra.mxu0 %v4662
    %5391 = vmatprep.subr.bf16.mxu0 0
    %5392 = vmatpush2.bf16.msra.mxu0 %v4657
    %5393 = vmatprep.subr.bf16.mxu0 0
    %5394 = vmatpush2.bf16.msra.mxu0 %v4652
    %5395 = vmatprep.mubr.bf16.mxu0 %v3861
    %5396 = vmatmul.mubr.bf16.gmra.mxu0 %v3860
    %v5397 = vpop.f32.mrf.mxu0
    %v5398 = vadd.f32 %v5341, %v5397
    %v5399 = vpop.f32.mrf.mxu0
    %v5400 = vpop.f32.mrf.mxu0
    %v5401 = vadd.f32 %v5344, %v5400
    %v5402 = vpop.f32.mrf.mxu0
    %5403 = vmatprep.mubr.bf16.mxu0 %v3866
    %5404 = vmatmul.mubr.bf16.gmra.mxu0 %v3865
    %v5405 = vpop.f32.mrf.mxu0
    %v5406 = vadd.f32 %v5349, %v5405
    %v5407 = vpop.f32.mrf.mxu0
    %v5408 = vpop.f32.mrf.mxu0
    %v5409 = vadd.f32 %v5352, %v5408
    %v5410 = vpop.f32.mrf.mxu0
    %5411 = vmatprep.mubr.bf16.mxu0 %v3871
    %5412 = vmatmul.mubr.bf16.gmra.mxu0 %v3870
    %v5413 = vpop.f32.mrf.mxu0
    %v5414 = vadd.f32 %v5357, %v5413
    %v5415 = vpop.f32.mrf.mxu0
    %v5416 = vpop.f32.mrf.mxu0
    %v5417 = vadd.f32 %v5360, %v5416
    %v5418 = vpop.f32.mrf.mxu0
    %5419 = vdwg.mxu0
    %5420 = vmatprep.subr.bf16.mxu0 0
    %5421 = vmatpush1.bf16.msra.mxu0 %v4727
    %5422 = vmatprep.subr.bf16.mxu0 0
    %5423 = vmatpush1.bf16.msra.mxu0 %v4722
    %5424 = vmatprep.subr.bf16.mxu0 0
    %5425 = vmatpush1.bf16.msra.mxu0 %v4717
    %5426 = vmatprep.subr.bf16.mxu0 0
    %5427 = vmatpush1.bf16.msra.mxu0 %v4712
    %5428 = vmatprep.subr.bf16.mxu0 0
    %5429 = vmatpush1.bf16.msra.mxu0 %v4707
    %5430 = vmatprep.subr.bf16.mxu0 0
    %5431 = vmatpush1.bf16.msra.mxu0 %v4702
    %5432 = vmatprep.subr.bf16.mxu0 0
    %5433 = vmatpush1.bf16.msra.mxu0 %v4697
    %5434 = vmatprep.subr.bf16.mxu0 0
    %5435 = vmatpush1.bf16.msra.mxu0 %v4692
    %5436 = vmatprep.subr.bf16.mxu0 0
    %5437 = vmatpush2.bf16.msra.mxu0 0
    %5438 = vmatprep.subr.bf16.mxu0 0
    %5439 = vmatpush2.bf16.msra.mxu0 0
    %5440 = vmatprep.subr.bf16.mxu0 0
    %5441 = vmatpush2.bf16.msra.mxu0 0
    %5442 = vmatprep.subr.bf16.mxu0 0
    %5443 = vmatpush2.bf16.msra.mxu0 0
    %5444 = vmatprep.subr.bf16.mxu0 0
    %5445 = vmatpush2.bf16.msra.mxu0 0
    %5446 = vmatprep.subr.bf16.mxu0 0
    %5447 = vmatpush2.bf16.msra.mxu0 0
    %5448 = vmatprep.subr.bf16.mxu0 0
    %5449 = vmatpush2.bf16.msra.mxu0 0
    %5450 = vmatprep.subr.bf16.mxu0 0
    %5451 = vmatpush2.bf16.msra.mxu0 0
    %5452 = vmatprep.mubr.bf16.mxu0 0
    %5453 = vmatmul.mubr.bf16.gmra.mxu0 %v3862
    %v5454 = vpop.f32.mrf.mxu0
    %v5455 = vadd.f32 %v5398, %v5454
    %v5456 = vpop.f32.mrf.mxu0
    %v5457 = vpop.f32.mrf.mxu0
    %v5458 = vadd.f32 %v5401, %v5457
    %v5459 = vpop.f32.mrf.mxu0
    %5460 = vmatprep.mubr.bf16.mxu0 0
    %5461 = vmatmul.mubr.bf16.gmra.mxu0 %v3867
    %v5462 = vpop.f32.mrf.mxu0
    %v5463 = vadd.f32 %v5406, %v5462
    %v5464 = vpop.f32.mrf.mxu0
    %v5465 = vpop.f32.mrf.mxu0
    %v5466 = vadd.f32 %v5409, %v5465
    %v5467 = vpop.f32.mrf.mxu0
    %5468 = vmatprep.mubr.bf16.mxu0 0
    %5469 = vmatmul.mubr.bf16.gmra.mxu0 %v3872
    %v5470 = vpop.f32.mrf.mxu0
    %v5471 = vadd.f32 %v5414, %v5470
    %v5472 = vpop.f32.mrf.mxu0
    %v5473 = vpop.f32.mrf.mxu0
    %v5474 = vadd.f32 %v5417, %v5473
    %v5475 = vpop.f32.mrf.mxu0
    %5476 = vdwg.mxu0
    %v5477 = vmax.f32 %v5089, 0.0
    %v5478 = vmax.f32 %v5091, 0.0
    %v5479 = vmax.f32 %v5278, 0.0
    %v5480 = vmax.f32 %v5280, 0.0
    %v5481 = vmax.f32 %v5455, 0.0
    %v5482 = vmax.f32 %v5093, 0.0
    %v5483 = vmax.f32 %v5095, 0.0
    %v5484 = vmax.f32 %v5282, 0.0
    %v5485 = vmax.f32 %v5284, 0.0
    %v5486 = vmax.f32 %v5458, 0.0
    %v5487 = vmax.f32 %v5099, 0.0
    %v5488 = vmax.f32 %v5101, 0.0
    %v5489 = vmax.f32 %v5288, 0.0
    %v5490 = vmax.f32 %v5290, 0.0
    %v5491 = vmax.f32 %v5463, 0.0
    %v5492 = vmax.f32 %v5103, 0.0
    %v5493 = vmax.f32 %v5105, 0.0
    %v5494 = vmax.f32 %v5292, 0.0
    %v5495 = vmax.f32 %v5294, 0.0
    %v5496 = vmax.f32 %v5466, 0.0
    %v5497 = vmax.f32 %v5109, 0.0
    %v5498 = vmax.f32 %v5111, 0.0
    %v5499 = vmax.f32 %v5298, 0.0
    %v5500 = vmax.f32 %v5300, 0.0
    %v5501 = vmax.f32 %v5471, 0.0
    %v5502 = vmax.f32 %v5113, 0.0
    %v5503 = vmax.f32 %v5115, 0.0
    %v5504 = vmax.f32 %v5302, 0.0
    %v5505 = vmax.f32 %v5304, 0.0
    %v5506 = vmax.f32 %v5474, 0.0
    %v5507 = vpack.c.bf16 %v5482, %v5477
    %v5508 = vpack.c.bf16 %v5483, %v5478
    %v5509 = vpack.c.bf16 %v5484, %v5479
    %v5510 = vpack.c.bf16 %v5485, %v5480
    %v5511 = vpack.c.bf16 %v5486, %v5481
    %v5512 = vpack.c.bf16 %v5492, %v5487
    %v5513 = vpack.c.bf16 %v5493, %v5488
    %v5514 = vpack.c.bf16 %v5494, %v5489
    %v5515 = vpack.c.bf16 %v5495, %v5490
    %v5516 = vpack.c.bf16 %v5496, %v5491
    %v5517 = vpack.c.bf16 %v5502, %v5497
    %v5518 = vpack.c.bf16 %v5503, %v5498
    %v5519 = vpack.c.bf16 %v5504, %v5499
    %v5520 = vpack.c.bf16 %v5505, %v5500
    %v5521 = vpack.c.bf16 %v5506, %v5501
    %v5522 = vld [vmem:[%s13] sm:$0xff]
    %v5523 = vld [vmem:[%s13 + $0x8] sm:$0xff]
    %v5524 = vld [vmem:[%s13 + $0x10] sm:$0xff]
    %v5525 = vld [vmem:[%s13 + $0x18] sm:$0xff]
    %v5526 = vld [vmem:[%s13 + $0x20] sm:$0xff]
    %v5527 = vld [vmem:[%s13 + $0x28] sm:$0xff]
    %v5528 = vld [vmem:[%s13 + $0x30] sm:$0xff]
    %v5529 = vld [vmem:[%s13 + $0x38] sm:$0xff]
    %v5530 = vld [vmem:[%s13 + $0x40] sm:$0xff]
    %v5531 = vld [vmem:[%s13 + $0x48] sm:$0xff]
    %v5532 = vld [vmem:[%s13 + $0x50] sm:$0xff]
    %v5533 = vld [vmem:[%s13 + $0x58] sm:$0xff]
    %v5534 = vld [vmem:[%s13 + $0x60] sm:$0xff]
    %v5535 = vld [vmem:[%s13 + $0x68] sm:$0xff]
    %v5536 = vld [vmem:[%s13 + $0x70] sm:$0xff]
    %v5537 = vld [vmem:[%s13 + $0x78] sm:$0xff]
    %v5538 = vld [vmem:[%s13 + $0x80] sm:$0xff]
    %v5539 = vld [vmem:[%s13 + $0x88] sm:$0xff]
    %v5540 = vld [vmem:[%s13 + $0x90] sm:$0xff]
    %v5541 = vld [vmem:[%s13 + $0x98] sm:$0xff]
    %v5542 = vld [vmem:[%s13 + $0xa0] sm:$0xff]
    %v5543 = vld [vmem:[%s13 + $0xa8] sm:$0xff]
    %v5544 = vld [vmem:[%s13 + $0xb0] sm:$0xff]
    %v5545 = vld [vmem:[%s13 + $0xb8] sm:$0xff]
    %v5546 = vld [vmem:[%s13 + $0xc0] sm:$0xff]
    %v5547 = vld [vmem:[%s13 + $0xc8] sm:$0xff]
    %v5548 = vld [vmem:[%s13 + $0xd0] sm:$0xff]
    %v5549 = vld [vmem:[%s13 + $0xd8] sm:$0xff]
    %v5550 = vld [vmem:[%s13 + $0xe0] sm:$0xff]
    %v5551 = vld [vmem:[%s13 + $0xe8] sm:$0xff]
    %v5552 = vld [vmem:[%s13 + $0xf0] sm:$0xff]
    %v5553 = vld [vmem:[%s13 + $0xf8] sm:$0xff]
    %v5554 = vld [vmem:[%s13 + $0x100] sm:$0xff]
    %v5555 = vld [vmem:[%s13 + $0x108] sm:$0xff]
    %v5556 = vld [vmem:[%s13 + $0x110] sm:$0xff]
    %v5557 = vld [vmem:[%s13 + $0x118] sm:$0xff]
    %v5558 = vld [vmem:[%s13 + $0x120] sm:$0xff]
    %v5559 = vld [vmem:[%s13 + $0x128] sm:$0xff]
    %v5560 = vld [vmem:[%s13 + $0x130] sm:$0xff]
    %v5561 = vld [vmem:[%s13 + $0x138] sm:$0xff]
    %v5562 = vld [vmem:[%s13 + $0x140] sm:$0xff]
    %v5563 = vld [vmem:[%s13 + $0x148] sm:$0xff]
    %v5564 = vld [vmem:[%s13 + $0x150] sm:$0xff]
    %v5565 = vld [vmem:[%s13 + $0x158] sm:$0xff]
    %v5566 = vld [vmem:[%s13 + $0x160] sm:$0xff]
    %v5567 = vld [vmem:[%s13 + $0x168] sm:$0xff]
    %v5568 = vld [vmem:[%s13 + $0x170] sm:$0xff]
    %v5569 = vld [vmem:[%s13 + $0x178] sm:$0xff]
    %v5570 = vld [vmem:[%s13 + $0x180] sm:$0xff]
    %v5571 = vld [vmem:[%s13 + $0x188] sm:$0xff]
    %v5572 = vld [vmem:[%s13 + $0x190] sm:$0xff]
    %v5573 = vld [vmem:[%s13 + $0x198] sm:$0xff]
    %v5574 = vld [vmem:[%s13 + $0x1a0] sm:$0xff]
    %v5575 = vld [vmem:[%s13 + $0x1a8] sm:$0xff]
    %v5576 = vld [vmem:[%s13 + $0x1b0] sm:$0xff]
    %v5577 = vld [vmem:[%s13 + $0x1b8] sm:$0xff]
    %v5578 = vld [vmem:[%s13 + $0x1c0] sm:$0xff]
    %v5579 = vld [vmem:[%s13 + $0x1c8] sm:$0xff]
    %v5580 = vld [vmem:[%s13 + $0x1d0] sm:$0xff]
    %v5581 = vld [vmem:[%s13 + $0x1d8] sm:$0xff]
    %v5582 = vld [vmem:[%s13 + $0x1e0] sm:$0xff]
    %v5583 = vld [vmem:[%s13 + $0x1e8] sm:$0xff]
    %v5584 = vld [vmem:[%s13 + $0x1f0] sm:$0xff]
    %v5585 = vld [vmem:[%s13 + $0x1f8] sm:$0xff]
    %v5586 = vld [vmem:[%s13 + $0x200] sm:$0xff]
    %v5587 = vld [vmem:[%s13 + $0x208] sm:$0xff]
    %v5588 = vld [vmem:[%s13 + $0x210] sm:$0xff]
    %v5589 = vld [vmem:[%s13 + $0x218] sm:$0xff]
    %v5590 = vld [vmem:[%s13 + $0x220] sm:$0xff]
    %v5591 = vld [vmem:[%s13 + $0x228] sm:$0xff]
    %v5592 = vld [vmem:[%s13 + $0x230] sm:$0xff]
    %v5593 = vld [vmem:[%s13 + $0x238] sm:$0xff]
    %v5594 = vld [vmem:[%s13 + $0x240] sm:$0xff]
    %v5595 = vld [vmem:[%s13 + $0x248] sm:$0xff]
    %v5596 = vld [vmem:[%s13 + $0x250] sm:$0xff]
    %v5597 = vld [vmem:[%s13 + $0x258] sm:$0xff]
    %v5598 = vld [vmem:[%s13 + $0x260] sm:$0xff]
    %v5599 = vld [vmem:[%s13 + $0x268] sm:$0xff]
    %v5600 = vld [vmem:[%s13 + $0x270] sm:$0xff]
    %v5601 = vld [vmem:[%s13 + $0x278] sm:$0xff]
    %v5682 = vunpack.c.l.b16 %v5522
    %v5683 = vunpack.c.h.b16 %v5522
    %v5684 = vunpack.c.l.b16 %v5523
    %v5685 = vunpack.c.h.b16 %v5523
    %v5686 = vunpack.c.l.b16 %v5524
    %v5687 = vunpack.c.h.b16 %v5524
    %v5688 = vunpack.c.l.b16 %v5525
    %v5689 = vunpack.c.h.b16 %v5525
    %v5690 = vunpack.c.l.b16 %v5526
    %v5691 = vunpack.c.h.b16 %v5526
    %v5692 = vunpack.c.l.b16 %v5527
    %v5693 = vunpack.c.h.b16 %v5527
    %v5694 = vunpack.c.l.b16 %v5528
    %v5695 = vunpack.c.h.b16 %v5528
    %v5696 = vunpack.c.l.b16 %v5529
    %v5697 = vunpack.c.h.b16 %v5529
    %v5698 = vunpack.c.l.b16 %v5530
    %v5699 = vunpack.c.h.b16 %v5530
    %v5700 = vunpack.c.l.b16 %v5531
    %v5701 = vunpack.c.h.b16 %v5531
    %v5702 = vunpack.c.l.b16 %v5532
    %v5703 = vunpack.c.h.b16 %v5532
    %v5704 = vunpack.c.l.b16 %v5533
    %v5705 = vunpack.c.h.b16 %v5533
    %v5706 = vunpack.c.l.b16 %v5534
    %v5707 = vunpack.c.h.b16 %v5534
    %v5708 = vunpack.c.l.b16 %v5535
    %v5709 = vunpack.c.h.b16 %v5535
    %v5710 = vunpack.c.l.b16 %v5536
    %v5711 = vunpack.c.h.b16 %v5536
    %v5712 = vunpack.c.l.b16 %v5537
    %v5713 = vunpack.c.h.b16 %v5537
    %v5714 = vunpack.c.l.b16 %v5538
    %v5715 = vunpack.c.h.b16 %v5538
    %v5716 = vunpack.c.l.b16 %v5539
    %v5717 = vunpack.c.h.b16 %v5539
    %v5718 = vunpack.c.l.b16 %v5540
    %v5719 = vunpack.c.h.b16 %v5540
    %v5720 = vunpack.c.l.b16 %v5541
    %v5721 = vunpack.c.h.b16 %v5541
    %v5722 = vunpack.c.l.b16 %v5542
    %v5723 = vunpack.c.h.b16 %v5542
    %v5724 = vunpack.c.l.b16 %v5543
    %v5725 = vunpack.c.h.b16 %v5543
    %v5726 = vunpack.c.l.b16 %v5544
    %v5727 = vunpack.c.h.b16 %v5544
    %v5728 = vunpack.c.l.b16 %v5545
    %v5729 = vunpack.c.h.b16 %v5545
    %v5730 = vunpack.c.l.b16 %v5546
    %v5731 = vunpack.c.h.b16 %v5546
    %v5732 = vunpack.c.l.b16 %v5547
    %v5733 = vunpack.c.h.b16 %v5547
    %v5734 = vunpack.c.l.b16 %v5548
    %v5735 = vunpack.c.h.b16 %v5548
    %v5736 = vunpack.c.l.b16 %v5549
    %v5737 = vunpack.c.h.b16 %v5549
    %v5738 = vunpack.c.l.b16 %v5550
    %v5739 = vunpack.c.h.b16 %v5550
    %v5740 = vunpack.c.l.b16 %v5551
    %v5741 = vunpack.c.h.b16 %v5551
    %v5742 = vunpack.c.l.b16 %v5552
    %v5743 = vunpack.c.h.b16 %v5552
    %v5744 = vunpack.c.l.b16 %v5553
    %v5745 = vunpack.c.h.b16 %v5553
    %v5746 = vunpack.c.l.b16 %v5554
    %v5747 = vunpack.c.h.b16 %v5554
    %v5748 = vunpack.c.l.b16 %v5555
    %v5749 = vunpack.c.h.b16 %v5555
    %v5750 = vunpack.c.l.b16 %v5556
    %v5751 = vunpack.c.h.b16 %v5556
    %v5752 = vunpack.c.l.b16 %v5557
    %v5753 = vunpack.c.h.b16 %v5557
    %v5754 = vunpack.c.l.b16 %v5558
    %v5755 = vunpack.c.h.b16 %v5558
    %v5756 = vunpack.c.l.b16 %v5559
    %v5757 = vunpack.c.h.b16 %v5559
    %v5758 = vunpack.c.l.b16 %v5560
    %v5759 = vunpack.c.h.b16 %v5560
    %v5760 = vunpack.c.l.b16 %v5561
    %v5761 = vunpack.c.h.b16 %v5561
    %v5762 = vunpack.c.l.b16 %v5562
    %v5763 = vunpack.c.h.b16 %v5562
    %v5764 = vunpack.c.l.b16 %v5563
    %v5765 = vunpack.c.h.b16 %v5563
    %v5766 = vunpack.c.l.b16 %v5564
    %v5767 = vunpack.c.h.b16 %v5564
    %v5768 = vunpack.c.l.b16 %v5565
    %v5769 = vunpack.c.h.b16 %v5565
    %v5770 = vunpack.c.l.b16 %v5566
    %v5771 = vunpack.c.h.b16 %v5566
    %v5772 = vunpack.c.l.b16 %v5567
    %v5773 = vunpack.c.h.b16 %v5567
    %v5774 = vunpack.c.l.b16 %v5568
    %v5775 = vunpack.c.h.b16 %v5568
    %v5776 = vunpack.c.l.b16 %v5569
    %v5777 = vunpack.c.h.b16 %v5569
    %v5778 = vunpack.c.l.b16 %v5570
    %v5779 = vunpack.c.h.b16 %v5570
    %v5780 = vunpack.c.l.b16 %v5571
    %v5781 = vunpack.c.h.b16 %v5571
    %v5782 = vunpack.c.l.b16 %v5572
    %v5783 = vunpack.c.h.b16 %v5572
    %v5784 = vunpack.c.l.b16 %v5573
    %v5785 = vunpack.c.h.b16 %v5573
    %v5786 = vunpack.c.l.b16 %v5574
    %v5787 = vunpack.c.h.b16 %v5574
    %v5788 = vunpack.c.l.b16 %v5575
    %v5789 = vunpack.c.h.b16 %v5575
    %v5790 = vunpack.c.l.b16 %v5576
    %v5791 = vunpack.c.h.b16 %v5576
    %v5792 = vunpack.c.l.b16 %v5577
    %v5793 = vunpack.c.h.b16 %v5577
    %v5794 = vunpack.c.l.b16 %v5578
    %v5795 = vunpack.c.h.b16 %v5578
    %v5796 = vunpack.c.l.b16 %v5579
    %v5797 = vunpack.c.h.b16 %v5579
    %v5798 = vunpack.c.l.b16 %v5580
    %v5799 = vunpack.c.h.b16 %v5580
    %v5800 = vunpack.c.l.b16 %v5581
    %v5801 = vunpack.c.h.b16 %v5581
    %v5802 = vunpack.c.l.b16 %v5582
    %v5803 = vunpack.c.h.b16 %v5582
    %v5804 = vunpack.c.l.b16 %v5583
    %v5805 = vunpack.c.h.b16 %v5583
    %v5806 = vunpack.c.l.b16 %v5584
    %v5807 = vunpack.c.h.b16 %v5584
    %v5808 = vunpack.c.l.b16 %v5585
    %v5809 = vunpack.c.h.b16 %v5585
    %v5810 = vunpack.c.l.b16 %v5586
    %v5811 = vunpack.c.h.b16 %v5586
    %v5812 = vunpack.c.l.b16 %v5587
    %v5813 = vunpack.c.h.b16 %v5587
    %v5814 = vunpack.c.l.b16 %v5588
    %v5815 = vunpack.c.h.b16 %v5588
    %v5816 = vunpack.c.l.b16 %v5589
    %v5817 = vunpack.c.h.b16 %v5589
    %v5818 = vunpack.c.l.b16 %v5590
    %v5819 = vunpack.c.h.b16 %v5590
    %v5820 = vunpack.c.l.b16 %v5591
    %v5821 = vunpack.c.h.b16 %v5591
    %v5822 = vunpack.c.l.b16 %v5592
    %v5823 = vunpack.c.h.b16 %v5592
    %v5824 = vunpack.c.l.b16 %v5593
    %v5825 = vunpack.c.h.b16 %v5593
    %v5826 = vunpack.c.l.b16 %v5594
    %v5827 = vunpack.c.h.b16 %v5594
    %v5828 = vunpack.c.l.b16 %v5595
    %v5829 = vunpack.c.h.b16 %v5595
    %v5830 = vunpack.c.l.b16 %v5596
    %v5831 = vunpack.c.h.b16 %v5596
    %v5832 = vunpack.c.l.b16 %v5597
    %v5833 = vunpack.c.h.b16 %v5597
    %v5834 = vunpack.c.l.b16 %v5598
    %v5835 = vunpack.c.h.b16 %v5598
    %v5836 = vunpack.c.l.b16 %v5599
    %v5837 = vunpack.c.h.b16 %v5599
    %v5838 = vunpack.c.l.b16 %v5600
    %v5839 = vunpack.c.h.b16 %v5600
    %v5840 = vunpack.c.l.b16 %v5601
    %v5841 = vunpack.c.h.b16 %v5601
    %v5842 = vpack.c.b16 %v5684, %v5682
    %v5843 = vpack.c.b16 %v5685, %v5683
    %v5844 = vpack.c.b16 %v5688, %v5686
    %v5845 = vpack.c.b16 %v5689, %v5687
    %v5846 = vpack.c.b16 %v5692, %v5690
    %v5847 = vpack.c.b16 %v5693, %v5691
    %v5848 = vpack.c.b16 %v5696, %v5694
    %v5849 = vpack.c.b16 %v5697, %v5695
    %v5850 = vpack.c.b16 %v5700, %v5698
    %v5851 = vpack.c.b16 %v5701, %v5699
    %v5852 = vpack.c.b16 %v5704, %v5702
    %v5853 = vpack.c.b16 %v5705, %v5703
    %v5854 = vpack.c.b16 %v5708, %v5706
    %v5855 = vpack.c.b16 %v5709, %v5707
    %v5856 = vpack.c.b16 %v5712, %v5710
    %v5857 = vpack.c.b16 %v5713, %v5711
    %v5858 = vpack.c.b16 %v5716, %v5714
    %v5859 = vpack.c.b16 %v5717, %v5715
    %v5860 = vpack.c.b16 %v5720, %v5718
    %v5861 = vpack.c.b16 %v5721, %v5719
    %v5862 = vpack.c.b16 %v5724, %v5722
    %v5863 = vpack.c.b16 %v5725, %v5723
    %v5864 = vpack.c.b16 %v5728, %v5726
    %v5865 = vpack.c.b16 %v5729, %v5727
    %v5866 = vpack.c.b16 %v5732, %v5730
    %v5867 = vpack.c.b16 %v5733, %v5731
    %v5868 = vpack.c.b16 %v5736, %v5734
    %v5869 = vpack.c.b16 %v5737, %v5735
    %v5870 = vpack.c.b16 %v5740, %v5738
    %v5871 = vpack.c.b16 %v5741, %v5739
    %v5872 = vpack.c.b16 %v5744, %v5742
    %v5873 = vpack.c.b16 %v5745, %v5743
    %v5874 = vpack.c.b16 %v5748, %v5746
    %v5875 = vpack.c.b16 %v5749, %v5747
    %v5876 = vpack.c.b16 %v5752, %v5750
    %v5877 = vpack.c.b16 %v5753, %v5751
    %v5878 = vpack.c.b16 %v5756, %v5754
    %v5879 = vpack.c.b16 %v5757, %v5755
    %v5880 = vpack.c.b16 %v5760, %v5758
    %v5881 = vpack.c.b16 %v5761, %v5759
    %v5882 = vpack.c.b16 %v5764, %v5762
    %v5883 = vpack.c.b16 %v5765, %v5763
    %v5884 = vpack.c.b16 %v5768, %v5766
    %v5885 = vpack.c.b16 %v5769, %v5767
    %v5886 = vpack.c.b16 %v5772, %v5770
    %v5887 = vpack.c.b16 %v5773, %v5771
    %v5888 = vpack.c.b16 %v5776, %v5774
    %v5889 = vpack.c.b16 %v5777, %v5775
    %v5890 = vpack.c.b16 %v5780, %v5778
    %v5891 = vpack.c.b16 %v5781, %v5779
    %v5892 = vpack.c.b16 %v5784, %v5782
    %v5893 = vpack.c.b16 %v5785, %v5783
    %v5894 = vpack.c.b16 %v5788, %v5786
    %v5895 = vpack.c.b16 %v5789, %v5787
    %v5896 = vpack.c.b16 %v5792, %v5790
    %v5897 = vpack.c.b16 %v5793, %v5791
    %v5898 = vpack.c.b16 %v5796, %v5794
    %v5899 = vpack.c.b16 %v5797, %v5795
    %v5900 = vpack.c.b16 %v5800, %v5798
    %v5901 = vpack.c.b16 %v5801, %v5799
    %v5902 = vpack.c.b16 %v5804, %v5802
    %v5903 = vpack.c.b16 %v5805, %v5803
    %v5904 = vpack.c.b16 %v5808, %v5806
    %v5905 = vpack.c.b16 %v5809, %v5807
    %v5906 = vpack.c.b16 %v5812, %v5810
    %v5907 = vpack.c.b16 %v5813, %v5811
    %v5908 = vpack.c.b16 %v5816, %v5814
    %v5909 = vpack.c.b16 %v5817, %v5815
    %v5910 = vpack.c.b16 %v5820, %v5818
    %v5911 = vpack.c.b16 %v5821, %v5819
    %v5912 = vpack.c.b16 %v5824, %v5822
    %v5913 = vpack.c.b16 %v5825, %v5823
    %v5914 = vpack.c.b16 %v5828, %v5826
    %v5915 = vpack.c.b16 %v5829, %v5827
    %v5916 = vpack.c.b16 %v5832, %v5830
    %v5917 = vpack.c.b16 %v5833, %v5831
    %v5918 = vpack.c.b16 %v5836, %v5834
    %v5919 = vpack.c.b16 %v5837, %v5835
    %v5920 = vpack.c.b16 %v5840, %v5838
    %v5921 = vpack.c.b16 %v5841, %v5839
    %6002 = vmatprep.subr.bf16.mxu0 %v5857
    %6003 = vmatpush1.bf16.msra.mxu0 %v5856
    %6004 = vmatprep.subr.bf16.mxu0 %v5855
    %6005 = vmatpush1.bf16.msra.mxu0 %v5854
    %6006 = vmatprep.subr.bf16.mxu0 %v5853
    %6007 = vmatpush1.bf16.msra.mxu0 %v5852
    %6008 = vmatprep.subr.bf16.mxu0 %v5851
    %6009 = vmatpush1.bf16.msra.mxu0 %v5850
    %6010 = vmatprep.subr.bf16.mxu0 %v5849
    %6011 = vmatpush1.bf16.msra.mxu0 %v5848
    %6012 = vmatprep.subr.bf16.mxu0 %v5847
    %6013 = vmatpush1.bf16.msra.mxu0 %v5846
    %6014 = vmatprep.subr.bf16.mxu0 %v5845
    %6015 = vmatpush1.bf16.msra.mxu0 %v5844
    %6016 = vmatprep.subr.bf16.mxu0 %v5843
    %6017 = vmatpush1.bf16.msra.mxu0 %v5842
    %6018 = vmatprep.subr.bf16.mxu0 %v5873
    %6019 = vmatpush2.bf16.msra.mxu0 %v5872
    %6020 = vmatprep.subr.bf16.mxu0 %v5871
    %6021 = vmatpush2.bf16.msra.mxu0 %v5870
    %6022 = vmatprep.subr.bf16.mxu0 %v5869
    %6023 = vmatpush2.bf16.msra.mxu0 %v5868
    %6024 = vmatprep.subr.bf16.mxu0 %v5867
    %6025 = vmatpush2.bf16.msra.mxu0 %v5866
    %6026 = vmatprep.subr.bf16.mxu0 %v5865
    %6027 = vmatpush2.bf16.msra.mxu0 %v5864
    %6028 = vmatprep.subr.bf16.mxu0 %v5863
    %6029 = vmatpush2.bf16.msra.mxu0 %v5862
    %6030 = vmatprep.subr.bf16.mxu0 %v5861
    %6031 = vmatpush2.bf16.msra.mxu0 %v5860
    %6032 = vmatprep.subr.bf16.mxu0 %v5859
    %6033 = vmatpush2.bf16.msra.mxu0 %v5858
    %6034 = vmatprep.mubr.bf16.mxu0 %v5508
    %6035 = vmatmul.mubr.bf16.gmra.mxu0 %v5507
    %v6036 = vpop.f32.mrf.mxu0
    %v6037 = vadd.f32 0.0, %v6036
    %v6038 = vpop.f32.mrf.mxu0
    %v6039 = vadd.f32 0.0, %v6038
    %v6040 = vpop.f32.mrf.mxu0
    %v6041 = vadd.f32 0.0, %v6040
    %v6042 = vpop.f32.mrf.mxu0
    %v6043 = vadd.f32 0.0, %v6042
    %6044 = vdwg.mxu0
    %6045 = vmatprep.subr.bf16.mxu0 %v5889
    %6046 = vmatpush1.bf16.msra.mxu0 %v5888
    %6047 = vmatprep.subr.bf16.mxu0 %v5887
    %6048 = vmatpush1.bf16.msra.mxu0 %v5886
    %6049 = vmatprep.subr.bf16.mxu0 %v5885
    %6050 = vmatpush1.bf16.msra.mxu0 %v5884
    %6051 = vmatprep.subr.bf16.mxu0 %v5883
    %6052 = vmatpush1.bf16.msra.mxu0 %v5882
    %6053 = vmatprep.subr.bf16.mxu0 %v5881
    %6054 = vmatpush1.bf16.msra.mxu0 %v5880
    %6055 = vmatprep.subr.bf16.mxu0 %v5879
    %6056 = vmatpush1.bf16.msra.mxu0 %v5878
    %6057 = vmatprep.subr.bf16.mxu0 %v5877
    %6058 = vmatpush1.bf16.msra.mxu0 %v5876
    %6059 = vmatprep.subr.bf16.mxu0 %v5875
    %6060 = vmatpush1.bf16.msra.mxu0 %v5874
    %6061 = vmatprep.subr.bf16.mxu0 %v5905
    %6062 = vmatpush2.bf16.msra.mxu0 %v5904
    %6063 = vmatprep.subr.bf16.mxu0 %v5903
    %6064 = vmatpush2.bf16.msra.mxu0 %v5902
    %6065 = vmatprep.subr.bf16.mxu0 %v5901
    %6066 = vmatpush2.bf16.msra.mxu0 %v5900
    %6067 = vmatprep.subr.bf16.mxu0 %v5899
    %6068 = vmatpush2.bf16.msra.mxu0 %v5898
    %6069 = vmatprep.subr.bf16.mxu0 %v5897
    %6070 = vmatpush2.bf16.msra.mxu0 %v5896
    %6071 = vmatprep.subr.bf16.mxu0 %v5895
    %6072 = vmatpush2.bf16.msra.mxu0 %v5894
    %6073 = vmatprep.subr.bf16.mxu0 %v5893
    %6074 = vmatpush2.bf16.msra.mxu0 %v5892
    %6075 = vmatprep.subr.bf16.mxu0 %v5891
    %6076 = vmatpush2.bf16.msra.mxu0 %v5890
    %6077 = vmatprep.mubr.bf16.mxu0 %v5510
    %6078 = vmatmul.mubr.bf16.gmra.mxu0 %v5509
    %v6079 = vpop.f32.mrf.mxu0
    %v6080 = vadd.f32 %v6037, %v6079
    %v6081 = vpop.f32.mrf.mxu0
    %v6082 = vadd.f32 %v6039, %v6081
    %v6083 = vpop.f32.mrf.mxu0
    %v6084 = vadd.f32 %v6041, %v6083
    %v6085 = vpop.f32.mrf.mxu0
    %v6086 = vadd.f32 %v6043, %v6085
    %6087 = vdwg.mxu0
    %6088 = vmatprep.subr.bf16.mxu0 %v5921
    %6089 = vmatpush1.bf16.msra.mxu0 %v5920
    %6090 = vmatprep.subr.bf16.mxu0 %v5919
    %6091 = vmatpush1.bf16.msra.mxu0 %v5918
    %6092 = vmatprep.subr.bf16.mxu0 %v5917
    %6093 = vmatpush1.bf16.msra.mxu0 %v5916
    %6094 = vmatprep.subr.bf16.mxu0 %v5915
    %6095 = vmatpush1.bf16.msra.mxu0 %v5914
    %6096 = vmatprep.subr.bf16.mxu0 %v5913
    %6097 = vmatpush1.bf16.msra.mxu0 %v5912
    %6098 = vmatprep.subr.bf16.mxu0 %v5911
    %6099 = vmatpush1.bf16.msra.mxu0 %v5910
    %6100 = vmatprep.subr.bf16.mxu0 %v5909
    %6101 = vmatpush1.bf16.msra.mxu0 %v5908
    %6102 = vmatprep.subr.bf16.mxu0 %v5907
    %6103 = vmatpush1.bf16.msra.mxu0 %v5906
    %6104 = vmatprep.subr.bf16.mxu0 0
    %6105 = vmatpush2.bf16.msra.mxu0 0
    %6106 = vmatprep.subr.bf16.mxu0 0
    %6107 = vmatpush2.bf16.msra.mxu0 0
    %6108 = vmatprep.subr.bf16.mxu0 0
    %6109 = vmatpush2.bf16.msra.mxu0 0
    %6110 = vmatprep.subr.bf16.mxu0 0
    %6111 = vmatpush2.bf16.msra.mxu0 0
    %6112 = vmatprep.subr.bf16.mxu0 0
    %6113 = vmatpush2.bf16.msra.mxu0 0
    %6114 = vmatprep.subr.bf16.mxu0 0
    %6115 = vmatpush2.bf16.msra.mxu0 0
    %6116 = vmatprep.subr.bf16.mxu0 0
    %6117 = vmatpush2.bf16.msra.mxu0 0
    %6118 = vmatprep.subr.bf16.mxu0 0
    %6119 = vmatpush2.bf16.msra.mxu0 0
    %6120 = vmatprep.mubr.bf16.mxu0 0
    %6121 = vmatmul.mubr.bf16.gmra.mxu0 %v5511
    %v6122 = vpop.f32.mrf.mxu0
    %v6123 = vadd.f32 %v6080, %v6122
    %v6124 = vpop.f32.mrf.mxu0
    %v6125 = vadd.f32 %v6082, %v6124
    %v6126 = vpop.f32.mrf.mxu0
    %v6127 = vadd.f32 %v6084, %v6126
    %v6128 = vpop.f32.mrf.mxu0
    %v6129 = vadd.f32 %v6086, %v6128
    %6130 = vdwg.mxu0
    %v6131 = vld [vmem:[%s14] sm:$0xff]
    %v6132 = vld [vmem:[%s14 + $0x8] sm:$0xff]
    %v6133 = vld [vmem:[%s14 + $0x10] sm:$0xff]
    %v6134 = vld [vmem:[%s14 + $0x18] sm:$0xff]
    %v6135 = vmul.f32 %v6123, %v6131
    %v6136 = vmul.f32 %v6125, %v6132
    %v6137 = vmul.f32 %v6127, %v6133
    %v6138 = vmul.f32 %v6129, %v6134
    %s6139 = scalar_lea.vmem %s13, 640
    %v6140 = vld [vmem:[%s6139] sm:$0xff]
    %v6141 = vld [vmem:[%s6139 + $0x8] sm:$0xff]
    %v6142 = vld [vmem:[%s6139 + $0x10] sm:$0xff]
    %v6143 = vld [vmem:[%s6139 + $0x18] sm:$0xff]
    %v6144 = vld [vmem:[%s6139 + $0x20] sm:$0xff]
    %v6145 = vld [vmem:[%s6139 + $0x28] sm:$0xff]
    %v6146 = vld [vmem:[%s6139 + $0x30] sm:$0xff]
    %v6147 = vld [vmem:[%s6139 + $0x38] sm:$0xff]
    %v6148 = vld [vmem:[%s6139 + $0x40] sm:$0xff]
    %v6149 = vld [vmem:[%s6139 + $0x48] sm:$0xff]
    %v6150 = vld [vmem:[%s6139 + $0x50] sm:$0xff]
    %v6151 = vld [vmem:[%s6139 + $0x58] sm:$0xff]
    %v6152 = vld [vmem:[%s6139 + $0x60] sm:$0xff]
    %v6153 = vld [vmem:[%s6139 + $0x68] sm:$0xff]
    %v6154 = vld [vmem:[%s6139 + $0x70] sm:$0xff]
    %v6155 = vld [vmem:[%s6139 + $0x78] sm:$0xff]
    %v6156 = vld [vmem:[%s6139 + $0x80] sm:$0xff]
    %v6157 = vld [vmem:[%s6139 + $0x88] sm:$0xff]
    %v6158 = vld [vmem:[%s6139 + $0x90] sm:$0xff]
    %v6159 = vld [vmem:[%s6139 + $0x98] sm:$0xff]
    %v6160 = vld [vmem:[%s6139 + $0xa0] sm:$0xff]
    %v6161 = vld [vmem:[%s6139 + $0xa8] sm:$0xff]
    %v6162 = vld [vmem:[%s6139 + $0xb0] sm:$0xff]
    %v6163 = vld [vmem:[%s6139 + $0xb8] sm:$0xff]
    %v6164 = vld [vmem:[%s6139 + $0xc0] sm:$0xff]
    %v6165 = vld [vmem:[%s6139 + $0xc8] sm:$0xff]
    %v6166 = vld [vmem:[%s6139 + $0xd0] sm:$0xff]
    %v6167 = vld [vmem:[%s6139 + $0xd8] sm:$0xff]
    %v6168 = vld [vmem:[%s6139 + $0xe0] sm:$0xff]
    %v6169 = vld [vmem:[%s6139 + $0xe8] sm:$0xff]
    %v6170 = vld [vmem:[%s6139 + $0xf0] sm:$0xff]
    %v6171 = vld [vmem:[%s6139 + $0xf8] sm:$0xff]
    %v6172 = vld [vmem:[%s6139 + $0x100] sm:$0xff]
    %v6173 = vld [vmem:[%s6139 + $0x108] sm:$0xff]
    %v6174 = vld [vmem:[%s6139 + $0x110] sm:$0xff]
    %v6175 = vld [vmem:[%s6139 + $0x118] sm:$0xff]
    %v6176 = vld [vmem:[%s6139 + $0x120] sm:$0xff]
    %v6177 = vld [vmem:[%s6139 + $0x128] sm:$0xff]
    %v6178 = vld [vmem:[%s6139 + $0x130] sm:$0xff]
    %v6179 = vld [vmem:[%s6139 + $0x138] sm:$0xff]
    %v6180 = vld [vmem:[%s6139 + $0x140] sm:$0xff]
    %v6181 = vld [vmem:[%s6139 + $0x148] sm:$0xff]
    %v6182 = vld [vmem:[%s6139 + $0x150] sm:$0xff]
    %v6183 = vld [vmem:[%s6139 + $0x158] sm:$0xff]
    %v6184 = vld [vmem:[%s6139 + $0x160] sm:$0xff]
    %v6185 = vld [vmem:[%s6139 + $0x168] sm:$0xff]
    %v6186 = vld [vmem:[%s6139 + $0x170] sm:$0xff]
    %v6187 = vld [vmem:[%s6139 + $0x178] sm:$0xff]
    %v6188 = vld [vmem:[%s6139 + $0x180] sm:$0xff]
    %v6189 = vld [vmem:[%s6139 + $0x188] sm:$0xff]
    %v6190 = vld [vmem:[%s6139 + $0x190] sm:$0xff]
    %v6191 = vld [vmem:[%s6139 + $0x198] sm:$0xff]
    %v6192 = vld [vmem:[%s6139 + $0x1a0] sm:$0xff]
    %v6193 = vld [vmem:[%s6139 + $0x1a8] sm:$0xff]
    %v6194 = vld [vmem:[%s6139 + $0x1b0] sm:$0xff]
    %v6195 = vld [vmem:[%s6139 + $0x1b8] sm:$0xff]
    %v6196 = vld [vmem:[%s6139 + $0x1c0] sm:$0xff]
    %v6197 = vld [vmem:[%s6139 + $0x1c8] sm:$0xff]
    %v6198 = vld [vmem:[%s6139 + $0x1d0] sm:$0xff]
    %v6199 = vld [vmem:[%s6139 + $0x1d8] sm:$0xff]
    %v6200 = vld [vmem:[%s6139 + $0x1e0] sm:$0xff]
    %v6201 = vld [vmem:[%s6139 + $0x1e8] sm:$0xff]
    %v6202 = vld [vmem:[%s6139 + $0x1f0] sm:$0xff]
    %v6203 = vld [vmem:[%s6139 + $0x1f8] sm:$0xff]
    %v6204 = vld [vmem:[%s6139 + $0x200] sm:$0xff]
    %v6205 = vld [vmem:[%s6139 + $0x208] sm:$0xff]
    %v6206 = vld [vmem:[%s6139 + $0x210] sm:$0xff]
    %v6207 = vld [vmem:[%s6139 + $0x218] sm:$0xff]
    %v6208 = vld [vmem:[%s6139 + $0x220] sm:$0xff]
    %v6209 = vld [vmem:[%s6139 + $0x228] sm:$0xff]
    %v6210 = vld [vmem:[%s6139 + $0x230] sm:$0xff]
    %v6211 = vld [vmem:[%s6139 + $0x238] sm:$0xff]
    %v6212 = vld [vmem:[%s6139 + $0x240] sm:$0xff]
    %v6213 = vld [vmem:[%s6139 + $0x248] sm:$0xff]
    %v6214 = vld [vmem:[%s6139 + $0x250] sm:$0xff]
    %v6215 = vld [vmem:[%s6139 + $0x258] sm:$0xff]
    %v6216 = vld [vmem:[%s6139 + $0x260] sm:$0xff]
    %v6217 = vld [vmem:[%s6139 + $0x268] sm:$0xff]
    %v6218 = vld [vmem:[%s6139 + $0x270] sm:$0xff]
    %v6219 = vld [vmem:[%s6139 + $0x278] sm:$0xff]
    %v6300 = vunpack.c.l.b16 %v6140
    %v6301 = vunpack.c.h.b16 %v6140
    %v6302 = vunpack.c.l.b16 %v6141
    %v6303 = vunpack.c.h.b16 %v6141
    %v6304 = vunpack.c.l.b16 %v6142
    %v6305 = vunpack.c.h.b16 %v6142
    %v6306 = vunpack.c.l.b16 %v6143
    %v6307 = vunpack.c.h.b16 %v6143
    %v6308 = vunpack.c.l.b16 %v6144
    %v6309 = vunpack.c.h.b16 %v6144
    %v6310 = vunpack.c.l.b16 %v6145
    %v6311 = vunpack.c.h.b16 %v6145
    %v6312 = vunpack.c.l.b16 %v6146
    %v6313 = vunpack.c.h.b16 %v6146
    %v6314 = vunpack.c.l.b16 %v6147
    %v6315 = vunpack.c.h.b16 %v6147
    %v6316 = vunpack.c.l.b16 %v6148
    %v6317 = vunpack.c.h.b16 %v6148
    %v6318 = vunpack.c.l.b16 %v6149
    %v6319 = vunpack.c.h.b16 %v6149
    %v6320 = vunpack.c.l.b16 %v6150
    %v6321 = vunpack.c.h.b16 %v6150
    %v6322 = vunpack.c.l.b16 %v6151
    %v6323 = vunpack.c.h.b16 %v6151
    %v6324 = vunpack.c.l.b16 %v6152
    %v6325 = vunpack.c.h.b16 %v6152
    %v6326 = vunpack.c.l.b16 %v6153
    %v6327 = vunpack.c.h.b16 %v6153
    %v6328 = vunpack.c.l.b16 %v6154
    %v6329 = vunpack.c.h.b16 %v6154
    %v6330 = vunpack.c.l.b16 %v6155
    %v6331 = vunpack.c.h.b16 %v6155
    %v6332 = vunpack.c.l.b16 %v6156
    %v6333 = vunpack.c.h.b16 %v6156
    %v6334 = vunpack.c.l.b16 %v6157
    %v6335 = vunpack.c.h.b16 %v6157
    %v6336 = vunpack.c.l.b16 %v6158
    %v6337 = vunpack.c.h.b16 %v6158
    %v6338 = vunpack.c.l.b16 %v6159
    %v6339 = vunpack.c.h.b16 %v6159
    %v6340 = vunpack.c.l.b16 %v6160
    %v6341 = vunpack.c.h.b16 %v6160
    %v6342 = vunpack.c.l.b16 %v6161
    %v6343 = vunpack.c.h.b16 %v6161
    %v6344 = vunpack.c.l.b16 %v6162
    %v6345 = vunpack.c.h.b16 %v6162
    %v6346 = vunpack.c.l.b16 %v6163
    %v6347 = vunpack.c.h.b16 %v6163
    %v6348 = vunpack.c.l.b16 %v6164
    %v6349 = vunpack.c.h.b16 %v6164
    %v6350 = vunpack.c.l.b16 %v6165
    %v6351 = vunpack.c.h.b16 %v6165
    %v6352 = vunpack.c.l.b16 %v6166
    %v6353 = vunpack.c.h.b16 %v6166
    %v6354 = vunpack.c.l.b16 %v6167
    %v6355 = vunpack.c.h.b16 %v6167
    %v6356 = vunpack.c.l.b16 %v6168
    %v6357 = vunpack.c.h.b16 %v6168
    %v6358 = vunpack.c.l.b16 %v6169
    %v6359 = vunpack.c.h.b16 %v6169
    %v6360 = vunpack.c.l.b16 %v6170
    %v6361 = vunpack.c.h.b16 %v6170
    %v6362 = vunpack.c.l.b16 %v6171
    %v6363 = vunpack.c.h.b16 %v6171
    %v6364 = vunpack.c.l.b16 %v6172
    %v6365 = vunpack.c.h.b16 %v6172
    %v6366 = vunpack.c.l.b16 %v6173
    %v6367 = vunpack.c.h.b16 %v6173
    %v6368 = vunpack.c.l.b16 %v6174
    %v6369 = vunpack.c.h.b16 %v6174
    %v6370 = vunpack.c.l.b16 %v6175
    %v6371 = vunpack.c.h.b16 %v6175
    %v6372 = vunpack.c.l.b16 %v6176
    %v6373 = vunpack.c.h.b16 %v6176
    %v6374 = vunpack.c.l.b16 %v6177
    %v6375 = vunpack.c.h.b16 %v6177
    %v6376 = vunpack.c.l.b16 %v6178
    %v6377 = vunpack.c.h.b16 %v6178
    %v6378 = vunpack.c.l.b16 %v6179
    %v6379 = vunpack.c.h.b16 %v6179
    %v6380 = vunpack.c.l.b16 %v6180
    %v6381 = vunpack.c.h.b16 %v6180
    %v6382 = vunpack.c.l.b16 %v6181
    %v6383 = vunpack.c.h.b16 %v6181
    %v6384 = vunpack.c.l.b16 %v6182
    %v6385 = vunpack.c.h.b16 %v6182
    %v6386 = vunpack.c.l.b16 %v6183
    %v6387 = vunpack.c.h.b16 %v6183
    %v6388 = vunpack.c.l.b16 %v6184
    %v6389 = vunpack.c.h.b16 %v6184
    %v6390 = vunpack.c.l.b16 %v6185
    %v6391 = vunpack.c.h.b16 %v6185
    %v6392 = vunpack.c.l.b16 %v6186
    %v6393 = vunpack.c.h.b16 %v6186
    %v6394 = vunpack.c.l.b16 %v6187
    %v6395 = vunpack.c.h.b16 %v6187
    %v6396 = vunpack.c.l.b16 %v6188
    %v6397 = vunpack.c.h.b16 %v6188
    %v6398 = vunpack.c.l.b16 %v6189
    %v6399 = vunpack.c.h.b16 %v6189
    %v6400 = vunpack.c.l.b16 %v6190
    %v6401 = vunpack.c.h.b16 %v6190
    %v6402 = vunpack.c.l.b16 %v6191
    %v6403 = vunpack.c.h.b16 %v6191
    %v6404 = vunpack.c.l.b16 %v6192
    %v6405 = vunpack.c.h.b16 %v6192
    %v6406 = vunpack.c.l.b16 %v6193
    %v6407 = vunpack.c.h.b16 %v6193
    %v6408 = vunpack.c.l.b16 %v6194
    %v6409 = vunpack.c.h.b16 %v6194
    %v6410 = vunpack.c.l.b16 %v6195
    %v6411 = vunpack.c.h.b16 %v6195
    %v6412 = vunpack.c.l.b16 %v6196
    %v6413 = vunpack.c.h.b16 %v6196
    %v6414 = vunpack.c.l.b16 %v6197
    %v6415 = vunpack.c.h.b16 %v6197
    %v6416 = vunpack.c.l.b16 %v6198
    %v6417 = vunpack.c.h.b16 %v6198
    %v6418 = vunpack.c.l.b16 %v6199
    %v6419 = vunpack.c.h.b16 %v6199
    %v6420 = vunpack.c.l.b16 %v6200
    %v6421 = vunpack.c.h.b16 %v6200
    %v6422 = vunpack.c.l.b16 %v6201
    %v6423 = vunpack.c.h.b16 %v6201
    %v6424 = vunpack.c.l.b16 %v6202
    %v6425 = vunpack.c.h.b16 %v6202
    %v6426 = vunpack.c.l.b16 %v6203
    %v6427 = vunpack.c.h.b16 %v6203
    %v6428 = vunpack.c.l.b16 %v6204
    %v6429 = vunpack.c.h.b16 %v6204
    %v6430 = vunpack.c.l.b16 %v6205
    %v6431 = vunpack.c.h.b16 %v6205
    %v6432 = vunpack.c.l.b16 %v6206
    %v6433 = vunpack.c.h.b16 %v6206
    %v6434 = vunpack.c.l.b16 %v6207
    %v6435 = vunpack.c.h.b16 %v6207
    %v6436 = vunpack.c.l.b16 %v6208
    %v6437 = vunpack.c.h.b16 %v6208
    %v6438 = vunpack.c.l.b16 %v6209
    %v6439 = vunpack.c.h.b16 %v6209
    %v6440 = vunpack.c.l.b16 %v6210
    %v6441 = vunpack.c.h.b16 %v6210
    %v6442 = vunpack.c.l.b16 %v6211
    %v6443 = vunpack.c.h.b16 %v6211
    %v6444 = vunpack.c.l.b16 %v6212
    %v6445 = vunpack.c.h.b16 %v6212
    %v6446 = vunpack.c.l.b16 %v6213
    %v6447 = vunpack.c.h.b16 %v6213
    %v6448 = vunpack.c.l.b16 %v6214
    %v6449 = vunpack.c.h.b16 %v6214
    %v6450 = vunpack.c.l.b16 %v6215
    %v6451 = vunpack.c.h.b16 %v6215
    %v6452 = vunpack.c.l.b16 %v6216
    %v6453 = vunpack.c.h.b16 %v6216
    %v6454 = vunpack.c.l.b16 %v6217
    %v6455 = vunpack.c.h.b16 %v6217
    %v6456 = vunpack.c.l.b16 %v6218
    %v6457 = vunpack.c.h.b16 %v6218
    %v6458 = vunpack.c.l.b16 %v6219
    %v6459 = vunpack.c.h.b16 %v6219
    %v6460 = vpack.c.b16 %v6302, %v6300
    %v6461 = vpack.c.b16 %v6303, %v6301
    %v6462 = vpack.c.b16 %v6306, %v6304
    %v6463 = vpack.c.b16 %v6307, %v6305
    %v6464 = vpack.c.b16 %v6310, %v6308
    %v6465 = vpack.c.b16 %v6311, %v6309
    %v6466 = vpack.c.b16 %v6314, %v6312
    %v6467 = vpack.c.b16 %v6315, %v6313
    %v6468 = vpack.c.b16 %v6318, %v6316
    %v6469 = vpack.c.b16 %v6319, %v6317
    %v6470 = vpack.c.b16 %v6322, %v6320
    %v6471 = vpack.c.b16 %v6323, %v6321
    %v6472 = vpack.c.b16 %v6326, %v6324
    %v6473 = vpack.c.b16 %v6327, %v6325
    %v6474 = vpack.c.b16 %v6330, %v6328
    %v6475 = vpack.c.b16 %v6331, %v6329
    %v6476 = vpack.c.b16 %v6334, %v6332
    %v6477 = vpack.c.b16 %v6335, %v6333
    %v6478 = vpack.c.b16 %v6338, %v6336
    %v6479 = vpack.c.b16 %v6339, %v6337
    %v6480 = vpack.c.b16 %v6342, %v6340
    %v6481 = vpack.c.b16 %v6343, %v6341
    %v6482 = vpack.c.b16 %v6346, %v6344
    %v6483 = vpack.c.b16 %v6347, %v6345
    %v6484 = vpack.c.b16 %v6350, %v6348
    %v6485 = vpack.c.b16 %v6351, %v6349
    %v6486 = vpack.c.b16 %v6354, %v6352
    %v6487 = vpack.c.b16 %v6355, %v6353
    %v6488 = vpack.c.b16 %v6358, %v6356
    %v6489 = vpack.c.b16 %v6359, %v6357
    %v6490 = vpack.c.b16 %v6362, %v6360
    %v6491 = vpack.c.b16 %v6363, %v6361
    %v6492 = vpack.c.b16 %v6366, %v6364
    %v6493 = vpack.c.b16 %v6367, %v6365
    %v6494 = vpack.c.b16 %v6370, %v6368
    %v6495 = vpack.c.b16 %v6371, %v6369
    %v6496 = vpack.c.b16 %v6374, %v6372
    %v6497 = vpack.c.b16 %v6375, %v6373
    %v6498 = vpack.c.b16 %v6378, %v6376
    %v6499 = vpack.c.b16 %v6379, %v6377
    %v6500 = vpack.c.b16 %v6382, %v6380
    %v6501 = vpack.c.b16 %v6383, %v6381
    %v6502 = vpack.c.b16 %v6386, %v6384
    %v6503 = vpack.c.b16 %v6387, %v6385
    %v6504 = vpack.c.b16 %v6390, %v6388
    %v6505 = vpack.c.b16 %v6391, %v6389
    %v6506 = vpack.c.b16 %v6394, %v6392
    %v6507 = vpack.c.b16 %v6395, %v6393
    %v6508 = vpack.c.b16 %v6398, %v6396
    %v6509 = vpack.c.b16 %v6399, %v6397
    %v6510 = vpack.c.b16 %v6402, %v6400
    %v6511 = vpack.c.b16 %v6403, %v6401
    %v6512 = vpack.c.b16 %v6406, %v6404
    %v6513 = vpack.c.b16 %v6407, %v6405
    %v6514 = vpack.c.b16 %v6410, %v6408
    %v6515 = vpack.c.b16 %v6411, %v6409
    %v6516 = vpack.c.b16 %v6414, %v6412
    %v6517 = vpack.c.b16 %v6415, %v6413
    %v6518 = vpack.c.b16 %v6418, %v6416
    %v6519 = vpack.c.b16 %v6419, %v6417
    %v6520 = vpack.c.b16 %v6422, %v6420
    %v6521 = vpack.c.b16 %v6423, %v6421
    %v6522 = vpack.c.b16 %v6426, %v6424
    %v6523 = vpack.c.b16 %v6427, %v6425
    %v6524 = vpack.c.b16 %v6430, %v6428
    %v6525 = vpack.c.b16 %v6431, %v6429
    %v6526 = vpack.c.b16 %v6434, %v6432
    %v6527 = vpack.c.b16 %v6435, %v6433
    %v6528 = vpack.c.b16 %v6438, %v6436
    %v6529 = vpack.c.b16 %v6439, %v6437
    %v6530 = vpack.c.b16 %v6442, %v6440
    %v6531 = vpack.c.b16 %v6443, %v6441
    %v6532 = vpack.c.b16 %v6446, %v6444
    %v6533 = vpack.c.b16 %v6447, %v6445
    %v6534 = vpack.c.b16 %v6450, %v6448
    %v6535 = vpack.c.b16 %v6451, %v6449
    %v6536 = vpack.c.b16 %v6454, %v6452
    %v6537 = vpack.c.b16 %v6455, %v6453
    %v6538 = vpack.c.b16 %v6458, %v6456
    %v6539 = vpack.c.b16 %v6459, %v6457
    %6620 = vmatprep.subr.bf16.mxu0 %v6475
    %6621 = vmatpush1.bf16.msra.mxu0 %v6474
    %6622 = vmatprep.subr.bf16.mxu0 %v6473
    %6623 = vmatpush1.bf16.msra.mxu0 %v6472
    %6624 = vmatprep.subr.bf16.mxu0 %v6471
    %6625 = vmatpush1.bf16.msra.mxu0 %v6470
    %6626 = vmatprep.subr.bf16.mxu0 %v6469
    %6627 = vmatpush1.bf16.msra.mxu0 %v6468
    %6628 = vmatprep.subr.bf16.mxu0 %v6467
    %6629 = vmatpush1.bf16.msra.mxu0 %v6466
    %6630 = vmatprep.subr.bf16.mxu0 %v6465
    %6631 = vmatpush1.bf16.msra.mxu0 %v6464
    %6632 = vmatprep.subr.bf16.mxu0 %v6463
    %6633 = vmatpush1.bf16.msra.mxu0 %v6462
    %6634 = vmatprep.subr.bf16.mxu0 %v6461
    %6635 = vmatpush1.bf16.msra.mxu0 %v6460
    %6636 = vmatprep.subr.bf16.mxu0 %v6491
    %6637 = vmatpush2.bf16.msra.mxu0 %v6490
    %6638 = vmatprep.subr.bf16.mxu0 %v6489
    %6639 = vmatpush2.bf16.msra.mxu0 %v6488
    %6640 = vmatprep.subr.bf16.mxu0 %v6487
    %6641 = vmatpush2.bf16.msra.mxu0 %v6486
    %6642 = vmatprep.subr.bf16.mxu0 %v6485
    %6643 = vmatpush2.bf16.msra.mxu0 %v6484
    %6644 = vmatprep.subr.bf16.mxu0 %v6483
    %6645 = vmatpush2.bf16.msra.mxu0 %v6482
    %6646 = vmatprep.subr.bf16.mxu0 %v6481
    %6647 = vmatpush2.bf16.msra.mxu0 %v6480
    %6648 = vmatprep.subr.bf16.mxu0 %v6479
    %6649 = vmatpush2.bf16.msra.mxu0 %v6478
    %6650 = vmatprep.subr.bf16.mxu0 %v6477
    %6651 = vmatpush2.bf16.msra.mxu0 %v6476
    %6652 = vmatprep.mubr.bf16.mxu0 %v5513
    %6653 = vmatmul.mubr.bf16.gmra.mxu0 %v5512
    %v6654 = vpop.f32.mrf.mxu0
    %v6655 = vadd.f32 0.0, %v6654
    %v6656 = vpop.f32.mrf.mxu0
    %v6657 = vadd.f32 0.0, %v6656
    %v6658 = vpop.f32.mrf.mxu0
    %v6659 = vadd.f32 0.0, %v6658
    %v6660 = vpop.f32.mrf.mxu0
    %v6661 = vadd.f32 0.0, %v6660
    %6662 = vdwg.mxu0
    %6663 = vmatprep.subr.bf16.mxu0 %v6507
    %6664 = vmatpush1.bf16.msra.mxu0 %v6506
    %6665 = vmatprep.subr.bf16.mxu0 %v6505
    %6666 = vmatpush1.bf16.msra.mxu0 %v6504
    %6667 = vmatprep.subr.bf16.mxu0 %v6503
    %6668 = vmatpush1.bf16.msra.mxu0 %v6502
    %6669 = vmatprep.subr.bf16.mxu0 %v6501
    %6670 = vmatpush1.bf16.msra.mxu0 %v6500
    %6671 = vmatprep.subr.bf16.mxu0 %v6499
    %6672 = vmatpush1.bf16.msra.mxu0 %v6498
    %6673 = vmatprep.subr.bf16.mxu0 %v6497
    %6674 = vmatpush1.bf16.msra.mxu0 %v6496
    %6675 = vmatprep.subr.bf16.mxu0 %v6495
    %6676 = vmatpush1.bf16.msra.mxu0 %v6494
    %6677 = vmatprep.subr.bf16.mxu0 %v6493
    %6678 = vmatpush1.bf16.msra.mxu0 %v6492
    %6679 = vmatprep.subr.bf16.mxu0 %v6523
    %6680 = vmatpush2.bf16.msra.mxu0 %v6522
    %6681 = vmatprep.subr.bf16.mxu0 %v6521
    %6682 = vmatpush2.bf16.msra.mxu0 %v6520
    %6683 = vmatprep.subr.bf16.mxu0 %v6519
    %6684 = vmatpush2.bf16.msra.mxu0 %v6518
    %6685 = vmatprep.subr.bf16.mxu0 %v6517
    %6686 = vmatpush2.bf16.msra.mxu0 %v6516
    %6687 = vmatprep.subr.bf16.mxu0 %v6515
    %6688 = vmatpush2.bf16.msra.mxu0 %v6514
    %6689 = vmatprep.subr.bf16.mxu0 %v6513
    %6690 = vmatpush2.bf16.msra.mxu0 %v6512
    %6691 = vmatprep.subr.bf16.mxu0 %v6511
    %6692 = vmatpush2.bf16.msra.mxu0 %v6510
    %6693 = vmatprep.subr.bf16.mxu0 %v6509
    %6694 = vmatpush2.bf16.msra.mxu0 %v6508
    %6695 = vmatprep.mubr.bf16.mxu0 %v5515
    %6696 = vmatmul.mubr.bf16.gmra.mxu0 %v5514
    %v6697 = vpop.f32.mrf.mxu0
    %v6698 = vadd.f32 %v6655, %v6697
    %v6699 = vpop.f32.mrf.mxu0
    %v6700 = vadd.f32 %v6657, %v6699
    %v6701 = vpop.f32.mrf.mxu0
    %v6702 = vadd.f32 %v6659, %v6701
    %v6703 = vpop.f32.mrf.mxu0
    %v6704 = vadd.f32 %v6661, %v6703
    %6705 = vdwg.mxu0
    %6706 = vmatprep.subr.bf16.mxu0 %v6539
    %6707 = vmatpush1.bf16.msra.mxu0 %v6538
    %6708 = vmatprep.subr.bf16.mxu0 %v6537
    %6709 = vmatpush1.bf16.msra.mxu0 %v6536
    %6710 = vmatprep.subr.bf16.mxu0 %v6535
    %6711 = vmatpush1.bf16.msra.mxu0 %v6534
    %6712 = vmatprep.subr.bf16.mxu0 %v6533
    %6713 = vmatpush1.bf16.msra.mxu0 %v6532
    %6714 = vmatprep.subr.bf16.mxu0 %v6531
    %6715 = vmatpush1.bf16.msra.mxu0 %v6530
    %6716 = vmatprep.subr.bf16.mxu0 %v6529
    %6717 = vmatpush1.bf16.msra.mxu0 %v6528
    %6718 = vmatprep.subr.bf16.mxu0 %v6527
    %6719 = vmatpush1.bf16.msra.mxu0 %v6526
    %6720 = vmatprep.subr.bf16.mxu0 %v6525
    %6721 = vmatpush1.bf16.msra.mxu0 %v6524
    %6722 = vmatprep.subr.bf16.mxu0 0
    %6723 = vmatpush2.bf16.msra.mxu0 0
    %6724 = vmatprep.subr.bf16.mxu0 0
    %6725 = vmatpush2.bf16.msra.mxu0 0
    %6726 = vmatprep.subr.bf16.mxu0 0
    %6727 = vmatpush2.bf16.msra.mxu0 0
    %6728 = vmatprep.subr.bf16.mxu0 0
    %6729 = vmatpush2.bf16.msra.mxu0 0
    %6730 = vmatprep.subr.bf16.mxu0 0
    %6731 = vmatpush2.bf16.msra.mxu0 0
    %6732 = vmatprep.subr.bf16.mxu0 0
    %6733 = vmatpush2.bf16.msra.mxu0 0
    %6734 = vmatprep.subr.bf16.mxu0 0
    %6735 = vmatpush2.bf16.msra.mxu0 0
    %6736 = vmatprep.subr.bf16.mxu0 0
    %6737 = vmatpush2.bf16.msra.mxu0 0
    %6738 = vmatprep.mubr.bf16.mxu0 0
    %6739 = vmatmul.mubr.bf16.gmra.mxu0 %v5516
    %v6740 = vpop.f32.mrf.mxu0
    %v6741 = vadd.f32 %v6698, %v6740
    %v6742 = vpop.f32.mrf.mxu0
    %v6743 = vadd.f32 %v6700, %v6742
    %v6744 = vpop.f32.mrf.mxu0
    %v6745 = vadd.f32 %v6702, %v6744
    %v6746 = vpop.f32.mrf.mxu0
    %v6747 = vadd.f32 %v6704, %v6746
    %6748 = vdwg.mxu0
    %v6749 = vmul.f32 %v6741, %v6131
    %v6750 = vmul.f32 %v6743, %v6132
    %v6751 = vmul.f32 %v6745, %v6133
    %v6752 = vmul.f32 %v6747, %v6134
    %v6753 = vadd.f32 %v6135, %v6749
    %v6754 = vadd.f32 %v6136, %v6750
    %v6755 = vadd.f32 %v6137, %v6751
    %v6756 = vadd.f32 %v6138, %v6752
    %s6757 = scalar_lea.vmem %s13, 1280
    %v6758 = vld [vmem:[%s6757] sm:$0xff]
    %v6759 = vld [vmem:[%s6757 + $0x8] sm:$0xff]
    %v6760 = vld [vmem:[%s6757 + $0x10] sm:$0xff]
    %v6761 = vld [vmem:[%s6757 + $0x18] sm:$0xff]
    %v6762 = vld [vmem:[%s6757 + $0x20] sm:$0xff]
    %v6763 = vld [vmem:[%s6757 + $0x28] sm:$0xff]
    %v6764 = vld [vmem:[%s6757 + $0x30] sm:$0xff]
    %v6765 = vld [vmem:[%s6757 + $0x38] sm:$0xff]
    %v6766 = vld [vmem:[%s6757 + $0x40] sm:$0xff]
    %v6767 = vld [vmem:[%s6757 + $0x48] sm:$0xff]
    %v6768 = vld [vmem:[%s6757 + $0x50] sm:$0xff]
    %v6769 = vld [vmem:[%s6757 + $0x58] sm:$0xff]
    %v6770 = vld [vmem:[%s6757 + $0x60] sm:$0xff]
    %v6771 = vld [vmem:[%s6757 + $0x68] sm:$0xff]
    %v6772 = vld [vmem:[%s6757 + $0x70] sm:$0xff]
    %v6773 = vld [vmem:[%s6757 + $0x78] sm:$0xff]
    %v6774 = vld [vmem:[%s6757 + $0x80] sm:$0xff]
    %v6775 = vld [vmem:[%s6757 + $0x88] sm:$0xff]
    %v6776 = vld [vmem:[%s6757 + $0x90] sm:$0xff]
    %v6777 = vld [vmem:[%s6757 + $0x98] sm:$0xff]
    %v6778 = vld [vmem:[%s6757 + $0xa0] sm:$0xff]
    %v6779 = vld [vmem:[%s6757 + $0xa8] sm:$0xff]
    %v6780 = vld [vmem:[%s6757 + $0xb0] sm:$0xff]
    %v6781 = vld [vmem:[%s6757 + $0xb8] sm:$0xff]
    %v6782 = vld [vmem:[%s6757 + $0xc0] sm:$0xff]
    %v6783 = vld [vmem:[%s6757 + $0xc8] sm:$0xff]
    %v6784 = vld [vmem:[%s6757 + $0xd0] sm:$0xff]
    %v6785 = vld [vmem:[%s6757 + $0xd8] sm:$0xff]
    %v6786 = vld [vmem:[%s6757 + $0xe0] sm:$0xff]
    %v6787 = vld [vmem:[%s6757 + $0xe8] sm:$0xff]
    %v6788 = vld [vmem:[%s6757 + $0xf0] sm:$0xff]
    %v6789 = vld [vmem:[%s6757 + $0xf8] sm:$0xff]
    %v6790 = vld [vmem:[%s6757 + $0x100] sm:$0xff]
    %v6791 = vld [vmem:[%s6757 + $0x108] sm:$0xff]
    %v6792 = vld [vmem:[%s6757 + $0x110] sm:$0xff]
    %v6793 = vld [vmem:[%s6757 + $0x118] sm:$0xff]
    %v6794 = vld [vmem:[%s6757 + $0x120] sm:$0xff]
    %v6795 = vld [vmem:[%s6757 + $0x128] sm:$0xff]
    %v6796 = vld [vmem:[%s6757 + $0x130] sm:$0xff]
    %v6797 = vld [vmem:[%s6757 + $0x138] sm:$0xff]
    %v6798 = vld [vmem:[%s6757 + $0x140] sm:$0xff]
    %v6799 = vld [vmem:[%s6757 + $0x148] sm:$0xff]
    %v6800 = vld [vmem:[%s6757 + $0x150] sm:$0xff]
    %v6801 = vld [vmem:[%s6757 + $0x158] sm:$0xff]
    %v6802 = vld [vmem:[%s6757 + $0x160] sm:$0xff]
    %v6803 = vld [vmem:[%s6757 + $0x168] sm:$0xff]
    %v6804 = vld [vmem:[%s6757 + $0x170] sm:$0xff]
    %v6805 = vld [vmem:[%s6757 + $0x178] sm:$0xff]
    %v6806 = vld [vmem:[%s6757 + $0x180] sm:$0xff]
    %v6807 = vld [vmem:[%s6757 + $0x188] sm:$0xff]
    %v6808 = vld [vmem:[%s6757 + $0x190] sm:$0xff]
    %v6809 = vld [vmem:[%s6757 + $0x198] sm:$0xff]
    %v6810 = vld [vmem:[%s6757 + $0x1a0] sm:$0xff]
    %v6811 = vld [vmem:[%s6757 + $0x1a8] sm:$0xff]
    %v6812 = vld [vmem:[%s6757 + $0x1b0] sm:$0xff]
    %v6813 = vld [vmem:[%s6757 + $0x1b8] sm:$0xff]
    %v6814 = vld [vmem:[%s6757 + $0x1c0] sm:$0xff]
    %v6815 = vld [vmem:[%s6757 + $0x1c8] sm:$0xff]
    %v6816 = vld [vmem:[%s6757 + $0x1d0] sm:$0xff]
    %v6817 = vld [vmem:[%s6757 + $0x1d8] sm:$0xff]
    %v6818 = vld [vmem:[%s6757 + $0x1e0] sm:$0xff]
    %v6819 = vld [vmem:[%s6757 + $0x1e8] sm:$0xff]
    %v6820 = vld [vmem:[%s6757 + $0x1f0] sm:$0xff]
    %v6821 = vld [vmem:[%s6757 + $0x1f8] sm:$0xff]
    %v6822 = vld [vmem:[%s6757 + $0x200] sm:$0xff]
    %v6823 = vld [vmem:[%s6757 + $0x208] sm:$0xff]
    %v6824 = vld [vmem:[%s6757 + $0x210] sm:$0xff]
    %v6825 = vld [vmem:[%s6757 + $0x218] sm:$0xff]
    %v6826 = vld [vmem:[%s6757 + $0x220] sm:$0xff]
    %v6827 = vld [vmem:[%s6757 + $0x228] sm:$0xff]
    %v6828 = vld [vmem:[%s6757 + $0x230] sm:$0xff]
    %v6829 = vld [vmem:[%s6757 + $0x238] sm:$0xff]
    %v6830 = vld [vmem:[%s6757 + $0x240] sm:$0xff]
    %v6831 = vld [vmem:[%s6757 + $0x248] sm:$0xff]
    %v6832 = vld [vmem:[%s6757 + $0x250] sm:$0xff]
    %v6833 = vld [vmem:[%s6757 + $0x258] sm:$0xff]
    %v6834 = vld [vmem:[%s6757 + $0x260] sm:$0xff]
    %v6835 = vld [vmem:[%s6757 + $0x268] sm:$0xff]
    %v6836 = vld [vmem:[%s6757 + $0x270] sm:$0xff]
    %v6837 = vld [vmem:[%s6757 + $0x278] sm:$0xff]
    %v6918 = vunpack.c.l.b16 %v6758
    %v6919 = vunpack.c.h.b16 %v6758
    %v6920 = vunpack.c.l.b16 %v6759
    %v6921 = vunpack.c.h.b16 %v6759
    %v6922 = vunpack.c.l.b16 %v6760
    %v6923 = vunpack.c.h.b16 %v6760
    %v6924 = vunpack.c.l.b16 %v6761
    %v6925 = vunpack.c.h.b16 %v6761
    %v6926 = vunpack.c.l.b16 %v6762
    %v6927 = vunpack.c.h.b16 %v6762
    %v6928 = vunpack.c.l.b16 %v6763
    %v6929 = vunpack.c.h.b16 %v6763
    %v6930 = vunpack.c.l.b16 %v6764
    %v6931 = vunpack.c.h.b16 %v6764
    %v6932 = vunpack.c.l.b16 %v6765
    %v6933 = vunpack.c.h.b16 %v6765
    %v6934 = vunpack.c.l.b16 %v6766
    %v6935 = vunpack.c.h.b16 %v6766
    %v6936 = vunpack.c.l.b16 %v6767
    %v6937 = vunpack.c.h.b16 %v6767
    %v6938 = vunpack.c.l.b16 %v6768
    %v6939 = vunpack.c.h.b16 %v6768
    %v6940 = vunpack.c.l.b16 %v6769
    %v6941 = vunpack.c.h.b16 %v6769
    %v6942 = vunpack.c.l.b16 %v6770
    %v6943 = vunpack.c.h.b16 %v6770
    %v6944 = vunpack.c.l.b16 %v6771
    %v6945 = vunpack.c.h.b16 %v6771
    %v6946 = vunpack.c.l.b16 %v6772
    %v6947 = vunpack.c.h.b16 %v6772
    %v6948 = vunpack.c.l.b16 %v6773
    %v6949 = vunpack.c.h.b16 %v6773
    %v6950 = vunpack.c.l.b16 %v6774
    %v6951 = vunpack.c.h.b16 %v6774
    %v6952 = vunpack.c.l.b16 %v6775
    %v6953 = vunpack.c.h.b16 %v6775
    %v6954 = vunpack.c.l.b16 %v6776
    %v6955 = vunpack.c.h.b16 %v6776
    %v6956 = vunpack.c.l.b16 %v6777
    %v6957 = vunpack.c.h.b16 %v6777
    %v6958 = vunpack.c.l.b16 %v6778
    %v6959 = vunpack.c.h.b16 %v6778
    %v6960 = vunpack.c.l.b16 %v6779
    %v6961 = vunpack.c.h.b16 %v6779
    %v6962 = vunpack.c.l.b16 %v6780
    %v6963 = vunpack.c.h.b16 %v6780
    %v6964 = vunpack.c.l.b16 %v6781
    %v6965 = vunpack.c.h.b16 %v6781
    %v6966 = vunpack.c.l.b16 %v6782
    %v6967 = vunpack.c.h.b16 %v6782
    %v6968 = vunpack.c.l.b16 %v6783
    %v6969 = vunpack.c.h.b16 %v6783
    %v6970 = vunpack.c.l.b16 %v6784
    %v6971 = vunpack.c.h.b16 %v6784
    %v6972 = vunpack.c.l.b16 %v6785
    %v6973 = vunpack.c.h.b16 %v6785
    %v6974 = vunpack.c.l.b16 %v6786
    %v6975 = vunpack.c.h.b16 %v6786
    %v6976 = vunpack.c.l.b16 %v6787
    %v6977 = vunpack.c.h.b16 %v6787
    %v6978 = vunpack.c.l.b16 %v6788
    %v6979 = vunpack.c.h.b16 %v6788
    %v6980 = vunpack.c.l.b16 %v6789
    %v6981 = vunpack.c.h.b16 %v6789
    %v6982 = vunpack.c.l.b16 %v6790
    %v6983 = vunpack.c.h.b16 %v6790
    %v6984 = vunpack.c.l.b16 %v6791
    %v6985 = vunpack.c.h.b16 %v6791
    %v6986 = vunpack.c.l.b16 %v6792
    %v6987 = vunpack.c.h.b16 %v6792
    %v6988 = vunpack.c.l.b16 %v6793
    %v6989 = vunpack.c.h.b16 %v6793
    %v6990 = vunpack.c.l.b16 %v6794
    %v6991 = vunpack.c.h.b16 %v6794
    %v6992 = vunpack.c.l.b16 %v6795
    %v6993 = vunpack.c.h.b16 %v6795
    %v6994 = vunpack.c.l.b16 %v6796
    %v6995 = vunpack.c.h.b16 %v6796
    %v6996 = vunpack.c.l.b16 %v6797
    %v6997 = vunpack.c.h.b16 %v6797
    %v6998 = vunpack.c.l.b16 %v6798
    %v6999 = vunpack.c.h.b16 %v6798
    %v7000 = vunpack.c.l.b16 %v6799
    %v7001 = vunpack.c.h.b16 %v6799
    %v7002 = vunpack.c.l.b16 %v6800
    %v7003 = vunpack.c.h.b16 %v6800
    %v7004 = vunpack.c.l.b16 %v6801
    %v7005 = vunpack.c.h.b16 %v6801
    %v7006 = vunpack.c.l.b16 %v6802
    %v7007 = vunpack.c.h.b16 %v6802
    %v7008 = vunpack.c.l.b16 %v6803
    %v7009 = vunpack.c.h.b16 %v6803
    %v7010 = vunpack.c.l.b16 %v6804
    %v7011 = vunpack.c.h.b16 %v6804
    %v7012 = vunpack.c.l.b16 %v6805
    %v7013 = vunpack.c.h.b16 %v6805
    %v7014 = vunpack.c.l.b16 %v6806
    %v7015 = vunpack.c.h.b16 %v6806
    %v7016 = vunpack.c.l.b16 %v6807
    %v7017 = vunpack.c.h.b16 %v6807
    %v7018 = vunpack.c.l.b16 %v6808
    %v7019 = vunpack.c.h.b16 %v6808
    %v7020 = vunpack.c.l.b16 %v6809
    %v7021 = vunpack.c.h.b16 %v6809
    %v7022 = vunpack.c.l.b16 %v6810
    %v7023 = vunpack.c.h.b16 %v6810
    %v7024 = vunpack.c.l.b16 %v6811
    %v7025 = vunpack.c.h.b16 %v6811
    %v7026 = vunpack.c.l.b16 %v6812
    %v7027 = vunpack.c.h.b16 %v6812
    %v7028 = vunpack.c.l.b16 %v6813
    %v7029 = vunpack.c.h.b16 %v6813
    %v7030 = vunpack.c.l.b16 %v6814
    %v7031 = vunpack.c.h.b16 %v6814
    %v7032 = vunpack.c.l.b16 %v6815
    %v7033 = vunpack.c.h.b16 %v6815
    %v7034 = vunpack.c.l.b16 %v6816
    %v7035 = vunpack.c.h.b16 %v6816
    %v7036 = vunpack.c.l.b16 %v6817
    %v7037 = vunpack.c.h.b16 %v6817
    %v7038 = vunpack.c.l.b16 %v6818
    %v7039 = vunpack.c.h.b16 %v6818
    %v7040 = vunpack.c.l.b16 %v6819
    %v7041 = vunpack.c.h.b16 %v6819
    %v7042 = vunpack.c.l.b16 %v6820
    %v7043 = vunpack.c.h.b16 %v6820
    %v7044 = vunpack.c.l.b16 %v6821
    %v7045 = vunpack.c.h.b16 %v6821
    %v7046 = vunpack.c.l.b16 %v6822
    %v7047 = vunpack.c.h.b16 %v6822
    %v7048 = vunpack.c.l.b16 %v6823
    %v7049 = vunpack.c.h.b16 %v6823
    %v7050 = vunpack.c.l.b16 %v6824
    %v7051 = vunpack.c.h.b16 %v6824
    %v7052 = vunpack.c.l.b16 %v6825
    %v7053 = vunpack.c.h.b16 %v6825
    %v7054 = vunpack.c.l.b16 %v6826
    %v7055 = vunpack.c.h.b16 %v6826
    %v7056 = vunpack.c.l.b16 %v6827
    %v7057 = vunpack.c.h.b16 %v6827
    %v7058 = vunpack.c.l.b16 %v6828
    %v7059 = vunpack.c.h.b16 %v6828
    %v7060 = vunpack.c.l.b16 %v6829
    %v7061 = vunpack.c.h.b16 %v6829
    %v7062 = vunpack.c.l.b16 %v6830
    %v7063 = vunpack.c.h.b16 %v6830
    %v7064 = vunpack.c.l.b16 %v6831
    %v7065 = vunpack.c.h.b16 %v6831
    %v7066 = vunpack.c.l.b16 %v6832
    %v7067 = vunpack.c.h.b16 %v6832
    %v7068 = vunpack.c.l.b16 %v6833
    %v7069 = vunpack.c.h.b16 %v6833
    %v7070 = vunpack.c.l.b16 %v6834
    %v7071 = vunpack.c.h.b16 %v6834
    %v7072 = vunpack.c.l.b16 %v6835
    %v7073 = vunpack.c.h.b16 %v6835
    %v7074 = vunpack.c.l.b16 %v6836
    %v7075 = vunpack.c.h.b16 %v6836
    %v7076 = vunpack.c.l.b16 %v6837
    %v7077 = vunpack.c.h.b16 %v6837
    %v7078 = vpack.c.b16 %v6920, %v6918
    %v7079 = vpack.c.b16 %v6921, %v6919
    %v7080 = vpack.c.b16 %v6924, %v6922
    %v7081 = vpack.c.b16 %v6925, %v6923
    %v7082 = vpack.c.b16 %v6928, %v6926
    %v7083 = vpack.c.b16 %v6929, %v6927
    %v7084 = vpack.c.b16 %v6932, %v6930
    %v7085 = vpack.c.b16 %v6933, %v6931
    %v7086 = vpack.c.b16 %v6936, %v6934
    %v7087 = vpack.c.b16 %v6937, %v6935
    %v7088 = vpack.c.b16 %v6940, %v6938
    %v7089 = vpack.c.b16 %v6941, %v6939
    %v7090 = vpack.c.b16 %v6944, %v6942
    %v7091 = vpack.c.b16 %v6945, %v6943
    %v7092 = vpack.c.b16 %v6948, %v6946
    %v7093 = vpack.c.b16 %v6949, %v6947
    %v7094 = vpack.c.b16 %v6952, %v6950
    %v7095 = vpack.c.b16 %v6953, %v6951
    %v7096 = vpack.c.b16 %v6956, %v6954
    %v7097 = vpack.c.b16 %v6957, %v6955
    %v7098 = vpack.c.b16 %v6960, %v6958
    %v7099 = vpack.c.b16 %v6961, %v6959
    %v7100 = vpack.c.b16 %v6964, %v6962
    %v7101 = vpack.c.b16 %v6965, %v6963
    %v7102 = vpack.c.b16 %v6968, %v6966
    %v7103 = vpack.c.b16 %v6969, %v6967
    %v7104 = vpack.c.b16 %v6972, %v6970
    %v7105 = vpack.c.b16 %v6973, %v6971
    %v7106 = vpack.c.b16 %v6976, %v6974
    %v7107 = vpack.c.b16 %v6977, %v6975
    %v7108 = vpack.c.b16 %v6980, %v6978
    %v7109 = vpack.c.b16 %v6981, %v6979
    %v7110 = vpack.c.b16 %v6984, %v6982
    %v7111 = vpack.c.b16 %v6985, %v6983
    %v7112 = vpack.c.b16 %v6988, %v6986
    %v7113 = vpack.c.b16 %v6989, %v6987
    %v7114 = vpack.c.b16 %v6992, %v6990
    %v7115 = vpack.c.b16 %v6993, %v6991
    %v7116 = vpack.c.b16 %v6996, %v6994
    %v7117 = vpack.c.b16 %v6997, %v6995
    %v7118 = vpack.c.b16 %v7000, %v6998
    %v7119 = vpack.c.b16 %v7001, %v6999
    %v7120 = vpack.c.b16 %v7004, %v7002
    %v7121 = vpack.c.b16 %v7005, %v7003
    %v7122 = vpack.c.b16 %v7008, %v7006
    %v7123 = vpack.c.b16 %v7009, %v7007
    %v7124 = vpack.c.b16 %v7012, %v7010
    %v7125 = vpack.c.b16 %v7013, %v7011
    %v7126 = vpack.c.b16 %v7016, %v7014
    %v7127 = vpack.c.b16 %v7017, %v7015
    %v7128 = vpack.c.b16 %v7020, %v7018
    %v7129 = vpack.c.b16 %v7021, %v7019
    %v7130 = vpack.c.b16 %v7024, %v7022
    %v7131 = vpack.c.b16 %v7025, %v7023
    %v7132 = vpack.c.b16 %v7028, %v7026
    %v7133 = vpack.c.b16 %v7029, %v7027
    %v7134 = vpack.c.b16 %v7032, %v7030
    %v7135 = vpack.c.b16 %v7033, %v7031
    %v7136 = vpack.c.b16 %v7036, %v7034
    %v7137 = vpack.c.b16 %v7037, %v7035
    %v7138 = vpack.c.b16 %v7040, %v7038
    %v7139 = vpack.c.b16 %v7041, %v7039
    %v7140 = vpack.c.b16 %v7044, %v7042
    %v7141 = vpack.c.b16 %v7045, %v7043
    %v7142 = vpack.c.b16 %v7048, %v7046
    %v7143 = vpack.c.b16 %v7049, %v7047
    %v7144 = vpack.c.b16 %v7052, %v7050
    %v7145 = vpack.c.b16 %v7053, %v7051
    %v7146 = vpack.c.b16 %v7056, %v7054
    %v7147 = vpack.c.b16 %v7057, %v7055
    %v7148 = vpack.c.b16 %v7060, %v7058
    %v7149 = vpack.c.b16 %v7061, %v7059
    %v7150 = vpack.c.b16 %v7064, %v7062
    %v7151 = vpack.c.b16 %v7065, %v7063
    %v7152 = vpack.c.b16 %v7068, %v7066
    %v7153 = vpack.c.b16 %v7069, %v7067
    %v7154 = vpack.c.b16 %v7072, %v7070
    %v7155 = vpack.c.b16 %v7073, %v7071
    %v7156 = vpack.c.b16 %v7076, %v7074
    %v7157 = vpack.c.b16 %v7077, %v7075
    %7238 = vmatprep.subr.bf16.mxu0 %v7093
    %7239 = vmatpush1.bf16.msra.mxu0 %v7092
    %7240 = vmatprep.subr.bf16.mxu0 %v7091
    %7241 = vmatpush1.bf16.msra.mxu0 %v7090
    %7242 = vmatprep.subr.bf16.mxu0 %v7089
    %7243 = vmatpush1.bf16.msra.mxu0 %v7088
    %7244 = vmatprep.subr.bf16.mxu0 %v7087
    %7245 = vmatpush1.bf16.msra.mxu0 %v7086
    %7246 = vmatprep.subr.bf16.mxu0 %v7085
    %7247 = vmatpush1.bf16.msra.mxu0 %v7084
    %7248 = vmatprep.subr.bf16.mxu0 %v7083
    %7249 = vmatpush1.bf16.msra.mxu0 %v7082
    %7250 = vmatprep.subr.bf16.mxu0 %v7081
    %7251 = vmatpush1.bf16.msra.mxu0 %v7080
    %7252 = vmatprep.subr.bf16.mxu0 %v7079
    %7253 = vmatpush1.bf16.msra.mxu0 %v7078
    %7254 = vmatprep.subr.bf16.mxu0 %v7109
    %7255 = vmatpush2.bf16.msra.mxu0 %v7108
    %7256 = vmatprep.subr.bf16.mxu0 %v7107
    %7257 = vmatpush2.bf16.msra.mxu0 %v7106
    %7258 = vmatprep.subr.bf16.mxu0 %v7105
    %7259 = vmatpush2.bf16.msra.mxu0 %v7104
    %7260 = vmatprep.subr.bf16.mxu0 %v7103
    %7261 = vmatpush2.bf16.msra.mxu0 %v7102
    %7262 = vmatprep.subr.bf16.mxu0 %v7101
    %7263 = vmatpush2.bf16.msra.mxu0 %v7100
    %7264 = vmatprep.subr.bf16.mxu0 %v7099
    %7265 = vmatpush2.bf16.msra.mxu0 %v7098
    %7266 = vmatprep.subr.bf16.mxu0 %v7097
    %7267 = vmatpush2.bf16.msra.mxu0 %v7096
    %7268 = vmatprep.subr.bf16.mxu0 %v7095
    %7269 = vmatpush2.bf16.msra.mxu0 %v7094
    %7270 = vmatprep.mubr.bf16.mxu0 %v5518
    %7271 = vmatmul.mubr.bf16.gmra.mxu0 %v5517
    %v7272 = vpop.f32.mrf.mxu0
    %v7273 = vadd.f32 0.0, %v7272
    %v7274 = vpop.f32.mrf.mxu0
    %v7275 = vadd.f32 0.0, %v7274
    %v7276 = vpop.f32.mrf.mxu0
    %v7277 = vadd.f32 0.0, %v7276
    %v7278 = vpop.f32.mrf.mxu0
    %v7279 = vadd.f32 0.0, %v7278
    %7280 = vdwg.mxu0
    %7281 = vmatprep.subr.bf16.mxu0 %v7125
    %7282 = vmatpush1.bf16.msra.mxu0 %v7124
    %7283 = vmatprep.subr.bf16.mxu0 %v7123
    %7284 = vmatpush1.bf16.msra.mxu0 %v7122
    %7285 = vmatprep.subr.bf16.mxu0 %v7121
    %7286 = vmatpush1.bf16.msra.mxu0 %v7120
    %7287 = vmatprep.subr.bf16.mxu0 %v7119
    %7288 = vmatpush1.bf16.msra.mxu0 %v7118
    %7289 = vmatprep.subr.bf16.mxu0 %v7117
    %7290 = vmatpush1.bf16.msra.mxu0 %v7116
    %7291 = vmatprep.subr.bf16.mxu0 %v7115
    %7292 = vmatpush1.bf16.msra.mxu0 %v7114
    %7293 = vmatprep.subr.bf16.mxu0 %v7113
    %7294 = vmatpush1.bf16.msra.mxu0 %v7112
    %7295 = vmatprep.subr.bf16.mxu0 %v7111
    %7296 = vmatpush1.bf16.msra.mxu0 %v7110
    %7297 = vmatprep.subr.bf16.mxu0 %v7141
    %7298 = vmatpush2.bf16.msra.mxu0 %v7140
    %7299 = vmatprep.subr.bf16.mxu0 %v7139
    %7300 = vmatpush2.bf16.msra.mxu0 %v7138
    %7301 = vmatprep.subr.bf16.mxu0 %v7137
    %7302 = vmatpush2.bf16.msra.mxu0 %v7136
    %7303 = vmatprep.subr.bf16.mxu0 %v7135
    %7304 = vmatpush2.bf16.msra.mxu0 %v7134
    %7305 = vmatprep.subr.bf16.mxu0 %v7133
    %7306 = vmatpush2.bf16.msra.mxu0 %v7132
    %7307 = vmatprep.subr.bf16.mxu0 %v7131
    %7308 = vmatpush2.bf16.msra.mxu0 %v7130
    %7309 = vmatprep.subr.bf16.mxu0 %v7129
    %7310 = vmatpush2.bf16.msra.mxu0 %v7128
    %7311 = vmatprep.subr.bf16.mxu0 %v7127
    %7312 = vmatpush2.bf16.msra.mxu0 %v7126
    %7313 = vmatprep.mubr.bf16.mxu0 %v5520
    %7314 = vmatmul.mubr.bf16.gmra.mxu0 %v5519
    %v7315 = vpop.f32.mrf.mxu0
    %v7316 = vadd.f32 %v7273, %v7315
    %v7317 = vpop.f32.mrf.mxu0
    %v7318 = vadd.f32 %v7275, %v7317
    %v7319 = vpop.f32.mrf.mxu0
    %v7320 = vadd.f32 %v7277, %v7319
    %v7321 = vpop.f32.mrf.mxu0
    %v7322 = vadd.f32 %v7279, %v7321
    %7323 = vdwg.mxu0
    %7324 = vmatprep.subr.bf16.mxu0 %v7157
    %7325 = vmatpush1.bf16.msra.mxu0 %v7156
    %7326 = vmatprep.subr.bf16.mxu0 %v7155
    %7327 = vmatpush1.bf16.msra.mxu0 %v7154
    %7328 = vmatprep.subr.bf16.mxu0 %v7153
    %7329 = vmatpush1.bf16.msra.mxu0 %v7152
    %7330 = vmatprep.subr.bf16.mxu0 %v7151
    %7331 = vmatpush1.bf16.msra.mxu0 %v7150
    %7332 = vmatprep.subr.bf16.mxu0 %v7149
    %7333 = vmatpush1.bf16.msra.mxu0 %v7148
    %7334 = vmatprep.subr.bf16.mxu0 %v7147
    %7335 = vmatpush1.bf16.msra.mxu0 %v7146
    %7336 = vmatprep.subr.bf16.mxu0 %v7145
    %7337 = vmatpush1.bf16.msra.mxu0 %v7144
    %7338 = vmatprep.subr.bf16.mxu0 %v7143
    %7339 = vmatpush1.bf16.msra.mxu0 %v7142
    %7340 = vmatprep.subr.bf16.mxu0 0
    %7341 = vmatpush2.bf16.msra.mxu0 0
    %7342 = vmatprep.subr.bf16.mxu0 0
    %7343 = vmatpush2.bf16.msra.mxu0 0
    %7344 = vmatprep.subr.bf16.mxu0 0
    %7345 = vmatpush2.bf16.msra.mxu0 0
    %7346 = vmatprep.subr.bf16.mxu0 0
    %7347 = vmatpush2.bf16.msra.mxu0 0
    %7348 = vmatprep.subr.bf16.mxu0 0
    %7349 = vmatpush2.bf16.msra.mxu0 0
    %7350 = vmatprep.subr.bf16.mxu0 0
    %7351 = vmatpush2.bf16.msra.mxu0 0
    %7352 = vmatprep.subr.bf16.mxu0 0
    %7353 = vmatpush2.bf16.msra.mxu0 0
    %7354 = vmatprep.subr.bf16.mxu0 0
    %7355 = vmatpush2.bf16.msra.mxu0 0
    %7356 = vmatprep.mubr.bf16.mxu0 0
    %7357 = vmatmul.mubr.bf16.gmra.mxu0 %v5521
    %v7358 = vpop.f32.mrf.mxu0
    %v7359 = vadd.f32 %v7316, %v7358
    %v7360 = vpop.f32.mrf.mxu0
    %v7361 = vadd.f32 %v7318, %v7360
    %v7362 = vpop.f32.mrf.mxu0
    %v7363 = vadd.f32 %v7320, %v7362
    %v7364 = vpop.f32.mrf.mxu0
    %v7365 = vadd.f32 %v7322, %v7364
    %7366 = vdwg.mxu0
    %v7367 = vmul.f32 %v7359, %v6131
    %v7368 = vmul.f32 %v7361, %v6132
    %v7369 = vmul.f32 %v7363, %v6133
    %v7370 = vmul.f32 %v7365, %v6134
    %v7371 = vadd.f32 %v6753, %v7367
    %v7372 = vadd.f32 %v6754, %v7368
    %v7373 = vadd.f32 %v6755, %v7369
    %v7374 = vadd.f32 %v6756, %v7370
    %v7375 = vld [vmem:[%s15] sm:$0xff]
    %v7376 = vld [vmem:[%s15 + $0x8] sm:$0xff]
    %v7377 = vld [vmem:[%s15 + $0x10] sm:$0xff]
    %v7378 = vld [vmem:[%s15 + $0x18] sm:$0xff]
    %v7379 = vld [vmem:[%s15 + $0x20] sm:$0xff]
    %v7380 = vld [vmem:[%s15 + $0x28] sm:$0xff]
    %v7381 = vld [vmem:[%s15 + $0x30] sm:$0xff]
    %v7382 = vld [vmem:[%s15 + $0x38] sm:$0xff]
    %v7383 = vld [vmem:[%s15 + $0x40] sm:$0xff]
    %v7384 = vld [vmem:[%s15 + $0x48] sm:$0xff]
    %v7385 = vld [vmem:[%s15 + $0x50] sm:$0xff]
    %v7386 = vld [vmem:[%s15 + $0x58] sm:$0xff]
    %v7387 = vld [vmem:[%s15 + $0x60] sm:$0xff]
    %v7388 = vld [vmem:[%s15 + $0x68] sm:$0xff]
    %v7389 = vld [vmem:[%s15 + $0x70] sm:$0xff]
    %v7390 = vld [vmem:[%s15 + $0x78] sm:$0xff]
    %v7391 = vld [vmem:[%s15 + $0x80] sm:$0xff]
    %v7392 = vld [vmem:[%s15 + $0x88] sm:$0xff]
    %v7393 = vld [vmem:[%s15 + $0x90] sm:$0xff]
    %v7394 = vld [vmem:[%s15 + $0x98] sm:$0xff]
    %v7395 = vld [vmem:[%s15 + $0xa0] sm:$0xff]
    %v7396 = vld [vmem:[%s15 + $0xa8] sm:$0xff]
    %v7397 = vld [vmem:[%s15 + $0xb0] sm:$0xff]
    %v7398 = vld [vmem:[%s15 + $0xb8] sm:$0xff]
    %v7399 = vld [vmem:[%s15 + $0xc0] sm:$0xff]
    %v7400 = vld [vmem:[%s15 + $0xc8] sm:$0xff]
    %v7401 = vld [vmem:[%s15 + $0xd0] sm:$0xff]
    %v7402 = vld [vmem:[%s15 + $0xd8] sm:$0xff]
    %v7403 = vld [vmem:[%s15 + $0xe0] sm:$0xff]
    %v7404 = vld [vmem:[%s15 + $0xe8] sm:$0xff]
    %v7405 = vld [vmem:[%s15 + $0xf0] sm:$0xff]
    %v7406 = vld [vmem:[%s15 + $0xf8] sm:$0xff]
    %7407 = vmatprep.subr.mxu0 0.0
    %7408 = vmatpush1.msra.mxu0 %v7390
    %7409 = vmatprep.subr.mxu0 0.0
    %7410 = vmatpush1.msra.mxu0 %v7389
    %7411 = vmatprep.subr.mxu0 0.0
    %7412 = vmatpush1.msra.mxu0 %v7388
    %7413 = vmatprep.subr.mxu0 0.0
    %7414 = vmatpush1.msra.mxu0 %v7387
    %7415 = vmatprep.subr.mxu0 0.0
    %7416 = vmatpush1.msra.mxu0 %v7386
    %7417 = vmatprep.subr.mxu0 0.0
    %7418 = vmatpush1.msra.mxu0 %v7385
    %7419 = vmatprep.subr.mxu0 0.0
    %7420 = vmatpush1.msra.mxu0 %v7384
    %7421 = vmatprep.subr.mxu0 0.0
    %7422 = vmatpush1.msra.mxu0 %v7383
    %7423 = vmatprep.subr.mxu0 0.0
    %7424 = vmatpush1.msra.mxu0 %v7382
    %7425 = vmatprep.subr.mxu0 0.0
    %7426 = vmatpush1.msra.mxu0 %v7381
    %7427 = vmatprep.subr.mxu0 0.0
    %7428 = vmatpush1.msra.mxu0 %v7380
    %7429 = vmatprep.subr.mxu0 0.0
    %7430 = vmatpush1.msra.mxu0 %v7379
    %7431 = vmatprep.subr.mxu0 0.0
    %7432 = vmatpush1.msra.mxu0 %v7378
    %7433 = vmatprep.subr.mxu0 0.0
    %7434 = vmatpush1.msra.mxu0 %v7377
    %7435 = vmatprep.subr.mxu0 0.0
    %7436 = vmatpush1.msra.mxu0 %v7376
    %7437 = vmatprep.subr.mxu0 0.0
    %7438 = vmatpush1.msra.mxu0 %v7375
    %7439 = vmatprep.subr.mxu0 0.0
    %7440 = vmatpush2.msra.mxu0 %v7406
    %7441 = vmatprep.subr.mxu0 0.0
    %7442 = vmatpush2.msra.mxu0 %v7405
    %7443 = vmatprep.subr.mxu0 0.0
    %7444 = vmatpush2.msra.mxu0 %v7404
    %7445 = vmatprep.subr.mxu0 0.0
    %7446 = vmatpush2.msra.mxu0 %v7403
    %7447 = vmatprep.subr.mxu0 0.0
    %7448 = vmatpush2.msra.mxu0 %v7402
    %7449 = vmatprep.subr.mxu0 0.0
    %7450 = vmatpush2.msra.mxu0 %v7401
    %7451 = vmatprep.subr.mxu0 0.0
    %7452 = vmatpush2.msra.mxu0 %v7400
    %7453 = vmatprep.subr.mxu0 0.0
    %7454 = vmatpush2.msra.mxu0 %v7399
    %7455 = vmatprep.subr.mxu0 0.0
    %7456 = vmatpush2.msra.mxu0 %v7398
    %7457 = vmatprep.subr.mxu0 0.0
    %7458 = vmatpush2.msra.mxu0 %v7397
    %7459 = vmatprep.subr.mxu0 0.0
    %7460 = vmatpush2.msra.mxu0 %v7396
    %7461 = vmatprep.subr.mxu0 0.0
    %7462 = vmatpush2.msra.mxu0 %v7395
    %7463 = vmatprep.subr.mxu0 0.0
    %7464 = vmatpush2.msra.mxu0 %v7394
    %7465 = vmatprep.subr.mxu0 0.0
    %7466 = vmatpush2.msra.mxu0 %v7393
    %7467 = vmatprep.subr.mxu0 0.0
    %7468 = vmatpush2.msra.mxu0 %v7392
    %7469 = vmatprep.subr.mxu0 0.0
    %7470 = vmatpush2.msra.mxu0 %v7391
    %7471 = vmatprep.mubr.f32.mxu0 %v7372
    %7472 = vmatmul.mubr.f32.gmra.mxu0 %v7371
    %v7473 = vpop.f32.mrf.mxu0
    %v7474 = vadd.f32 0.0, %v7473
    %v7475 = vpop.f32.mrf.mxu0
    %7476 = vmatprep.mubr.f32.mxu0 %v7374
    %7477 = vmatmul.mubr.f32.gmra.mxu0 %v7373
    %v7478 = vpop.f32.mrf.mxu0
    %v7479 = vadd.f32 0.0, %v7478
    %v7480 = vpop.f32.mrf.mxu0
    %7481 = vdwg.mxu0
    %v7482 = vld [vmem:[%s16] sm:$0x3]
    %v7483 = vld [vmem:[%s17] sm:$0x1]
    %v7485 = vlaneseq
    %v7486 = vshrl.u32 %v7485, 7
    %v7487 = vsub.s32 0, %v7486
    %v7488 = vrot.slane %v7483, %v7487
    %vm7490 = vcmask 130048
    %v7492 = vsel %vm7490, %v7482, 0
    %7494 = vmatprep.subr.mxu0 0.0
    %7495 = vmatpush1.msra.mxu0 0.0
    %7496 = vmatprep.subr.mxu0 0.0
    %7497 = vmatpush1.msra.mxu0 0.0
    %7498 = vmatprep.subr.mxu0 0.0
    %7499 = vmatpush1.msra.mxu0 0.0
    %7500 = vmatprep.subr.mxu0 0.0
    %7501 = vmatpush1.msra.mxu0 0.0
    %7502 = vmatprep.subr.mxu0 0.0
    %7503 = vmatpush1.msra.mxu0 0.0
    %7504 = vmatprep.subr.mxu0 0.0
    %7505 = vmatpush1.msra.mxu0 0.0
    %7506 = vmatprep.subr.mxu0 0.0
    %7507 = vmatpush1.msra.mxu0 0.0
    %7508 = vmatprep.subr.mxu0 0.0
    %7509 = vmatpush1.msra.mxu0 0.0
    %7510 = vmatprep.subr.mxu0 0.0
    %7511 = vmatpush1.msra.mxu0 0.0
    %7512 = vmatprep.subr.mxu0 0.0
    %7513 = vmatpush1.msra.mxu0 0.0
    %7514 = vmatprep.subr.mxu0 0.0
    %7515 = vmatpush1.msra.mxu0 0.0
    %7516 = vmatprep.subr.mxu0 0.0
    %7517 = vmatpush1.msra.mxu0 0.0
    %7518 = vmatprep.subr.mxu0 0.0
    %7519 = vmatpush1.msra.mxu0 0.0
    %7520 = vmatprep.subr.mxu0 0.0
    %7521 = vmatpush1.msra.mxu0 0.0
    %7522 = vmatprep.subr.mxu0 0.0
    %7523 = vmatpush1.msra.mxu0 %v7479
    %7524 = vmatprep.subr.mxu0 0.0
    %7525 = vmatpush1.msra.mxu0 %v7474
    %7526 = vmatprep.subr.mxu0 0.0
    %7527 = vmatpush2.msra.mxu0 0.0
    %7528 = vmatprep.subr.mxu0 0.0
    %7529 = vmatpush2.msra.mxu0 0.0
    %7530 = vmatprep.subr.mxu0 0.0
    %7531 = vmatpush2.msra.mxu0 0.0
    %7532 = vmatprep.subr.mxu0 0.0
    %7533 = vmatpush2.msra.mxu0 0.0
    %7534 = vmatprep.subr.mxu0 0.0
    %7535 = vmatpush2.msra.mxu0 0.0
    %7536 = vmatprep.subr.mxu0 0.0
    %7537 = vmatpush2.msra.mxu0 0.0
    %7538 = vmatprep.subr.mxu0 0.0
    %7539 = vmatpush2.msra.mxu0 0.0
    %7540 = vmatprep.subr.mxu0 0.0
    %7541 = vmatpush2.msra.mxu0 0.0
    %7542 = vmatprep.subr.mxu0 0.0
    %7543 = vmatpush2.msra.mxu0 0.0
    %7544 = vmatprep.subr.mxu0 0.0
    %7545 = vmatpush2.msra.mxu0 0.0
    %7546 = vmatprep.subr.mxu0 0.0
    %7547 = vmatpush2.msra.mxu0 0.0
    %7548 = vmatprep.subr.mxu0 0.0
    %7549 = vmatpush2.msra.mxu0 0.0
    %7550 = vmatprep.subr.mxu0 0.0
    %7551 = vmatpush2.msra.mxu0 0.0
    %7552 = vmatprep.subr.mxu0 0.0
    %7553 = vmatpush2.msra.mxu0 0.0
    %7554 = vmatprep.subr.mxu0 0.0
    %7555 = vmatpush2.msra.mxu0 0.0
    %7556 = vmatprep.subr.mxu0 0.0
    %7557 = vmatpush2.msra.mxu0 0.0
    %7558 = vmatprep.mubr.f32.mxu0 0.0
    %7559 = vmatmul.mubr.f32.gmra.mxu0 %v7492
    %v7560 = vpop.f32.mrf.mxu0
    %v7561 = vadd.f32 %v7488, %v7560
    %v7562 = vpop.f32.mrf.mxu0
    %7563 = vdwg.mxu0
    %v7564 = vmax.f32 %v7561, 0.0
    %v7565 = vpack.c.bf16 %v7564, %v7564
    %v7566 = vld [vmem:[%s18] sm:$0xf]
    %v7567 = vld [vmem:[%s18 + $0x4] sm:$0xf]
    %v7568 = vld [vmem:[%s18 + $0x8] sm:$0xf]
    %v7569 = vld [vmem:[%s18 + $0xc] sm:$0xf]
    %v7570 = vld [vmem:[%s19] sm:$0x1]
    %v7572 = vlaneseq
    %v7573 = vshrl.u32 %v7572, 7
    %v7574 = vsub.s32 0, %v7573
    %v7575 = vrot.slane %v7570, %v7574
    %v7581 = vunpack.c.l.b16 %v7566
    %v7582 = vunpack.c.l.b16 %v7567
    %v7583 = vunpack.c.l.b16 %v7568
    %v7584 = vunpack.c.l.b16 %v7569
    %v7585 = vpack.c.b16 %v7582, %v7581
    %v7586 = vpack.c.b16 %v7584, %v7583
    %vm7589 = vcmask 261120
    %v7591 = vsel %vm7589, %v7565, 0
    %7593 = vmatprep.subr.bf16.mxu0 0
    %7594 = vmatpush1.bf16.msra.mxu0 0
    %7595 = vmatprep.subr.bf16.mxu0 0
    %7596 = vmatpush1.bf16.msra.mxu0 0
    %7597 = vmatprep.subr.bf16.mxu0 0
    %7598 = vmatpush1.bf16.msra.mxu0 0
    %7599 = vmatprep.subr.bf16.mxu0 0
    %7600 = vmatpush1.bf16.msra.mxu0 0
    %7601 = vmatprep.subr.bf16.mxu0 0
    %7602 = vmatpush1.bf16.msra.mxu0 0
    %7603 = vmatprep.subr.bf16.mxu0 0
    %7604 = vmatpush1.bf16.msra.mxu0 0
    %7605 = vmatprep.subr.bf16.mxu0 0
    %7606 = vmatpush1.bf16.msra.mxu0 %v7586
    %7607 = vmatprep.subr.bf16.mxu0 0
    %7608 = vmatpush1.bf16.msra.mxu0 %v7585
    %7609 = vmatprep.subr.bf16.mxu0 0
    %7610 = vmatpush2.bf16.msra.mxu0 0
    %7611 = vmatprep.subr.bf16.mxu0 0
    %7612 = vmatpush2.bf16.msra.mxu0 0
    %7613 = vmatprep.subr.bf16.mxu0 0
    %7614 = vmatpush2.bf16.msra.mxu0 0
    %7615 = vmatprep.subr.bf16.mxu0 0
    %7616 = vmatpush2.bf16.msra.mxu0 0
    %7617 = vmatprep.subr.bf16.mxu0 0
    %7618 = vmatpush2.bf16.msra.mxu0 0
    %7619 = vmatprep.subr.bf16.mxu0 0
    %7620 = vmatpush2.bf16.msra.mxu0 0
    %7621 = vmatprep.subr.bf16.mxu0 0
    %7622 = vmatpush2.bf16.msra.mxu0 0
    %7623 = vmatprep.subr.bf16.mxu0 0
    %7624 = vmatpush2.bf16.msra.mxu0 0
    %7625 = vmatprep.mubr.bf16.mxu0 0
    %7626 = vmatmul.mubr.bf16.gmra.mxu0 %v7591
    %v7627 = vpop.f32.mrf.mxu0
    %v7628 = vadd.f32 %v7575, %v7627
    %v7629 = vpop.f32.mrf.mxu0
    %v7630 = vpop.f32.mrf.mxu0
    %v7631 = vpop.f32.mrf.mxu0
    %7632 = vdwg.mxu0
    %vm7633 = vcmask 254976
    %v7634 = vsel %vm7633, %v7628, 0.0
    %7635 = vadd.xlane.f32.xlu0 %v7634
    %v7636 = vpop.xlane.xlu0 %7635
    %v7637 = vrcp.pop 32.0
    %v7638 = vmul.f32 %v7636, %v7637
    %v7639 = vsub.f32 %v7628, %v7638
    %v7640 = vmul.f32 %v7639, %v7639
    %v7641 = vsel %vm7633, %v7640, 0.0
    %7642 = vadd.xlane.f32.xlu0 %v7641
    %v7643 = vpop.xlane.xlu0 %7642
    %v7644 = vmul.f32 %v7643, %v7637
    %v7645 = vadd.f32 %v7644, 1e-05
    %v7646 = vrsqrt.pop %v7645
    %v7647 = vmul.f32 %v7639, %v7646
    %v7648 = vld [vmem:[%s20] sm:$0x1]
    %v7650 = vlaneseq
    %v7651 = vshrl.u32 %v7650, 7
    %v7652 = vsub.s32 0, %v7651
    %v7653 = vrot.slane %v7648, %v7652
    %v7655 = vmul.f32 %v7647, %v7653
    %v7656 = vld [vmem:[%s21] sm:$0x1]
    %v7658 = vlaneseq
    %v7659 = vshrl.u32 %v7658, 7
    %v7660 = vsub.s32 0, %v7659
    %v7661 = vrot.slane %v7656, %v7660
    %v7663 = vadd.f32 %v7655, %v7661
    %v7664 = vmax.f32 %v7663, 0.0
    %v7665 = vpack.c.bf16 %v7664, %v7664
    %v7666 = vld [vmem:[%s22] sm:$0xf]
    %v7667 = vld [vmem:[%s22 + $0x4] sm:$0xf]
    %v7668 = vld [vmem:[%s22 + $0x8] sm:$0xf]
    %v7669 = vld [vmem:[%s22 + $0xc] sm:$0xf]
    %v7670 = vld [vmem:[%s23] sm:$0x1]
    %v7672 = vlaneseq
    %v7673 = vshrl.u32 %v7672, 7
    %v7674 = vsub.s32 0, %v7673
    %v7675 = vrot.slane %v7670, %v7674
    %v7681 = vunpack.c.l.b16 %v7666
    %v7682 = vunpack.c.l.b16 %v7667
    %v7683 = vunpack.c.l.b16 %v7668
    %v7684 = vunpack.c.l.b16 %v7669
    %v7685 = vpack.c.b16 %v7682, %v7681
    %v7686 = vpack.c.b16 %v7684, %v7683
    %v7690 = vsel %vm7589, %v7665, 0
    %7692 = vmatprep.subr.bf16.mxu0 0
    %7693 = vmatpush1.bf16.msra.mxu0 0
    %7694 = vmatprep.subr.bf16.mxu0 0
    %7695 = vmatpush1.bf16.msra.mxu0 0
    %7696 = vmatprep.subr.bf16.mxu0 0
    %7697 = vmatpush1.bf16.msra.mxu0 0
    %7698 = vmatprep.subr.bf16.mxu0 0
    %7699 = vmatpush1.bf16.msra.mxu0 0
    %7700 = vmatprep.subr.bf16.mxu0 0
    %7701 = vmatpush1.bf16.msra.mxu0 0
    %7702 = vmatprep.subr.bf16.mxu0 0
    %7703 = vmatpush1.bf16.msra.mxu0 0
    %7704 = vmatprep.subr.bf16.mxu0 0
    %7705 = vmatpush1.bf16.msra.mxu0 %v7686
    %7706 = vmatprep.subr.bf16.mxu0 0
    %7707 = vmatpush1.bf16.msra.mxu0 %v7685
    %7708 = vmatprep.subr.bf16.mxu0 0
    %7709 = vmatpush2.bf16.msra.mxu0 0
    %7710 = vmatprep.subr.bf16.mxu0 0
    %7711 = vmatpush2.bf16.msra.mxu0 0
    %7712 = vmatprep.subr.bf16.mxu0 0
    %7713 = vmatpush2.bf16.msra.mxu0 0
    %7714 = vmatprep.subr.bf16.mxu0 0
    %7715 = vmatpush2.bf16.msra.mxu0 0
    %7716 = vmatprep.subr.bf16.mxu0 0
    %7717 = vmatpush2.bf16.msra.mxu0 0
    %7718 = vmatprep.subr.bf16.mxu0 0
    %7719 = vmatpush2.bf16.msra.mxu0 0
    %7720 = vmatprep.subr.bf16.mxu0 0
    %7721 = vmatpush2.bf16.msra.mxu0 0
    %7722 = vmatprep.subr.bf16.mxu0 0
    %7723 = vmatpush2.bf16.msra.mxu0 0
    %7724 = vmatprep.mubr.bf16.mxu0 0
    %7725 = vmatmul.mubr.bf16.gmra.mxu0 %v7690
    %v7726 = vpop.f32.mrf.mxu0
    %v7727 = vadd.f32 %v7675, %v7726
    %v7728 = vpop.f32.mrf.mxu0
    %v7729 = vpop.f32.mrf.mxu0
    %v7730 = vpop.f32.mrf.mxu0
    %7731 = vdwg.mxu0
    %v7732 = vxor.u32 %v7727, 2147483648
    %v7733 = vmul.f32 %v7732, 1.442695
    %v7734 = vpow.pop %v7733
    %v7735 = vadd.f32 %v7734, 1.0
    %v7736 = vrcp.pop %v7735
    %v7737 = vmul.f32 1.0, %v7736
    %vm7738 = vcmask 58368
    %7739 = vst.msk [vmem:[#allocation4] sm:$0x3] %vm7738, %v7737
    // Predicated region
    $region98: #{obj_learner_forward.1} parent=1 // pred_check
      _
    $region99: #{obj_learner_forward.1} parent=1 // pred_check_branch
      %7741 = sbr.rel (0) target = $region101
    $region100: #{obj_learner_forward.1} parent=1 // pred_region
      %s7743 = ssub.s32 32, 32
      %7744 = vsyncadd [#allocation5], %s7743
      %s7746 = sshll.u32 [#allocation4], 4
      %s7747 = int_to_ptr.vmem [resolvable:$true] %s7746
      %7749 = dma.vmem_to_hbm [thread:$0]  %s7747, 32, %s24, [#allocation5]
    $region101: #{obj_learner_forward.1} parent=1 // pred_fallthru
      _
    // Predicated region
    $region102: #{obj_learner_forward.1} parent=1 // pred_check
      _
    $region103: #{obj_learner_forward.1} parent=1 // pred_check_branch
      %7751 = sbr.rel (0) target = $region105
    $region104: #{obj_learner_forward.1} parent=1 // pred_region
      %7752 = dma.done [#allocation5], 32
    $region105: #{obj_learner_forward.1} parent=1 // pred_fallthru
      _
    %7753 = vsyncpa [#allocation5], 1

</llo_original>
